<compile_context>
chip_gen: v7x
topology: tpu7x:2x2x1
jax: 0.10.0
libtpu: 0.0.40
codegen_flags: <defaults>
</compile_context>

<pallas_src>
import functools
import numpy as np
import jax
import jax.numpy as jnp
from jax.experimental import pallas as pl
from jax.experimental.pallas import tpu as pltpu


# ------------------------------------------------------------------ fused kernel

def _dlrm_fused_kernel(idx_ref, dense_ref, bd_ref, ri_ref, rj_ref, ss_ref, *refs,
                       n_bot, n_top, n_idx, vocab,
                       sigmoid_bot, sigmoid_top, loss_threshold):
    # refs = [bot_w0, bot_b0, ..., top_w0, top_b0, ..., out_ref]
    n_w = 2 * (n_bot + n_top)
    w_refs = refs[:n_w]
    out_ref = refs[n_w]

    # -------- bottom MLP (bf16 MXU inputs, f32 accumulation, f32 VPU math) ----
    x = dense_ref[...]
    for li in range(n_bot):
        w = w_refs[2 * li][...]
        b = w_refs[2 * li + 1][...]
        z = jnp.dot(x.astype(jnp.bfloat16), w,
                    preferred_element_type=jnp.float32) + b
        x = jax.nn.sigmoid(z) if li == sigmoid_bot else jnp.maximum(z, 0.0)

    # -------- EmbeddingBag(mode='sum'): one-hot counts + block-diag matmul ----
    # counts[b, v] = #times stacked-table row v appears in sample b's bags
    # emb = counts @ blockdiag  -> per-table bag sums laid out (TB, n_tables*d)
    idx = idx_ref[...]                                        # (TB, n_tables*L) i32
    iota_v = jax.lax.broadcasted_iota(jnp.int32, (1, vocab), 1)
    counts = jnp.zeros((idx.shape[0], vocab), jnp.float32)
    for j in range(n_idx):                                    # n_tables*L compares
        counts = counts + (idx[:, j:j + 1] == iota_v).astype(jnp.float32)
    emb = jnp.dot(counts.astype(jnp.bfloat16), bd_ref[...],
                  preferred_element_type=jnp.float32)         # (TB, n_tables*d)

    # -------- 'dot' interaction: 0/1 replication + selector matmuls (bf16) ----
    feats = jnp.concatenate([x, emb], axis=1).astype(jnp.bfloat16)   # (TB, F*d)
    blk_i = jnp.dot(feats, ri_ref[...], preferred_element_type=jnp.float32)
    blk_j = jnp.dot(feats, rj_ref[...], preferred_element_type=jnp.float32)
    prod = (blk_i * blk_j).astype(jnp.bfloat16)                      # (TB, P*d)
    zflat = jnp.dot(prod, ss_ref[...],
                    preferred_element_type=jnp.float32)              # (TB, P)
    r = jnp.concatenate([x, zflat], axis=1)                          # (TB, d+P)

    # -------- top MLP --------
    for li in range(n_top):
        w = w_refs[2 * (n_bot + li)][...]
        b = w_refs[2 * (n_bot + li) + 1][...]
        z = jnp.dot(r.astype(jnp.bfloat16), w,
                    preferred_element_type=jnp.float32) + b
        r = jax.nn.sigmoid(z) if li == sigmoid_top else jnp.maximum(z, 0.0)

    if 0.0 < loss_threshold < 1.0:
        r = jnp.clip(r, loss_threshold, 1.0 - loss_threshold)
    out_ref[...] = r.astype(out_ref.dtype)


def _pick_batch_tile(B):
    # Fill the MXU's M dimension (256 rows on v6e/v7x, 128 on v5e) while keeping
    # >=2 grid steps so pipelining / megacore sharding still have work.
    for tb in (256, 128, 64, 32, 16, 8):
        if B % tb == 0 and B // tb >= 2:
            return tb
    for tb in (256, 128, 64, 32, 16, 8):
        if B % tb == 0:
            return tb
    return B


# ------------------------------------------------------------------ model wrapper

class DLRMNetPallas:
    """Pallas re-implementation of DLRM_Net.sequential_forward ('dot' interaction)."""

    MAX_ONEHOT_VOCAB = 4096   # one-hot MXU EmbeddingBag path only for small vocab

    def __init__(self, m_spa, ln_emb, ln_bot, ln_top,
                 sigmoid_bot=-1, sigmoid_top=-1, loss_threshold=0.0, seed=0):
        self.m_spa = int(m_spa)
        self.ln_emb = [int(n) for n in ln_emb]
        self.n_tables = len(self.ln_emb)
        self.sigmoid_bot = sigmoid_bot
        self.sigmoid_top = sigmoid_top
        self.loss_threshold = float(loss_threshold)
        rng = np.random.RandomState(seed)

        def make_mlp(ln):
            layers = []
            for i in range(ln.size - 1):
                n, m = int(ln[i]), int(ln[i + 1])
                W = rng.normal(0.0, np.sqrt(2.0 / (m + n)), size=(m, n)).astype(np.float32)
                b = rng.normal(0.0, np.sqrt(1.0 / m), size=(m,)).astype(np.float32)
                # store transposed (n, m) in bf16 for the MXU; bias as (1, m) f32
                layers.append((jnp.asarray(W.T).astype(jnp.bfloat16),
                               jnp.asarray(b).reshape(1, m)))
            return layers

        self.bot_params = make_mlp(ln_bot)
        self.top_params = make_mlp(ln_top)

        # per-table embeddings (f32 copies for the reference) + row offsets
        d = self.m_spa
        tables_np, self.row_offsets, off = [], [], 0
        for n in self.ln_emb:
            lim = np.sqrt(1.0 / n)
            W = rng.uniform(low=-lim, high=lim, size=(n, d)).astype(np.float32)
            tables_np.append(W)
            self.row_offsets.append(off)
            off += n
        self.total_vocab = off
        self.tables_f32 = [jnp.asarray(W) for W in tables_np]

        # block-diagonal stacked table (vocab, n_tables*d): table k occupies
        # rows [off_k, off_k+n_k) x cols [k*d, (k+1)*d).  bf16 for the MXU.
        BD = np.zeros((self.total_vocab, self.n_tables * d), np.float32)
        for k in range(self.n_tables):
            o, n = self.row_offsets[k], self.ln_emb[k]
            BD[o:o + n, k * d:(k + 1) * d] = tables_np[k]
        self.blockdiag = jnp.asarray(BD).astype(jnp.bfloat16)

        # interaction constants: pair replication matrices and block-summing
        # selector, pair order = torch's (i, j<i), feature 0 = dense x.
        F = 1 + self.n_tables
        P = F * (F - 1) // 2
        Ri = np.zeros((F * d, P * d), np.float32)
        Rj = np.zeros((F * d, P * d), np.float32)
        S = np.zeros((P * d, P), np.float32)
        eye = np.eye(d, dtype=np.float32)
        p = 0
        for i in range(F):
            for j in range(i):               # arch_interaction_itself=False
                Ri[i * d:(i + 1) * d, p * d:(p + 1) * d] = eye
                Rj[j * d:(j + 1) * d, p * d:(p + 1) * d] = eye
                S[p * d:(p + 1) * d, p] = 1.0
                p += 1
        self.rep_i = jnp.asarray(Ri).astype(jnp.bfloat16)
        self.rep_j = jnp.asarray(Rj).astype(jnp.bfloat16)
        self.ssum = jnp.asarray(S).astype(jnp.bfloat16)
        self.num_feat, self.num_pairs = F, P

    # --------------------------------------------------------------- forward

    def forward(self, dense_x, lS_i):
        B, n_dense = dense_x.shape
        L = lS_i[0].shape[1]
        J = self.n_tables * L
        V = self.total_vocab
        TB = _pick_batch_tile(B)
        grid = (B // TB,)

        if V > self.MAX_ONEHOT_VOCAB:
            # TODO(synk): large-vocab path -> HBM-resident table (pl.ANY) with
            # per-bag make_async_copy double-buffered row DMA.
            raise NotImplementedError("vocab too large for VMEM one-hot path")

        # glue: add per-table row offsets, keep indices as a (B, J) int32 VMEM input
        idx = jnp.concatenate(
            [lS_i[k] + self.row_offsets[k] for k in range(self.n_tables)], axis=1
        ).astype(jnp.int32)                                        # (B, J)

        flat_params = []
        for (w, b) in self.bot_params + self.top_params:
            flat_params += [w, b]
        const_arrays = [self.blockdiag, self.rep_i, self.rep_j, self.ssum] + flat_params

        kernel = functools.partial(
            _dlrm_fused_kernel,
            n_bot=len(self.bot_params), n_top=len(self.top_params),
            n_idx=J, vocab=V,
            sigmoid_bot=self.sigmoid_bot, sigmoid_top=self.sigmoid_top,
            loss_threshold=self.loss_threshold)

        def build_and_run(single_buffer):
            def const_spec(shape):
                imap = lambda i: tuple(0 for _ in shape)
                if single_buffer:
                    # grid-invariant input: no benefit from double-buffering
                    return pl.BlockSpec(shape, imap, pipeline_mode=pl.Buffered(1))
                return pl.BlockSpec(shape, imap)

            in_specs = (
                [pl.BlockSpec((TB, J), lambda i: (i, 0)),          # index tile
                 pl.BlockSpec((TB, n_dense), lambda i: (i, 0))]    # dense tile
                + [const_spec(a.shape) for a in const_arrays])

            grid_spec = pltpu.PrefetchScalarGridSpec(
                num_scalar_prefetch=0, grid=grid,
                in_specs=in_specs,
                out_specs=pl.BlockSpec((TB, 1), lambda i: (i, 0)))

            fn = pl.pallas_call(
                kernel,
                out_shape=jax.ShapeDtypeStruct((B, 1), jnp.float32),
                grid_spec=grid_spec,
                compiler_params=pltpu.CompilerParams(
                    dimension_semantics=("parallel",)))
            return fn(idx, dense_x, *const_arrays)

        try:
            return build_and_run(True)
        except Exception:
            # pipeline_mode=pl.Buffered(1) not accepted by this jax build's
            # pallas_call pipeline -> fall back to default buffering (tiny constants).
            return build_and_run(False)

    # ------------------------------------------------- plain-JAX reference

    def reference_forward(self, dense_x, lS_i):
        x = dense_x
        for i, (w, b) in enumerate(self.bot_params):
            z = jnp.dot(x.astype(jnp.bfloat16), w, preferred_element_type=jnp.float32) + b
            x = jax.nn.sigmoid(z) if i == self.sigmoid_bot else jnp.maximum(z, 0.0)
        ly = [jnp.sum(self.tables_f32[k][lS_i[k]], axis=1) for k in range(self.n_tables)]
        feats = [x] + ly
        cols = []
        for i in range(len(feats)):
            for j in range(i):
                cols.append(jnp.sum(feats[i] * feats[j], axis=1, keepdims=True))
        r = jnp.concatenate([x] + cols, axis=1)
        for i, (w, b) in enumerate(self.top_params):
            z = jnp.dot(r.astype(jnp.bfloat16), w, preferred_element_type=jnp.float32) + b
            r = jax.nn.sigmoid(z) if i == self.sigmoid_top else jnp.maximum(z, 0.0)
        if 0.0 < self.loss_threshold < 1.0:
            r = jnp.clip(r, self.loss_threshold, 1.0 - self.loss_threshold)
        return r


# ------------------------------------------------------------------ main

if __name__ == "__main__":
    # Small DLRM configuration (consistent with the module's shape contract).
    B = 256               # batch (tiled into TB=128 rows -> grid=(2,), "parallel")
    L = 4                 # indices per embedding bag (fixed offsets = arange(B)*L)
    m_spa = 16            # sparse feature (embedding) dim == bottom-MLP output dim
    ln_emb = np.array([60, 80, 100])              # 3 embedding tables
    ln_bot = np.array([13, 64, m_spa])            # bottom MLP
    num_fea = 1 + ln_emb.size                     # dense + sparse features
    num_int = m_spa + num_fea * (num_fea - 1) // 2
    ln_top = np.array([num_int, 32, 1])           # top MLP, sigmoid on last layer

    model = DLRMNetPallas(
        m_spa=m_spa, ln_emb=ln_emb, ln_bot=ln_bot, ln_top=ln_top,
        sigmoid_bot=-1, sigmoid_top=ln_top.size - 2, loss_threshold=0.0, seed=0)

    key = jax.random.PRNGKey(0)
    k_dense, *k_idx = jax.random.split(key, 1 + ln_emb.size)
    dense_x = jax.random.normal(k_dense, (B, int(ln_bot[0])), dtype=jnp.float32)
    lS_i = [jax.random.randint(k_idx[t], (B, L), 0, int(ln_emb[t]), dtype=jnp.int32)
            for t in range(ln_emb.size)]

    out = model.forward(dense_x, lS_i)
    out = jax.block_until_ready(out)
    assert out.shape == (B, 1) and out.dtype == jnp.float32
    assert bool(jnp.all(jnp.isfinite(out)))

    ref = jax.block_until_ready(model.reference_forward(dense_x, lS_i))
    assert bool(jnp.allclose(out, ref, atol=2e-2, rtol=0.0)), "mismatch vs JAX reference"
    print("KERNEL_OK")
</pallas_src>

<mosaic_0001>
module attributes {stable_mosaic.version = 11 : i64} {
  func.func @_dlrm_fused_kernel(%arg0: i32, %arg1: memref<128x12xi32, #tpu.memory_space<vmem>>, %arg2: memref<128x13xf32, #tpu.memory_space<vmem>>, %arg3: memref<240x48xbf16, #tpu.memory_space<vmem>>, %arg4: memref<64x96xbf16, #tpu.memory_space<vmem>>, %arg5: memref<64x96xbf16, #tpu.memory_space<vmem>>, %arg6: memref<96x6xbf16, #tpu.memory_space<vmem>>, %arg7: memref<13x64xbf16, #tpu.memory_space<vmem>>, %arg8: memref<1x64xf32, #tpu.memory_space<vmem>>, %arg9: memref<64x16xbf16, #tpu.memory_space<vmem>>, %arg10: memref<1x16xf32, #tpu.memory_space<vmem>>, %arg11: memref<22x32xbf16, #tpu.memory_space<vmem>>, %arg12: memref<1x32xf32, #tpu.memory_space<vmem>>, %arg13: memref<32x1xbf16, #tpu.memory_space<vmem>>, %arg14: memref<1x1xf32, #tpu.memory_space<vmem>>, %arg15: memref<128x1xf32, #tpu.memory_space<vmem>>) attributes {dimension_semantics = [#tpu.dimension_semantics<parallel>], iteration_bounds = array<i64: 2>, scalar_prefetch = 0 : i64, scratch_operands = 0 : i64, tpu.core_type = #tpu.core_type<tc>, window_params = [{transform_indices = @transform_0, window_bounds = array<i64: 128, 12>}, {transform_indices = @transform_1, window_bounds = array<i64: 128, 13>}, {pipeline_mode = #tpu.pipeline_mode<synchronous>, transform_indices = @transform_2, window_bounds = array<i64: 240, 48>}, {pipeline_mode = #tpu.pipeline_mode<synchronous>, transform_indices = @transform_3, window_bounds = array<i64: 64, 96>}, {pipeline_mode = #tpu.pipeline_mode<synchronous>, transform_indices = @transform_4, window_bounds = array<i64: 64, 96>}, {pipeline_mode = #tpu.pipeline_mode<synchronous>, transform_indices = @transform_5, window_bounds = array<i64: 96, 6>}, {pipeline_mode = #tpu.pipeline_mode<synchronous>, transform_indices = @transform_6, window_bounds = array<i64: 13, 64>}, {pipeline_mode = #tpu.pipeline_mode<synchronous>, transform_indices = @transform_7, window_bounds = array<i64: 1, 64>}, {pipeline_mode = #tpu.pipeline_mode<synchronous>, transform_indices = @transform_8, window_bounds = array<i64: 64, 16>}, {pipeline_mode = #tpu.pipeline_mode<synchronous>, transform_indices = @transform_9, window_bounds = array<i64: 1, 16>}, {pipeline_mode = #tpu.pipeline_mode<synchronous>, transform_indices = @transform_10, window_bounds = array<i64: 22, 32>}, {pipeline_mode = #tpu.pipeline_mode<synchronous>, transform_indices = @transform_11, window_bounds = array<i64: 1, 32>}, {pipeline_mode = #tpu.pipeline_mode<synchronous>, transform_indices = @transform_12, window_bounds = array<i64: 32, 1>}, {pipeline_mode = #tpu.pipeline_mode<synchronous>, transform_indices = @transform_13, window_bounds = array<i64: 1, 1>}, {transform_indices = @transform_14, window_bounds = array<i64: 128, 1>}]} {
    %c0 = arith.constant 0 : index
    %c0_0 = arith.constant 0 : index
    %0 = vector.load %arg2[%c0, %c0_0] : memref<128x13xf32, #tpu.memory_space<vmem>>, vector<128x13xf32>
    %c0_1 = arith.constant 0 : index
    %c0_2 = arith.constant 0 : index
    %1 = vector.load %arg7[%c0_1, %c0_2] : memref<13x64xbf16, #tpu.memory_space<vmem>>, vector<13x64xbf16>
    %c0_3 = arith.constant 0 : index
    %c0_4 = arith.constant 0 : index
    %2 = vector.load %arg8[%c0_3, %c0_4] : memref<1x64xf32, #tpu.memory_space<vmem>>, vector<1x64xf32>
    %3 = arith.truncf %0 : vector<128x13xf32> to vector<128x13xbf16>
    %cst = arith.constant dense<0.000000e+00> : vector<128x64xf32>
    %4 = tpu.matmul %3, %1, %cst {dimension_numbers = #tpu.dot_dimension_numbers<[1], [0], [0], [1], [0, 0, 1, 1], [], []>} : vector<128x13xbf16>, vector<13x64xbf16>, vector<128x64xf32> -> vector<128x64xf32>
    %5 = vector.broadcast %2 : vector<1x64xf32> to vector<128x64xf32>
    %6 = arith.addf %4, %5 : vector<128x64xf32>
    %cst_5 = arith.constant 0.000000e+00 : f32
    %7 = vector.broadcast %cst_5 : f32 to vector<128x64xf32>
    %8 = arith.maximumf %6, %7 : vector<128x64xf32>
    %c0_6 = arith.constant 0 : index
    %c0_7 = arith.constant 0 : index
    %9 = vector.load %arg9[%c0_6, %c0_7] : memref<64x16xbf16, #tpu.memory_space<vmem>>, vector<64x16xbf16>
    %c0_8 = arith.constant 0 : index
    %c0_9 = arith.constant 0 : index
    %10 = vector.load %arg10[%c0_8, %c0_9] : memref<1x16xf32, #tpu.memory_space<vmem>>, vector<1x16xf32>
    %11 = arith.truncf %8 : vector<128x64xf32> to vector<128x64xbf16>
    %cst_10 = arith.constant dense<0.000000e+00> : vector<128x16xf32>
    %12 = tpu.matmul %11, %9, %cst_10 {dimension_numbers = #tpu.dot_dimension_numbers<[1], [0], [0], [1], [0, 0, 1, 1], [], []>} : vector<128x64xbf16>, vector<64x16xbf16>, vector<128x16xf32> -> vector<128x16xf32>
    %13 = vector.broadcast %10 : vector<1x16xf32> to vector<128x16xf32>
    %14 = arith.addf %12, %13 : vector<128x16xf32>
    %cst_11 = arith.constant 0.000000e+00 : f32
    %15 = vector.broadcast %cst_11 : f32 to vector<128x16xf32>
    %16 = arith.maximumf %14, %15 : vector<128x16xf32>
    %c0_12 = arith.constant 0 : index
    %c0_13 = arith.constant 0 : index
    %17 = vector.load %arg1[%c0_12, %c0_13] : memref<128x12xi32, #tpu.memory_space<vmem>>, vector<128x12xi32>
    %18 = tpu.iota {dimensions = array<i32: 1>} : vector<1x240xi32>
    %cst_14 = arith.constant 0.000000e+00 : f32
    %19 = vector.broadcast %cst_14 : f32 to vector<128x240xf32>
    %20 = vector.extract_strided_slice %17 {offsets = [0, 0], sizes = [128, 1], strides = [1, 1]} : vector<128x12xi32> to vector<128x1xi32>
    %21 = vector.broadcast %20 : vector<128x1xi32> to vector<128x240xi32>
    %22 = vector.broadcast %18 : vector<1x240xi32> to vector<128x240xi32>
    %23 = arith.cmpi eq, %21, %22 : vector<128x240xi32>
    %24 = arith.extui %23 : vector<128x240xi1> to vector<128x240xi32>
    %25 = arith.sitofp %24 : vector<128x240xi32> to vector<128x240xf32>
    %26 = arith.addf %19, %25 : vector<128x240xf32>
    %27 = vector.extract_strided_slice %17 {offsets = [0, 1], sizes = [128, 1], strides = [1, 1]} : vector<128x12xi32> to vector<128x1xi32>
    %28 = vector.broadcast %27 : vector<128x1xi32> to vector<128x240xi32>
    %29 = vector.broadcast %18 : vector<1x240xi32> to vector<128x240xi32>
    %30 = arith.cmpi eq, %28, %29 : vector<128x240xi32>
    %31 = arith.extui %30 : vector<128x240xi1> to vector<128x240xi32>
    %32 = arith.sitofp %31 : vector<128x240xi32> to vector<128x240xf32>
    %33 = arith.addf %26, %32 : vector<128x240xf32>
    %34 = vector.extract_strided_slice %17 {offsets = [0, 2], sizes = [128, 1], strides = [1, 1]} : vector<128x12xi32> to vector<128x1xi32>
    %35 = vector.broadcast %34 : vector<128x1xi32> to vector<128x240xi32>
    %36 = vector.broadcast %18 : vector<1x240xi32> to vector<128x240xi32>
    %37 = arith.cmpi eq, %35, %36 : vector<128x240xi32>
    %38 = arith.extui %37 : vector<128x240xi1> to vector<128x240xi32>
    %39 = arith.sitofp %38 : vector<128x240xi32> to vector<128x240xf32>
    %40 = arith.addf %33, %39 : vector<128x240xf32>
    %41 = vector.extract_strided_slice %17 {offsets = [0, 3], sizes = [128, 1], strides = [1, 1]} : vector<128x12xi32> to vector<128x1xi32>
    %42 = vector.broadcast %41 : vector<128x1xi32> to vector<128x240xi32>
    %43 = vector.broadcast %18 : vector<1x240xi32> to vector<128x240xi32>
    %44 = arith.cmpi eq, %42, %43 : vector<128x240xi32>
    %45 = arith.extui %44 : vector<128x240xi1> to vector<128x240xi32>
    %46 = arith.sitofp %45 : vector<128x240xi32> to vector<128x240xf32>
    %47 = arith.addf %40, %46 : vector<128x240xf32>
    %48 = vector.extract_strided_slice %17 {offsets = [0, 4], sizes = [128, 1], strides = [1, 1]} : vector<128x12xi32> to vector<128x1xi32>
    %49 = vector.broadcast %48 : vector<128x1xi32> to vector<128x240xi32>
    %50 = vector.broadcast %18 : vector<1x240xi32> to vector<128x240xi32>
    %51 = arith.cmpi eq, %49, %50 : vector<128x240xi32>
    %52 = arith.extui %51 : vector<128x240xi1> to vector<128x240xi32>
    %53 = arith.sitofp %52 : vector<128x240xi32> to vector<128x240xf32>
    %54 = arith.addf %47, %53 : vector<128x240xf32>
    %55 = vector.extract_strided_slice %17 {offsets = [0, 5], sizes = [128, 1], strides = [1, 1]} : vector<128x12xi32> to vector<128x1xi32>
    %56 = vector.broadcast %55 : vector<128x1xi32> to vector<128x240xi32>
    %57 = vector.broadcast %18 : vector<1x240xi32> to vector<128x240xi32>
    %58 = arith.cmpi eq, %56, %57 : vector<128x240xi32>
    %59 = arith.extui %58 : vector<128x240xi1> to vector<128x240xi32>
    %60 = arith.sitofp %59 : vector<128x240xi32> to vector<128x240xf32>
    %61 = arith.addf %54, %60 : vector<128x240xf32>
    %62 = vector.extract_strided_slice %17 {offsets = [0, 6], sizes = [128, 1], strides = [1, 1]} : vector<128x12xi32> to vector<128x1xi32>
    %63 = vector.broadcast %62 : vector<128x1xi32> to vector<128x240xi32>
    %64 = vector.broadcast %18 : vector<1x240xi32> to vector<128x240xi32>
    %65 = arith.cmpi eq, %63, %64 : vector<128x240xi32>
    %66 = arith.extui %65 : vector<128x240xi1> to vector<128x240xi32>
    %67 = arith.sitofp %66 : vector<128x240xi32> to vector<128x240xf32>
    %68 = arith.addf %61, %67 : vector<128x240xf32>
    %69 = vector.extract_strided_slice %17 {offsets = [0, 7], sizes = [128, 1], strides = [1, 1]} : vector<128x12xi32> to vector<128x1xi32>
    %70 = vector.broadcast %69 : vector<128x1xi32> to vector<128x240xi32>
    %71 = vector.broadcast %18 : vector<1x240xi32> to vector<128x240xi32>
    %72 = arith.cmpi eq, %70, %71 : vector<128x240xi32>
    %73 = arith.extui %72 : vector<128x240xi1> to vector<128x240xi32>
    %74 = arith.sitofp %73 : vector<128x240xi32> to vector<128x240xf32>
    %75 = arith.addf %68, %74 : vector<128x240xf32>
    %76 = vector.extract_strided_slice %17 {offsets = [0, 8], sizes = [128, 1], strides = [1, 1]} : vector<128x12xi32> to vector<128x1xi32>
    %77 = vector.broadcast %76 : vector<128x1xi32> to vector<128x240xi32>
    %78 = vector.broadcast %18 : vector<1x240xi32> to vector<128x240xi32>
    %79 = arith.cmpi eq, %77, %78 : vector<128x240xi32>
    %80 = arith.extui %79 : vector<128x240xi1> to vector<128x240xi32>
    %81 = arith.sitofp %80 : vector<128x240xi32> to vector<128x240xf32>
    %82 = arith.addf %75, %81 : vector<128x240xf32>
    %83 = vector.extract_strided_slice %17 {offsets = [0, 9], sizes = [128, 1], strides = [1, 1]} : vector<128x12xi32> to vector<128x1xi32>
    %84 = vector.broadcast %83 : vector<128x1xi32> to vector<128x240xi32>
    %85 = vector.broadcast %18 : vector<1x240xi32> to vector<128x240xi32>
    %86 = arith.cmpi eq, %84, %85 : vector<128x240xi32>
    %87 = arith.extui %86 : vector<128x240xi1> to vector<128x240xi32>
    %88 = arith.sitofp %87 : vector<128x240xi32> to vector<128x240xf32>
    %89 = arith.addf %82, %88 : vector<128x240xf32>
    %90 = vector.extract_strided_slice %17 {offsets = [0, 10], sizes = [128, 1], strides = [1, 1]} : vector<128x12xi32> to vector<128x1xi32>
    %91 = vector.broadcast %90 : vector<128x1xi32> to vector<128x240xi32>
    %92 = vector.broadcast %18 : vector<1x240xi32> to vector<128x240xi32>
    %93 = arith.cmpi eq, %91, %92 : vector<128x240xi32>
    %94 = arith.extui %93 : vector<128x240xi1> to vector<128x240xi32>
    %95 = arith.sitofp %94 : vector<128x240xi32> to vector<128x240xf32>
    %96 = arith.addf %89, %95 : vector<128x240xf32>
    %97 = vector.extract_strided_slice %17 {offsets = [0, 11], sizes = [128, 1], strides = [1, 1]} : vector<128x12xi32> to vector<128x1xi32>
    %98 = vector.broadcast %97 : vector<128x1xi32> to vector<128x240xi32>
    %99 = vector.broadcast %18 : vector<1x240xi32> to vector<128x240xi32>
    %100 = arith.cmpi eq, %98, %99 : vector<128x240xi32>
    %101 = arith.extui %100 : vector<128x240xi1> to vector<128x240xi32>
    %102 = arith.sitofp %101 : vector<128x240xi32> to vector<128x240xf32>
    %103 = arith.addf %96, %102 : vector<128x240xf32>
    %104 = arith.truncf %103 : vector<128x240xf32> to vector<128x240xbf16>
    %c0_15 = arith.constant 0 : index
    %c0_16 = arith.constant 0 : index
    %105 = vector.load %arg3[%c0_15, %c0_16] : memref<240x48xbf16, #tpu.memory_space<vmem>>, vector<240x48xbf16>
    %cst_17 = arith.constant dense<0.000000e+00> : vector<128x48xf32>
    %106 = tpu.matmul %104, %105, %cst_17 {dimension_numbers = #tpu.dot_dimension_numbers<[1], [0], [0], [1], [0, 0, 1, 1], [], []>} : vector<128x240xbf16>, vector<240x48xbf16>, vector<128x48xf32> -> vector<128x48xf32>
    %107 = tpu.concatenate %16, %106 in 1 : vector<128x16xf32>, vector<128x48xf32> -> vector<128x64xf32>
    %108 = arith.truncf %107 : vector<128x64xf32> to vector<128x64xbf16>
    %c0_18 = arith.constant 0 : index
    %c0_19 = arith.constant 0 : index
    %109 = vector.load %arg4[%c0_18, %c0_19] : memref<64x96xbf16, #tpu.memory_space<vmem>>, vector<64x96xbf16>
    %cst_20 = arith.constant dense<0.000000e+00> : vector<128x96xf32>
    %110 = tpu.matmul %108, %109, %cst_20 {dimension_numbers = #tpu.dot_dimension_numbers<[1], [0], [0], [1], [0, 0, 1, 1], [], []>} : vector<128x64xbf16>, vector<64x96xbf16>, vector<128x96xf32> -> vector<128x96xf32>
    %c0_21 = arith.constant 0 : index
    %c0_22 = arith.constant 0 : index
    %111 = vector.load %arg5[%c0_21, %c0_22] : memref<64x96xbf16, #tpu.memory_space<vmem>>, vector<64x96xbf16>
    %cst_23 = arith.constant dense<0.000000e+00> : vector<128x96xf32>
    %112 = tpu.matmul %108, %111, %cst_23 {dimension_numbers = #tpu.dot_dimension_numbers<[1], [0], [0], [1], [0, 0, 1, 1], [], []>} : vector<128x64xbf16>, vector<64x96xbf16>, vector<128x96xf32> -> vector<128x96xf32>
    %113 = arith.mulf %110, %112 : vector<128x96xf32>
    %114 = arith.truncf %113 : vector<128x96xf32> to vector<128x96xbf16>
    %c0_24 = arith.constant 0 : index
    %c0_25 = arith.constant 0 : index
    %115 = vector.load %arg6[%c0_24, %c0_25] : memref<96x6xbf16, #tpu.memory_space<vmem>>, vector<96x6xbf16>
    %cst_26 = arith.constant dense<0.000000e+00> : vector<128x6xf32>
    %116 = tpu.matmul %114, %115, %cst_26 {dimension_numbers = #tpu.dot_dimension_numbers<[1], [0], [0], [1], [0, 0, 1, 1], [], []>} : vector<128x96xbf16>, vector<96x6xbf16>, vector<128x6xf32> -> vector<128x6xf32>
    %117 = tpu.concatenate %16, %116 in 1 : vector<128x16xf32>, vector<128x6xf32> -> vector<128x22xf32>
    %c0_27 = arith.constant 0 : index
    %c0_28 = arith.constant 0 : index
    %118 = vector.load %arg11[%c0_27, %c0_28] : memref<22x32xbf16, #tpu.memory_space<vmem>>, vector<22x32xbf16>
    %c0_29 = arith.constant 0 : index
    %c0_30 = arith.constant 0 : index
    %119 = vector.load %arg12[%c0_29, %c0_30] : memref<1x32xf32, #tpu.memory_space<vmem>>, vector<1x32xf32>
    %120 = arith.truncf %117 : vector<128x22xf32> to vector<128x22xbf16>
    %cst_31 = arith.constant dense<0.000000e+00> : vector<128x32xf32>
    %121 = tpu.matmul %120, %118, %cst_31 {dimension_numbers = #tpu.dot_dimension_numbers<[1], [0], [0], [1], [0, 0, 1, 1], [], []>} : vector<128x22xbf16>, vector<22x32xbf16>, vector<128x32xf32> -> vector<128x32xf32>
    %122 = vector.broadcast %119 : vector<1x32xf32> to vector<128x32xf32>
    %123 = arith.addf %121, %122 : vector<128x32xf32>
    %cst_32 = arith.constant 0.000000e+00 : f32
    %124 = vector.broadcast %cst_32 : f32 to vector<128x32xf32>
    %125 = arith.maximumf %123, %124 : vector<128x32xf32>
    %c0_33 = arith.constant 0 : index
    %c0_34 = arith.constant 0 : index
    %126 = vector.load %arg13[%c0_33, %c0_34] : memref<32x1xbf16, #tpu.memory_space<vmem>>, vector<32x1xbf16>
    %c0_35 = arith.constant 0 : index
    %c0_36 = arith.constant 0 : index
    %127 = vector.load %arg14[%c0_35, %c0_36] : memref<1x1xf32, #tpu.memory_space<vmem>>, vector<1x1xf32>
    %128 = arith.truncf %125 : vector<128x32xf32> to vector<128x32xbf16>
    %cst_37 = arith.constant dense<0.000000e+00> : vector<128x1xf32>
    %129 = tpu.matmul %128, %126, %cst_37 {dimension_numbers = #tpu.dot_dimension_numbers<[1], [0], [0], [1], [0, 0, 1, 1], [], []>} : vector<128x32xbf16>, vector<32x1xbf16>, vector<128x1xf32> -> vector<128x1xf32>
    %130 = vector.broadcast %127 : vector<1x1xf32> to vector<128x1xf32>
    %131 = arith.addf %129, %130 : vector<128x1xf32>
    %132 = arith.negf %131 : vector<128x1xf32>
    %133 = math.exp %132 : vector<128x1xf32>
    %cst_38 = arith.constant 1.000000e+00 : f32
    %134 = vector.broadcast %cst_38 : f32 to vector<128x1xf32>
    %135 = arith.addf %134, %133 : vector<128x1xf32>
    %136 = arith.divf %134, %135 : vector<128x1xf32>
    %c0_39 = arith.constant 0 : index
    %c0_40 = arith.constant 0 : index
    %137 = vector.load %arg15[%c0_39, %c0_40] : memref<128x1xf32, #tpu.memory_space<vmem>>, vector<128x1xf32>
    tpu.vector_store %arg15[%c0_39, %c0_40], %136 {strides = array<i32>} : memref<128x1xf32, #tpu.memory_space<vmem>>, vector<128x1xf32>,
    return
  }
  func.func @transform_0(%arg0: i32) -> (i32, i32) {
    %c0_i32 = arith.constant 0 : i32
    %c0_i32_0 = arith.constant 0 : i32
    return %arg0, %c0_i32 : i32, i32
  }
  func.func @transform_1(%arg0: i32) -> (i32, i32) {
    %c0_i32 = arith.constant 0 : i32
    %c0_i32_0 = arith.constant 0 : i32
    return %arg0, %c0_i32 : i32, i32
  }
  func.func @transform_2(%arg0: i32) -> (i32, i32) {
    %c0_i32 = arith.constant 0 : i32
    %c0_i32_0 = arith.constant 0 : i32
    %c0_i32_1 = arith.constant 0 : i32
    return %c0_i32, %c0_i32_0 : i32, i32
  }
  func.func @transform_3(%arg0: i32) -> (i32, i32) {
    %c0_i32 = arith.constant 0 : i32
    %c0_i32_0 = arith.constant 0 : i32
    %c0_i32_1 = arith.constant 0 : i32
    return %c0_i32, %c0_i32_0 : i32, i32
  }
  func.func @transform_4(%arg0: i32) -> (i32, i32) {
    %c0_i32 = arith.constant 0 : i32
    %c0_i32_0 = arith.constant 0 : i32
    %c0_i32_1 = arith.constant 0 : i32
    return %c0_i32, %c0_i32_0 : i32, i32
  }
  func.func @transform_5(%arg0: i32) -> (i32, i32) {
    %c0_i32 = arith.constant 0 : i32
    %c0_i32_0 = arith.constant 0 : i32
    %c0_i32_1 = arith.constant 0 : i32
    return %c0_i32, %c0_i32_0 : i32, i32
  }
  func.func @transform_6(%arg0: i32) -> (i32, i32) {
    %c0_i32 = arith.constant 0 : i32
    %c0_i32_0 = arith.constant 0 : i32
    %c0_i32_1 = arith.constant 0 : i32
    return %c0_i32, %c0_i32_0 : i32, i32
  }
  func.func @transform_7(%arg0: i32) -> (i32, i32) {
    %c0_i32 = arith.constant 0 : i32
    %c0_i32_0 = arith.constant 0 : i32
    %c0_i32_1 = arith.constant 0 : i32
    return %c0_i32, %c0_i32_0 : i32, i32
  }
  func.func @transform_8(%arg0: i32) -> (i32, i32) {
    %c0_i32 = arith.constant 0 : i32
    %c0_i32_0 = arith.constant 0 : i32
    %c0_i32_1 = arith.constant 0 : i32
    return %c0_i32, %c0_i32_0 : i32, i32
  }
  func.func @transform_9(%arg0: i32) -> (i32, i32) {
    %c0_i32 = arith.constant 0 : i32
    %c0_i32_0 = arith.constant 0 : i32
    %c0_i32_1 = arith.constant 0 : i32
    return %c0_i32, %c0_i32_0 : i32, i32
  }
  func.func @transform_10(%arg0: i32) -> (i32, i32) {
    %c0_i32 = arith.constant 0 : i32
    %c0_i32_0 = arith.constant 0 : i32
    %c0_i32_1 = arith.constant 0 : i32
    return %c0_i32, %c0_i32_0 : i32, i32
  }
  func.func @transform_11(%arg0: i32) -> (i32, i32) {
    %c0_i32 = arith.constant 0 : i32
    %c0_i32_0 = arith.constant 0 : i32
    %c0_i32_1 = arith.constant 0 : i32
    return %c0_i32, %c0_i32_0 : i32, i32
  }
  func.func @transform_12(%arg0: i32) -> (i32, i32) {
    %c0_i32 = arith.constant 0 : i32
    %c0_i32_0 = arith.constant 0 : i32
    %c0_i32_1 = arith.constant 0 : i32
    return %c0_i32, %c0_i32_0 : i32, i32
  }
  func.func @transform_13(%arg0: i32) -> (i32, i32) {
    %c0_i32 = arith.constant 0 : i32
    %c0_i32_0 = arith.constant 0 : i32
    %c0_i32_1 = arith.constant 0 : i32
    return %c0_i32, %c0_i32_0 : i32, i32
  }
  func.func @transform_14(%arg0: i32) -> (i32, i32) {
    %c0_i32 = arith.constant 0 : i32
    %c0_i32_0 = arith.constant 0 : i32
    return %arg0, %c0_i32 : i32, i32
  }
}

module attributes {stable_mosaic.version = 11 : i64} {
  func.func @_dlrm_fused_kernel(%arg0: i32, %arg1: memref<128x12xi32, #tpu.memory_space<vmem>>, %arg2: memref<128x13xf32, #tpu.memory_space<vmem>>, %arg3: memref<240x48xbf16, #tpu.memory_space<vmem>>, %arg4: memref<64x96xbf16, #tpu.memory_space<vmem>>, %arg5: memref<64x96xbf16, #tpu.memory_space<vmem>>, %arg6: memref<96x6xbf16, #tpu.memory_space<vmem>>, %arg7: memref<13x64xbf16, #tpu.memory_space<vmem>>, %arg8: memref<1x64xf32, #tpu.memory_space<vmem>>, %arg9: memref<64x16xbf16, #tpu.memory_space<vmem>>, %arg10: memref<1x16xf32, #tpu.memory_space<vmem>>, %arg11: memref<22x32xbf16, #tpu.memory_space<vmem>>, %arg12: memref<1x32xf32, #tpu.memory_space<vmem>>, %arg13: memref<32x1xbf16, #tpu.memory_space<vmem>>, %arg14: memref<1x1xf32, #tpu.memory_space<vmem>>, %arg15: memref<128x1xf32, #tpu.memory_space<vmem>>) attributes {dimension_semantics = [#tpu.dimension_semantics<parallel>], iteration_bounds = array<i64: 2>, scalar_prefetch = 0 : i64, scratch_operands = 0 : i64, tpu.core_type = #tpu.core_type<tc>, window_params = [{transform_indices = @transform_0, window_bounds = array<i64: 128, 12>}, {transform_indices = @transform_1, window_bounds = array<i64: 128, 13>}, {pipeline_mode = #tpu.pipeline_mode<synchronous>, transform_indices = @transform_2, window_bounds = array<i64: 240, 48>}, {pipeline_mode = #tpu.pipeline_mode<synchronous>, transform_indices = @transform_3, window_bounds = array<i64: 64, 96>}, {pipeline_mode = #tpu.pipeline_mode<synchronous>, transform_indices = @transform_4, window_bounds = array<i64: 64, 96>}, {pipeline_mode = #tpu.pipeline_mode<synchronous>, transform_indices = @transform_5, window_bounds = array<i64: 96, 6>}, {pipeline_mode = #tpu.pipeline_mode<synchronous>, transform_indices = @transform_6, window_bounds = array<i64: 13, 64>}, {pipeline_mode = #tpu.pipeline_mode<synchronous>, transform_indices = @transform_7, window_bounds = array<i64: 1, 64>}, {pipeline_mode = #tpu.pipeline_mode<synchronous>, transform_indices = @transform_8, window_bounds = array<i64: 64, 16>}, {pipeline_mode = #tpu.pipeline_mode<synchronous>, transform_indices = @transform_9, window_bounds = array<i64: 1, 16>}, {pipeline_mode = #tpu.pipeline_mode<synchronous>, transform_indices = @transform_10, window_bounds = array<i64: 22, 32>}, {pipeline_mode = #tpu.pipeline_mode<synchronous>, transform_indices = @transform_11, window_bounds = array<i64: 1, 32>}, {pipeline_mode = #tpu.pipeline_mode<synchronous>, transform_indices = @transform_12, window_bounds = array<i64: 32, 1>}, {pipeline_mode = #tpu.pipeline_mode<synchronous>, transform_indices = @transform_13, window_bounds = array<i64: 1, 1>}, {transform_indices = @transform_14, window_bounds = array<i64: 128, 1>}]} {
    %c0 = arith.constant 0 : index
    %c0_0 = arith.constant 0 : index
    %0 = vector.load %arg2[%c0, %c0_0] : memref<128x13xf32, #tpu.memory_space<vmem>>, vector<128x13xf32>
    %c0_1 = arith.constant 0 : index
    %c0_2 = arith.constant 0 : index
    %1 = vector.load %arg7[%c0_1, %c0_2] : memref<13x64xbf16, #tpu.memory_space<vmem>>, vector<13x64xbf16>
    %c0_3 = arith.constant 0 : index
    %c0_4 = arith.constant 0 : index
    %2 = vector.load %arg8[%c0_3, %c0_4] : memref<1x64xf32, #tpu.memory_space<vmem>>, vector<1x64xf32>
    %3 = arith.truncf %0 : vector<128x13xf32> to vector<128x13xbf16>
    %cst = arith.constant dense<0.000000e+00> : vector<128x64xf32>
    %4 = tpu.matmul %3, %1, %cst {dimension_numbers = #tpu.dot_dimension_numbers<[1], [0], [0], [1], [0, 0, 1, 1], [], []>} : vector<128x13xbf16>, vector<13x64xbf16>, vector<128x64xf32> -> vector<128x64xf32>
    %5 = vector.broadcast %2 : vector<1x64xf32> to vector<128x64xf32>
    %6 = arith.addf %4, %5 : vector<128x64xf32>
    %cst_5 = arith.constant 0.000000e+00 : f32
    %7 = vector.broadcast %cst_5 : f32 to vector<128x64xf32>
    %8 = arith.maximumf %6, %7 : vector<128x64xf32>
    %c0_6 = arith.constant 0 : index
    %c0_7 = arith.constant 0 : index
    %9 = vector.load %arg9[%c0_6, %c0_7] : memref<64x16xbf16, #tpu.memory_space<vmem>>, vector<64x16xbf16>
    %c0_8 = arith.constant 0 : index
    %c0_9 = arith.constant 0 : index
    %10 = vector.load %arg10[%c0_8, %c0_9] : memref<1x16xf32, #tpu.memory_space<vmem>>, vector<1x16xf32>
    %11 = arith.truncf %8 : vector<128x64xf32> to vector<128x64xbf16>
    %cst_10 = arith.constant dense<0.000000e+00> : vector<128x16xf32>
    %12 = tpu.matmul %11, %9, %cst_10 {dimension_numbers = #tpu.dot_dimension_numbers<[1], [0], [0], [1], [0, 0, 1, 1], [], []>} : vector<128x64xbf16>, vector<64x16xbf16>, vector<128x16xf32> -> vector<128x16xf32>
    %13 = vector.broadcast %10 : vector<1x16xf32> to vector<128x16xf32>
    %14 = arith.addf %12, %13 : vector<128x16xf32>
    %cst_11 = arith.constant 0.000000e+00 : f32
    %15 = vector.broadcast %cst_11 : f32 to vector<128x16xf32>
    %16 = arith.maximumf %14, %15 : vector<128x16xf32>
    %c0_12 = arith.constant 0 : index
    %c0_13 = arith.constant 0 : index
    %17 = vector.load %arg1[%c0_12, %c0_13] : memref<128x12xi32, #tpu.memory_space<vmem>>, vector<128x12xi32>
    %18 = tpu.iota {dimensions = array<i32: 1>} : vector<1x240xi32>
    %cst_14 = arith.constant 0.000000e+00 : f32
    %19 = vector.broadcast %cst_14 : f32 to vector<128x240xf32>
    %20 = vector.extract_strided_slice %17 {offsets = [0, 0], sizes = [128, 1], strides = [1, 1]} : vector<128x12xi32> to vector<128x1xi32>
    %21 = vector.broadcast %20 : vector<128x1xi32> to vector<128x240xi32>
    %22 = vector.broadcast %18 : vector<1x240xi32> to vector<128x240xi32>
    %23 = arith.cmpi eq, %21, %22 : vector<128x240xi32>
    %24 = arith.extui %23 : vector<128x240xi1> to vector<128x240xi32>
    %25 = arith.sitofp %24 : vector<128x240xi32> to vector<128x240xf32>
    %26 = arith.addf %19, %25 : vector<128x240xf32>
    %27 = vector.extract_strided_slice %17 {offsets = [0, 1], sizes = [128, 1], strides = [1, 1]} : vector<128x12xi32> to vector<128x1xi32>
    %28 = vector.broadcast %27 : vector<128x1xi32> to vector<128x240xi32>
    %29 = vector.broadcast %18 : vector<1x240xi32> to vector<128x240xi32>
    %30 = arith.cmpi eq, %28, %29 : vector<128x240xi32>
    %31 = arith.extui %30 : vector<128x240xi1> to vector<128x240xi32>
    %32 = arith.sitofp %31 : vector<128x240xi32> to vector<128x240xf32>
    %33 = arith.addf %26, %32 : vector<128x240xf32>
    %34 = vector.extract_strided_slice %17 {offsets = [0, 2], sizes = [128, 1], strides = [1, 1]} : vector<128x12xi32> to vector<128x1xi32>
    %35 = vector.broadcast %34 : vector<128x1xi32> to vector<128x240xi32>
    %36 = vector.broadcast %18 : vector<1x240xi32> to vector<128x240xi32>
    %37 = arith.cmpi eq, %35, %36 : vector<128x240xi32>
    %38 = arith.extui %37 : vector<128x240xi1> to vector<128x240xi32>
    %39 = arith.sitofp %38 : vector<128x240xi32> to vector<128x240xf32>
    %40 = arith.addf %33, %39 : vector<128x240xf32>
    %41 = vector.extract_strided_slice %17 {offsets = [0, 3], sizes = [128, 1], strides = [1, 1]} : vector<128x12xi32> to vector<128x1xi32>
    %42 = vector.broadcast %41 : vector<128x1xi32> to vector<128x240xi32>
    %43 = vector.broadcast %18 : vector<1x240xi32> to vector<128x240xi32>
    %44 = arith.cmpi eq, %42, %43 : vector<128x240xi32>
    %45 = arith.extui %44 : vector<128x240xi1> to vector<128x240xi32>
    %46 = arith.sitofp %45 : vector<128x240xi32> to vector<128x240xf32>
    %47 = arith.addf %40, %46 : vector<128x240xf32>
    %48 = vector.extract_strided_slice %17 {offsets = [0, 4], sizes = [128, 1], strides = [1, 1]} : vector<128x12xi32> to vector<128x1xi32>
    %49 = vector.broadcast %48 : vector<128x1xi32> to vector<128x240xi32>
    %50 = vector.broadcast %18 : vector<1x240xi32> to vector<128x240xi32>
    %51 = arith.cmpi eq, %49, %50 : vector<128x240xi32>
    %52 = arith.extui %51 : vector<128x240xi1> to vector<128x240xi32>
    %53 = arith.sitofp %52 : vector<128x240xi32> to vector<128x240xf32>
    %54 = arith.addf %47, %53 : vector<128x240xf32>
    %55 = vector.extract_strided_slice %17 {offsets = [0, 5], sizes = [128, 1], strides = [1, 1]} : vector<128x12xi32> to vector<128x1xi32>
    %56 = vector.broadcast %55 : vector<128x1xi32> to vector<128x240xi32>
    %57 = vector.broadcast %18 : vector<1x240xi32> to vector<128x240xi32>
    %58 = arith.cmpi eq, %56, %57 : vector<128x240xi32>
    %59 = arith.extui %58 : vector<128x240xi1> to vector<128x240xi32>
    %60 = arith.sitofp %59 : vector<128x240xi32> to vector<128x240xf32>
    %61 = arith.addf %54, %60 : vector<128x240xf32>
    %62 = vector.extract_strided_slice %17 {offsets = [0, 6], sizes = [128, 1], strides = [1, 1]} : vector<128x12xi32> to vector<128x1xi32>
    %63 = vector.broadcast %62 : vector<128x1xi32> to vector<128x240xi32>
    %64 = vector.broadcast %18 : vector<1x240xi32> to vector<128x240xi32>
    %65 = arith.cmpi eq, %63, %64 : vector<128x240xi32>
    %66 = arith.extui %65 : vector<128x240xi1> to vector<128x240xi32>
    %67 = arith.sitofp %66 : vector<128x240xi32> to vector<128x240xf32>
    %68 = arith.addf %61, %67 : vector<128x240xf32>
    %69 = vector.extract_strided_slice %17 {offsets = [0, 7], sizes = [128, 1], strides = [1, 1]} : vector<128x12xi32> to vector<128x1xi32>
    %70 = vector.broadcast %69 : vector<128x1xi32> to vector<128x240xi32>
    %71 = vector.broadcast %18 : vector<1x240xi32> to vector<128x240xi32>
    %72 = arith.cmpi eq, %70, %71 : vector<128x240xi32>
    %73 = arith.extui %72 : vector<128x240xi1> to vector<128x240xi32>
    %74 = arith.sitofp %73 : vector<128x240xi32> to vector<128x240xf32>
    %75 = arith.addf %68, %74 : vector<128x240xf32>
    %76 = vector.extract_strided_slice %17 {offsets = [0, 8], sizes = [128, 1], strides = [1, 1]} : vector<128x12xi32> to vector<128x1xi32>
    %77 = vector.broadcast %76 : vector<128x1xi32> to vector<128x240xi32>
    %78 = vector.broadcast %18 : vector<1x240xi32> to vector<128x240xi32>
    %79 = arith.cmpi eq, %77, %78 : vector<128x240xi32>
    %80 = arith.extui %79 : vector<128x240xi1> to vector<128x240xi32>
    %81 = arith.sitofp %80 : vector<128x240xi32> to vector<128x240xf32>
    %82 = arith.addf %75, %81 : vector<128x240xf32>
    %83 = vector.extract_strided_slice %17 {offsets = [0, 9], sizes = [128, 1], strides = [1, 1]} : vector<128x12xi32> to vector<128x1xi32>
    %84 = vector.broadcast %83 : vector<128x1xi32> to vector<128x240xi32>
    %85 = vector.broadcast %18 : vector<1x240xi32> to vector<128x240xi32>
    %86 = arith.cmpi eq, %84, %85 : vector<128x240xi32>
    %87 = arith.extui %86 : vector<128x240xi1> to vector<128x240xi32>
    %88 = arith.sitofp %87 : vector<128x240xi32> to vector<128x240xf32>
    %89 = arith.addf %82, %88 : vector<128x240xf32>
    %90 = vector.extract_strided_slice %17 {offsets = [0, 10], sizes = [128, 1], strides = [1, 1]} : vector<128x12xi32> to vector<128x1xi32>
    %91 = vector.broadcast %90 : vector<128x1xi32> to vector<128x240xi32>
    %92 = vector.broadcast %18 : vector<1x240xi32> to vector<128x240xi32>
    %93 = arith.cmpi eq, %91, %92 : vector<128x240xi32>
    %94 = arith.extui %93 : vector<128x240xi1> to vector<128x240xi32>
    %95 = arith.sitofp %94 : vector<128x240xi32> to vector<128x240xf32>
    %96 = arith.addf %89, %95 : vector<128x240xf32>
    %97 = vector.extract_strided_slice %17 {offsets = [0, 11], sizes = [128, 1], strides = [1, 1]} : vector<128x12xi32> to vector<128x1xi32>
    %98 = vector.broadcast %97 : vector<128x1xi32> to vector<128x240xi32>
    %99 = vector.broadcast %18 : vector<1x240xi32> to vector<128x240xi32>
    %100 = arith.cmpi eq, %98, %99 : vector<128x240xi32>
    %101 = arith.extui %100 : vector<128x240xi1> to vector<128x240xi32>
    %102 = arith.sitofp %101 : vector<128x240xi32> to vector<128x240xf32>
    %103 = arith.addf %96, %102 : vector<128x240xf32>
    %104 = arith.truncf %103 : vector<128x240xf32> to vector<128x240xbf16>
    %c0_15 = arith.constant 0 : index
    %c0_16 = arith.constant 0 : index
    %105 = vector.load %arg3[%c0_15, %c0_16] : memref<240x48xbf16, #tpu.memory_space<vmem>>, vector<240x48xbf16>
    %cst_17 = arith.constant dense<0.000000e+00> : vector<128x48xf32>
    %106 = tpu.matmul %104, %105, %cst_17 {dimension_numbers = #tpu.dot_dimension_numbers<[1], [0], [0], [1], [0, 0, 1, 1], [], []>} : vector<128x240xbf16>, vector<240x48xbf16>, vector<128x48xf32> -> vector<128x48xf32>
    %107 = tpu.concatenate %16, %106 in 1 : vector<128x16xf32>, vector<128x48xf32> -> vector<128x64xf32>
    %108 = arith.truncf %107 : vector<128x64xf32> to vector<128x64xbf16>
    %c0_18 = arith.constant 0 : index
    %c0_19 = arith.constant 0 : index
    %109 = vector.load %arg4[%c0_18, %c0_19] : memref<64x96xbf16, #tpu.memory_space<vmem>>, vector<64x96xbf16>
    %cst_20 = arith.constant dense<0.000000e+00> : vector<128x96xf32>
    %110 = tpu.matmul %108, %109, %cst_20 {dimension_numbers = #tpu.dot_dimension_numbers<[1], [0], [0], [1], [0, 0, 1, 1], [], []>} : vector<128x64xbf16>, vector<64x96xbf16>, vector<128x96xf32> -> vector<128x96xf32>
    %c0_21 = arith.constant 0 : index
    %c0_22 = arith.constant 0 : index
    %111 = vector.load %arg5[%c0_21, %c0_22] : memref<64x96xbf16, #tpu.memory_space<vmem>>, vector<64x96xbf16>
    %cst_23 = arith.constant dense<0.000000e+00> : vector<128x96xf32>
    %112 = tpu.matmul %108, %111, %cst_23 {dimension_numbers = #tpu.dot_dimension_numbers<[1], [0], [0], [1], [0, 0, 1, 1], [], []>} : vector<128x64xbf16>, vector<64x96xbf16>, vector<128x96xf32> -> vector<128x96xf32>
    %113 = arith.mulf %110, %112 : vector<128x96xf32>
    %114 = arith.truncf %113 : vector<128x96xf32> to vector<128x96xbf16>
    %c0_24 = arith.constant 0 : index
    %c0_25 = arith.constant 0 : index
    %115 = vector.load %arg6[%c0_24, %c0_25] : memref<96x6xbf16, #tpu.memory_space<vmem>>, vector<96x6xbf16>
    %cst_26 = arith.constant dense<0.000000e+00> : vector<128x6xf32>
    %116 = tpu.matmul %114, %115, %cst_26 {dimension_numbers = #tpu.dot_dimension_numbers<[1], [0], [0], [1], [0, 0, 1, 1], [], []>} : vector<128x96xbf16>, vector<96x6xbf16>, vector<128x6xf32> -> vector<128x6xf32>
    %117 = tpu.concatenate %16, %116 in 1 : vector<128x16xf32>, vector<128x6xf32> -> vector<128x22xf32>
    %c0_27 = arith.constant 0 : index
    %c0_28 = arith.constant 0 : index
    %118 = vector.load %arg11[%c0_27, %c0_28] : memref<22x32xbf16, #tpu.memory_space<vmem>>, vector<22x32xbf16>
    %c0_29 = arith.constant 0 : index
    %c0_30 = arith.constant 0 : index
    %119 = vector.load %arg12[%c0_29, %c0_30] : memref<1x32xf32, #tpu.memory_space<vmem>>, vector<1x32xf32>
    %120 = arith.truncf %117 : vector<128x22xf32> to vector<128x22xbf16>
    %cst_31 = arith.constant dense<0.000000e+00> : vector<128x32xf32>
    %121 = tpu.matmul %120, %118, %cst_31 {dimension_numbers = #tpu.dot_dimension_numbers<[1], [0], [0], [1], [0, 0, 1, 1], [], []>} : vector<128x22xbf16>, vector<22x32xbf16>, vector<128x32xf32> -> vector<128x32xf32>
    %122 = vector.broadcast %119 : vector<1x32xf32> to vector<128x32xf32>
    %123 = arith.addf %121, %122 : vector<128x32xf32>
    %cst_32 = arith.constant 0.000000e+00 : f32
    %124 = vector.broadcast %cst_32 : f32 to vector<128x32xf32>
    %125 = arith.maximumf %123, %124 : vector<128x32xf32>
    %c0_33 = arith.constant 0 : index
    %c0_34 = arith.constant 0 : index
    %126 = vector.load %arg13[%c0_33, %c0_34] : memref<32x1xbf16, #tpu.memory_space<vmem>>, vector<32x1xbf16>
    %c0_35 = arith.constant 0 : index
    %c0_36 = arith.constant 0 : index
    %127 = vector.load %arg14[%c0_35, %c0_36] : memref<1x1xf32, #tpu.memory_space<vmem>>, vector<1x1xf32>
    %128 = arith.truncf %125 : vector<128x32xf32> to vector<128x32xbf16>
    %cst_37 = arith.constant dense<0.000000e+00> : vector<128x1xf32>
    %129 = tpu.matmul %128, %126, %cst_37 {dimension_numbers = #tpu.dot_dimension_numbers<[1], [0], [0], [1], [0, 0, 1, 1], [], []>} : vector<128x32xbf16>, vector<32x1xbf16>, vector<128x1xf32> -> vector<128x1xf32>
    %130 = vector.broadcast %127 : vector<1x1xf32> to vector<128x1xf32>
    %131 = arith.addf %129, %130 : vector<128x1xf32>
    %132 = arith.negf %131 : vector<128x1xf32>
    %133 = math.exp %132 : vector<128x1xf32>
    %cst_38 = arith.constant 1.000000e+00 : f32
    %134 = vector.broadcast %cst_38 : f32 to vector<128x1xf32>
    %135 = arith.addf %134, %133 : vector<128x1xf32>
    %136 = arith.divf %134, %135 : vector<128x1xf32>
    %c0_39 = arith.constant 0 : index
    %c0_40 = arith.constant 0 : index
    %137 = vector.load %arg15[%c0_39, %c0_40] : memref<128x1xf32, #tpu.memory_space<vmem>>, vector<128x1xf32>
    tpu.vector_store %arg15[%c0_39, %c0_40], %136 {strides = array<i32>} : memref<128x1xf32, #tpu.memory_space<vmem>>, vector<128x1xf32>,
    return
  }
  func.func @transform_0(%arg0: i32) -> (i32, i32) {
    %c0_i32 = arith.constant 0 : i32
    %c0_i32_0 = arith.constant 0 : i32
    return %arg0, %c0_i32 : i32, i32
  }
  func.func @transform_1(%arg0: i32) -> (i32, i32) {
    %c0_i32 = arith.constant 0 : i32
    %c0_i32_0 = arith.constant 0 : i32
    return %arg0, %c0_i32 : i32, i32
  }
  func.func @transform_2(%arg0: i32) -> (i32, i32) {
    %c0_i32 = arith.constant 0 : i32
    %c0_i32_0 = arith.constant 0 : i32
    %c0_i32_1 = arith.constant 0 : i32
    return %c0_i32, %c0_i32_0 : i32, i32
  }
  func.func @transform_3(%arg0: i32) -> (i32, i32) {
    %c0_i32 = arith.constant 0 : i32
    %c0_i32_0 = arith.constant 0 : i32
    %c0_i32_1 = arith.constant 0 : i32
    return %c0_i32, %c0_i32_0 : i32, i32
  }
  func.func @transform_4(%arg0: i32) -> (i32, i32) {
    %c0_i32 = arith.constant 0 : i32
    %c0_i32_0 = arith.constant 0 : i32
    %c0_i32_1 = arith.constant 0 : i32
    return %c0_i32, %c0_i32_0 : i32, i32
  }
  func.func @transform_5(%arg0: i32) -> (i32, i32) {
    %c0_i32 = arith.constant 0 : i32
    %c0_i32_0 = arith.constant 0 : i32
    %c0_i32_1 = arith.constant 0 : i32
    return %c0_i32, %c0_i32_0 : i32, i32
  }
  func.func @transform_6(%arg0: i32) -> (i32, i32) {
    %c0_i32 = arith.constant 0 : i32
    %c0_i32_0 = arith.constant 0 : i32
    %c0_i32_1 = arith.constant 0 : i32
    return %c0_i32, %c0_i32_0 : i32, i32
  }
  func.func @transform_7(%arg0: i32) -> (i32, i32) {
    %c0_i32 = arith.constant 0 : i32
    %c0_i32_0 = arith.constant 0 : i32
    %c0_i32_1 = arith.constant 0 : i32
    return %c0_i32, %c0_i32_0 : i32, i32
  }
  func.func @transform_8(%arg0: i32) -> (i32, i32) {
    %c0_i32 = arith.constant 0 : i32
    %c0_i32_0 = arith.constant 0 : i32
    %c0_i32_1 = arith.constant 0 : i32
    return %c0_i32, %c0_i32_0 : i32, i32
  }
  func.func @transform_9(%arg0: i32) -> (i32, i32) {
    %c0_i32 = arith.constant 0 : i32
    %c0_i32_0 = arith.constant 0 : i32
    %c0_i32_1 = arith.constant 0 : i32
    return %c0_i32, %c0_i32_0 : i32, i32
  }
  func.func @transform_10(%arg0: i32) -> (i32, i32) {
    %c0_i32 = arith.constant 0 : i32
    %c0_i32_0 = arith.constant 0 : i32
    %c0_i32_1 = arith.constant 0 : i32
    return %c0_i32, %c0_i32_0 : i32, i32
  }
  func.func @transform_11(%arg0: i32) -> (i32, i32) {
    %c0_i32 = arith.constant 0 : i32
    %c0_i32_0 = arith.constant 0 : i32
    %c0_i32_1 = arith.constant 0 : i32
    return %c0_i32, %c0_i32_0 : i32, i32
  }
  func.func @transform_12(%arg0: i32) -> (i32, i32) {
    %c0_i32 = arith.constant 0 : i32
    %c0_i32_0 = arith.constant 0 : i32
    %c0_i32_1 = arith.constant 0 : i32
    return %c0_i32, %c0_i32_0 : i32, i32
  }
  func.func @transform_13(%arg0: i32) -> (i32, i32) {
    %c0_i32 = arith.constant 0 : i32
    %c0_i32_0 = arith.constant 0 : i32
    %c0_i32_1 = arith.constant 0 : i32
    return %c0_i32, %c0_i32_0 : i32, i32
  }
  func.func @transform_14(%arg0: i32) -> (i32, i32) {
    %c0_i32 = arith.constant 0 : i32
    %c0_i32_0 = arith.constant 0 : i32
    return %arg0, %c0_i32 : i32, i32
  }
}

</mosaic_0001>

<llo_original>
// kernel: tpu_custom_call.1
$region0: #{tpu_custom_call.1}
  #allocation0 [shape = 'u32[]', space=smem, size = 0x4, offset = 0x4, fixed_abs, tag = 'smem constant byte address 0x4 - core index']
  #allocation1 [shape = 'u32[144,128]{1,0:T(1,128)}', space=vmem, size = 0x12000, scoped, tag = 'internal scratch']
  #allocation2 [shape = 'f32[1,1]{1,0:T(1,128)S(1)}', space=vmem, size = 0x200, scoped, tag = 'scoped memory for tpu_custom_call.1']
  %s0 = inlined_call_operand.vmem [shape: s32[256,12], index: 0, kind: input, shape index: {}]
  %s1 = inlined_call_operand.vmem [shape: f32[256,13], index: 1, kind: input, shape index: {}]
  %s2 = inlined_call_operand.vmem [shape: bf16[240,48], index: 2, kind: input, shape index: {}]
  %s3 = inlined_call_operand.vmem [shape: bf16[64,96], index: 3, kind: input, shape index: {}]
  %s4 = inlined_call_operand.vmem [shape: bf16[64,96], index: 4, kind: input, shape index: {}]
  %s5 = inlined_call_operand.vmem [shape: bf16[96,6], index: 5, kind: input, shape index: {}]
  %s6 = inlined_call_operand.vmem [shape: bf16[13,64], index: 6, kind: input, shape index: {}]
  %s7 = inlined_call_operand.vmem [shape: f32[1,64], index: 7, kind: input, shape index: {}]
  %s8 = inlined_call_operand.vmem [shape: bf16[64,16], index: 8, kind: input, shape index: {}]
  %s9 = inlined_call_operand.vmem [shape: f32[1,16], index: 9, kind: input, shape index: {}]
  %s10 = inlined_call_operand.vmem [shape: bf16[22,32], index: 10, kind: input, shape index: {}]
  %s11 = inlined_call_operand.vmem [shape: f32[1,32], index: 11, kind: input, shape index: {}]
  %s12 = inlined_call_operand.vmem [shape: bf16[32,1], index: 12, kind: input, shape index: {}]
  %s13 = inlined_call_operand.<no memory space> [shape: f32[1,1], index: 13, kind: input, shape index: {}]
  %s14 = inlined_call_operand.vmem [shape: f32[256,1], index: 14, kind: output, shape index: {}]
  %s15 = sld [smem:[#allocation0]]
  $region89: #{tpu_custom_call.1} parent=0
    _
  %s17 = ssub.s32 1, %s15
  %s18 = scalar_select 0, %s17, %s15
  %v19 = vstv %s13
  %20 = vst [vmem:[#allocation2] sm:$0x1] %v19
  loop: start=0, step=1, limit=4
  $region2: #{tpu_custom_call.1} parent=0 // loop_pre_header
    _
  $region3: #{tpu_custom_call.1} parent=0 // loop_header
    %s22 = sphi 0, %s26
    %p23 = scmp.ge.s32.totalorder %s22, 4
    %s32 = sphi 0, %s34
    %s35 = sphi 0, %s32
    %s36 = sphi 0, %s35
    %s52 = sphi 0, %s36
    %s58 = sphi 0, %s60
    %s61 = sphi 0, %s58
    %s62 = sphi 0, %s61
    %s78 = sphi 0, %s62
    %s82 = sphi 0, %s82
    %s84 = sphi 0, %s82
    %s85 = sphi 0, %s84
    %s99 = sphi 0, %s85
    %s103 = sphi 0, %s103
    %s105 = sphi 0, %s103
    %s106 = sphi 0, %s105
    %s120 = sphi 0, %s106
    %s124 = sphi 0, %s124
    %s126 = sphi 0, %s124
    %s127 = sphi 0, %s126
    %s141 = sphi 0, %s127
    %s145 = sphi 0, %s145
    %s147 = sphi 0, %s145
    %s148 = sphi 0, %s147
    %s162 = sphi 0, %s148
    %s166 = sphi 0, %s166
    %s168 = sphi 0, %s166
    %s169 = sphi 0, %s168
    %s183 = sphi 0, %s169
    %s187 = sphi 0, %s187
    %s189 = sphi 0, %s187
    %s190 = sphi 0, %s189
    %s204 = sphi 0, %s190
    %s208 = sphi 0, %s208
    %s210 = sphi 0, %s208
    %s211 = sphi 0, %s210
    %s225 = sphi 0, %s211
    %s229 = sphi 0, %s229
    %s231 = sphi 0, %s229
    %s232 = sphi 0, %s231
    %s246 = sphi 0, %s232
    %s250 = sphi 0, %s250
    %s252 = sphi 0, %s250
    %s253 = sphi 0, %s252
    %s267 = sphi 0, %s253
    %s271 = sphi 0, %s271
    %s273 = sphi 0, %s271
    %s274 = sphi 0, %s273
    %s288 = sphi 0, %s274
    %s292 = sphi 0, %s292
    %s294 = sphi 0, %s292
    %s295 = sphi 0, %s294
    %s309 = sphi 0, %s295
    %s313 = sphi 0, %s313
    %s315 = sphi 0, %s313
    %s316 = sphi 0, %s315
    %s330 = sphi 0, %s316
    %s336 = sphi 0, %s338
    %s339 = sphi 0, %s336
    %s340 = sphi 0, %s339
    %s356 = sphi 0, %s340
  $region4: #{tpu_custom_call.1} parent=0 // loop_header_branch
    %25 = sbr.rel (%p23) target = $region8
  $region5: #{tpu_custom_call.1} parent=0 // loop_body
    %s27 = ssub.s32 %s22, 1
    %s28 = ssub.s32 %s22, 2
    %s29 = sadd.s32 %s22, 1
    %s30 = ssub.s32 %s22, %s29
    %p31 = scmp.eq.s32.totalorder %s30, 0
    %s33 = sadd.s32 %s32, 1
    %s34 = scalar_select %p31, %s32, %s33
    %p37 = pneg %p31
    %p38 = scmp.eq.s32.totalorder %s22, 1
    %p39 = por %p37, %p38
    %p40 = scmp.ne.s32.totalorder %s32, %s35
    %p41 = scmp.eq.s32.totalorder %s22, 0
    %p42 = por %p40, %p41
    %p43 = scmp.ne.s32.totalorder %s32, %s35
    %p44 = scmp.eq.s32.totalorder %s27, 1
    %p45 = por %p43, %p44
    %p46 = scmp.ne.s32.totalorder %s35, %s36
    %p47 = scmp.eq.s32.totalorder %s27, 0
    %p48 = por %p46, %p47
    %p49 = scmp.ne.s32.totalorder %s35, %s36
    %p50 = scmp.eq.s32.totalorder %s28, 1
    %p51 = por %p49, %p50
    %p53 = scmp.ne.s32.totalorder %s36, %s52
    %p54 = scmp.eq.s32.totalorder %s28, 0
    %p55 = por %p53, %p54
    %s56 = ssub.s32 %s22, %s29
    %p57 = scmp.eq.s32.totalorder %s56, 0
    %s59 = sadd.s32 %s58, 1
    %s60 = scalar_select %p57, %s58, %s59
    %p63 = pneg %p57
    %p64 = scmp.eq.s32.totalorder %s22, 1
    %p65 = por %p63, %p64
    %p66 = scmp.ne.s32.totalorder %s58, %s61
    %p67 = scmp.eq.s32.totalorder %s22, 0
    %p68 = por %p66, %p67
    %p69 = scmp.ne.s32.totalorder %s58, %s61
    %p70 = scmp.eq.s32.totalorder %s27, 1
    %p71 = por %p69, %p70
    %p72 = scmp.ne.s32.totalorder %s61, %s62
    %p73 = scmp.eq.s32.totalorder %s27, 0
    %p74 = por %p72, %p73
    %p75 = scmp.ne.s32.totalorder %s61, %s62
    %p76 = scmp.eq.s32.totalorder %s28, 1
    %p77 = por %p75, %p76
    %p79 = scmp.ne.s32.totalorder %s62, %s78
    %p80 = scmp.eq.s32.totalorder %s28, 0
    %p81 = por %p79, %p80
    %s83 = sadd.s32 %s82, 1
    %p86 = scmp.eq.s32.totalorder %s22, 1
    %p87 = scmp.ne.s32.totalorder %s82, %s84
    %p88 = scmp.eq.s32.totalorder %s22, 0
    %p89 = por %p87, %p88
    %p90 = scmp.ne.s32.totalorder %s82, %s84
    %p91 = scmp.eq.s32.totalorder %s27, 1
    %p92 = por %p90, %p91
    %p93 = scmp.ne.s32.totalorder %s84, %s85
    %p94 = scmp.eq.s32.totalorder %s27, 0
    %p95 = por %p93, %p94
    %p96 = scmp.ne.s32.totalorder %s84, %s85
    %p97 = scmp.eq.s32.totalorder %s28, 1
    %p98 = por %p96, %p97
    %p100 = scmp.ne.s32.totalorder %s85, %s99
    %p101 = scmp.eq.s32.totalorder %s28, 0
    %p102 = por %p100, %p101
    %s104 = sadd.s32 %s103, 1
    %p107 = scmp.eq.s32.totalorder %s22, 1
    %p108 = scmp.ne.s32.totalorder %s103, %s105
    %p109 = scmp.eq.s32.totalorder %s22, 0
    %p110 = por %p108, %p109
    %p111 = scmp.ne.s32.totalorder %s103, %s105
    %p112 = scmp.eq.s32.totalorder %s27, 1
    %p113 = por %p111, %p112
    %p114 = scmp.ne.s32.totalorder %s105, %s106
    %p115 = scmp.eq.s32.totalorder %s27, 0
    %p116 = por %p114, %p115
    %p117 = scmp.ne.s32.totalorder %s105, %s106
    %p118 = scmp.eq.s32.totalorder %s28, 1
    %p119 = por %p117, %p118
    %p121 = scmp.ne.s32.totalorder %s106, %s120
    %p122 = scmp.eq.s32.totalorder %s28, 0
    %p123 = por %p121, %p122
    %s125 = sadd.s32 %s124, 1
    %p128 = scmp.eq.s32.totalorder %s22, 1
    %p129 = scmp.ne.s32.totalorder %s124, %s126
    %p130 = scmp.eq.s32.totalorder %s22, 0
    %p131 = por %p129, %p130
    %p132 = scmp.ne.s32.totalorder %s124, %s126
    %p133 = scmp.eq.s32.totalorder %s27, 1
    %p134 = por %p132, %p133
    %p135 = scmp.ne.s32.totalorder %s126, %s127
    %p136 = scmp.eq.s32.totalorder %s27, 0
    %p137 = por %p135, %p136
    %p138 = scmp.ne.s32.totalorder %s126, %s127
    %p139 = scmp.eq.s32.totalorder %s28, 1
    %p140 = por %p138, %p139
    %p142 = scmp.ne.s32.totalorder %s127, %s141
    %p143 = scmp.eq.s32.totalorder %s28, 0
    %p144 = por %p142, %p143
    %s146 = sadd.s32 %s145, 1
    %p149 = scmp.eq.s32.totalorder %s22, 1
    %p150 = scmp.ne.s32.totalorder %s145, %s147
    %p151 = scmp.eq.s32.totalorder %s22, 0
    %p152 = por %p150, %p151
    %p153 = scmp.ne.s32.totalorder %s145, %s147
    %p154 = scmp.eq.s32.totalorder %s27, 1
    %p155 = por %p153, %p154
    %p156 = scmp.ne.s32.totalorder %s147, %s148
    %p157 = scmp.eq.s32.totalorder %s27, 0
    %p158 = por %p156, %p157
    %p159 = scmp.ne.s32.totalorder %s147, %s148
    %p160 = scmp.eq.s32.totalorder %s28, 1
    %p161 = por %p159, %p160
    %p163 = scmp.ne.s32.totalorder %s148, %s162
    %p164 = scmp.eq.s32.totalorder %s28, 0
    %p165 = por %p163, %p164
    %s167 = sadd.s32 %s166, 1
    %p170 = scmp.eq.s32.totalorder %s22, 1
    %p171 = scmp.ne.s32.totalorder %s166, %s168
    %p172 = scmp.eq.s32.totalorder %s22, 0
    %p173 = por %p171, %p172
    %p174 = scmp.ne.s32.totalorder %s166, %s168
    %p175 = scmp.eq.s32.totalorder %s27, 1
    %p176 = por %p174, %p175
    %p177 = scmp.ne.s32.totalorder %s168, %s169
    %p178 = scmp.eq.s32.totalorder %s27, 0
    %p179 = por %p177, %p178
    %p180 = scmp.ne.s32.totalorder %s168, %s169
    %p181 = scmp.eq.s32.totalorder %s28, 1
    %p182 = por %p180, %p181
    %p184 = scmp.ne.s32.totalorder %s169, %s183
    %p185 = scmp.eq.s32.totalorder %s28, 0
    %p186 = por %p184, %p185
    %s188 = sadd.s32 %s187, 1
    %p191 = scmp.eq.s32.totalorder %s22, 1
    %p192 = scmp.ne.s32.totalorder %s187, %s189
    %p193 = scmp.eq.s32.totalorder %s22, 0
    %p194 = por %p192, %p193
    %p195 = scmp.ne.s32.totalorder %s187, %s189
    %p196 = scmp.eq.s32.totalorder %s27, 1
    %p197 = por %p195, %p196
    %p198 = scmp.ne.s32.totalorder %s189, %s190
    %p199 = scmp.eq.s32.totalorder %s27, 0
    %p200 = por %p198, %p199
    %p201 = scmp.ne.s32.totalorder %s189, %s190
    %p202 = scmp.eq.s32.totalorder %s28, 1
    %p203 = por %p201, %p202
    %p205 = scmp.ne.s32.totalorder %s190, %s204
    %p206 = scmp.eq.s32.totalorder %s28, 0
    %p207 = por %p205, %p206
    %s209 = sadd.s32 %s208, 1
    %p212 = scmp.eq.s32.totalorder %s22, 1
    %p213 = scmp.ne.s32.totalorder %s208, %s210
    %p214 = scmp.eq.s32.totalorder %s22, 0
    %p215 = por %p213, %p214
    %p216 = scmp.ne.s32.totalorder %s208, %s210
    %p217 = scmp.eq.s32.totalorder %s27, 1
    %p218 = por %p216, %p217
    %p219 = scmp.ne.s32.totalorder %s210, %s211
    %p220 = scmp.eq.s32.totalorder %s27, 0
    %p221 = por %p219, %p220
    %p222 = scmp.ne.s32.totalorder %s210, %s211
    %p223 = scmp.eq.s32.totalorder %s28, 1
    %p224 = por %p222, %p223
    %p226 = scmp.ne.s32.totalorder %s211, %s225
    %p227 = scmp.eq.s32.totalorder %s28, 0
    %p228 = por %p226, %p227
    %s230 = sadd.s32 %s229, 1
    %p233 = scmp.eq.s32.totalorder %s22, 1
    %p234 = scmp.ne.s32.totalorder %s229, %s231
    %p235 = scmp.eq.s32.totalorder %s22, 0
    %p236 = por %p234, %p235
    %p237 = scmp.ne.s32.totalorder %s229, %s231
    %p238 = scmp.eq.s32.totalorder %s27, 1
    %p239 = por %p237, %p238
    %p240 = scmp.ne.s32.totalorder %s231, %s232
    %p241 = scmp.eq.s32.totalorder %s27, 0
    %p242 = por %p240, %p241
    %p243 = scmp.ne.s32.totalorder %s231, %s232
    %p244 = scmp.eq.s32.totalorder %s28, 1
    %p245 = por %p243, %p244
    %p247 = scmp.ne.s32.totalorder %s232, %s246
    %p248 = scmp.eq.s32.totalorder %s28, 0
    %p249 = por %p247, %p248
    %s251 = sadd.s32 %s250, 1
    %p254 = scmp.eq.s32.totalorder %s22, 1
    %p255 = scmp.ne.s32.totalorder %s250, %s252
    %p256 = scmp.eq.s32.totalorder %s22, 0
    %p257 = por %p255, %p256
    %p258 = scmp.ne.s32.totalorder %s250, %s252
    %p259 = scmp.eq.s32.totalorder %s27, 1
    %p260 = por %p258, %p259
    %p261 = scmp.ne.s32.totalorder %s252, %s253
    %p262 = scmp.eq.s32.totalorder %s27, 0
    %p263 = por %p261, %p262
    %p264 = scmp.ne.s32.totalorder %s252, %s253
    %p265 = scmp.eq.s32.totalorder %s28, 1
    %p266 = por %p264, %p265
    %p268 = scmp.ne.s32.totalorder %s253, %s267
    %p269 = scmp.eq.s32.totalorder %s28, 0
    %p270 = por %p268, %p269
    %s272 = sadd.s32 %s271, 1
    %p275 = scmp.eq.s32.totalorder %s22, 1
    %p276 = scmp.ne.s32.totalorder %s271, %s273
    %p277 = scmp.eq.s32.totalorder %s22, 0
    %p278 = por %p276, %p277
    %p279 = scmp.ne.s32.totalorder %s271, %s273
    %p280 = scmp.eq.s32.totalorder %s27, 1
    %p281 = por %p279, %p280
    %p282 = scmp.ne.s32.totalorder %s273, %s274
    %p283 = scmp.eq.s32.totalorder %s27, 0
    %p284 = por %p282, %p283
    %p285 = scmp.ne.s32.totalorder %s273, %s274
    %p286 = scmp.eq.s32.totalorder %s28, 1
    %p287 = por %p285, %p286
    %p289 = scmp.ne.s32.totalorder %s274, %s288
    %p290 = scmp.eq.s32.totalorder %s28, 0
    %p291 = por %p289, %p290
    %s293 = sadd.s32 %s292, 1
    %p296 = scmp.eq.s32.totalorder %s22, 1
    %p297 = scmp.ne.s32.totalorder %s292, %s294
    %p298 = scmp.eq.s32.totalorder %s22, 0
    %p299 = por %p297, %p298
    %p300 = scmp.ne.s32.totalorder %s292, %s294
    %p301 = scmp.eq.s32.totalorder %s27, 1
    %p302 = por %p300, %p301
    %p303 = scmp.ne.s32.totalorder %s294, %s295
    %p304 = scmp.eq.s32.totalorder %s27, 0
    %p305 = por %p303, %p304
    %p306 = scmp.ne.s32.totalorder %s294, %s295
    %p307 = scmp.eq.s32.totalorder %s28, 1
    %p308 = por %p306, %p307
    %p310 = scmp.ne.s32.totalorder %s295, %s309
    %p311 = scmp.eq.s32.totalorder %s28, 0
    %p312 = por %p310, %p311
    %s314 = sadd.s32 %s313, 1
    %p317 = scmp.eq.s32.totalorder %s22, 1
    %p318 = scmp.ne.s32.totalorder %s313, %s315
    %p319 = scmp.eq.s32.totalorder %s22, 0
    %p320 = por %p318, %p319
    %p321 = scmp.ne.s32.totalorder %s313, %s315
    %p322 = scmp.eq.s32.totalorder %s27, 1
    %p323 = por %p321, %p322
    %p324 = scmp.ne.s32.totalorder %s315, %s316
    %p325 = scmp.eq.s32.totalorder %s27, 0
    %p326 = por %p324, %p325
    %p327 = scmp.ne.s32.totalorder %s315, %s316
    %p328 = scmp.eq.s32.totalorder %s28, 1
    %p329 = por %p327, %p328
    %p331 = scmp.ne.s32.totalorder %s316, %s330
    %p332 = scmp.eq.s32.totalorder %s28, 0
    %p333 = por %p331, %p332
    %s334 = ssub.s32 %s22, %s29
    %p335 = scmp.eq.s32.totalorder %s334, 0
    %s337 = sadd.s32 %s336, 1
    %s338 = scalar_select %p335, %s336, %s337
    %p341 = pneg %p335
    %p342 = scmp.eq.s32.totalorder %s22, 1
    %p343 = por %p341, %p342
    %p344 = scmp.ne.s32.totalorder %s336, %s339
    %p345 = scmp.eq.s32.totalorder %s22, 0
    %p346 = por %p344, %p345
    %p347 = scmp.ne.s32.totalorder %s336, %s339
    %p348 = scmp.eq.s32.totalorder %s27, 1
    %p349 = por %p347, %p348
    %p350 = scmp.ne.s32.totalorder %s339, %s340
    %p351 = scmp.eq.s32.totalorder %s27, 0
    %p352 = por %p350, %p351
    %p353 = scmp.ne.s32.totalorder %s339, %s340
    %p354 = scmp.eq.s32.totalorder %s28, 1
    %p355 = por %p353, %p354
    %p357 = scmp.ne.s32.totalorder %s340, %s356
    %p358 = scmp.eq.s32.totalorder %s28, 0
    %p359 = por %p357, %p358
    %p360 = scmp.le.s32.totalorder 1, %s22
    %p361 = scmp.lt.s32.totalorder %s22, 3
    %p362 = pnand %p360, %p361
    %p363 = pneg %p362
    // Predicated region
    $region9: #{tpu_custom_call.1} parent=5 // pred_check
      _
    $region10: #{tpu_custom_call.1} parent=5 // pred_check_branch
      %365 = sbr.rel (%p362) target = $region12
    $region11: #{tpu_custom_call.1} parent=5 // pred_region
      %s366 = ssub.s32 %s22, 1
      // Predicated region
      $region13: #{tpu_custom_call.1} parent=11 // pred_check
        %p367 = pneg %p95
      $region14: #{tpu_custom_call.1} parent=11 // pred_check_branch
        %369 = sbr.rel (%p367) target = $region16
      $region15: #{tpu_custom_call.1} parent=11 // pred_region
        _
      $region16: #{tpu_custom_call.1} parent=11 // pred_fallthru
        _
      // Predicated region
      $region17: #{tpu_custom_call.1} parent=11 // pred_check
        %p370 = pneg %p116
      $region18: #{tpu_custom_call.1} parent=11 // pred_check_branch
        %372 = sbr.rel (%p370) target = $region20
      $region19: #{tpu_custom_call.1} parent=11 // pred_region
        _
      $region20: #{tpu_custom_call.1} parent=11 // pred_fallthru
        _
      // Predicated region
      $region21: #{tpu_custom_call.1} parent=11 // pred_check
        %p373 = pneg %p137
      $region22: #{tpu_custom_call.1} parent=11 // pred_check_branch
        %375 = sbr.rel (%p373) target = $region24
      $region23: #{tpu_custom_call.1} parent=11 // pred_region
        _
      $region24: #{tpu_custom_call.1} parent=11 // pred_fallthru
        _
      // Predicated region
      $region25: #{tpu_custom_call.1} parent=11 // pred_check
        %p376 = pneg %p158
      $region26: #{tpu_custom_call.1} parent=11 // pred_check_branch
        %378 = sbr.rel (%p376) target = $region28
      $region27: #{tpu_custom_call.1} parent=11 // pred_region
        _
      $region28: #{tpu_custom_call.1} parent=11 // pred_fallthru
        _
      // Predicated region
      $region29: #{tpu_custom_call.1} parent=11 // pred_check
        %p379 = pneg %p179
      $region30: #{tpu_custom_call.1} parent=11 // pred_check_branch
        %381 = sbr.rel (%p379) target = $region32
      $region31: #{tpu_custom_call.1} parent=11 // pred_region
        _
      $region32: #{tpu_custom_call.1} parent=11 // pred_fallthru
        _
      // Predicated region
      $region33: #{tpu_custom_call.1} parent=11 // pred_check
        %p382 = pneg %p200
      $region34: #{tpu_custom_call.1} parent=11 // pred_check_branch
        %384 = sbr.rel (%p382) target = $region36
      $region35: #{tpu_custom_call.1} parent=11 // pred_region
        _
      $region36: #{tpu_custom_call.1} parent=11 // pred_fallthru
        _
      // Predicated region
      $region37: #{tpu_custom_call.1} parent=11 // pred_check
        %p385 = pneg %p221
      $region38: #{tpu_custom_call.1} parent=11 // pred_check_branch
        %387 = sbr.rel (%p385) target = $region40
      $region39: #{tpu_custom_call.1} parent=11 // pred_region
        _
      $region40: #{tpu_custom_call.1} parent=11 // pred_fallthru
        _
      // Predicated region
      $region41: #{tpu_custom_call.1} parent=11 // pred_check
        %p388 = pneg %p242
      $region42: #{tpu_custom_call.1} parent=11 // pred_check_branch
        %390 = sbr.rel (%p388) target = $region44
      $region43: #{tpu_custom_call.1} parent=11 // pred_region
        _
      $region44: #{tpu_custom_call.1} parent=11 // pred_fallthru
        _
      // Predicated region
      $region45: #{tpu_custom_call.1} parent=11 // pred_check
        %p391 = pneg %p263
      $region46: #{tpu_custom_call.1} parent=11 // pred_check_branch
        %393 = sbr.rel (%p391) target = $region48
      $region47: #{tpu_custom_call.1} parent=11 // pred_region
        _
      $region48: #{tpu_custom_call.1} parent=11 // pred_fallthru
        _
      // Predicated region
      $region49: #{tpu_custom_call.1} parent=11 // pred_check
        %p394 = pneg %p284
      $region50: #{tpu_custom_call.1} parent=11 // pred_check_branch
        %396 = sbr.rel (%p394) target = $region52
      $region51: #{tpu_custom_call.1} parent=11 // pred_region
        _
      $region52: #{tpu_custom_call.1} parent=11 // pred_fallthru
        _
      // Predicated region
      $region53: #{tpu_custom_call.1} parent=11 // pred_check
        %p397 = pneg %p305
      $region54: #{tpu_custom_call.1} parent=11 // pred_check_branch
        %399 = sbr.rel (%p397) target = $region56
      $region55: #{tpu_custom_call.1} parent=11 // pred_region
        _
      $region56: #{tpu_custom_call.1} parent=11 // pred_fallthru
        _
      // Predicated region
      $region57: #{tpu_custom_call.1} parent=11 // pred_check
        %p400 = pneg %p326
      $region58: #{tpu_custom_call.1} parent=11 // pred_check_branch
        %402 = sbr.rel (%p400) target = $region60
      $region59: #{tpu_custom_call.1} parent=11 // pred_region
        _
      $region60: #{tpu_custom_call.1} parent=11 // pred_fallthru
        _
    $region12: #{tpu_custom_call.1} parent=5 // pred_fallthru
      _
    %p403 = scmp.lt.s32.totalorder %s22, 2
    // Predicated region
    $region61: #{tpu_custom_call.1} parent=5 // pred_check
      %p404 = pneg %p403
    $region62: #{tpu_custom_call.1} parent=5 // pred_check_branch
      %406 = sbr.rel (%p404) target = $region64
    $region63: #{tpu_custom_call.1} parent=5 // pred_region
      // Predicated region
      $region65: #{tpu_custom_call.1} parent=63 // pred_check
        %p407 = pneg %p42
      $region66: #{tpu_custom_call.1} parent=63 // pred_check_branch
        %409 = sbr.rel (%p407) target = $region68
      $region67: #{tpu_custom_call.1} parent=63 // pred_region
        %s410 = smul.u32 16, %s22
        %p411 = scmp.lt.s32.totalorder %s410, 31
        %s412 = scalar_select %p411, %s410, 31
        %s413 = smul.addr %s412, 8
        %s414 = scalar_lea.vmem %s0, %s413
        %s415 = smul.u32 16, %s22
      $region68: #{tpu_custom_call.1} parent=63 // pred_fallthru
        _
      // Predicated region
      $region69: #{tpu_custom_call.1} parent=63 // pred_check
        %p416 = pneg %p68
      $region70: #{tpu_custom_call.1} parent=63 // pred_check_branch
        %418 = sbr.rel (%p416) target = $region72
      $region71: #{tpu_custom_call.1} parent=63 // pred_region
        %s419 = smul.u32 16, %s22
        %p420 = scmp.lt.s32.totalorder %s419, 31
        %s421 = scalar_select %p420, %s419, 31
        %s422 = smul.addr %s421, 8
        %s423 = scalar_lea.vmem %s1, %s422
        %s424 = smul.u32 16, %s22
      $region72: #{tpu_custom_call.1} parent=63 // pred_fallthru
        _
    $region64: #{tpu_custom_call.1} parent=5 // pred_fallthru
      _
    %p425 = scmp.le.s32.totalorder 1, %s22
    %p426 = scmp.lt.s32.totalorder %s22, 3
    %p427 = pnand %p425, %p426
    %p428 = pneg %p427
    // Predicated region
    $region73: #{tpu_custom_call.1} parent=5 // pred_check
      _
    $region74: #{tpu_custom_call.1} parent=5 // pred_check_branch
      %430 = sbr.rel (%p427) target = $region76
    $region75: #{tpu_custom_call.1} parent=5 // pred_region
      %s431 = ssub.s32 %s22, 1
      %s432 = smul.u32 16, %s27
      %p433 = scmp.lt.s32.totalorder %s432, 31
      %s434 = scalar_select %p433, %s432, 31
      %s435 = smul.addr %s434, 8
      %s436 = scalar_lea.vmem %s0, %s435
      %p437 = pneg %p48
      %p438 = pneg %p45
      %s439 = smul.u32 16, %s27
      %p440 = scmp.lt.s32.totalorder %s439, 31
      %s441 = scalar_select %p440, %s439, 31
      %s442 = smul.addr %s441, 8
      %s443 = scalar_lea.vmem %s1, %s442
      %p444 = pneg %p74
      %p445 = pneg %p71
      %p446 = pneg %p95
      %p447 = pneg %p92
      %p448 = pneg %p116
      %p449 = pneg %p113
      %p450 = pneg %p137
      %p451 = pneg %p134
      %p452 = pneg %p158
      %p453 = pneg %p155
      %p454 = pneg %p179
      %p455 = pneg %p176
      %p456 = pneg %p200
      %p457 = pneg %p197
      %p458 = pneg %p221
      %p459 = pneg %p218
      %p460 = pneg %p242
      %p461 = pneg %p239
      %p462 = pneg %p263
      %p463 = pneg %p260
      %p464 = pneg %p284
      %p465 = pneg %p281
      %p466 = pneg %p305
      %p467 = pneg %p302
      %p468 = pneg %p326
      %p469 = pneg %p323
      %p470 = pneg %p352
      %p471 = pneg %p349
      %s472 = smul.u32 16, %s27
      %p473 = scmp.lt.s32.totalorder %s472, 31
      %s474 = scalar_select %p473, %s472, 31
      %s475 = smul.addr %s474, 8
      %s476 = scalar_lea.vmem %s14, %s475
      %s477 = smul.u32 16, %s27
      %p478 = scmp.lt.s32.totalorder %s477, 31
      %s479 = scalar_select %p478, %s477, 31
      %s480 = smul.addr %s479, 8
      %s481 = scalar_lea.vmem %s0, %s480
      %s482 = smul.u32 16, %s27
      %s483 = smul.u32 16, %s27
      %p484 = scmp.lt.s32.totalorder %s483, 31
      %s485 = scalar_select %p484, %s483, 31
      %s486 = smul.addr %s485, 8
      %s487 = scalar_lea.vmem %s1, %s486
      %s488 = smul.u32 16, %s27
      %s489 = smul.u32 16, %s27
      %p490 = scmp.lt.s32.totalorder %s489, 31
      %s491 = scalar_select %p490, %s489, 31
      %s492 = smul.addr %s491, 8
      %s493 = scalar_lea.vmem %s14, %s492
      %s494 = smul.u32 16, %s27
      %v496 = vld [vmem:[%s487] sm:$0xff]
      %v497 = vld [vmem:[%s487 + $0x8] sm:$0xff]
      %v498 = vld [vmem:[%s487 + $0x10] sm:$0xff]
      %v499 = vld [vmem:[%s487 + $0x18] sm:$0xff]
      %v500 = vld [vmem:[%s487 + $0x20] sm:$0xff]
      %v501 = vld [vmem:[%s487 + $0x28] sm:$0xff]
      %v502 = vld [vmem:[%s487 + $0x30] sm:$0xff]
      %v503 = vld [vmem:[%s487 + $0x38] sm:$0xff]
      %v504 = vld [vmem:[%s487 + $0x40] sm:$0xff]
      %v505 = vld [vmem:[%s487 + $0x48] sm:$0xff]
      %v506 = vld [vmem:[%s487 + $0x50] sm:$0xff]
      %v507 = vld [vmem:[%s487 + $0x58] sm:$0xff]
      %v508 = vld [vmem:[%s487 + $0x60] sm:$0xff]
      %v509 = vld [vmem:[%s487 + $0x68] sm:$0xff]
      %v510 = vld [vmem:[%s487 + $0x70] sm:$0xff]
      %v511 = vld [vmem:[%s487 + $0x78] sm:$0xff]
      %v512 = vld [vmem:[%s6] sm:$0xf]
      %v513 = vld [vmem:[%s6 + $0x4] sm:$0x7]
      %v514 = vld [vmem:[%s7] sm:$0x1]
      %v515 = vpack.c.bf16 %v497, %v496
      %v516 = vpack.c.bf16 %v499, %v498
      %v517 = vpack.c.bf16 %v501, %v500
      %v518 = vpack.c.bf16 %v503, %v502
      %v519 = vpack.c.bf16 %v505, %v504
      %v520 = vpack.c.bf16 %v507, %v506
      %v521 = vpack.c.bf16 %v509, %v508
      %v522 = vpack.c.bf16 %v511, %v510
      %v524 = vlaneseq
      %v525 = vshrl.u32 %v524, 7
      %v526 = vsub.s32 0, %v525
      %v527 = vrot.slane %v514, %v526
      %v531 = vunpack.c.l.b16 %v512
      %v532 = vunpack.c.l.b16 %v513
      %v533 = vpack.c.b16 %v532, %v531
      %vm534 = vcmask 105472
      %v536 = vsel %vm534, %v515, 0
      %v539 = vsel %vm534, %v516, 0
      %v542 = vsel %vm534, %v517, 0
      %v545 = vsel %vm534, %v518, 0
      %v548 = vsel %vm534, %v519, 0
      %v551 = vsel %vm534, %v520, 0
      %v554 = vsel %vm534, %v521, 0
      %v557 = vsel %vm534, %v522, 0
      %vm559 = vcmask 1045504
      %vm560 = vcmask 1046528
      %v561 = vsel %vm559, 4294967295, 65535
      %v562 = vsel %vm560, %v561, 0
      %v564 = vand.u32 %v533, %v562
      %566 = vmatprep.subr.bf16.mxu0 0
      %567 = vmatpush1.bf16.msra.mxu0 %v564
      %568 = vmatprep.subr.bf16.mxu0 0
      %569 = vmatpush1.bf16.msra.mxu0 0
      %570 = vmatprep.subr.bf16.mxu0 0
      %571 = vmatpush1.bf16.msra.mxu0 0
      %572 = vmatprep.subr.bf16.mxu0 0
      %573 = vmatpush1.bf16.msra.mxu0 0
      %574 = vmatprep.subr.bf16.mxu0 0
      %575 = vmatpush1.bf16.msra.mxu0 0
      %576 = vmatprep.subr.bf16.mxu0 0
      %577 = vmatpush1.bf16.msra.mxu0 0
      %578 = vmatprep.subr.bf16.mxu0 0
      %579 = vmatpush1.bf16.msra.mxu0 0
      %580 = vmatprep.subr.bf16.mxu0 0
      %581 = vmatpush1.bf16.msra.mxu0 0
      %582 = vmatprep.subr.bf16.mxu0 0
      %583 = vmatpush1.bf16.msra.mxu0 0
      %584 = vmatprep.subr.bf16.mxu0 0
      %585 = vmatpush1.bf16.msra.mxu0 0
      %586 = vmatprep.subr.bf16.mxu0 0
      %587 = vmatpush1.bf16.msra.mxu0 0
      %588 = vmatprep.subr.bf16.mxu0 0
      %589 = vmatpush1.bf16.msra.mxu0 0
      %590 = vmatprep.subr.bf16.mxu0 0
      %591 = vmatpush1.bf16.msra.mxu0 0
      %592 = vmatprep.subr.bf16.mxu0 0
      %593 = vmatpush1.bf16.msra.mxu0 0
      %594 = vmatprep.subr.bf16.mxu0 0
      %595 = vmatpush1.bf16.msra.mxu0 0
      %596 = vmatprep.subr.bf16.mxu0 0
      %597 = vmatpush1.bf16.msra.mxu0 0
      %598 = vmatprep.mubr.bf16.mxu0 0
      %599 = vmatmul.mubr.bf16.gmra.mrb[0].mxu0 %v536
      %v600 = vpop.f32.mrb[0].mxu0
      %v601 = vadd.f32 %v527, %v600
      %v602 = vpop.f32.mrb[0].mxu0
      %v603 = vpop.f32.mrb[0].mxu0
      %v604 = vadd.f32 %v527, %v603
      %v605 = vpop.f32.mrb[0].mxu0
      %606 = vmatprep.mubr.bf16.mxu0 0
      %607 = vmatmul.mubr.bf16.gmra.mrb[0].mxu0 %v539
      %v608 = vpop.f32.mrb[0].mxu0
      %v609 = vadd.f32 %v527, %v608
      %v610 = vpop.f32.mrb[0].mxu0
      %v611 = vpop.f32.mrb[0].mxu0
      %v612 = vadd.f32 %v527, %v611
      %v613 = vpop.f32.mrb[0].mxu0
      %614 = vmatprep.mubr.bf16.mxu0 0
      %615 = vmatmul.mubr.bf16.gmra.mrb[0].mxu0 %v542
      %v616 = vpop.f32.mrb[0].mxu0
      %v617 = vadd.f32 %v527, %v616
      %v618 = vpop.f32.mrb[0].mxu0
      %v619 = vpop.f32.mrb[0].mxu0
      %v620 = vadd.f32 %v527, %v619
      %v621 = vpop.f32.mrb[0].mxu0
      %622 = vmatprep.mubr.bf16.mxu0 0
      %623 = vmatmul.mubr.bf16.gmra.mrb[0].mxu0 %v545
      %v624 = vpop.f32.mrb[0].mxu0
      %v625 = vadd.f32 %v527, %v624
      %v626 = vpop.f32.mrb[0].mxu0
      %v627 = vpop.f32.mrb[0].mxu0
      %v628 = vadd.f32 %v527, %v627
      %v629 = vpop.f32.mrb[0].mxu0
      %630 = vmatprep.mubr.bf16.mxu0 0
      %631 = vmatmul.mubr.bf16.gmra.mrb[0].mxu0 %v548
      %v632 = vpop.f32.mrb[0].mxu0
      %v633 = vadd.f32 %v527, %v632
      %v634 = vpop.f32.mrb[0].mxu0
      %v635 = vpop.f32.mrb[0].mxu0
      %v636 = vadd.f32 %v527, %v635
      %v637 = vpop.f32.mrb[0].mxu0
      %638 = vmatprep.mubr.bf16.mxu0 0
      %639 = vmatmul.mubr.bf16.gmra.mrb[0].mxu0 %v551
      %v640 = vpop.f32.mrb[0].mxu0
      %v641 = vadd.f32 %v527, %v640
      %v642 = vpop.f32.mrb[0].mxu0
      %v643 = vpop.f32.mrb[0].mxu0
      %v644 = vadd.f32 %v527, %v643
      %v645 = vpop.f32.mrb[0].mxu0
      %646 = vmatprep.mubr.bf16.mxu0 0
      %647 = vmatmul.mubr.bf16.gmra.mrb[0].mxu0 %v554
      %v648 = vpop.f32.mrb[0].mxu0
      %v649 = vadd.f32 %v527, %v648
      %v650 = vpop.f32.mrb[0].mxu0
      %v651 = vpop.f32.mrb[0].mxu0
      %v652 = vadd.f32 %v527, %v651
      %v653 = vpop.f32.mrb[0].mxu0
      %654 = vmatprep.mubr.bf16.mxu0 0
      %655 = vmatmul.mubr.bf16.gmra.mrb[0].mxu0 %v557
      %v656 = vpop.f32.mrb[0].mxu0
      %v657 = vadd.f32 %v527, %v656
      %v658 = vpop.f32.mrb[0].mxu0
      %v659 = vpop.f32.mrb[0].mxu0
      %v660 = vadd.f32 %v527, %v659
      %v661 = vpop.f32.mrb[0].mxu0
      %662 = vdwg.mxu0
      %v663 = vmax.f32 %v601, 0.0
      %v664 = vmax.f32 %v604, 0.0
      %v665 = vmax.f32 %v609, 0.0
      %v666 = vmax.f32 %v612, 0.0
      %v667 = vmax.f32 %v617, 0.0
      %v668 = vmax.f32 %v620, 0.0
      %v669 = vmax.f32 %v625, 0.0
      %v670 = vmax.f32 %v628, 0.0
      %v671 = vmax.f32 %v633, 0.0
      %v672 = vmax.f32 %v636, 0.0
      %v673 = vmax.f32 %v641, 0.0
      %v674 = vmax.f32 %v644, 0.0
      %v675 = vmax.f32 %v649, 0.0
      %v676 = vmax.f32 %v652, 0.0
      %v677 = vmax.f32 %v657, 0.0
      %v678 = vmax.f32 %v660, 0.0
      %v679 = vld [vmem:[%s8] sm:$0xf]
      %v680 = vld [vmem:[%s8 + $0x4] sm:$0xf]
      %v681 = vld [vmem:[%s8 + $0x8] sm:$0xf]
      %v682 = vld [vmem:[%s8 + $0xc] sm:$0xf]
      %v683 = vld [vmem:[%s8 + $0x10] sm:$0xf]
      %v684 = vld [vmem:[%s8 + $0x14] sm:$0xf]
      %v685 = vld [vmem:[%s8 + $0x18] sm:$0xf]
      %v686 = vld [vmem:[%s8 + $0x1c] sm:$0xf]
      %v687 = vld [vmem:[%s9] sm:$0x1]
      %v688 = vpack.c.bf16 %v664, %v663
      %v689 = vpack.c.bf16 %v666, %v665
      %v690 = vpack.c.bf16 %v668, %v667
      %v691 = vpack.c.bf16 %v670, %v669
      %v692 = vpack.c.bf16 %v672, %v671
      %v693 = vpack.c.bf16 %v674, %v673
      %v694 = vpack.c.bf16 %v676, %v675
      %v695 = vpack.c.bf16 %v678, %v677
      %v697 = vlaneseq
      %v698 = vshrl.u32 %v697, 7
      %v699 = vsub.s32 0, %v698
      %v700 = vrot.slane %v687, %v699
      %v710 = vunpack.c.l.b16 %v679
      %v711 = vunpack.c.l.b16 %v680
      %v712 = vunpack.c.l.b16 %v681
      %v713 = vunpack.c.l.b16 %v682
      %v714 = vunpack.c.l.b16 %v683
      %v715 = vunpack.c.l.b16 %v684
      %v716 = vunpack.c.l.b16 %v685
      %v717 = vunpack.c.l.b16 %v686
      %v718 = vpack.c.b16 %v711, %v710
      %v719 = vpack.c.b16 %v713, %v712
      %v720 = vpack.c.b16 %v715, %v714
      %v721 = vpack.c.b16 %v717, %v716
      %vm726 = vcmask 523264
      %v728 = vsel %vm726, %v688, 0
      %v731 = vsel %vm726, %v689, 0
      %v734 = vsel %vm726, %v690, 0
      %v737 = vsel %vm726, %v691, 0
      %v740 = vsel %vm726, %v692, 0
      %v743 = vsel %vm726, %v693, 0
      %v746 = vsel %vm726, %v694, 0
      %v749 = vsel %vm726, %v695, 0
      %751 = vmatprep.subr.bf16.mxu0 0
      %752 = vmatpush1.bf16.msra.mxu0 %v718
      %753 = vmatprep.subr.bf16.mxu0 0
      %754 = vmatpush1.bf16.msra.mxu0 %v719
      %755 = vmatprep.subr.bf16.mxu0 0
      %756 = vmatpush1.bf16.msra.mxu0 %v720
      %757 = vmatprep.subr.bf16.mxu0 0
      %758 = vmatpush1.bf16.msra.mxu0 %v721
      %759 = vmatprep.subr.bf16.mxu0 0
      %760 = vmatpush1.bf16.msra.mxu0 0
      %761 = vmatprep.subr.bf16.mxu0 0
      %762 = vmatpush1.bf16.msra.mxu0 0
      %763 = vmatprep.subr.bf16.mxu0 0
      %764 = vmatpush1.bf16.msra.mxu0 0
      %765 = vmatprep.subr.bf16.mxu0 0
      %766 = vmatpush1.bf16.msra.mxu0 0
      %767 = vmatprep.subr.bf16.mxu0 0
      %768 = vmatpush1.bf16.msra.mxu0 0
      %769 = vmatprep.subr.bf16.mxu0 0
      %770 = vmatpush1.bf16.msra.mxu0 0
      %771 = vmatprep.subr.bf16.mxu0 0
      %772 = vmatpush1.bf16.msra.mxu0 0
      %773 = vmatprep.subr.bf16.mxu0 0
      %774 = vmatpush1.bf16.msra.mxu0 0
      %775 = vmatprep.subr.bf16.mxu0 0
      %776 = vmatpush1.bf16.msra.mxu0 0
      %777 = vmatprep.subr.bf16.mxu0 0
      %778 = vmatpush1.bf16.msra.mxu0 0
      %779 = vmatprep.subr.bf16.mxu0 0
      %780 = vmatpush1.bf16.msra.mxu0 0
      %781 = vmatprep.subr.bf16.mxu0 0
      %782 = vmatpush1.bf16.msra.mxu0 0
      %783 = vmatprep.mubr.bf16.mxu0 0
      %784 = vmatmul.mubr.bf16.gmra.mrb[0].mxu0 %v728
      %v785 = vpop.f32.mrb[0].mxu0
      %v786 = vadd.f32 %v700, %v785
      %v787 = vpop.f32.mrb[0].mxu0
      %v788 = vpop.f32.mrb[0].mxu0
      %v789 = vadd.f32 %v700, %v788
      %v790 = vpop.f32.mrb[0].mxu0
      %791 = vmatprep.mubr.bf16.mxu0 0
      %792 = vmatmul.mubr.bf16.gmra.mrb[0].mxu0 %v731
      %v793 = vpop.f32.mrb[0].mxu0
      %v794 = vadd.f32 %v700, %v793
      %v795 = vpop.f32.mrb[0].mxu0
      %v796 = vpop.f32.mrb[0].mxu0
      %v797 = vadd.f32 %v700, %v796
      %v798 = vpop.f32.mrb[0].mxu0
      %799 = vmatprep.mubr.bf16.mxu0 0
      %800 = vmatmul.mubr.bf16.gmra.mrb[0].mxu0 %v734
      %v801 = vpop.f32.mrb[0].mxu0
      %v802 = vadd.f32 %v700, %v801
      %v803 = vpop.f32.mrb[0].mxu0
      %v804 = vpop.f32.mrb[0].mxu0
      %v805 = vadd.f32 %v700, %v804
      %v806 = vpop.f32.mrb[0].mxu0
      %807 = vmatprep.mubr.bf16.mxu0 0
      %808 = vmatmul.mubr.bf16.gmra.mrb[0].mxu0 %v737
      %v809 = vpop.f32.mrb[0].mxu0
      %v810 = vadd.f32 %v700, %v809
      %v811 = vpop.f32.mrb[0].mxu0
      %v812 = vpop.f32.mrb[0].mxu0
      %v813 = vadd.f32 %v700, %v812
      %v814 = vpop.f32.mrb[0].mxu0
      %815 = vmatprep.mubr.bf16.mxu0 0
      %816 = vmatmul.mubr.bf16.gmra.mrb[0].mxu0 %v740
      %v817 = vpop.f32.mrb[0].mxu0
      %v818 = vadd.f32 %v700, %v817
      %v819 = vpop.f32.mrb[0].mxu0
      %v820 = vpop.f32.mrb[0].mxu0
      %v821 = vadd.f32 %v700, %v820
      %v822 = vpop.f32.mrb[0].mxu0
      %823 = vmatprep.mubr.bf16.mxu0 0
      %824 = vmatmul.mubr.bf16.gmra.mrb[0].mxu0 %v743
      %v825 = vpop.f32.mrb[0].mxu0
      %v826 = vadd.f32 %v700, %v825
      %v827 = vpop.f32.mrb[0].mxu0
      %v828 = vpop.f32.mrb[0].mxu0
      %v829 = vadd.f32 %v700, %v828
      %v830 = vpop.f32.mrb[0].mxu0
      %831 = vmatprep.mubr.bf16.mxu0 0
      %832 = vmatmul.mubr.bf16.gmra.mrb[0].mxu0 %v746
      %v833 = vpop.f32.mrb[0].mxu0
      %v834 = vadd.f32 %v700, %v833
      %v835 = vpop.f32.mrb[0].mxu0
      %v836 = vpop.f32.mrb[0].mxu0
      %v837 = vadd.f32 %v700, %v836
      %v838 = vpop.f32.mrb[0].mxu0
      %839 = vmatprep.mubr.bf16.mxu0 0
      %840 = vmatmul.mubr.bf16.gmra.mrb[0].mxu0 %v749
      %v841 = vpop.f32.mrb[0].mxu0
      %v842 = vadd.f32 %v700, %v841
      %v843 = vpop.f32.mrb[0].mxu0
      %v844 = vpop.f32.mrb[0].mxu0
      %v845 = vadd.f32 %v700, %v844
      %v846 = vpop.f32.mrb[0].mxu0
      %847 = vdwg.mxu0
      %v848 = vmax.f32 %v786, 0.0
      %v849 = vmax.f32 %v789, 0.0
      %v850 = vmax.f32 %v794, 0.0
      %v851 = vmax.f32 %v797, 0.0
      %v852 = vmax.f32 %v802, 0.0
      %v853 = vmax.f32 %v805, 0.0
      %v854 = vmax.f32 %v810, 0.0
      %v855 = vmax.f32 %v813, 0.0
      %v856 = vmax.f32 %v818, 0.0
      %v857 = vmax.f32 %v821, 0.0
      %v858 = vmax.f32 %v826, 0.0
      %v859 = vmax.f32 %v829, 0.0
      %v860 = vmax.f32 %v834, 0.0
      %v861 = vmax.f32 %v837, 0.0
      %v862 = vmax.f32 %v842, 0.0
      %v863 = vmax.f32 %v845, 0.0
      %v864 = vld [vmem:[%s481] sm:$0xff]
      %v865 = vld [vmem:[%s481 + $0x8] sm:$0xff]
      %v866 = vld [vmem:[%s481 + $0x10] sm:$0xff]
      %v867 = vld [vmem:[%s481 + $0x18] sm:$0xff]
      %v868 = vld [vmem:[%s481 + $0x20] sm:$0xff]
      %v869 = vld [vmem:[%s481 + $0x28] sm:$0xff]
      %v870 = vld [vmem:[%s481 + $0x30] sm:$0xff]
      %v871 = vld [vmem:[%s481 + $0x38] sm:$0xff]
      %v872 = vld [vmem:[%s481 + $0x40] sm:$0xff]
      %v873 = vld [vmem:[%s481 + $0x48] sm:$0xff]
      %v874 = vld [vmem:[%s481 + $0x50] sm:$0xff]
      %v875 = vld [vmem:[%s481 + $0x58] sm:$0xff]
      %v876 = vld [vmem:[%s481 + $0x60] sm:$0xff]
      %v877 = vld [vmem:[%s481 + $0x68] sm:$0xff]
      %v878 = vld [vmem:[%s481 + $0x70] sm:$0xff]
      %v879 = vld [vmem:[%s481 + $0x78] sm:$0xff]
      %v880 = vlaneseq
      %v881 = vand.u32 %v880, 127
      %v882 = vadd.s32 %v881, 128
      %883 = vset.pattern.permute.xlu0 0
      %884 = vperm.xlu0 %883, %v864
      %v885 = vpop.permute.xlu0 %884
      %886 = vset.pattern.permute.xlu0 0
      %887 = vperm.xlu0 %886, %v865
      %v888 = vpop.permute.xlu0 %887
      %889 = vset.pattern.permute.xlu0 0
      %890 = vperm.xlu0 %889, %v866
      %v891 = vpop.permute.xlu0 %890
      %892 = vset.pattern.permute.xlu0 0
      %893 = vperm.xlu0 %892, %v867
      %v894 = vpop.permute.xlu0 %893
      %895 = vset.pattern.permute.xlu0 0
      %896 = vperm.xlu0 %895, %v868
      %v897 = vpop.permute.xlu0 %896
      %898 = vset.pattern.permute.xlu0 0
      %899 = vperm.xlu0 %898, %v869
      %v900 = vpop.permute.xlu0 %899
      %901 = vset.pattern.permute.xlu0 0
      %902 = vperm.xlu0 %901, %v870
      %v903 = vpop.permute.xlu0 %902
      %904 = vset.pattern.permute.xlu0 0
      %905 = vperm.xlu0 %904, %v871
      %v906 = vpop.permute.xlu0 %905
      %907 = vset.pattern.permute.xlu0 0
      %908 = vperm.xlu0 %907, %v872
      %v909 = vpop.permute.xlu0 %908
      %910 = vset.pattern.permute.xlu0 0
      %911 = vperm.xlu0 %910, %v873
      %v912 = vpop.permute.xlu0 %911
      %913 = vset.pattern.permute.xlu0 0
      %914 = vperm.xlu0 %913, %v874
      %v915 = vpop.permute.xlu0 %914
      %916 = vset.pattern.permute.xlu0 0
      %917 = vperm.xlu0 %916, %v875
      %v918 = vpop.permute.xlu0 %917
      %919 = vset.pattern.permute.xlu0 0
      %920 = vperm.xlu0 %919, %v876
      %v921 = vpop.permute.xlu0 %920
      %922 = vset.pattern.permute.xlu0 0
      %923 = vperm.xlu0 %922, %v877
      %v924 = vpop.permute.xlu0 %923
      %925 = vset.pattern.permute.xlu0 0
      %926 = vperm.xlu0 %925, %v878
      %v927 = vpop.permute.xlu0 %926
      %928 = vset.pattern.permute.xlu0 0
      %929 = vperm.xlu0 %928, %v879
      %v930 = vpop.permute.xlu0 %929
      %vm931 = vcmp.eq.s32.totalorder %v885, %v881
      %vm932 = vcmp.eq.s32.totalorder %v885, %v882
      %vm933 = vcmp.eq.s32.totalorder %v888, %v881
      %vm934 = vcmp.eq.s32.totalorder %v888, %v882
      %vm935 = vcmp.eq.s32.totalorder %v891, %v881
      %vm936 = vcmp.eq.s32.totalorder %v891, %v882
      %vm937 = vcmp.eq.s32.totalorder %v894, %v881
      %vm938 = vcmp.eq.s32.totalorder %v894, %v882
      %vm939 = vcmp.eq.s32.totalorder %v897, %v881
      %vm940 = vcmp.eq.s32.totalorder %v897, %v882
      %vm941 = vcmp.eq.s32.totalorder %v900, %v881
      %vm942 = vcmp.eq.s32.totalorder %v900, %v882
      %vm943 = vcmp.eq.s32.totalorder %v903, %v881
      %vm944 = vcmp.eq.s32.totalorder %v903, %v882
      %vm945 = vcmp.eq.s32.totalorder %v906, %v881
      %vm946 = vcmp.eq.s32.totalorder %v906, %v882
      %vm947 = vcmp.eq.s32.totalorder %v909, %v881
      %vm948 = vcmp.eq.s32.totalorder %v909, %v882
      %vm949 = vcmp.eq.s32.totalorder %v912, %v881
      %vm950 = vcmp.eq.s32.totalorder %v912, %v882
      %vm951 = vcmp.eq.s32.totalorder %v915, %v881
      %vm952 = vcmp.eq.s32.totalorder %v915, %v882
      %vm953 = vcmp.eq.s32.totalorder %v918, %v881
      %vm954 = vcmp.eq.s32.totalorder %v918, %v882
      %vm955 = vcmp.eq.s32.totalorder %v921, %v881
      %vm956 = vcmp.eq.s32.totalorder %v921, %v882
      %vm957 = vcmp.eq.s32.totalorder %v924, %v881
      %vm958 = vcmp.eq.s32.totalorder %v924, %v882
      %vm959 = vcmp.eq.s32.totalorder %v927, %v881
      %vm960 = vcmp.eq.s32.totalorder %v927, %v882
      %vm961 = vcmp.eq.s32.totalorder %v930, %v881
      %vm962 = vcmp.eq.s32.totalorder %v930, %v882
      %v963 = vsel %vm931, 1, 0
      %v964 = vsel %vm932, 1, 0
      %v965 = vsel %vm933, 1, 0
      %v966 = vsel %vm934, 1, 0
      %v967 = vsel %vm935, 1, 0
      %v968 = vsel %vm936, 1, 0
      %v969 = vsel %vm937, 1, 0
      %v970 = vsel %vm938, 1, 0
      %v971 = vsel %vm939, 1, 0
      %v972 = vsel %vm940, 1, 0
      %v973 = vsel %vm941, 1, 0
      %v974 = vsel %vm942, 1, 0
      %v975 = vsel %vm943, 1, 0
      %v976 = vsel %vm944, 1, 0
      %v977 = vsel %vm945, 1, 0
      %v978 = vsel %vm946, 1, 0
      %v979 = vsel %vm947, 1, 0
      %v980 = vsel %vm948, 1, 0
      %v981 = vsel %vm949, 1, 0
      %v982 = vsel %vm950, 1, 0
      %v983 = vsel %vm951, 1, 0
      %v984 = vsel %vm952, 1, 0
      %v985 = vsel %vm953, 1, 0
      %v986 = vsel %vm954, 1, 0
      %v987 = vsel %vm955, 1, 0
      %v988 = vsel %vm956, 1, 0
      %v989 = vsel %vm957, 1, 0
      %v990 = vsel %vm958, 1, 0
      %v991 = vsel %vm959, 1, 0
      %v992 = vsel %vm960, 1, 0
      %v993 = vsel %vm961, 1, 0
      %v994 = vsel %vm962, 1, 0
      %v995 = vcvt.s32.f32 %v963
      %v996 = vcvt.s32.f32 %v964
      %v997 = vcvt.s32.f32 %v965
      %v998 = vcvt.s32.f32 %v966
      %v999 = vcvt.s32.f32 %v967
      %v1000 = vcvt.s32.f32 %v968
      %v1001 = vcvt.s32.f32 %v969
      %v1002 = vcvt.s32.f32 %v970
      %v1003 = vcvt.s32.f32 %v971
      %v1004 = vcvt.s32.f32 %v972
      %v1005 = vcvt.s32.f32 %v973
      %v1006 = vcvt.s32.f32 %v974
      %v1007 = vcvt.s32.f32 %v975
      %v1008 = vcvt.s32.f32 %v976
      %v1009 = vcvt.s32.f32 %v977
      %v1010 = vcvt.s32.f32 %v978
      %v1011 = vcvt.s32.f32 %v979
      %v1012 = vcvt.s32.f32 %v980
      %v1013 = vcvt.s32.f32 %v981
      %v1014 = vcvt.s32.f32 %v982
      %v1015 = vcvt.s32.f32 %v983
      %v1016 = vcvt.s32.f32 %v984
      %v1017 = vcvt.s32.f32 %v985
      %v1018 = vcvt.s32.f32 %v986
      %v1019 = vcvt.s32.f32 %v987
      %v1020 = vcvt.s32.f32 %v988
      %v1021 = vcvt.s32.f32 %v989
      %v1022 = vcvt.s32.f32 %v990
      %v1023 = vcvt.s32.f32 %v991
      %v1024 = vcvt.s32.f32 %v992
      %v1025 = vcvt.s32.f32 %v993
      %v1026 = vcvt.s32.f32 %v994
      %v1027 = vadd.f32 %v995, 0.0
      %v1028 = vadd.f32 %v996, 0.0
      %v1029 = vadd.f32 %v997, 0.0
      %v1030 = vadd.f32 %v998, 0.0
      %v1031 = vadd.f32 %v999, 0.0
      %v1032 = vadd.f32 %v1000, 0.0
      %v1033 = vadd.f32 %v1001, 0.0
      %v1034 = vadd.f32 %v1002, 0.0
      %v1035 = vadd.f32 %v1003, 0.0
      %v1036 = vadd.f32 %v1004, 0.0
      %v1037 = vadd.f32 %v1005, 0.0
      %v1038 = vadd.f32 %v1006, 0.0
      %v1039 = vadd.f32 %v1007, 0.0
      %v1040 = vadd.f32 %v1008, 0.0
      %v1041 = vadd.f32 %v1009, 0.0
      %v1042 = vadd.f32 %v1010, 0.0
      %v1043 = vadd.f32 %v1011, 0.0
      %v1044 = vadd.f32 %v1012, 0.0
      %v1045 = vadd.f32 %v1013, 0.0
      %v1046 = vadd.f32 %v1014, 0.0
      %v1047 = vadd.f32 %v1015, 0.0
      %v1048 = vadd.f32 %v1016, 0.0
      %v1049 = vadd.f32 %v1017, 0.0
      %v1050 = vadd.f32 %v1018, 0.0
      %v1051 = vadd.f32 %v1019, 0.0
      %v1052 = vadd.f32 %v1020, 0.0
      %v1053 = vadd.f32 %v1021, 0.0
      %v1054 = vadd.f32 %v1022, 0.0
      %v1055 = vadd.f32 %v1023, 0.0
      %v1056 = vadd.f32 %v1024, 0.0
      %v1057 = vadd.f32 %v1025, 0.0
      %v1058 = vadd.f32 %v1026, 0.0
      %1059 = vset.pattern.permute.xlu0 1
      %1060 = vperm.xlu0 %1059, %v864
      %v1061 = vpop.permute.xlu0 %1060
      %1062 = vset.pattern.permute.xlu0 1
      %1063 = vperm.xlu0 %1062, %v865
      %v1064 = vpop.permute.xlu0 %1063
      %1065 = vset.pattern.permute.xlu0 1
      %1066 = vperm.xlu0 %1065, %v866
      %v1067 = vpop.permute.xlu0 %1066
      %1068 = vset.pattern.permute.xlu0 1
      %1069 = vperm.xlu0 %1068, %v867
      %v1070 = vpop.permute.xlu0 %1069
      %1071 = vset.pattern.permute.xlu0 1
      %1072 = vperm.xlu0 %1071, %v868
      %v1073 = vpop.permute.xlu0 %1072
      %1074 = vset.pattern.permute.xlu0 1
      %1075 = vperm.xlu0 %1074, %v869
      %v1076 = vpop.permute.xlu0 %1075
      %1077 = vset.pattern.permute.xlu0 1
      %1078 = vperm.xlu0 %1077, %v870
      %v1079 = vpop.permute.xlu0 %1078
      %1080 = vset.pattern.permute.xlu0 1
      %1081 = vperm.xlu0 %1080, %v871
      %v1082 = vpop.permute.xlu0 %1081
      %1083 = vset.pattern.permute.xlu0 1
      %1084 = vperm.xlu0 %1083, %v872
      %v1085 = vpop.permute.xlu0 %1084
      %1086 = vset.pattern.permute.xlu0 1
      %1087 = vperm.xlu0 %1086, %v873
      %v1088 = vpop.permute.xlu0 %1087
      %1089 = vset.pattern.permute.xlu0 1
      %1090 = vperm.xlu0 %1089, %v874
      %v1091 = vpop.permute.xlu0 %1090
      %1092 = vset.pattern.permute.xlu0 1
      %1093 = vperm.xlu0 %1092, %v875
      %v1094 = vpop.permute.xlu0 %1093
      %1095 = vset.pattern.permute.xlu0 1
      %1096 = vperm.xlu0 %1095, %v876
      %v1097 = vpop.permute.xlu0 %1096
      %1098 = vset.pattern.permute.xlu0 1
      %1099 = vperm.xlu0 %1098, %v877
      %v1100 = vpop.permute.xlu0 %1099
      %1101 = vset.pattern.permute.xlu0 1
      %1102 = vperm.xlu0 %1101, %v878
      %v1103 = vpop.permute.xlu0 %1102
      %1104 = vset.pattern.permute.xlu0 1
      %1105 = vperm.xlu0 %1104, %v879
      %v1106 = vpop.permute.xlu0 %1105
      %vm1107 = vcmp.eq.s32.totalorder %v1061, %v881
      %vm1108 = vcmp.eq.s32.totalorder %v1061, %v882
      %vm1109 = vcmp.eq.s32.totalorder %v1064, %v881
      %vm1110 = vcmp.eq.s32.totalorder %v1064, %v882
      %vm1111 = vcmp.eq.s32.totalorder %v1067, %v881
      %vm1112 = vcmp.eq.s32.totalorder %v1067, %v882
      %vm1113 = vcmp.eq.s32.totalorder %v1070, %v881
      %vm1114 = vcmp.eq.s32.totalorder %v1070, %v882
      %vm1115 = vcmp.eq.s32.totalorder %v1073, %v881
      %vm1116 = vcmp.eq.s32.totalorder %v1073, %v882
      %vm1117 = vcmp.eq.s32.totalorder %v1076, %v881
      %vm1118 = vcmp.eq.s32.totalorder %v1076, %v882
      %vm1119 = vcmp.eq.s32.totalorder %v1079, %v881
      %vm1120 = vcmp.eq.s32.totalorder %v1079, %v882
      %vm1121 = vcmp.eq.s32.totalorder %v1082, %v881
      %vm1122 = vcmp.eq.s32.totalorder %v1082, %v882
      %vm1123 = vcmp.eq.s32.totalorder %v1085, %v881
      %vm1124 = vcmp.eq.s32.totalorder %v1085, %v882
      %vm1125 = vcmp.eq.s32.totalorder %v1088, %v881
      %vm1126 = vcmp.eq.s32.totalorder %v1088, %v882
      %vm1127 = vcmp.eq.s32.totalorder %v1091, %v881
      %vm1128 = vcmp.eq.s32.totalorder %v1091, %v882
      %vm1129 = vcmp.eq.s32.totalorder %v1094, %v881
      %vm1130 = vcmp.eq.s32.totalorder %v1094, %v882
      %vm1131 = vcmp.eq.s32.totalorder %v1097, %v881
      %vm1132 = vcmp.eq.s32.totalorder %v1097, %v882
      %vm1133 = vcmp.eq.s32.totalorder %v1100, %v881
      %vm1134 = vcmp.eq.s32.totalorder %v1100, %v882
      %vm1135 = vcmp.eq.s32.totalorder %v1103, %v881
      %vm1136 = vcmp.eq.s32.totalorder %v1103, %v882
      %vm1137 = vcmp.eq.s32.totalorder %v1106, %v881
      %vm1138 = vcmp.eq.s32.totalorder %v1106, %v882
      %v1139 = vsel %vm1107, 1, 0
      %v1140 = vsel %vm1108, 1, 0
      %v1141 = vsel %vm1109, 1, 0
      %v1142 = vsel %vm1110, 1, 0
      %v1143 = vsel %vm1111, 1, 0
      %v1144 = vsel %vm1112, 1, 0
      %v1145 = vsel %vm1113, 1, 0
      %v1146 = vsel %vm1114, 1, 0
      %v1147 = vsel %vm1115, 1, 0
      %v1148 = vsel %vm1116, 1, 0
      %v1149 = vsel %vm1117, 1, 0
      %v1150 = vsel %vm1118, 1, 0
      %v1151 = vsel %vm1119, 1, 0
      %v1152 = vsel %vm1120, 1, 0
      %v1153 = vsel %vm1121, 1, 0
      %v1154 = vsel %vm1122, 1, 0
      %v1155 = vsel %vm1123, 1, 0
      %v1156 = vsel %vm1124, 1, 0
      %v1157 = vsel %vm1125, 1, 0
      %v1158 = vsel %vm1126, 1, 0
      %v1159 = vsel %vm1127, 1, 0
      %v1160 = vsel %vm1128, 1, 0
      %v1161 = vsel %vm1129, 1, 0
      %v1162 = vsel %vm1130, 1, 0
      %v1163 = vsel %vm1131, 1, 0
      %v1164 = vsel %vm1132, 1, 0
      %v1165 = vsel %vm1133, 1, 0
      %v1166 = vsel %vm1134, 1, 0
      %v1167 = vsel %vm1135, 1, 0
      %v1168 = vsel %vm1136, 1, 0
      %v1169 = vsel %vm1137, 1, 0
      %v1170 = vsel %vm1138, 1, 0
      %v1171 = vcvt.s32.f32 %v1139
      %v1172 = vcvt.s32.f32 %v1140
      %v1173 = vcvt.s32.f32 %v1141
      %v1174 = vcvt.s32.f32 %v1142
      %v1175 = vcvt.s32.f32 %v1143
      %v1176 = vcvt.s32.f32 %v1144
      %v1177 = vcvt.s32.f32 %v1145
      %v1178 = vcvt.s32.f32 %v1146
      %v1179 = vcvt.s32.f32 %v1147
      %v1180 = vcvt.s32.f32 %v1148
      %v1181 = vcvt.s32.f32 %v1149
      %v1182 = vcvt.s32.f32 %v1150
      %v1183 = vcvt.s32.f32 %v1151
      %v1184 = vcvt.s32.f32 %v1152
      %v1185 = vcvt.s32.f32 %v1153
      %v1186 = vcvt.s32.f32 %v1154
      %v1187 = vcvt.s32.f32 %v1155
      %v1188 = vcvt.s32.f32 %v1156
      %v1189 = vcvt.s32.f32 %v1157
      %v1190 = vcvt.s32.f32 %v1158
      %v1191 = vcvt.s32.f32 %v1159
      %v1192 = vcvt.s32.f32 %v1160
      %v1193 = vcvt.s32.f32 %v1161
      %v1194 = vcvt.s32.f32 %v1162
      %v1195 = vcvt.s32.f32 %v1163
      %v1196 = vcvt.s32.f32 %v1164
      %v1197 = vcvt.s32.f32 %v1165
      %v1198 = vcvt.s32.f32 %v1166
      %v1199 = vcvt.s32.f32 %v1167
      %v1200 = vcvt.s32.f32 %v1168
      %v1201 = vcvt.s32.f32 %v1169
      %v1202 = vcvt.s32.f32 %v1170
      %v1203 = vadd.f32 %v1027, %v1171
      %v1204 = vadd.f32 %v1028, %v1172
      %v1205 = vadd.f32 %v1029, %v1173
      %v1206 = vadd.f32 %v1030, %v1174
      %v1207 = vadd.f32 %v1031, %v1175
      %v1208 = vadd.f32 %v1032, %v1176
      %v1209 = vadd.f32 %v1033, %v1177
      %v1210 = vadd.f32 %v1034, %v1178
      %v1211 = vadd.f32 %v1035, %v1179
      %v1212 = vadd.f32 %v1036, %v1180
      %v1213 = vadd.f32 %v1037, %v1181
      %v1214 = vadd.f32 %v1038, %v1182
      %v1215 = vadd.f32 %v1039, %v1183
      %v1216 = vadd.f32 %v1040, %v1184
      %v1217 = vadd.f32 %v1041, %v1185
      %v1218 = vadd.f32 %v1042, %v1186
      %v1219 = vadd.f32 %v1043, %v1187
      %v1220 = vadd.f32 %v1044, %v1188
      %v1221 = vadd.f32 %v1045, %v1189
      %v1222 = vadd.f32 %v1046, %v1190
      %v1223 = vadd.f32 %v1047, %v1191
      %v1224 = vadd.f32 %v1048, %v1192
      %v1225 = vadd.f32 %v1049, %v1193
      %v1226 = vadd.f32 %v1050, %v1194
      %v1227 = vadd.f32 %v1051, %v1195
      %v1228 = vadd.f32 %v1052, %v1196
      %v1229 = vadd.f32 %v1053, %v1197
      %v1230 = vadd.f32 %v1054, %v1198
      %v1231 = vadd.f32 %v1055, %v1199
      %v1232 = vadd.f32 %v1056, %v1200
      %v1233 = vadd.f32 %v1057, %v1201
      %v1234 = vadd.f32 %v1058, %v1202
      %1235 = vset.pattern.permute.xlu0 2
      %1236 = vperm.xlu0 %1235, %v864
      %v1237 = vpop.permute.xlu0 %1236
      %1238 = vset.pattern.permute.xlu0 2
      %1239 = vperm.xlu0 %1238, %v865
      %v1240 = vpop.permute.xlu0 %1239
      %1241 = vset.pattern.permute.xlu0 2
      %1242 = vperm.xlu0 %1241, %v866
      %v1243 = vpop.permute.xlu0 %1242
      %1244 = vset.pattern.permute.xlu0 2
      %1245 = vperm.xlu0 %1244, %v867
      %v1246 = vpop.permute.xlu0 %1245
      %1247 = vset.pattern.permute.xlu0 2
      %1248 = vperm.xlu0 %1247, %v868
      %v1249 = vpop.permute.xlu0 %1248
      %1250 = vset.pattern.permute.xlu0 2
      %1251 = vperm.xlu0 %1250, %v869
      %v1252 = vpop.permute.xlu0 %1251
      %1253 = vset.pattern.permute.xlu0 2
      %1254 = vperm.xlu0 %1253, %v870
      %v1255 = vpop.permute.xlu0 %1254
      %1256 = vset.pattern.permute.xlu0 2
      %1257 = vperm.xlu0 %1256, %v871
      %v1258 = vpop.permute.xlu0 %1257
      %1259 = vset.pattern.permute.xlu0 2
      %1260 = vperm.xlu0 %1259, %v872
      %v1261 = vpop.permute.xlu0 %1260
      %1262 = vset.pattern.permute.xlu0 2
      %1263 = vperm.xlu0 %1262, %v873
      %v1264 = vpop.permute.xlu0 %1263
      %1265 = vset.pattern.permute.xlu0 2
      %1266 = vperm.xlu0 %1265, %v874
      %v1267 = vpop.permute.xlu0 %1266
      %1268 = vset.pattern.permute.xlu0 2
      %1269 = vperm.xlu0 %1268, %v875
      %v1270 = vpop.permute.xlu0 %1269
      %1271 = vset.pattern.permute.xlu0 2
      %1272 = vperm.xlu0 %1271, %v876
      %v1273 = vpop.permute.xlu0 %1272
      %1274 = vset.pattern.permute.xlu0 2
      %1275 = vperm.xlu0 %1274, %v877
      %v1276 = vpop.permute.xlu0 %1275
      %1277 = vset.pattern.permute.xlu0 2
      %1278 = vperm.xlu0 %1277, %v878
      %v1279 = vpop.permute.xlu0 %1278
      %1280 = vset.pattern.permute.xlu0 2
      %1281 = vperm.xlu0 %1280, %v879
      %v1282 = vpop.permute.xlu0 %1281
      %vm1283 = vcmp.eq.s32.totalorder %v1237, %v881
      %vm1284 = vcmp.eq.s32.totalorder %v1237, %v882
      %vm1285 = vcmp.eq.s32.totalorder %v1240, %v881
      %vm1286 = vcmp.eq.s32.totalorder %v1240, %v882
      %vm1287 = vcmp.eq.s32.totalorder %v1243, %v881
      %vm1288 = vcmp.eq.s32.totalorder %v1243, %v882
      %vm1289 = vcmp.eq.s32.totalorder %v1246, %v881
      %vm1290 = vcmp.eq.s32.totalorder %v1246, %v882
      %vm1291 = vcmp.eq.s32.totalorder %v1249, %v881
      %vm1292 = vcmp.eq.s32.totalorder %v1249, %v882
      %vm1293 = vcmp.eq.s32.totalorder %v1252, %v881
      %vm1294 = vcmp.eq.s32.totalorder %v1252, %v882
      %vm1295 = vcmp.eq.s32.totalorder %v1255, %v881
      %vm1296 = vcmp.eq.s32.totalorder %v1255, %v882
      %vm1297 = vcmp.eq.s32.totalorder %v1258, %v881
      %vm1298 = vcmp.eq.s32.totalorder %v1258, %v882
      %vm1299 = vcmp.eq.s32.totalorder %v1261, %v881
      %vm1300 = vcmp.eq.s32.totalorder %v1261, %v882
      %vm1301 = vcmp.eq.s32.totalorder %v1264, %v881
      %vm1302 = vcmp.eq.s32.totalorder %v1264, %v882
      %vm1303 = vcmp.eq.s32.totalorder %v1267, %v881
      %vm1304 = vcmp.eq.s32.totalorder %v1267, %v882
      %vm1305 = vcmp.eq.s32.totalorder %v1270, %v881
      %vm1306 = vcmp.eq.s32.totalorder %v1270, %v882
      %vm1307 = vcmp.eq.s32.totalorder %v1273, %v881
      %vm1308 = vcmp.eq.s32.totalorder %v1273, %v882
      %vm1309 = vcmp.eq.s32.totalorder %v1276, %v881
      %vm1310 = vcmp.eq.s32.totalorder %v1276, %v882
      %vm1311 = vcmp.eq.s32.totalorder %v1279, %v881
      %vm1312 = vcmp.eq.s32.totalorder %v1279, %v882
      %vm1313 = vcmp.eq.s32.totalorder %v1282, %v881
      %vm1314 = vcmp.eq.s32.totalorder %v1282, %v882
      %v1315 = vsel %vm1283, 1, 0
      %v1316 = vsel %vm1284, 1, 0
      %v1317 = vsel %vm1285, 1, 0
      %v1318 = vsel %vm1286, 1, 0
      %v1319 = vsel %vm1287, 1, 0
      %v1320 = vsel %vm1288, 1, 0
      %v1321 = vsel %vm1289, 1, 0
      %v1322 = vsel %vm1290, 1, 0
      %v1323 = vsel %vm1291, 1, 0
      %v1324 = vsel %vm1292, 1, 0
      %v1325 = vsel %vm1293, 1, 0
      %v1326 = vsel %vm1294, 1, 0
      %v1327 = vsel %vm1295, 1, 0
      %v1328 = vsel %vm1296, 1, 0
      %v1329 = vsel %vm1297, 1, 0
      %v1330 = vsel %vm1298, 1, 0
      %v1331 = vsel %vm1299, 1, 0
      %v1332 = vsel %vm1300, 1, 0
      %v1333 = vsel %vm1301, 1, 0
      %v1334 = vsel %vm1302, 1, 0
      %v1335 = vsel %vm1303, 1, 0
      %v1336 = vsel %vm1304, 1, 0
      %v1337 = vsel %vm1305, 1, 0
      %v1338 = vsel %vm1306, 1, 0
      %v1339 = vsel %vm1307, 1, 0
      %v1340 = vsel %vm1308, 1, 0
      %v1341 = vsel %vm1309, 1, 0
      %v1342 = vsel %vm1310, 1, 0
      %v1343 = vsel %vm1311, 1, 0
      %v1344 = vsel %vm1312, 1, 0
      %v1345 = vsel %vm1313, 1, 0
      %v1346 = vsel %vm1314, 1, 0
      %v1347 = vcvt.s32.f32 %v1315
      %v1348 = vcvt.s32.f32 %v1316
      %v1349 = vcvt.s32.f32 %v1317
      %v1350 = vcvt.s32.f32 %v1318
      %v1351 = vcvt.s32.f32 %v1319
      %v1352 = vcvt.s32.f32 %v1320
      %v1353 = vcvt.s32.f32 %v1321
      %v1354 = vcvt.s32.f32 %v1322
      %v1355 = vcvt.s32.f32 %v1323
      %v1356 = vcvt.s32.f32 %v1324
      %v1357 = vcvt.s32.f32 %v1325
      %v1358 = vcvt.s32.f32 %v1326
      %v1359 = vcvt.s32.f32 %v1327
      %v1360 = vcvt.s32.f32 %v1328
      %v1361 = vcvt.s32.f32 %v1329
      %v1362 = vcvt.s32.f32 %v1330
      %v1363 = vcvt.s32.f32 %v1331
      %v1364 = vcvt.s32.f32 %v1332
      %v1365 = vcvt.s32.f32 %v1333
      %v1366 = vcvt.s32.f32 %v1334
      %v1367 = vcvt.s32.f32 %v1335
      %v1368 = vcvt.s32.f32 %v1336
      %v1369 = vcvt.s32.f32 %v1337
      %v1370 = vcvt.s32.f32 %v1338
      %v1371 = vcvt.s32.f32 %v1339
      %v1372 = vcvt.s32.f32 %v1340
      %v1373 = vcvt.s32.f32 %v1341
      %v1374 = vcvt.s32.f32 %v1342
      %v1375 = vcvt.s32.f32 %v1343
      %v1376 = vcvt.s32.f32 %v1344
      %v1377 = vcvt.s32.f32 %v1345
      %v1378 = vcvt.s32.f32 %v1346
      %v1379 = vadd.f32 %v1203, %v1347
      %v1380 = vadd.f32 %v1204, %v1348
      %v1381 = vadd.f32 %v1205, %v1349
      %v1382 = vadd.f32 %v1206, %v1350
      %v1383 = vadd.f32 %v1207, %v1351
      %v1384 = vadd.f32 %v1208, %v1352
      %v1385 = vadd.f32 %v1209, %v1353
      %v1386 = vadd.f32 %v1210, %v1354
      %v1387 = vadd.f32 %v1211, %v1355
      %v1388 = vadd.f32 %v1212, %v1356
      %v1389 = vadd.f32 %v1213, %v1357
      %v1390 = vadd.f32 %v1214, %v1358
      %v1391 = vadd.f32 %v1215, %v1359
      %v1392 = vadd.f32 %v1216, %v1360
      %v1393 = vadd.f32 %v1217, %v1361
      %v1394 = vadd.f32 %v1218, %v1362
      %v1395 = vadd.f32 %v1219, %v1363
      %v1396 = vadd.f32 %v1220, %v1364
      %v1397 = vadd.f32 %v1221, %v1365
      %v1398 = vadd.f32 %v1222, %v1366
      %v1399 = vadd.f32 %v1223, %v1367
      %v1400 = vadd.f32 %v1224, %v1368
      %v1401 = vadd.f32 %v1225, %v1369
      %v1402 = vadd.f32 %v1226, %v1370
      %v1403 = vadd.f32 %v1227, %v1371
      %v1404 = vadd.f32 %v1228, %v1372
      %v1405 = vadd.f32 %v1229, %v1373
      %v1406 = vadd.f32 %v1230, %v1374
      %v1407 = vadd.f32 %v1231, %v1375
      %v1408 = vadd.f32 %v1232, %v1376
      %v1409 = vadd.f32 %v1233, %v1377
      %v1410 = vadd.f32 %v1234, %v1378
      %1411 = vset.pattern.permute.xlu0 3
      %1412 = vperm.xlu0 %1411, %v864
      %v1413 = vpop.permute.xlu0 %1412
      %1414 = vset.pattern.permute.xlu0 3
      %1415 = vperm.xlu0 %1414, %v865
      %v1416 = vpop.permute.xlu0 %1415
      %1417 = vset.pattern.permute.xlu0 3
      %1418 = vperm.xlu0 %1417, %v866
      %v1419 = vpop.permute.xlu0 %1418
      %1420 = vset.pattern.permute.xlu0 3
      %1421 = vperm.xlu0 %1420, %v867
      %v1422 = vpop.permute.xlu0 %1421
      %1423 = vset.pattern.permute.xlu0 3
      %1424 = vperm.xlu0 %1423, %v868
      %v1425 = vpop.permute.xlu0 %1424
      %1426 = vset.pattern.permute.xlu0 3
      %1427 = vperm.xlu0 %1426, %v869
      %v1428 = vpop.permute.xlu0 %1427
      %1429 = vset.pattern.permute.xlu0 3
      %1430 = vperm.xlu0 %1429, %v870
      %v1431 = vpop.permute.xlu0 %1430
      %1432 = vset.pattern.permute.xlu0 3
      %1433 = vperm.xlu0 %1432, %v871
      %v1434 = vpop.permute.xlu0 %1433
      %1435 = vset.pattern.permute.xlu0 3
      %1436 = vperm.xlu0 %1435, %v872
      %v1437 = vpop.permute.xlu0 %1436
      %1438 = vset.pattern.permute.xlu0 3
      %1439 = vperm.xlu0 %1438, %v873
      %v1440 = vpop.permute.xlu0 %1439
      %1441 = vset.pattern.permute.xlu0 3
      %1442 = vperm.xlu0 %1441, %v874
      %v1443 = vpop.permute.xlu0 %1442
      %1444 = vset.pattern.permute.xlu0 3
      %1445 = vperm.xlu0 %1444, %v875
      %v1446 = vpop.permute.xlu0 %1445
      %1447 = vset.pattern.permute.xlu0 3
      %1448 = vperm.xlu0 %1447, %v876
      %v1449 = vpop.permute.xlu0 %1448
      %1450 = vset.pattern.permute.xlu0 3
      %1451 = vperm.xlu0 %1450, %v877
      %v1452 = vpop.permute.xlu0 %1451
      %1453 = vset.pattern.permute.xlu0 3
      %1454 = vperm.xlu0 %1453, %v878
      %v1455 = vpop.permute.xlu0 %1454
      %1456 = vset.pattern.permute.xlu0 3
      %1457 = vperm.xlu0 %1456, %v879
      %v1458 = vpop.permute.xlu0 %1457
      %vm1459 = vcmp.eq.s32.totalorder %v1413, %v881
      %vm1460 = vcmp.eq.s32.totalorder %v1413, %v882
      %vm1461 = vcmp.eq.s32.totalorder %v1416, %v881
      %vm1462 = vcmp.eq.s32.totalorder %v1416, %v882
      %vm1463 = vcmp.eq.s32.totalorder %v1419, %v881
      %vm1464 = vcmp.eq.s32.totalorder %v1419, %v882
      %vm1465 = vcmp.eq.s32.totalorder %v1422, %v881
      %vm1466 = vcmp.eq.s32.totalorder %v1422, %v882
      %vm1467 = vcmp.eq.s32.totalorder %v1425, %v881
      %vm1468 = vcmp.eq.s32.totalorder %v1425, %v882
      %vm1469 = vcmp.eq.s32.totalorder %v1428, %v881
      %vm1470 = vcmp.eq.s32.totalorder %v1428, %v882
      %vm1471 = vcmp.eq.s32.totalorder %v1431, %v881
      %vm1472 = vcmp.eq.s32.totalorder %v1431, %v882
      %vm1473 = vcmp.eq.s32.totalorder %v1434, %v881
      %vm1474 = vcmp.eq.s32.totalorder %v1434, %v882
      %vm1475 = vcmp.eq.s32.totalorder %v1437, %v881
      %vm1476 = vcmp.eq.s32.totalorder %v1437, %v882
      %vm1477 = vcmp.eq.s32.totalorder %v1440, %v881
      %vm1478 = vcmp.eq.s32.totalorder %v1440, %v882
      %vm1479 = vcmp.eq.s32.totalorder %v1443, %v881
      %vm1480 = vcmp.eq.s32.totalorder %v1443, %v882
      %vm1481 = vcmp.eq.s32.totalorder %v1446, %v881
      %vm1482 = vcmp.eq.s32.totalorder %v1446, %v882
      %vm1483 = vcmp.eq.s32.totalorder %v1449, %v881
      %vm1484 = vcmp.eq.s32.totalorder %v1449, %v882
      %vm1485 = vcmp.eq.s32.totalorder %v1452, %v881
      %vm1486 = vcmp.eq.s32.totalorder %v1452, %v882
      %vm1487 = vcmp.eq.s32.totalorder %v1455, %v881
      %vm1488 = vcmp.eq.s32.totalorder %v1455, %v882
      %vm1489 = vcmp.eq.s32.totalorder %v1458, %v881
      %vm1490 = vcmp.eq.s32.totalorder %v1458, %v882
      %v1491 = vsel %vm1459, 1, 0
      %v1492 = vsel %vm1460, 1, 0
      %v1493 = vsel %vm1461, 1, 0
      %v1494 = vsel %vm1462, 1, 0
      %v1495 = vsel %vm1463, 1, 0
      %v1496 = vsel %vm1464, 1, 0
      %v1497 = vsel %vm1465, 1, 0
      %v1498 = vsel %vm1466, 1, 0
      %v1499 = vsel %vm1467, 1, 0
      %v1500 = vsel %vm1468, 1, 0
      %v1501 = vsel %vm1469, 1, 0
      %v1502 = vsel %vm1470, 1, 0
      %v1503 = vsel %vm1471, 1, 0
      %v1504 = vsel %vm1472, 1, 0
      %v1505 = vsel %vm1473, 1, 0
      %v1506 = vsel %vm1474, 1, 0
      %v1507 = vsel %vm1475, 1, 0
      %v1508 = vsel %vm1476, 1, 0
      %v1509 = vsel %vm1477, 1, 0
      %v1510 = vsel %vm1478, 1, 0
      %v1511 = vsel %vm1479, 1, 0
      %v1512 = vsel %vm1480, 1, 0
      %v1513 = vsel %vm1481, 1, 0
      %v1514 = vsel %vm1482, 1, 0
      %v1515 = vsel %vm1483, 1, 0
      %v1516 = vsel %vm1484, 1, 0
      %v1517 = vsel %vm1485, 1, 0
      %v1518 = vsel %vm1486, 1, 0
      %v1519 = vsel %vm1487, 1, 0
      %v1520 = vsel %vm1488, 1, 0
      %v1521 = vsel %vm1489, 1, 0
      %v1522 = vsel %vm1490, 1, 0
      %v1523 = vcvt.s32.f32 %v1491
      %v1524 = vcvt.s32.f32 %v1492
      %v1525 = vcvt.s32.f32 %v1493
      %v1526 = vcvt.s32.f32 %v1494
      %v1527 = vcvt.s32.f32 %v1495
      %v1528 = vcvt.s32.f32 %v1496
      %v1529 = vcvt.s32.f32 %v1497
      %v1530 = vcvt.s32.f32 %v1498
      %v1531 = vcvt.s32.f32 %v1499
      %v1532 = vcvt.s32.f32 %v1500
      %v1533 = vcvt.s32.f32 %v1501
      %v1534 = vcvt.s32.f32 %v1502
      %v1535 = vcvt.s32.f32 %v1503
      %v1536 = vcvt.s32.f32 %v1504
      %v1537 = vcvt.s32.f32 %v1505
      %v1538 = vcvt.s32.f32 %v1506
      %v1539 = vcvt.s32.f32 %v1507
      %v1540 = vcvt.s32.f32 %v1508
      %v1541 = vcvt.s32.f32 %v1509
      %v1542 = vcvt.s32.f32 %v1510
      %v1543 = vcvt.s32.f32 %v1511
      %v1544 = vcvt.s32.f32 %v1512
      %v1545 = vcvt.s32.f32 %v1513
      %v1546 = vcvt.s32.f32 %v1514
      %v1547 = vcvt.s32.f32 %v1515
      %v1548 = vcvt.s32.f32 %v1516
      %v1549 = vcvt.s32.f32 %v1517
      %v1550 = vcvt.s32.f32 %v1518
      %v1551 = vcvt.s32.f32 %v1519
      %v1552 = vcvt.s32.f32 %v1520
      %v1553 = vcvt.s32.f32 %v1521
      %v1554 = vcvt.s32.f32 %v1522
      %v1555 = vadd.f32 %v1379, %v1523
      %v1556 = vadd.f32 %v1380, %v1524
      %v1557 = vadd.f32 %v1381, %v1525
      %v1558 = vadd.f32 %v1382, %v1526
      %v1559 = vadd.f32 %v1383, %v1527
      %v1560 = vadd.f32 %v1384, %v1528
      %v1561 = vadd.f32 %v1385, %v1529
      %v1562 = vadd.f32 %v1386, %v1530
      %v1563 = vadd.f32 %v1387, %v1531
      %v1564 = vadd.f32 %v1388, %v1532
      %v1565 = vadd.f32 %v1389, %v1533
      %v1566 = vadd.f32 %v1390, %v1534
      %v1567 = vadd.f32 %v1391, %v1535
      %v1568 = vadd.f32 %v1392, %v1536
      %v1569 = vadd.f32 %v1393, %v1537
      %v1570 = vadd.f32 %v1394, %v1538
      %v1571 = vadd.f32 %v1395, %v1539
      %v1572 = vadd.f32 %v1396, %v1540
      %v1573 = vadd.f32 %v1397, %v1541
      %v1574 = vadd.f32 %v1398, %v1542
      %v1575 = vadd.f32 %v1399, %v1543
      %v1576 = vadd.f32 %v1400, %v1544
      %v1577 = vadd.f32 %v1401, %v1545
      %v1578 = vadd.f32 %v1402, %v1546
      %v1579 = vadd.f32 %v1403, %v1547
      %v1580 = vadd.f32 %v1404, %v1548
      %v1581 = vadd.f32 %v1405, %v1549
      %v1582 = vadd.f32 %v1406, %v1550
      %v1583 = vadd.f32 %v1407, %v1551
      %v1584 = vadd.f32 %v1408, %v1552
      %v1585 = vadd.f32 %v1409, %v1553
      %v1586 = vadd.f32 %v1410, %v1554
      %1587 = vset.pattern.permute.xlu0 4
      %1588 = vperm.xlu0 %1587, %v864
      %v1589 = vpop.permute.xlu0 %1588
      %1590 = vset.pattern.permute.xlu0 4
      %1591 = vperm.xlu0 %1590, %v865
      %v1592 = vpop.permute.xlu0 %1591
      %1593 = vset.pattern.permute.xlu0 4
      %1594 = vperm.xlu0 %1593, %v866
      %v1595 = vpop.permute.xlu0 %1594
      %1596 = vset.pattern.permute.xlu0 4
      %1597 = vperm.xlu0 %1596, %v867
      %v1598 = vpop.permute.xlu0 %1597
      %1599 = vset.pattern.permute.xlu0 4
      %1600 = vperm.xlu0 %1599, %v868
      %v1601 = vpop.permute.xlu0 %1600
      %1602 = vset.pattern.permute.xlu0 4
      %1603 = vperm.xlu0 %1602, %v869
      %v1604 = vpop.permute.xlu0 %1603
      %1605 = vset.pattern.permute.xlu0 4
      %1606 = vperm.xlu0 %1605, %v870
      %v1607 = vpop.permute.xlu0 %1606
      %1608 = vset.pattern.permute.xlu0 4
      %1609 = vperm.xlu0 %1608, %v871
      %v1610 = vpop.permute.xlu0 %1609
      %1611 = vset.pattern.permute.xlu0 4
      %1612 = vperm.xlu0 %1611, %v872
      %v1613 = vpop.permute.xlu0 %1612
      %1614 = vset.pattern.permute.xlu0 4
      %1615 = vperm.xlu0 %1614, %v873
      %v1616 = vpop.permute.xlu0 %1615
      %1617 = vset.pattern.permute.xlu0 4
      %1618 = vperm.xlu0 %1617, %v874
      %v1619 = vpop.permute.xlu0 %1618
      %1620 = vset.pattern.permute.xlu0 4
      %1621 = vperm.xlu0 %1620, %v875
      %v1622 = vpop.permute.xlu0 %1621
      %1623 = vset.pattern.permute.xlu0 4
      %1624 = vperm.xlu0 %1623, %v876
      %v1625 = vpop.permute.xlu0 %1624
      %1626 = vset.pattern.permute.xlu0 4
      %1627 = vperm.xlu0 %1626, %v877
      %v1628 = vpop.permute.xlu0 %1627
      %1629 = vset.pattern.permute.xlu0 4
      %1630 = vperm.xlu0 %1629, %v878
      %v1631 = vpop.permute.xlu0 %1630
      %1632 = vset.pattern.permute.xlu0 4
      %1633 = vperm.xlu0 %1632, %v879
      %v1634 = vpop.permute.xlu0 %1633
      %vm1635 = vcmp.eq.s32.totalorder %v1589, %v881
      %vm1636 = vcmp.eq.s32.totalorder %v1589, %v882
      %vm1637 = vcmp.eq.s32.totalorder %v1592, %v881
      %vm1638 = vcmp.eq.s32.totalorder %v1592, %v882
      %vm1639 = vcmp.eq.s32.totalorder %v1595, %v881
      %vm1640 = vcmp.eq.s32.totalorder %v1595, %v882
      %vm1641 = vcmp.eq.s32.totalorder %v1598, %v881
      %vm1642 = vcmp.eq.s32.totalorder %v1598, %v882
      %vm1643 = vcmp.eq.s32.totalorder %v1601, %v881
      %vm1644 = vcmp.eq.s32.totalorder %v1601, %v882
      %vm1645 = vcmp.eq.s32.totalorder %v1604, %v881
      %vm1646 = vcmp.eq.s32.totalorder %v1604, %v882
      %vm1647 = vcmp.eq.s32.totalorder %v1607, %v881
      %vm1648 = vcmp.eq.s32.totalorder %v1607, %v882
      %vm1649 = vcmp.eq.s32.totalorder %v1610, %v881
      %vm1650 = vcmp.eq.s32.totalorder %v1610, %v882
      %vm1651 = vcmp.eq.s32.totalorder %v1613, %v881
      %vm1652 = vcmp.eq.s32.totalorder %v1613, %v882
      %vm1653 = vcmp.eq.s32.totalorder %v1616, %v881
      %vm1654 = vcmp.eq.s32.totalorder %v1616, %v882
      %vm1655 = vcmp.eq.s32.totalorder %v1619, %v881
      %vm1656 = vcmp.eq.s32.totalorder %v1619, %v882
      %vm1657 = vcmp.eq.s32.totalorder %v1622, %v881
      %vm1658 = vcmp.eq.s32.totalorder %v1622, %v882
      %vm1659 = vcmp.eq.s32.totalorder %v1625, %v881
      %vm1660 = vcmp.eq.s32.totalorder %v1625, %v882
      %vm1661 = vcmp.eq.s32.totalorder %v1628, %v881
      %vm1662 = vcmp.eq.s32.totalorder %v1628, %v882
      %vm1663 = vcmp.eq.s32.totalorder %v1631, %v881
      %vm1664 = vcmp.eq.s32.totalorder %v1631, %v882
      %vm1665 = vcmp.eq.s32.totalorder %v1634, %v881
      %vm1666 = vcmp.eq.s32.totalorder %v1634, %v882
      %v1667 = vsel %vm1635, 1, 0
      %v1668 = vsel %vm1636, 1, 0
      %v1669 = vsel %vm1637, 1, 0
      %v1670 = vsel %vm1638, 1, 0
      %v1671 = vsel %vm1639, 1, 0
      %v1672 = vsel %vm1640, 1, 0
      %v1673 = vsel %vm1641, 1, 0
      %v1674 = vsel %vm1642, 1, 0
      %v1675 = vsel %vm1643, 1, 0
      %v1676 = vsel %vm1644, 1, 0
      %v1677 = vsel %vm1645, 1, 0
      %v1678 = vsel %vm1646, 1, 0
      %v1679 = vsel %vm1647, 1, 0
      %v1680 = vsel %vm1648, 1, 0
      %v1681 = vsel %vm1649, 1, 0
      %v1682 = vsel %vm1650, 1, 0
      %v1683 = vsel %vm1651, 1, 0
      %v1684 = vsel %vm1652, 1, 0
      %v1685 = vsel %vm1653, 1, 0
      %v1686 = vsel %vm1654, 1, 0
      %v1687 = vsel %vm1655, 1, 0
      %v1688 = vsel %vm1656, 1, 0
      %v1689 = vsel %vm1657, 1, 0
      %v1690 = vsel %vm1658, 1, 0
      %v1691 = vsel %vm1659, 1, 0
      %v1692 = vsel %vm1660, 1, 0
      %v1693 = vsel %vm1661, 1, 0
      %v1694 = vsel %vm1662, 1, 0
      %v1695 = vsel %vm1663, 1, 0
      %v1696 = vsel %vm1664, 1, 0
      %v1697 = vsel %vm1665, 1, 0
      %v1698 = vsel %vm1666, 1, 0
      %v1699 = vcvt.s32.f32 %v1667
      %v1700 = vcvt.s32.f32 %v1668
      %v1701 = vcvt.s32.f32 %v1669
      %v1702 = vcvt.s32.f32 %v1670
      %v1703 = vcvt.s32.f32 %v1671
      %v1704 = vcvt.s32.f32 %v1672
      %v1705 = vcvt.s32.f32 %v1673
      %v1706 = vcvt.s32.f32 %v1674
      %v1707 = vcvt.s32.f32 %v1675
      %v1708 = vcvt.s32.f32 %v1676
      %v1709 = vcvt.s32.f32 %v1677
      %v1710 = vcvt.s32.f32 %v1678
      %v1711 = vcvt.s32.f32 %v1679
      %v1712 = vcvt.s32.f32 %v1680
      %v1713 = vcvt.s32.f32 %v1681
      %v1714 = vcvt.s32.f32 %v1682
      %v1715 = vcvt.s32.f32 %v1683
      %v1716 = vcvt.s32.f32 %v1684
      %v1717 = vcvt.s32.f32 %v1685
      %v1718 = vcvt.s32.f32 %v1686
      %v1719 = vcvt.s32.f32 %v1687
      %v1720 = vcvt.s32.f32 %v1688
      %v1721 = vcvt.s32.f32 %v1689
      %v1722 = vcvt.s32.f32 %v1690
      %v1723 = vcvt.s32.f32 %v1691
      %v1724 = vcvt.s32.f32 %v1692
      %v1725 = vcvt.s32.f32 %v1693
      %v1726 = vcvt.s32.f32 %v1694
      %v1727 = vcvt.s32.f32 %v1695
      %v1728 = vcvt.s32.f32 %v1696
      %v1729 = vcvt.s32.f32 %v1697
      %v1730 = vcvt.s32.f32 %v1698
      %v1731 = vadd.f32 %v1555, %v1699
      %v1732 = vadd.f32 %v1556, %v1700
      %v1733 = vadd.f32 %v1557, %v1701
      %v1734 = vadd.f32 %v1558, %v1702
      %v1735 = vadd.f32 %v1559, %v1703
      %v1736 = vadd.f32 %v1560, %v1704
      %v1737 = vadd.f32 %v1561, %v1705
      %v1738 = vadd.f32 %v1562, %v1706
      %v1739 = vadd.f32 %v1563, %v1707
      %v1740 = vadd.f32 %v1564, %v1708
      %v1741 = vadd.f32 %v1565, %v1709
      %v1742 = vadd.f32 %v1566, %v1710
      %v1743 = vadd.f32 %v1567, %v1711
      %v1744 = vadd.f32 %v1568, %v1712
      %v1745 = vadd.f32 %v1569, %v1713
      %v1746 = vadd.f32 %v1570, %v1714
      %v1747 = vadd.f32 %v1571, %v1715
      %v1748 = vadd.f32 %v1572, %v1716
      %v1749 = vadd.f32 %v1573, %v1717
      %v1750 = vadd.f32 %v1574, %v1718
      %v1751 = vadd.f32 %v1575, %v1719
      %v1752 = vadd.f32 %v1576, %v1720
      %v1753 = vadd.f32 %v1577, %v1721
      %v1754 = vadd.f32 %v1578, %v1722
      %v1755 = vadd.f32 %v1579, %v1723
      %v1756 = vadd.f32 %v1580, %v1724
      %v1757 = vadd.f32 %v1581, %v1725
      %v1758 = vadd.f32 %v1582, %v1726
      %v1759 = vadd.f32 %v1583, %v1727
      %v1760 = vadd.f32 %v1584, %v1728
      %v1761 = vadd.f32 %v1585, %v1729
      %v1762 = vadd.f32 %v1586, %v1730
      %1763 = vset.pattern.permute.xlu0 5
      %1764 = vperm.xlu0 %1763, %v864
      %v1765 = vpop.permute.xlu0 %1764
      %1766 = vset.pattern.permute.xlu0 5
      %1767 = vperm.xlu0 %1766, %v865
      %v1768 = vpop.permute.xlu0 %1767
      %1769 = vset.pattern.permute.xlu0 5
      %1770 = vperm.xlu0 %1769, %v866
      %v1771 = vpop.permute.xlu0 %1770
      %1772 = vset.pattern.permute.xlu0 5
      %1773 = vperm.xlu0 %1772, %v867
      %v1774 = vpop.permute.xlu0 %1773
      %1775 = vset.pattern.permute.xlu0 5
      %1776 = vperm.xlu0 %1775, %v868
      %v1777 = vpop.permute.xlu0 %1776
      %1778 = vset.pattern.permute.xlu0 5
      %1779 = vperm.xlu0 %1778, %v869
      %v1780 = vpop.permute.xlu0 %1779
      %1781 = vset.pattern.permute.xlu0 5
      %1782 = vperm.xlu0 %1781, %v870
      %v1783 = vpop.permute.xlu0 %1782
      %1784 = vset.pattern.permute.xlu0 5
      %1785 = vperm.xlu0 %1784, %v871
      %v1786 = vpop.permute.xlu0 %1785
      %1787 = vset.pattern.permute.xlu0 5
      %1788 = vperm.xlu0 %1787, %v872
      %v1789 = vpop.permute.xlu0 %1788
      %1790 = vset.pattern.permute.xlu0 5
      %1791 = vperm.xlu0 %1790, %v873
      %v1792 = vpop.permute.xlu0 %1791
      %1793 = vset.pattern.permute.xlu0 5
      %1794 = vperm.xlu0 %1793, %v874
      %v1795 = vpop.permute.xlu0 %1794
      %1796 = vset.pattern.permute.xlu0 5
      %1797 = vperm.xlu0 %1796, %v875
      %v1798 = vpop.permute.xlu0 %1797
      %1799 = vset.pattern.permute.xlu0 5
      %1800 = vperm.xlu0 %1799, %v876
      %v1801 = vpop.permute.xlu0 %1800
      %1802 = vset.pattern.permute.xlu0 5
      %1803 = vperm.xlu0 %1802, %v877
      %v1804 = vpop.permute.xlu0 %1803
      %1805 = vset.pattern.permute.xlu0 5
      %1806 = vperm.xlu0 %1805, %v878
      %v1807 = vpop.permute.xlu0 %1806
      %1808 = vset.pattern.permute.xlu0 5
      %1809 = vperm.xlu0 %1808, %v879
      %v1810 = vpop.permute.xlu0 %1809
      %vm1811 = vcmp.eq.s32.totalorder %v1765, %v881
      %vm1812 = vcmp.eq.s32.totalorder %v1765, %v882
      %vm1813 = vcmp.eq.s32.totalorder %v1768, %v881
      %vm1814 = vcmp.eq.s32.totalorder %v1768, %v882
      %vm1815 = vcmp.eq.s32.totalorder %v1771, %v881
      %vm1816 = vcmp.eq.s32.totalorder %v1771, %v882
      %vm1817 = vcmp.eq.s32.totalorder %v1774, %v881
      %vm1818 = vcmp.eq.s32.totalorder %v1774, %v882
      %vm1819 = vcmp.eq.s32.totalorder %v1777, %v881
      %vm1820 = vcmp.eq.s32.totalorder %v1777, %v882
      %vm1821 = vcmp.eq.s32.totalorder %v1780, %v881
      %vm1822 = vcmp.eq.s32.totalorder %v1780, %v882
      %vm1823 = vcmp.eq.s32.totalorder %v1783, %v881
      %vm1824 = vcmp.eq.s32.totalorder %v1783, %v882
      %vm1825 = vcmp.eq.s32.totalorder %v1786, %v881
      %vm1826 = vcmp.eq.s32.totalorder %v1786, %v882
      %vm1827 = vcmp.eq.s32.totalorder %v1789, %v881
      %vm1828 = vcmp.eq.s32.totalorder %v1789, %v882
      %vm1829 = vcmp.eq.s32.totalorder %v1792, %v881
      %vm1830 = vcmp.eq.s32.totalorder %v1792, %v882
      %vm1831 = vcmp.eq.s32.totalorder %v1795, %v881
      %vm1832 = vcmp.eq.s32.totalorder %v1795, %v882
      %vm1833 = vcmp.eq.s32.totalorder %v1798, %v881
      %vm1834 = vcmp.eq.s32.totalorder %v1798, %v882
      %vm1835 = vcmp.eq.s32.totalorder %v1801, %v881
      %vm1836 = vcmp.eq.s32.totalorder %v1801, %v882
      %vm1837 = vcmp.eq.s32.totalorder %v1804, %v881
      %vm1838 = vcmp.eq.s32.totalorder %v1804, %v882
      %vm1839 = vcmp.eq.s32.totalorder %v1807, %v881
      %vm1840 = vcmp.eq.s32.totalorder %v1807, %v882
      %vm1841 = vcmp.eq.s32.totalorder %v1810, %v881
      %vm1842 = vcmp.eq.s32.totalorder %v1810, %v882
      %v1843 = vsel %vm1811, 1, 0
      %v1844 = vsel %vm1812, 1, 0
      %v1845 = vsel %vm1813, 1, 0
      %v1846 = vsel %vm1814, 1, 0
      %v1847 = vsel %vm1815, 1, 0
      %v1848 = vsel %vm1816, 1, 0
      %v1849 = vsel %vm1817, 1, 0
      %v1850 = vsel %vm1818, 1, 0
      %v1851 = vsel %vm1819, 1, 0
      %v1852 = vsel %vm1820, 1, 0
      %v1853 = vsel %vm1821, 1, 0
      %v1854 = vsel %vm1822, 1, 0
      %v1855 = vsel %vm1823, 1, 0
      %v1856 = vsel %vm1824, 1, 0
      %v1857 = vsel %vm1825, 1, 0
      %v1858 = vsel %vm1826, 1, 0
      %v1859 = vsel %vm1827, 1, 0
      %v1860 = vsel %vm1828, 1, 0
      %v1861 = vsel %vm1829, 1, 0
      %v1862 = vsel %vm1830, 1, 0
      %v1863 = vsel %vm1831, 1, 0
      %v1864 = vsel %vm1832, 1, 0
      %v1865 = vsel %vm1833, 1, 0
      %v1866 = vsel %vm1834, 1, 0
      %v1867 = vsel %vm1835, 1, 0
      %v1868 = vsel %vm1836, 1, 0
      %v1869 = vsel %vm1837, 1, 0
      %v1870 = vsel %vm1838, 1, 0
      %v1871 = vsel %vm1839, 1, 0
      %v1872 = vsel %vm1840, 1, 0
      %v1873 = vsel %vm1841, 1, 0
      %v1874 = vsel %vm1842, 1, 0
      %v1875 = vcvt.s32.f32 %v1843
      %v1876 = vcvt.s32.f32 %v1844
      %v1877 = vcvt.s32.f32 %v1845
      %v1878 = vcvt.s32.f32 %v1846
      %v1879 = vcvt.s32.f32 %v1847
      %v1880 = vcvt.s32.f32 %v1848
      %v1881 = vcvt.s32.f32 %v1849
      %v1882 = vcvt.s32.f32 %v1850
      %v1883 = vcvt.s32.f32 %v1851
      %v1884 = vcvt.s32.f32 %v1852
      %v1885 = vcvt.s32.f32 %v1853
      %v1886 = vcvt.s32.f32 %v1854
      %v1887 = vcvt.s32.f32 %v1855
      %v1888 = vcvt.s32.f32 %v1856
      %v1889 = vcvt.s32.f32 %v1857
      %v1890 = vcvt.s32.f32 %v1858
      %v1891 = vcvt.s32.f32 %v1859
      %v1892 = vcvt.s32.f32 %v1860
      %v1893 = vcvt.s32.f32 %v1861
      %v1894 = vcvt.s32.f32 %v1862
      %v1895 = vcvt.s32.f32 %v1863
      %v1896 = vcvt.s32.f32 %v1864
      %v1897 = vcvt.s32.f32 %v1865
      %v1898 = vcvt.s32.f32 %v1866
      %v1899 = vcvt.s32.f32 %v1867
      %v1900 = vcvt.s32.f32 %v1868
      %v1901 = vcvt.s32.f32 %v1869
      %v1902 = vcvt.s32.f32 %v1870
      %v1903 = vcvt.s32.f32 %v1871
      %v1904 = vcvt.s32.f32 %v1872
      %v1905 = vcvt.s32.f32 %v1873
      %v1906 = vcvt.s32.f32 %v1874
      %v1907 = vadd.f32 %v1731, %v1875
      %v1908 = vadd.f32 %v1732, %v1876
      %v1909 = vadd.f32 %v1733, %v1877
      %v1910 = vadd.f32 %v1734, %v1878
      %v1911 = vadd.f32 %v1735, %v1879
      %v1912 = vadd.f32 %v1736, %v1880
      %v1913 = vadd.f32 %v1737, %v1881
      %v1914 = vadd.f32 %v1738, %v1882
      %v1915 = vadd.f32 %v1739, %v1883
      %v1916 = vadd.f32 %v1740, %v1884
      %v1917 = vadd.f32 %v1741, %v1885
      %v1918 = vadd.f32 %v1742, %v1886
      %v1919 = vadd.f32 %v1743, %v1887
      %v1920 = vadd.f32 %v1744, %v1888
      %v1921 = vadd.f32 %v1745, %v1889
      %v1922 = vadd.f32 %v1746, %v1890
      %v1923 = vadd.f32 %v1747, %v1891
      %v1924 = vadd.f32 %v1748, %v1892
      %v1925 = vadd.f32 %v1749, %v1893
      %v1926 = vadd.f32 %v1750, %v1894
      %v1927 = vadd.f32 %v1751, %v1895
      %v1928 = vadd.f32 %v1752, %v1896
      %v1929 = vadd.f32 %v1753, %v1897
      %v1930 = vadd.f32 %v1754, %v1898
      %v1931 = vadd.f32 %v1755, %v1899
      %v1932 = vadd.f32 %v1756, %v1900
      %v1933 = vadd.f32 %v1757, %v1901
      %v1934 = vadd.f32 %v1758, %v1902
      %v1935 = vadd.f32 %v1759, %v1903
      %v1936 = vadd.f32 %v1760, %v1904
      %v1937 = vadd.f32 %v1761, %v1905
      %v1938 = vadd.f32 %v1762, %v1906
      %1939 = vset.pattern.permute.xlu0 6
      %1940 = vperm.xlu0 %1939, %v864
      %v1941 = vpop.permute.xlu0 %1940
      %1942 = vset.pattern.permute.xlu0 6
      %1943 = vperm.xlu0 %1942, %v865
      %v1944 = vpop.permute.xlu0 %1943
      %1945 = vset.pattern.permute.xlu0 6
      %1946 = vperm.xlu0 %1945, %v866
      %v1947 = vpop.permute.xlu0 %1946
      %1948 = vset.pattern.permute.xlu0 6
      %1949 = vperm.xlu0 %1948, %v867
      %v1950 = vpop.permute.xlu0 %1949
      %1951 = vset.pattern.permute.xlu0 6
      %1952 = vperm.xlu0 %1951, %v868
      %v1953 = vpop.permute.xlu0 %1952
      %1954 = vset.pattern.permute.xlu0 6
      %1955 = vperm.xlu0 %1954, %v869
      %v1956 = vpop.permute.xlu0 %1955
      %1957 = vset.pattern.permute.xlu0 6
      %1958 = vperm.xlu0 %1957, %v870
      %v1959 = vpop.permute.xlu0 %1958
      %1960 = vset.pattern.permute.xlu0 6
      %1961 = vperm.xlu0 %1960, %v871
      %v1962 = vpop.permute.xlu0 %1961
      %1963 = vset.pattern.permute.xlu0 6
      %1964 = vperm.xlu0 %1963, %v872
      %v1965 = vpop.permute.xlu0 %1964
      %1966 = vset.pattern.permute.xlu0 6
      %1967 = vperm.xlu0 %1966, %v873
      %v1968 = vpop.permute.xlu0 %1967
      %1969 = vset.pattern.permute.xlu0 6
      %1970 = vperm.xlu0 %1969, %v874
      %v1971 = vpop.permute.xlu0 %1970
      %1972 = vset.pattern.permute.xlu0 6
      %1973 = vperm.xlu0 %1972, %v875
      %v1974 = vpop.permute.xlu0 %1973
      %1975 = vset.pattern.permute.xlu0 6
      %1976 = vperm.xlu0 %1975, %v876
      %v1977 = vpop.permute.xlu0 %1976
      %1978 = vset.pattern.permute.xlu0 6
      %1979 = vperm.xlu0 %1978, %v877
      %v1980 = vpop.permute.xlu0 %1979
      %1981 = vset.pattern.permute.xlu0 6
      %1982 = vperm.xlu0 %1981, %v878
      %v1983 = vpop.permute.xlu0 %1982
      %1984 = vset.pattern.permute.xlu0 6
      %1985 = vperm.xlu0 %1984, %v879
      %v1986 = vpop.permute.xlu0 %1985
      %vm1987 = vcmp.eq.s32.totalorder %v1941, %v881
      %vm1988 = vcmp.eq.s32.totalorder %v1941, %v882
      %vm1989 = vcmp.eq.s32.totalorder %v1944, %v881
      %vm1990 = vcmp.eq.s32.totalorder %v1944, %v882
      %vm1991 = vcmp.eq.s32.totalorder %v1947, %v881
      %vm1992 = vcmp.eq.s32.totalorder %v1947, %v882
      %vm1993 = vcmp.eq.s32.totalorder %v1950, %v881
      %vm1994 = vcmp.eq.s32.totalorder %v1950, %v882
      %vm1995 = vcmp.eq.s32.totalorder %v1953, %v881
      %vm1996 = vcmp.eq.s32.totalorder %v1953, %v882
      %vm1997 = vcmp.eq.s32.totalorder %v1956, %v881
      %vm1998 = vcmp.eq.s32.totalorder %v1956, %v882
      %vm1999 = vcmp.eq.s32.totalorder %v1959, %v881
      %vm2000 = vcmp.eq.s32.totalorder %v1959, %v882
      %vm2001 = vcmp.eq.s32.totalorder %v1962, %v881
      %vm2002 = vcmp.eq.s32.totalorder %v1962, %v882
      %vm2003 = vcmp.eq.s32.totalorder %v1965, %v881
      %vm2004 = vcmp.eq.s32.totalorder %v1965, %v882
      %vm2005 = vcmp.eq.s32.totalorder %v1968, %v881
      %vm2006 = vcmp.eq.s32.totalorder %v1968, %v882
      %vm2007 = vcmp.eq.s32.totalorder %v1971, %v881
      %vm2008 = vcmp.eq.s32.totalorder %v1971, %v882
      %vm2009 = vcmp.eq.s32.totalorder %v1974, %v881
      %vm2010 = vcmp.eq.s32.totalorder %v1974, %v882
      %vm2011 = vcmp.eq.s32.totalorder %v1977, %v881
      %vm2012 = vcmp.eq.s32.totalorder %v1977, %v882
      %vm2013 = vcmp.eq.s32.totalorder %v1980, %v881
      %vm2014 = vcmp.eq.s32.totalorder %v1980, %v882
      %vm2015 = vcmp.eq.s32.totalorder %v1983, %v881
      %vm2016 = vcmp.eq.s32.totalorder %v1983, %v882
      %vm2017 = vcmp.eq.s32.totalorder %v1986, %v881
      %vm2018 = vcmp.eq.s32.totalorder %v1986, %v882
      %v2019 = vsel %vm1987, 1, 0
      %v2020 = vsel %vm1988, 1, 0
      %v2021 = vsel %vm1989, 1, 0
      %v2022 = vsel %vm1990, 1, 0
      %v2023 = vsel %vm1991, 1, 0
      %v2024 = vsel %vm1992, 1, 0
      %v2025 = vsel %vm1993, 1, 0
      %v2026 = vsel %vm1994, 1, 0
      %v2027 = vsel %vm1995, 1, 0
      %v2028 = vsel %vm1996, 1, 0
      %v2029 = vsel %vm1997, 1, 0
      %v2030 = vsel %vm1998, 1, 0
      %v2031 = vsel %vm1999, 1, 0
      %v2032 = vsel %vm2000, 1, 0
      %v2033 = vsel %vm2001, 1, 0
      %v2034 = vsel %vm2002, 1, 0
      %v2035 = vsel %vm2003, 1, 0
      %v2036 = vsel %vm2004, 1, 0
      %v2037 = vsel %vm2005, 1, 0
      %v2038 = vsel %vm2006, 1, 0
      %v2039 = vsel %vm2007, 1, 0
      %v2040 = vsel %vm2008, 1, 0
      %v2041 = vsel %vm2009, 1, 0
      %v2042 = vsel %vm2010, 1, 0
      %v2043 = vsel %vm2011, 1, 0
      %v2044 = vsel %vm2012, 1, 0
      %v2045 = vsel %vm2013, 1, 0
      %v2046 = vsel %vm2014, 1, 0
      %v2047 = vsel %vm2015, 1, 0
      %v2048 = vsel %vm2016, 1, 0
      %v2049 = vsel %vm2017, 1, 0
      %v2050 = vsel %vm2018, 1, 0
      %v2051 = vcvt.s32.f32 %v2019
      %v2052 = vcvt.s32.f32 %v2020
      %v2053 = vcvt.s32.f32 %v2021
      %v2054 = vcvt.s32.f32 %v2022
      %v2055 = vcvt.s32.f32 %v2023
      %v2056 = vcvt.s32.f32 %v2024
      %v2057 = vcvt.s32.f32 %v2025
      %v2058 = vcvt.s32.f32 %v2026
      %v2059 = vcvt.s32.f32 %v2027
      %v2060 = vcvt.s32.f32 %v2028
      %v2061 = vcvt.s32.f32 %v2029
      %v2062 = vcvt.s32.f32 %v2030
      %v2063 = vcvt.s32.f32 %v2031
      %v2064 = vcvt.s32.f32 %v2032
      %v2065 = vcvt.s32.f32 %v2033
      %v2066 = vcvt.s32.f32 %v2034
      %v2067 = vcvt.s32.f32 %v2035
      %v2068 = vcvt.s32.f32 %v2036
      %v2069 = vcvt.s32.f32 %v2037
      %v2070 = vcvt.s32.f32 %v2038
      %v2071 = vcvt.s32.f32 %v2039
      %v2072 = vcvt.s32.f32 %v2040
      %v2073 = vcvt.s32.f32 %v2041
      %v2074 = vcvt.s32.f32 %v2042
      %v2075 = vcvt.s32.f32 %v2043
      %v2076 = vcvt.s32.f32 %v2044
      %v2077 = vcvt.s32.f32 %v2045
      %v2078 = vcvt.s32.f32 %v2046
      %v2079 = vcvt.s32.f32 %v2047
      %v2080 = vcvt.s32.f32 %v2048
      %v2081 = vcvt.s32.f32 %v2049
      %v2082 = vcvt.s32.f32 %v2050
      %v2083 = vadd.f32 %v1907, %v2051
      %v2084 = vadd.f32 %v1908, %v2052
      %v2085 = vadd.f32 %v1909, %v2053
      %v2086 = vadd.f32 %v1910, %v2054
      %v2087 = vadd.f32 %v1911, %v2055
      %v2088 = vadd.f32 %v1912, %v2056
      %v2089 = vadd.f32 %v1913, %v2057
      %v2090 = vadd.f32 %v1914, %v2058
      %v2091 = vadd.f32 %v1915, %v2059
      %v2092 = vadd.f32 %v1916, %v2060
      %v2093 = vadd.f32 %v1917, %v2061
      %v2094 = vadd.f32 %v1918, %v2062
      %v2095 = vadd.f32 %v1919, %v2063
      %v2096 = vadd.f32 %v1920, %v2064
      %v2097 = vadd.f32 %v1921, %v2065
      %v2098 = vadd.f32 %v1922, %v2066
      %v2099 = vadd.f32 %v1923, %v2067
      %v2100 = vadd.f32 %v1924, %v2068
      %v2101 = vadd.f32 %v1925, %v2069
      %v2102 = vadd.f32 %v1926, %v2070
      %v2103 = vadd.f32 %v1927, %v2071
      %v2104 = vadd.f32 %v1928, %v2072
      %v2105 = vadd.f32 %v1929, %v2073
      %v2106 = vadd.f32 %v1930, %v2074
      %v2107 = vadd.f32 %v1931, %v2075
      %v2108 = vadd.f32 %v1932, %v2076
      %v2109 = vadd.f32 %v1933, %v2077
      %v2110 = vadd.f32 %v1934, %v2078
      %v2111 = vadd.f32 %v1935, %v2079
      %v2112 = vadd.f32 %v1936, %v2080
      %v2113 = vadd.f32 %v1937, %v2081
      %v2114 = vadd.f32 %v1938, %v2082
      %2115 = vset.pattern.permute.xlu0 7
      %2116 = vperm.xlu0 %2115, %v864
      %v2117 = vpop.permute.xlu0 %2116
      %2118 = vset.pattern.permute.xlu0 7
      %2119 = vperm.xlu0 %2118, %v865
      %v2120 = vpop.permute.xlu0 %2119
      %2121 = vset.pattern.permute.xlu0 7
      %2122 = vperm.xlu0 %2121, %v866
      %v2123 = vpop.permute.xlu0 %2122
      %2124 = vset.pattern.permute.xlu0 7
      %2125 = vperm.xlu0 %2124, %v867
      %v2126 = vpop.permute.xlu0 %2125
      %2127 = vset.pattern.permute.xlu0 7
      %2128 = vperm.xlu0 %2127, %v868
      %v2129 = vpop.permute.xlu0 %2128
      %2130 = vset.pattern.permute.xlu0 7
      %2131 = vperm.xlu0 %2130, %v869
      %v2132 = vpop.permute.xlu0 %2131
      %2133 = vset.pattern.permute.xlu0 7
      %2134 = vperm.xlu0 %2133, %v870
      %v2135 = vpop.permute.xlu0 %2134
      %2136 = vset.pattern.permute.xlu0 7
      %2137 = vperm.xlu0 %2136, %v871
      %v2138 = vpop.permute.xlu0 %2137
      %2139 = vset.pattern.permute.xlu0 7
      %2140 = vperm.xlu0 %2139, %v872
      %v2141 = vpop.permute.xlu0 %2140
      %2142 = vset.pattern.permute.xlu0 7
      %2143 = vperm.xlu0 %2142, %v873
      %v2144 = vpop.permute.xlu0 %2143
      %2145 = vset.pattern.permute.xlu0 7
      %2146 = vperm.xlu0 %2145, %v874
      %v2147 = vpop.permute.xlu0 %2146
      %2148 = vset.pattern.permute.xlu0 7
      %2149 = vperm.xlu0 %2148, %v875
      %v2150 = vpop.permute.xlu0 %2149
      %2151 = vset.pattern.permute.xlu0 7
      %2152 = vperm.xlu0 %2151, %v876
      %v2153 = vpop.permute.xlu0 %2152
      %2154 = vset.pattern.permute.xlu0 7
      %2155 = vperm.xlu0 %2154, %v877
      %v2156 = vpop.permute.xlu0 %2155
      %2157 = vset.pattern.permute.xlu0 7
      %2158 = vperm.xlu0 %2157, %v878
      %v2159 = vpop.permute.xlu0 %2158
      %2160 = vset.pattern.permute.xlu0 7
      %2161 = vperm.xlu0 %2160, %v879
      %v2162 = vpop.permute.xlu0 %2161
      %vm2163 = vcmp.eq.s32.totalorder %v2117, %v881
      %vm2164 = vcmp.eq.s32.totalorder %v2117, %v882
      %vm2165 = vcmp.eq.s32.totalorder %v2120, %v881
      %vm2166 = vcmp.eq.s32.totalorder %v2120, %v882
      %vm2167 = vcmp.eq.s32.totalorder %v2123, %v881
      %vm2168 = vcmp.eq.s32.totalorder %v2123, %v882
      %vm2169 = vcmp.eq.s32.totalorder %v2126, %v881
      %vm2170 = vcmp.eq.s32.totalorder %v2126, %v882
      %vm2171 = vcmp.eq.s32.totalorder %v2129, %v881
      %vm2172 = vcmp.eq.s32.totalorder %v2129, %v882
      %vm2173 = vcmp.eq.s32.totalorder %v2132, %v881
      %vm2174 = vcmp.eq.s32.totalorder %v2132, %v882
      %vm2175 = vcmp.eq.s32.totalorder %v2135, %v881
      %vm2176 = vcmp.eq.s32.totalorder %v2135, %v882
      %vm2177 = vcmp.eq.s32.totalorder %v2138, %v881
      %vm2178 = vcmp.eq.s32.totalorder %v2138, %v882
      %vm2179 = vcmp.eq.s32.totalorder %v2141, %v881
      %vm2180 = vcmp.eq.s32.totalorder %v2141, %v882
      %vm2181 = vcmp.eq.s32.totalorder %v2144, %v881
      %vm2182 = vcmp.eq.s32.totalorder %v2144, %v882
      %vm2183 = vcmp.eq.s32.totalorder %v2147, %v881
      %vm2184 = vcmp.eq.s32.totalorder %v2147, %v882
      %vm2185 = vcmp.eq.s32.totalorder %v2150, %v881
      %vm2186 = vcmp.eq.s32.totalorder %v2150, %v882
      %vm2187 = vcmp.eq.s32.totalorder %v2153, %v881
      %vm2188 = vcmp.eq.s32.totalorder %v2153, %v882
      %vm2189 = vcmp.eq.s32.totalorder %v2156, %v881
      %vm2190 = vcmp.eq.s32.totalorder %v2156, %v882
      %vm2191 = vcmp.eq.s32.totalorder %v2159, %v881
      %vm2192 = vcmp.eq.s32.totalorder %v2159, %v882
      %vm2193 = vcmp.eq.s32.totalorder %v2162, %v881
      %vm2194 = vcmp.eq.s32.totalorder %v2162, %v882
      %v2195 = vsel %vm2163, 1, 0
      %v2196 = vsel %vm2164, 1, 0
      %v2197 = vsel %vm2165, 1, 0
      %v2198 = vsel %vm2166, 1, 0
      %v2199 = vsel %vm2167, 1, 0
      %v2200 = vsel %vm2168, 1, 0
      %v2201 = vsel %vm2169, 1, 0
      %v2202 = vsel %vm2170, 1, 0
      %v2203 = vsel %vm2171, 1, 0
      %v2204 = vsel %vm2172, 1, 0
      %v2205 = vsel %vm2173, 1, 0
      %v2206 = vsel %vm2174, 1, 0
      %v2207 = vsel %vm2175, 1, 0
      %v2208 = vsel %vm2176, 1, 0
      %v2209 = vsel %vm2177, 1, 0
      %v2210 = vsel %vm2178, 1, 0
      %v2211 = vsel %vm2179, 1, 0
      %v2212 = vsel %vm2180, 1, 0
      %v2213 = vsel %vm2181, 1, 0
      %v2214 = vsel %vm2182, 1, 0
      %v2215 = vsel %vm2183, 1, 0
      %v2216 = vsel %vm2184, 1, 0
      %v2217 = vsel %vm2185, 1, 0
      %v2218 = vsel %vm2186, 1, 0
      %v2219 = vsel %vm2187, 1, 0
      %v2220 = vsel %vm2188, 1, 0
      %v2221 = vsel %vm2189, 1, 0
      %v2222 = vsel %vm2190, 1, 0
      %v2223 = vsel %vm2191, 1, 0
      %v2224 = vsel %vm2192, 1, 0
      %v2225 = vsel %vm2193, 1, 0
      %v2226 = vsel %vm2194, 1, 0
      %v2227 = vcvt.s32.f32 %v2195
      %v2228 = vcvt.s32.f32 %v2196
      %v2229 = vcvt.s32.f32 %v2197
      %v2230 = vcvt.s32.f32 %v2198
      %v2231 = vcvt.s32.f32 %v2199
      %v2232 = vcvt.s32.f32 %v2200
      %v2233 = vcvt.s32.f32 %v2201
      %v2234 = vcvt.s32.f32 %v2202
      %v2235 = vcvt.s32.f32 %v2203
      %v2236 = vcvt.s32.f32 %v2204
      %v2237 = vcvt.s32.f32 %v2205
      %v2238 = vcvt.s32.f32 %v2206
      %v2239 = vcvt.s32.f32 %v2207
      %v2240 = vcvt.s32.f32 %v2208
      %v2241 = vcvt.s32.f32 %v2209
      %v2242 = vcvt.s32.f32 %v2210
      %v2243 = vcvt.s32.f32 %v2211
      %v2244 = vcvt.s32.f32 %v2212
      %v2245 = vcvt.s32.f32 %v2213
      %v2246 = vcvt.s32.f32 %v2214
      %v2247 = vcvt.s32.f32 %v2215
      %v2248 = vcvt.s32.f32 %v2216
      %v2249 = vcvt.s32.f32 %v2217
      %v2250 = vcvt.s32.f32 %v2218
      %v2251 = vcvt.s32.f32 %v2219
      %v2252 = vcvt.s32.f32 %v2220
      %v2253 = vcvt.s32.f32 %v2221
      %v2254 = vcvt.s32.f32 %v2222
      %v2255 = vcvt.s32.f32 %v2223
      %v2256 = vcvt.s32.f32 %v2224
      %v2257 = vcvt.s32.f32 %v2225
      %v2258 = vcvt.s32.f32 %v2226
      %v2259 = vadd.f32 %v2083, %v2227
      %v2260 = vadd.f32 %v2084, %v2228
      %v2261 = vadd.f32 %v2085, %v2229
      %v2262 = vadd.f32 %v2086, %v2230
      %v2263 = vadd.f32 %v2087, %v2231
      %v2264 = vadd.f32 %v2088, %v2232
      %v2265 = vadd.f32 %v2089, %v2233
      %v2266 = vadd.f32 %v2090, %v2234
      %v2267 = vadd.f32 %v2091, %v2235
      %v2268 = vadd.f32 %v2092, %v2236
      %v2269 = vadd.f32 %v2093, %v2237
      %v2270 = vadd.f32 %v2094, %v2238
      %v2271 = vadd.f32 %v2095, %v2239
      %v2272 = vadd.f32 %v2096, %v2240
      %v2273 = vadd.f32 %v2097, %v2241
      %v2274 = vadd.f32 %v2098, %v2242
      %v2275 = vadd.f32 %v2099, %v2243
      %v2276 = vadd.f32 %v2100, %v2244
      %v2277 = vadd.f32 %v2101, %v2245
      %v2278 = vadd.f32 %v2102, %v2246
      %v2279 = vadd.f32 %v2103, %v2247
      %v2280 = vadd.f32 %v2104, %v2248
      %v2281 = vadd.f32 %v2105, %v2249
      %v2282 = vadd.f32 %v2106, %v2250
      %v2283 = vadd.f32 %v2107, %v2251
      %v2284 = vadd.f32 %v2108, %v2252
      %v2285 = vadd.f32 %v2109, %v2253
      %v2286 = vadd.f32 %v2110, %v2254
      %v2287 = vadd.f32 %v2111, %v2255
      %v2288 = vadd.f32 %v2112, %v2256
      %v2289 = vadd.f32 %v2113, %v2257
      %v2290 = vadd.f32 %v2114, %v2258
      %2291 = vset.pattern.permute.xlu0 8
      %2292 = vperm.xlu0 %2291, %v864
      %v2293 = vpop.permute.xlu0 %2292
      %2294 = vset.pattern.permute.xlu0 8
      %2295 = vperm.xlu0 %2294, %v865
      %v2296 = vpop.permute.xlu0 %2295
      %2297 = vset.pattern.permute.xlu0 8
      %2298 = vperm.xlu0 %2297, %v866
      %v2299 = vpop.permute.xlu0 %2298
      %2300 = vset.pattern.permute.xlu0 8
      %2301 = vperm.xlu0 %2300, %v867
      %v2302 = vpop.permute.xlu0 %2301
      %2303 = vset.pattern.permute.xlu0 8
      %2304 = vperm.xlu0 %2303, %v868
      %v2305 = vpop.permute.xlu0 %2304
      %2306 = vset.pattern.permute.xlu0 8
      %2307 = vperm.xlu0 %2306, %v869
      %v2308 = vpop.permute.xlu0 %2307
      %2309 = vset.pattern.permute.xlu0 8
      %2310 = vperm.xlu0 %2309, %v870
      %v2311 = vpop.permute.xlu0 %2310
      %2312 = vset.pattern.permute.xlu0 8
      %2313 = vperm.xlu0 %2312, %v871
      %v2314 = vpop.permute.xlu0 %2313
      %2315 = vset.pattern.permute.xlu0 8
      %2316 = vperm.xlu0 %2315, %v872
      %v2317 = vpop.permute.xlu0 %2316
      %2318 = vset.pattern.permute.xlu0 8
      %2319 = vperm.xlu0 %2318, %v873
      %v2320 = vpop.permute.xlu0 %2319
      %2321 = vset.pattern.permute.xlu0 8
      %2322 = vperm.xlu0 %2321, %v874
      %v2323 = vpop.permute.xlu0 %2322
      %2324 = vset.pattern.permute.xlu0 8
      %2325 = vperm.xlu0 %2324, %v875
      %v2326 = vpop.permute.xlu0 %2325
      %2327 = vset.pattern.permute.xlu0 8
      %2328 = vperm.xlu0 %2327, %v876
      %v2329 = vpop.permute.xlu0 %2328
      %2330 = vset.pattern.permute.xlu0 8
      %2331 = vperm.xlu0 %2330, %v877
      %v2332 = vpop.permute.xlu0 %2331
      %2333 = vset.pattern.permute.xlu0 8
      %2334 = vperm.xlu0 %2333, %v878
      %v2335 = vpop.permute.xlu0 %2334
      %2336 = vset.pattern.permute.xlu0 8
      %2337 = vperm.xlu0 %2336, %v879
      %v2338 = vpop.permute.xlu0 %2337
      %vm2339 = vcmp.eq.s32.totalorder %v2293, %v881
      %vm2340 = vcmp.eq.s32.totalorder %v2293, %v882
      %vm2341 = vcmp.eq.s32.totalorder %v2296, %v881
      %vm2342 = vcmp.eq.s32.totalorder %v2296, %v882
      %vm2343 = vcmp.eq.s32.totalorder %v2299, %v881
      %vm2344 = vcmp.eq.s32.totalorder %v2299, %v882
      %vm2345 = vcmp.eq.s32.totalorder %v2302, %v881
      %vm2346 = vcmp.eq.s32.totalorder %v2302, %v882
      %vm2347 = vcmp.eq.s32.totalorder %v2305, %v881
      %vm2348 = vcmp.eq.s32.totalorder %v2305, %v882
      %vm2349 = vcmp.eq.s32.totalorder %v2308, %v881
      %vm2350 = vcmp.eq.s32.totalorder %v2308, %v882
      %vm2351 = vcmp.eq.s32.totalorder %v2311, %v881
      %vm2352 = vcmp.eq.s32.totalorder %v2311, %v882
      %vm2353 = vcmp.eq.s32.totalorder %v2314, %v881
      %vm2354 = vcmp.eq.s32.totalorder %v2314, %v882
      %vm2355 = vcmp.eq.s32.totalorder %v2317, %v881
      %vm2356 = vcmp.eq.s32.totalorder %v2317, %v882
      %vm2357 = vcmp.eq.s32.totalorder %v2320, %v881
      %vm2358 = vcmp.eq.s32.totalorder %v2320, %v882
      %vm2359 = vcmp.eq.s32.totalorder %v2323, %v881
      %vm2360 = vcmp.eq.s32.totalorder %v2323, %v882
      %vm2361 = vcmp.eq.s32.totalorder %v2326, %v881
      %vm2362 = vcmp.eq.s32.totalorder %v2326, %v882
      %vm2363 = vcmp.eq.s32.totalorder %v2329, %v881
      %vm2364 = vcmp.eq.s32.totalorder %v2329, %v882
      %vm2365 = vcmp.eq.s32.totalorder %v2332, %v881
      %vm2366 = vcmp.eq.s32.totalorder %v2332, %v882
      %vm2367 = vcmp.eq.s32.totalorder %v2335, %v881
      %vm2368 = vcmp.eq.s32.totalorder %v2335, %v882
      %vm2369 = vcmp.eq.s32.totalorder %v2338, %v881
      %vm2370 = vcmp.eq.s32.totalorder %v2338, %v882
      %v2371 = vsel %vm2339, 1, 0
      %v2372 = vsel %vm2340, 1, 0
      %v2373 = vsel %vm2341, 1, 0
      %v2374 = vsel %vm2342, 1, 0
      %v2375 = vsel %vm2343, 1, 0
      %v2376 = vsel %vm2344, 1, 0
      %v2377 = vsel %vm2345, 1, 0
      %v2378 = vsel %vm2346, 1, 0
      %v2379 = vsel %vm2347, 1, 0
      %v2380 = vsel %vm2348, 1, 0
      %v2381 = vsel %vm2349, 1, 0
      %v2382 = vsel %vm2350, 1, 0
      %v2383 = vsel %vm2351, 1, 0
      %v2384 = vsel %vm2352, 1, 0
      %v2385 = vsel %vm2353, 1, 0
      %v2386 = vsel %vm2354, 1, 0
      %v2387 = vsel %vm2355, 1, 0
      %v2388 = vsel %vm2356, 1, 0
      %v2389 = vsel %vm2357, 1, 0
      %v2390 = vsel %vm2358, 1, 0
      %v2391 = vsel %vm2359, 1, 0
      %v2392 = vsel %vm2360, 1, 0
      %v2393 = vsel %vm2361, 1, 0
      %v2394 = vsel %vm2362, 1, 0
      %v2395 = vsel %vm2363, 1, 0
      %v2396 = vsel %vm2364, 1, 0
      %v2397 = vsel %vm2365, 1, 0
      %v2398 = vsel %vm2366, 1, 0
      %v2399 = vsel %vm2367, 1, 0
      %v2400 = vsel %vm2368, 1, 0
      %v2401 = vsel %vm2369, 1, 0
      %v2402 = vsel %vm2370, 1, 0
      %v2403 = vcvt.s32.f32 %v2371
      %v2404 = vcvt.s32.f32 %v2372
      %v2405 = vcvt.s32.f32 %v2373
      %v2406 = vcvt.s32.f32 %v2374
      %v2407 = vcvt.s32.f32 %v2375
      %v2408 = vcvt.s32.f32 %v2376
      %v2409 = vcvt.s32.f32 %v2377
      %v2410 = vcvt.s32.f32 %v2378
      %v2411 = vcvt.s32.f32 %v2379
      %v2412 = vcvt.s32.f32 %v2380
      %v2413 = vcvt.s32.f32 %v2381
      %v2414 = vcvt.s32.f32 %v2382
      %v2415 = vcvt.s32.f32 %v2383
      %v2416 = vcvt.s32.f32 %v2384
      %v2417 = vcvt.s32.f32 %v2385
      %v2418 = vcvt.s32.f32 %v2386
      %v2419 = vcvt.s32.f32 %v2387
      %v2420 = vcvt.s32.f32 %v2388
      %v2421 = vcvt.s32.f32 %v2389
      %v2422 = vcvt.s32.f32 %v2390
      %v2423 = vcvt.s32.f32 %v2391
      %v2424 = vcvt.s32.f32 %v2392
      %v2425 = vcvt.s32.f32 %v2393
      %v2426 = vcvt.s32.f32 %v2394
      %v2427 = vcvt.s32.f32 %v2395
      %v2428 = vcvt.s32.f32 %v2396
      %v2429 = vcvt.s32.f32 %v2397
      %v2430 = vcvt.s32.f32 %v2398
      %v2431 = vcvt.s32.f32 %v2399
      %v2432 = vcvt.s32.f32 %v2400
      %v2433 = vcvt.s32.f32 %v2401
      %v2434 = vcvt.s32.f32 %v2402
      %v2435 = vadd.f32 %v2259, %v2403
      %v2436 = vadd.f32 %v2260, %v2404
      %v2437 = vadd.f32 %v2261, %v2405
      %v2438 = vadd.f32 %v2262, %v2406
      %v2439 = vadd.f32 %v2263, %v2407
      %v2440 = vadd.f32 %v2264, %v2408
      %v2441 = vadd.f32 %v2265, %v2409
      %v2442 = vadd.f32 %v2266, %v2410
      %v2443 = vadd.f32 %v2267, %v2411
      %v2444 = vadd.f32 %v2268, %v2412
      %v2445 = vadd.f32 %v2269, %v2413
      %v2446 = vadd.f32 %v2270, %v2414
      %v2447 = vadd.f32 %v2271, %v2415
      %v2448 = vadd.f32 %v2272, %v2416
      %v2449 = vadd.f32 %v2273, %v2417
      %v2450 = vadd.f32 %v2274, %v2418
      %v2451 = vadd.f32 %v2275, %v2419
      %v2452 = vadd.f32 %v2276, %v2420
      %v2453 = vadd.f32 %v2277, %v2421
      %v2454 = vadd.f32 %v2278, %v2422
      %v2455 = vadd.f32 %v2279, %v2423
      %v2456 = vadd.f32 %v2280, %v2424
      %v2457 = vadd.f32 %v2281, %v2425
      %v2458 = vadd.f32 %v2282, %v2426
      %v2459 = vadd.f32 %v2283, %v2427
      %v2460 = vadd.f32 %v2284, %v2428
      %v2461 = vadd.f32 %v2285, %v2429
      %v2462 = vadd.f32 %v2286, %v2430
      %v2463 = vadd.f32 %v2287, %v2431
      %v2464 = vadd.f32 %v2288, %v2432
      %v2465 = vadd.f32 %v2289, %v2433
      %v2466 = vadd.f32 %v2290, %v2434
      %2467 = vset.pattern.permute.xlu0 9
      %2468 = vperm.xlu0 %2467, %v864
      %v2469 = vpop.permute.xlu0 %2468
      %2470 = vset.pattern.permute.xlu0 9
      %2471 = vperm.xlu0 %2470, %v865
      %v2472 = vpop.permute.xlu0 %2471
      %2473 = vset.pattern.permute.xlu0 9
      %2474 = vperm.xlu0 %2473, %v866
      %v2475 = vpop.permute.xlu0 %2474
      %2476 = vset.pattern.permute.xlu0 9
      %2477 = vperm.xlu0 %2476, %v867
      %v2478 = vpop.permute.xlu0 %2477
      %2479 = vset.pattern.permute.xlu0 9
      %2480 = vperm.xlu0 %2479, %v868
      %v2481 = vpop.permute.xlu0 %2480
      %2482 = vset.pattern.permute.xlu0 9
      %2483 = vperm.xlu0 %2482, %v869
      %v2484 = vpop.permute.xlu0 %2483
      %2485 = vset.pattern.permute.xlu0 9
      %2486 = vperm.xlu0 %2485, %v870
      %v2487 = vpop.permute.xlu0 %2486
      %2488 = vset.pattern.permute.xlu0 9
      %2489 = vperm.xlu0 %2488, %v871
      %v2490 = vpop.permute.xlu0 %2489
      %2491 = vset.pattern.permute.xlu0 9
      %2492 = vperm.xlu0 %2491, %v872
      %v2493 = vpop.permute.xlu0 %2492
      %2494 = vset.pattern.permute.xlu0 9
      %2495 = vperm.xlu0 %2494, %v873
      %v2496 = vpop.permute.xlu0 %2495
      %2497 = vset.pattern.permute.xlu0 9
      %2498 = vperm.xlu0 %2497, %v874
      %v2499 = vpop.permute.xlu0 %2498
      %2500 = vset.pattern.permute.xlu0 9
      %2501 = vperm.xlu0 %2500, %v875
      %v2502 = vpop.permute.xlu0 %2501
      %2503 = vset.pattern.permute.xlu0 9
      %2504 = vperm.xlu0 %2503, %v876
      %v2505 = vpop.permute.xlu0 %2504
      %2506 = vset.pattern.permute.xlu0 9
      %2507 = vperm.xlu0 %2506, %v877
      %v2508 = vpop.permute.xlu0 %2507
      %2509 = vset.pattern.permute.xlu0 9
      %2510 = vperm.xlu0 %2509, %v878
      %v2511 = vpop.permute.xlu0 %2510
      %2512 = vset.pattern.permute.xlu0 9
      %2513 = vperm.xlu0 %2512, %v879
      %v2514 = vpop.permute.xlu0 %2513
      %vm2515 = vcmp.eq.s32.totalorder %v2469, %v881
      %vm2516 = vcmp.eq.s32.totalorder %v2469, %v882
      %vm2517 = vcmp.eq.s32.totalorder %v2472, %v881
      %vm2518 = vcmp.eq.s32.totalorder %v2472, %v882
      %vm2519 = vcmp.eq.s32.totalorder %v2475, %v881
      %vm2520 = vcmp.eq.s32.totalorder %v2475, %v882
      %vm2521 = vcmp.eq.s32.totalorder %v2478, %v881
      %vm2522 = vcmp.eq.s32.totalorder %v2478, %v882
      %vm2523 = vcmp.eq.s32.totalorder %v2481, %v881
      %vm2524 = vcmp.eq.s32.totalorder %v2481, %v882
      %vm2525 = vcmp.eq.s32.totalorder %v2484, %v881
      %vm2526 = vcmp.eq.s32.totalorder %v2484, %v882
      %vm2527 = vcmp.eq.s32.totalorder %v2487, %v881
      %vm2528 = vcmp.eq.s32.totalorder %v2487, %v882
      %vm2529 = vcmp.eq.s32.totalorder %v2490, %v881
      %vm2530 = vcmp.eq.s32.totalorder %v2490, %v882
      %vm2531 = vcmp.eq.s32.totalorder %v2493, %v881
      %vm2532 = vcmp.eq.s32.totalorder %v2493, %v882
      %vm2533 = vcmp.eq.s32.totalorder %v2496, %v881
      %vm2534 = vcmp.eq.s32.totalorder %v2496, %v882
      %vm2535 = vcmp.eq.s32.totalorder %v2499, %v881
      %vm2536 = vcmp.eq.s32.totalorder %v2499, %v882
      %vm2537 = vcmp.eq.s32.totalorder %v2502, %v881
      %vm2538 = vcmp.eq.s32.totalorder %v2502, %v882
      %vm2539 = vcmp.eq.s32.totalorder %v2505, %v881
      %vm2540 = vcmp.eq.s32.totalorder %v2505, %v882
      %vm2541 = vcmp.eq.s32.totalorder %v2508, %v881
      %vm2542 = vcmp.eq.s32.totalorder %v2508, %v882
      %vm2543 = vcmp.eq.s32.totalorder %v2511, %v881
      %vm2544 = vcmp.eq.s32.totalorder %v2511, %v882
      %vm2545 = vcmp.eq.s32.totalorder %v2514, %v881
      %vm2546 = vcmp.eq.s32.totalorder %v2514, %v882
      %v2547 = vsel %vm2515, 1, 0
      %v2548 = vsel %vm2516, 1, 0
      %v2549 = vsel %vm2517, 1, 0
      %v2550 = vsel %vm2518, 1, 0
      %v2551 = vsel %vm2519, 1, 0
      %v2552 = vsel %vm2520, 1, 0
      %v2553 = vsel %vm2521, 1, 0
      %v2554 = vsel %vm2522, 1, 0
      %v2555 = vsel %vm2523, 1, 0
      %v2556 = vsel %vm2524, 1, 0
      %v2557 = vsel %vm2525, 1, 0
      %v2558 = vsel %vm2526, 1, 0
      %v2559 = vsel %vm2527, 1, 0
      %v2560 = vsel %vm2528, 1, 0
      %v2561 = vsel %vm2529, 1, 0
      %v2562 = vsel %vm2530, 1, 0
      %v2563 = vsel %vm2531, 1, 0
      %v2564 = vsel %vm2532, 1, 0
      %v2565 = vsel %vm2533, 1, 0
      %v2566 = vsel %vm2534, 1, 0
      %v2567 = vsel %vm2535, 1, 0
      %v2568 = vsel %vm2536, 1, 0
      %v2569 = vsel %vm2537, 1, 0
      %v2570 = vsel %vm2538, 1, 0
      %v2571 = vsel %vm2539, 1, 0
      %v2572 = vsel %vm2540, 1, 0
      %v2573 = vsel %vm2541, 1, 0
      %v2574 = vsel %vm2542, 1, 0
      %v2575 = vsel %vm2543, 1, 0
      %v2576 = vsel %vm2544, 1, 0
      %v2577 = vsel %vm2545, 1, 0
      %v2578 = vsel %vm2546, 1, 0
      %v2579 = vcvt.s32.f32 %v2547
      %v2580 = vcvt.s32.f32 %v2548
      %v2581 = vcvt.s32.f32 %v2549
      %v2582 = vcvt.s32.f32 %v2550
      %v2583 = vcvt.s32.f32 %v2551
      %v2584 = vcvt.s32.f32 %v2552
      %v2585 = vcvt.s32.f32 %v2553
      %v2586 = vcvt.s32.f32 %v2554
      %v2587 = vcvt.s32.f32 %v2555
      %v2588 = vcvt.s32.f32 %v2556
      %v2589 = vcvt.s32.f32 %v2557
      %v2590 = vcvt.s32.f32 %v2558
      %v2591 = vcvt.s32.f32 %v2559
      %v2592 = vcvt.s32.f32 %v2560
      %v2593 = vcvt.s32.f32 %v2561
      %v2594 = vcvt.s32.f32 %v2562
      %v2595 = vcvt.s32.f32 %v2563
      %v2596 = vcvt.s32.f32 %v2564
      %v2597 = vcvt.s32.f32 %v2565
      %v2598 = vcvt.s32.f32 %v2566
      %v2599 = vcvt.s32.f32 %v2567
      %v2600 = vcvt.s32.f32 %v2568
      %v2601 = vcvt.s32.f32 %v2569
      %v2602 = vcvt.s32.f32 %v2570
      %v2603 = vcvt.s32.f32 %v2571
      %v2604 = vcvt.s32.f32 %v2572
      %v2605 = vcvt.s32.f32 %v2573
      %v2606 = vcvt.s32.f32 %v2574
      %v2607 = vcvt.s32.f32 %v2575
      %v2608 = vcvt.s32.f32 %v2576
      %v2609 = vcvt.s32.f32 %v2577
      %v2610 = vcvt.s32.f32 %v2578
      %v2611 = vadd.f32 %v2435, %v2579
      %v2612 = vadd.f32 %v2436, %v2580
      %v2613 = vadd.f32 %v2437, %v2581
      %v2614 = vadd.f32 %v2438, %v2582
      %v2615 = vadd.f32 %v2439, %v2583
      %v2616 = vadd.f32 %v2440, %v2584
      %v2617 = vadd.f32 %v2441, %v2585
      %v2618 = vadd.f32 %v2442, %v2586
      %v2619 = vadd.f32 %v2443, %v2587
      %v2620 = vadd.f32 %v2444, %v2588
      %v2621 = vadd.f32 %v2445, %v2589
      %v2622 = vadd.f32 %v2446, %v2590
      %v2623 = vadd.f32 %v2447, %v2591
      %v2624 = vadd.f32 %v2448, %v2592
      %v2625 = vadd.f32 %v2449, %v2593
      %v2626 = vadd.f32 %v2450, %v2594
      %v2627 = vadd.f32 %v2451, %v2595
      %v2628 = vadd.f32 %v2452, %v2596
      %v2629 = vadd.f32 %v2453, %v2597
      %v2630 = vadd.f32 %v2454, %v2598
      %v2631 = vadd.f32 %v2455, %v2599
      %v2632 = vadd.f32 %v2456, %v2600
      %v2633 = vadd.f32 %v2457, %v2601
      %v2634 = vadd.f32 %v2458, %v2602
      %v2635 = vadd.f32 %v2459, %v2603
      %v2636 = vadd.f32 %v2460, %v2604
      %v2637 = vadd.f32 %v2461, %v2605
      %v2638 = vadd.f32 %v2462, %v2606
      %v2639 = vadd.f32 %v2463, %v2607
      %v2640 = vadd.f32 %v2464, %v2608
      %v2641 = vadd.f32 %v2465, %v2609
      %v2642 = vadd.f32 %v2466, %v2610
      %2643 = vset.pattern.permute.xlu0 10
      %2644 = vperm.xlu0 %2643, %v864
      %v2645 = vpop.permute.xlu0 %2644
      %2646 = vset.pattern.permute.xlu0 10
      %2647 = vperm.xlu0 %2646, %v865
      %v2648 = vpop.permute.xlu0 %2647
      %2649 = vset.pattern.permute.xlu0 10
      %2650 = vperm.xlu0 %2649, %v866
      %v2651 = vpop.permute.xlu0 %2650
      %2652 = vset.pattern.permute.xlu0 10
      %2653 = vperm.xlu0 %2652, %v867
      %v2654 = vpop.permute.xlu0 %2653
      %2655 = vset.pattern.permute.xlu0 10
      %2656 = vperm.xlu0 %2655, %v868
      %v2657 = vpop.permute.xlu0 %2656
      %2658 = vset.pattern.permute.xlu0 10
      %2659 = vperm.xlu0 %2658, %v869
      %v2660 = vpop.permute.xlu0 %2659
      %2661 = vset.pattern.permute.xlu0 10
      %2662 = vperm.xlu0 %2661, %v870
      %v2663 = vpop.permute.xlu0 %2662
      %2664 = vset.pattern.permute.xlu0 10
      %2665 = vperm.xlu0 %2664, %v871
      %v2666 = vpop.permute.xlu0 %2665
      %2667 = vset.pattern.permute.xlu0 10
      %2668 = vperm.xlu0 %2667, %v872
      %v2669 = vpop.permute.xlu0 %2668
      %2670 = vset.pattern.permute.xlu0 10
      %2671 = vperm.xlu0 %2670, %v873
      %v2672 = vpop.permute.xlu0 %2671
      %2673 = vset.pattern.permute.xlu0 10
      %2674 = vperm.xlu0 %2673, %v874
      %v2675 = vpop.permute.xlu0 %2674
      %2676 = vset.pattern.permute.xlu0 10
      %2677 = vperm.xlu0 %2676, %v875
      %v2678 = vpop.permute.xlu0 %2677
      %2679 = vset.pattern.permute.xlu0 10
      %2680 = vperm.xlu0 %2679, %v876
      %v2681 = vpop.permute.xlu0 %2680
      %2682 = vset.pattern.permute.xlu0 10
      %2683 = vperm.xlu0 %2682, %v877
      %v2684 = vpop.permute.xlu0 %2683
      %2685 = vset.pattern.permute.xlu0 10
      %2686 = vperm.xlu0 %2685, %v878
      %v2687 = vpop.permute.xlu0 %2686
      %2688 = vset.pattern.permute.xlu0 10
      %2689 = vperm.xlu0 %2688, %v879
      %v2690 = vpop.permute.xlu0 %2689
      %vm2691 = vcmp.eq.s32.totalorder %v2645, %v881
      %vm2692 = vcmp.eq.s32.totalorder %v2645, %v882
      %vm2693 = vcmp.eq.s32.totalorder %v2648, %v881
      %vm2694 = vcmp.eq.s32.totalorder %v2648, %v882
      %vm2695 = vcmp.eq.s32.totalorder %v2651, %v881
      %vm2696 = vcmp.eq.s32.totalorder %v2651, %v882
      %vm2697 = vcmp.eq.s32.totalorder %v2654, %v881
      %vm2698 = vcmp.eq.s32.totalorder %v2654, %v882
      %vm2699 = vcmp.eq.s32.totalorder %v2657, %v881
      %vm2700 = vcmp.eq.s32.totalorder %v2657, %v882
      %vm2701 = vcmp.eq.s32.totalorder %v2660, %v881
      %vm2702 = vcmp.eq.s32.totalorder %v2660, %v882
      %vm2703 = vcmp.eq.s32.totalorder %v2663, %v881
      %vm2704 = vcmp.eq.s32.totalorder %v2663, %v882
      %vm2705 = vcmp.eq.s32.totalorder %v2666, %v881
      %vm2706 = vcmp.eq.s32.totalorder %v2666, %v882
      %vm2707 = vcmp.eq.s32.totalorder %v2669, %v881
      %vm2708 = vcmp.eq.s32.totalorder %v2669, %v882
      %vm2709 = vcmp.eq.s32.totalorder %v2672, %v881
      %vm2710 = vcmp.eq.s32.totalorder %v2672, %v882
      %vm2711 = vcmp.eq.s32.totalorder %v2675, %v881
      %vm2712 = vcmp.eq.s32.totalorder %v2675, %v882
      %vm2713 = vcmp.eq.s32.totalorder %v2678, %v881
      %vm2714 = vcmp.eq.s32.totalorder %v2678, %v882
      %vm2715 = vcmp.eq.s32.totalorder %v2681, %v881
      %vm2716 = vcmp.eq.s32.totalorder %v2681, %v882
      %vm2717 = vcmp.eq.s32.totalorder %v2684, %v881
      %vm2718 = vcmp.eq.s32.totalorder %v2684, %v882
      %vm2719 = vcmp.eq.s32.totalorder %v2687, %v881
      %vm2720 = vcmp.eq.s32.totalorder %v2687, %v882
      %vm2721 = vcmp.eq.s32.totalorder %v2690, %v881
      %vm2722 = vcmp.eq.s32.totalorder %v2690, %v882
      %v2723 = vsel %vm2691, 1, 0
      %v2724 = vsel %vm2692, 1, 0
      %v2725 = vsel %vm2693, 1, 0
      %v2726 = vsel %vm2694, 1, 0
      %v2727 = vsel %vm2695, 1, 0
      %v2728 = vsel %vm2696, 1, 0
      %v2729 = vsel %vm2697, 1, 0
      %v2730 = vsel %vm2698, 1, 0
      %v2731 = vsel %vm2699, 1, 0
      %v2732 = vsel %vm2700, 1, 0
      %v2733 = vsel %vm2701, 1, 0
      %v2734 = vsel %vm2702, 1, 0
      %v2735 = vsel %vm2703, 1, 0
      %v2736 = vsel %vm2704, 1, 0
      %v2737 = vsel %vm2705, 1, 0
      %v2738 = vsel %vm2706, 1, 0
      %v2739 = vsel %vm2707, 1, 0
      %v2740 = vsel %vm2708, 1, 0
      %v2741 = vsel %vm2709, 1, 0
      %v2742 = vsel %vm2710, 1, 0
      %v2743 = vsel %vm2711, 1, 0
      %v2744 = vsel %vm2712, 1, 0
      %v2745 = vsel %vm2713, 1, 0
      %v2746 = vsel %vm2714, 1, 0
      %v2747 = vsel %vm2715, 1, 0
      %v2748 = vsel %vm2716, 1, 0
      %v2749 = vsel %vm2717, 1, 0
      %v2750 = vsel %vm2718, 1, 0
      %v2751 = vsel %vm2719, 1, 0
      %v2752 = vsel %vm2720, 1, 0
      %v2753 = vsel %vm2721, 1, 0
      %v2754 = vsel %vm2722, 1, 0
      %v2755 = vcvt.s32.f32 %v2723
      %v2756 = vcvt.s32.f32 %v2724
      %v2757 = vcvt.s32.f32 %v2725
      %v2758 = vcvt.s32.f32 %v2726
      %v2759 = vcvt.s32.f32 %v2727
      %v2760 = vcvt.s32.f32 %v2728
      %v2761 = vcvt.s32.f32 %v2729
      %v2762 = vcvt.s32.f32 %v2730
      %v2763 = vcvt.s32.f32 %v2731
      %v2764 = vcvt.s32.f32 %v2732
      %v2765 = vcvt.s32.f32 %v2733
      %v2766 = vcvt.s32.f32 %v2734
      %v2767 = vcvt.s32.f32 %v2735
      %v2768 = vcvt.s32.f32 %v2736
      %v2769 = vcvt.s32.f32 %v2737
      %v2770 = vcvt.s32.f32 %v2738
      %v2771 = vcvt.s32.f32 %v2739
      %v2772 = vcvt.s32.f32 %v2740
      %v2773 = vcvt.s32.f32 %v2741
      %v2774 = vcvt.s32.f32 %v2742
      %v2775 = vcvt.s32.f32 %v2743
      %v2776 = vcvt.s32.f32 %v2744
      %v2777 = vcvt.s32.f32 %v2745
      %v2778 = vcvt.s32.f32 %v2746
      %v2779 = vcvt.s32.f32 %v2747
      %v2780 = vcvt.s32.f32 %v2748
      %v2781 = vcvt.s32.f32 %v2749
      %v2782 = vcvt.s32.f32 %v2750
      %v2783 = vcvt.s32.f32 %v2751
      %v2784 = vcvt.s32.f32 %v2752
      %v2785 = vcvt.s32.f32 %v2753
      %v2786 = vcvt.s32.f32 %v2754
      %v2787 = vadd.f32 %v2611, %v2755
      %v2788 = vadd.f32 %v2612, %v2756
      %v2789 = vadd.f32 %v2613, %v2757
      %v2790 = vadd.f32 %v2614, %v2758
      %v2791 = vadd.f32 %v2615, %v2759
      %v2792 = vadd.f32 %v2616, %v2760
      %v2793 = vadd.f32 %v2617, %v2761
      %v2794 = vadd.f32 %v2618, %v2762
      %v2795 = vadd.f32 %v2619, %v2763
      %v2796 = vadd.f32 %v2620, %v2764
      %v2797 = vadd.f32 %v2621, %v2765
      %v2798 = vadd.f32 %v2622, %v2766
      %v2799 = vadd.f32 %v2623, %v2767
      %v2800 = vadd.f32 %v2624, %v2768
      %v2801 = vadd.f32 %v2625, %v2769
      %v2802 = vadd.f32 %v2626, %v2770
      %v2803 = vadd.f32 %v2627, %v2771
      %v2804 = vadd.f32 %v2628, %v2772
      %v2805 = vadd.f32 %v2629, %v2773
      %v2806 = vadd.f32 %v2630, %v2774
      %v2807 = vadd.f32 %v2631, %v2775
      %v2808 = vadd.f32 %v2632, %v2776
      %v2809 = vadd.f32 %v2633, %v2777
      %v2810 = vadd.f32 %v2634, %v2778
      %v2811 = vadd.f32 %v2635, %v2779
      %v2812 = vadd.f32 %v2636, %v2780
      %v2813 = vadd.f32 %v2637, %v2781
      %v2814 = vadd.f32 %v2638, %v2782
      %v2815 = vadd.f32 %v2639, %v2783
      %v2816 = vadd.f32 %v2640, %v2784
      %v2817 = vadd.f32 %v2641, %v2785
      %v2818 = vadd.f32 %v2642, %v2786
      %2819 = vset.pattern.permute.xlu0 11
      %2820 = vperm.xlu0 %2819, %v864
      %v2821 = vpop.permute.xlu0 %2820
      %2822 = vset.pattern.permute.xlu0 11
      %2823 = vperm.xlu0 %2822, %v865
      %v2824 = vpop.permute.xlu0 %2823
      %2825 = vset.pattern.permute.xlu0 11
      %2826 = vperm.xlu0 %2825, %v866
      %v2827 = vpop.permute.xlu0 %2826
      %2828 = vset.pattern.permute.xlu0 11
      %2829 = vperm.xlu0 %2828, %v867
      %v2830 = vpop.permute.xlu0 %2829
      %2831 = vset.pattern.permute.xlu0 11
      %2832 = vperm.xlu0 %2831, %v868
      %v2833 = vpop.permute.xlu0 %2832
      %2834 = vset.pattern.permute.xlu0 11
      %2835 = vperm.xlu0 %2834, %v869
      %v2836 = vpop.permute.xlu0 %2835
      %2837 = vset.pattern.permute.xlu0 11
      %2838 = vperm.xlu0 %2837, %v870
      %v2839 = vpop.permute.xlu0 %2838
      %2840 = vset.pattern.permute.xlu0 11
      %2841 = vperm.xlu0 %2840, %v871
      %v2842 = vpop.permute.xlu0 %2841
      %2843 = vset.pattern.permute.xlu0 11
      %2844 = vperm.xlu0 %2843, %v872
      %v2845 = vpop.permute.xlu0 %2844
      %2846 = vset.pattern.permute.xlu0 11
      %2847 = vperm.xlu0 %2846, %v873
      %v2848 = vpop.permute.xlu0 %2847
      %2849 = vset.pattern.permute.xlu0 11
      %2850 = vperm.xlu0 %2849, %v874
      %v2851 = vpop.permute.xlu0 %2850
      %2852 = vset.pattern.permute.xlu0 11
      %2853 = vperm.xlu0 %2852, %v875
      %v2854 = vpop.permute.xlu0 %2853
      %2855 = vset.pattern.permute.xlu0 11
      %2856 = vperm.xlu0 %2855, %v876
      %v2857 = vpop.permute.xlu0 %2856
      %2858 = vset.pattern.permute.xlu0 11
      %2859 = vperm.xlu0 %2858, %v877
      %v2860 = vpop.permute.xlu0 %2859
      %2861 = vset.pattern.permute.xlu0 11
      %2862 = vperm.xlu0 %2861, %v878
      %v2863 = vpop.permute.xlu0 %2862
      %2864 = vset.pattern.permute.xlu0 11
      %2865 = vperm.xlu0 %2864, %v879
      %v2866 = vpop.permute.xlu0 %2865
      %vm2867 = vcmp.eq.s32.totalorder %v2821, %v881
      %vm2868 = vcmp.eq.s32.totalorder %v2821, %v882
      %vm2869 = vcmp.eq.s32.totalorder %v2824, %v881
      %vm2870 = vcmp.eq.s32.totalorder %v2824, %v882
      %vm2871 = vcmp.eq.s32.totalorder %v2827, %v881
      %vm2872 = vcmp.eq.s32.totalorder %v2827, %v882
      %vm2873 = vcmp.eq.s32.totalorder %v2830, %v881
      %vm2874 = vcmp.eq.s32.totalorder %v2830, %v882
      %vm2875 = vcmp.eq.s32.totalorder %v2833, %v881
      %vm2876 = vcmp.eq.s32.totalorder %v2833, %v882
      %vm2877 = vcmp.eq.s32.totalorder %v2836, %v881
      %vm2878 = vcmp.eq.s32.totalorder %v2836, %v882
      %vm2879 = vcmp.eq.s32.totalorder %v2839, %v881
      %vm2880 = vcmp.eq.s32.totalorder %v2839, %v882
      %vm2881 = vcmp.eq.s32.totalorder %v2842, %v881
      %vm2882 = vcmp.eq.s32.totalorder %v2842, %v882
      %vm2883 = vcmp.eq.s32.totalorder %v2845, %v881
      %vm2884 = vcmp.eq.s32.totalorder %v2845, %v882
      %vm2885 = vcmp.eq.s32.totalorder %v2848, %v881
      %vm2886 = vcmp.eq.s32.totalorder %v2848, %v882
      %vm2887 = vcmp.eq.s32.totalorder %v2851, %v881
      %vm2888 = vcmp.eq.s32.totalorder %v2851, %v882
      %vm2889 = vcmp.eq.s32.totalorder %v2854, %v881
      %vm2890 = vcmp.eq.s32.totalorder %v2854, %v882
      %vm2891 = vcmp.eq.s32.totalorder %v2857, %v881
      %vm2892 = vcmp.eq.s32.totalorder %v2857, %v882
      %vm2893 = vcmp.eq.s32.totalorder %v2860, %v881
      %vm2894 = vcmp.eq.s32.totalorder %v2860, %v882
      %vm2895 = vcmp.eq.s32.totalorder %v2863, %v881
      %vm2896 = vcmp.eq.s32.totalorder %v2863, %v882
      %vm2897 = vcmp.eq.s32.totalorder %v2866, %v881
      %vm2898 = vcmp.eq.s32.totalorder %v2866, %v882
      %v2899 = vsel %vm2867, 1, 0
      %v2900 = vsel %vm2868, 1, 0
      %v2901 = vsel %vm2869, 1, 0
      %v2902 = vsel %vm2870, 1, 0
      %v2903 = vsel %vm2871, 1, 0
      %v2904 = vsel %vm2872, 1, 0
      %v2905 = vsel %vm2873, 1, 0
      %v2906 = vsel %vm2874, 1, 0
      %v2907 = vsel %vm2875, 1, 0
      %v2908 = vsel %vm2876, 1, 0
      %v2909 = vsel %vm2877, 1, 0
      %v2910 = vsel %vm2878, 1, 0
      %v2911 = vsel %vm2879, 1, 0
      %v2912 = vsel %vm2880, 1, 0
      %v2913 = vsel %vm2881, 1, 0
      %v2914 = vsel %vm2882, 1, 0
      %v2915 = vsel %vm2883, 1, 0
      %v2916 = vsel %vm2884, 1, 0
      %v2917 = vsel %vm2885, 1, 0
      %v2918 = vsel %vm2886, 1, 0
      %v2919 = vsel %vm2887, 1, 0
      %v2920 = vsel %vm2888, 1, 0
      %v2921 = vsel %vm2889, 1, 0
      %v2922 = vsel %vm2890, 1, 0
      %v2923 = vsel %vm2891, 1, 0
      %v2924 = vsel %vm2892, 1, 0
      %v2925 = vsel %vm2893, 1, 0
      %v2926 = vsel %vm2894, 1, 0
      %v2927 = vsel %vm2895, 1, 0
      %v2928 = vsel %vm2896, 1, 0
      %v2929 = vsel %vm2897, 1, 0
      %v2930 = vsel %vm2898, 1, 0
      %v2931 = vcvt.s32.f32 %v2899
      %v2932 = vcvt.s32.f32 %v2900
      %v2933 = vcvt.s32.f32 %v2901
      %v2934 = vcvt.s32.f32 %v2902
      %v2935 = vcvt.s32.f32 %v2903
      %v2936 = vcvt.s32.f32 %v2904
      %v2937 = vcvt.s32.f32 %v2905
      %v2938 = vcvt.s32.f32 %v2906
      %v2939 = vcvt.s32.f32 %v2907
      %v2940 = vcvt.s32.f32 %v2908
      %v2941 = vcvt.s32.f32 %v2909
      %v2942 = vcvt.s32.f32 %v2910
      %v2943 = vcvt.s32.f32 %v2911
      %v2944 = vcvt.s32.f32 %v2912
      %v2945 = vcvt.s32.f32 %v2913
      %v2946 = vcvt.s32.f32 %v2914
      %v2947 = vcvt.s32.f32 %v2915
      %v2948 = vcvt.s32.f32 %v2916
      %v2949 = vcvt.s32.f32 %v2917
      %v2950 = vcvt.s32.f32 %v2918
      %v2951 = vcvt.s32.f32 %v2919
      %v2952 = vcvt.s32.f32 %v2920
      %v2953 = vcvt.s32.f32 %v2921
      %v2954 = vcvt.s32.f32 %v2922
      %v2955 = vcvt.s32.f32 %v2923
      %v2956 = vcvt.s32.f32 %v2924
      %v2957 = vcvt.s32.f32 %v2925
      %v2958 = vcvt.s32.f32 %v2926
      %v2959 = vcvt.s32.f32 %v2927
      %v2960 = vcvt.s32.f32 %v2928
      %v2961 = vcvt.s32.f32 %v2929
      %v2962 = vcvt.s32.f32 %v2930
      %v2963 = vadd.f32 %v2787, %v2931
      %v2964 = vadd.f32 %v2788, %v2932
      %v2965 = vadd.f32 %v2789, %v2933
      %v2966 = vadd.f32 %v2790, %v2934
      %v2967 = vadd.f32 %v2791, %v2935
      %v2968 = vadd.f32 %v2792, %v2936
      %v2969 = vadd.f32 %v2793, %v2937
      %v2970 = vadd.f32 %v2794, %v2938
      %v2971 = vadd.f32 %v2795, %v2939
      %v2972 = vadd.f32 %v2796, %v2940
      %v2973 = vadd.f32 %v2797, %v2941
      %v2974 = vadd.f32 %v2798, %v2942
      %v2975 = vadd.f32 %v2799, %v2943
      %v2976 = vadd.f32 %v2800, %v2944
      %v2977 = vadd.f32 %v2801, %v2945
      %v2978 = vadd.f32 %v2802, %v2946
      %v2979 = vadd.f32 %v2803, %v2947
      %v2980 = vadd.f32 %v2804, %v2948
      %v2981 = vadd.f32 %v2805, %v2949
      %v2982 = vadd.f32 %v2806, %v2950
      %v2983 = vadd.f32 %v2807, %v2951
      %v2984 = vadd.f32 %v2808, %v2952
      %v2985 = vadd.f32 %v2809, %v2953
      %v2986 = vadd.f32 %v2810, %v2954
      %v2987 = vadd.f32 %v2811, %v2955
      %v2988 = vadd.f32 %v2812, %v2956
      %v2989 = vadd.f32 %v2813, %v2957
      %v2990 = vadd.f32 %v2814, %v2958
      %v2991 = vadd.f32 %v2815, %v2959
      %v2992 = vadd.f32 %v2816, %v2960
      %v2993 = vadd.f32 %v2817, %v2961
      %v2994 = vadd.f32 %v2818, %v2962
      %v2995 = vpack.c.bf16 %v2965, %v2963
      %v2996 = vpack.c.bf16 %v2966, %v2964
      %v2997 = vpack.c.bf16 %v2969, %v2967
      %v2998 = vpack.c.bf16 %v2970, %v2968
      %v2999 = vpack.c.bf16 %v2973, %v2971
      %v3000 = vpack.c.bf16 %v2974, %v2972
      %v3001 = vpack.c.bf16 %v2977, %v2975
      %v3002 = vpack.c.bf16 %v2978, %v2976
      %v3003 = vpack.c.bf16 %v2981, %v2979
      %v3004 = vpack.c.bf16 %v2982, %v2980
      %v3005 = vpack.c.bf16 %v2985, %v2983
      %v3006 = vpack.c.bf16 %v2986, %v2984
      %v3007 = vpack.c.bf16 %v2989, %v2987
      %v3008 = vpack.c.bf16 %v2990, %v2988
      %v3009 = vpack.c.bf16 %v2993, %v2991
      %v3010 = vpack.c.bf16 %v2994, %v2992
      %v3011 = vld [vmem:[%s2] sm:$0xf]
      %v3012 = vld [vmem:[%s2 + $0x4] sm:$0xf]
      %v3013 = vld [vmem:[%s2 + $0x8] sm:$0xf]
      %v3014 = vld [vmem:[%s2 + $0xc] sm:$0xf]
      %v3015 = vld [vmem:[%s2 + $0x10] sm:$0xf]
      %v3016 = vld [vmem:[%s2 + $0x14] sm:$0xf]
      %v3017 = vld [vmem:[%s2 + $0x18] sm:$0xf]
      %v3018 = vld [vmem:[%s2 + $0x1c] sm:$0xf]
      %v3019 = vld [vmem:[%s2 + $0x20] sm:$0xf]
      %v3020 = vld [vmem:[%s2 + $0x24] sm:$0xf]
      %v3021 = vld [vmem:[%s2 + $0x28] sm:$0xf]
      %v3022 = vld [vmem:[%s2 + $0x2c] sm:$0xf]
      %v3023 = vld [vmem:[%s2 + $0x30] sm:$0xf]
      %v3024 = vld [vmem:[%s2 + $0x34] sm:$0xf]
      %v3025 = vld [vmem:[%s2 + $0x38] sm:$0xf]
      %v3026 = vld [vmem:[%s2 + $0x3c] sm:$0xf]
      %v3027 = vld [vmem:[%s2 + $0x40] sm:$0xf]
      %v3028 = vld [vmem:[%s2 + $0x44] sm:$0xf]
      %v3029 = vld [vmem:[%s2 + $0x48] sm:$0xf]
      %v3030 = vld [vmem:[%s2 + $0x4c] sm:$0xf]
      %v3031 = vld [vmem:[%s2 + $0x50] sm:$0xf]
      %v3032 = vld [vmem:[%s2 + $0x54] sm:$0xf]
      %v3033 = vld [vmem:[%s2 + $0x58] sm:$0xf]
      %v3034 = vld [vmem:[%s2 + $0x5c] sm:$0xf]
      %v3035 = vld [vmem:[%s2 + $0x60] sm:$0xf]
      %v3036 = vld [vmem:[%s2 + $0x64] sm:$0xf]
      %v3037 = vld [vmem:[%s2 + $0x68] sm:$0xf]
      %v3038 = vld [vmem:[%s2 + $0x6c] sm:$0xf]
      %v3039 = vld [vmem:[%s2 + $0x70] sm:$0xf]
      %v3040 = vld [vmem:[%s2 + $0x74] sm:$0xf]
      %v3071 = vunpack.c.l.b16 %v3011
      %v3072 = vunpack.c.l.b16 %v3012
      %v3073 = vunpack.c.l.b16 %v3013
      %v3074 = vunpack.c.l.b16 %v3014
      %v3075 = vunpack.c.l.b16 %v3015
      %v3076 = vunpack.c.l.b16 %v3016
      %v3077 = vunpack.c.l.b16 %v3017
      %v3078 = vunpack.c.l.b16 %v3018
      %v3079 = vunpack.c.l.b16 %v3019
      %v3080 = vunpack.c.l.b16 %v3020
      %v3081 = vunpack.c.l.b16 %v3021
      %v3082 = vunpack.c.l.b16 %v3022
      %v3083 = vunpack.c.l.b16 %v3023
      %v3084 = vunpack.c.l.b16 %v3024
      %v3085 = vunpack.c.l.b16 %v3025
      %v3086 = vunpack.c.l.b16 %v3026
      %v3087 = vunpack.c.l.b16 %v3027
      %v3088 = vunpack.c.l.b16 %v3028
      %v3089 = vunpack.c.l.b16 %v3029
      %v3090 = vunpack.c.l.b16 %v3030
      %v3091 = vunpack.c.l.b16 %v3031
      %v3092 = vunpack.c.l.b16 %v3032
      %v3093 = vunpack.c.l.b16 %v3033
      %v3094 = vunpack.c.l.b16 %v3034
      %v3095 = vunpack.c.l.b16 %v3035
      %v3096 = vunpack.c.l.b16 %v3036
      %v3097 = vunpack.c.l.b16 %v3037
      %v3098 = vunpack.c.l.b16 %v3038
      %v3099 = vunpack.c.l.b16 %v3039
      %v3100 = vunpack.c.l.b16 %v3040
      %v3101 = vpack.c.b16 %v3072, %v3071
      %v3102 = vpack.c.b16 %v3074, %v3073
      %v3103 = vpack.c.b16 %v3076, %v3075
      %v3104 = vpack.c.b16 %v3078, %v3077
      %v3105 = vpack.c.b16 %v3080, %v3079
      %v3106 = vpack.c.b16 %v3082, %v3081
      %v3107 = vpack.c.b16 %v3084, %v3083
      %v3108 = vpack.c.b16 %v3086, %v3085
      %v3109 = vpack.c.b16 %v3088, %v3087
      %v3110 = vpack.c.b16 %v3090, %v3089
      %v3111 = vpack.c.b16 %v3092, %v3091
      %v3112 = vpack.c.b16 %v3094, %v3093
      %v3113 = vpack.c.b16 %v3096, %v3095
      %v3114 = vpack.c.b16 %v3098, %v3097
      %v3115 = vpack.c.b16 %v3100, %v3099
      %vm3131 = vcmask 916480
      %v3133 = vsel %vm3131, %v2996, 0
      %v3136 = vsel %vm3131, %v2998, 0
      %v3139 = vsel %vm3131, %v3000, 0
      %v3142 = vsel %vm3131, %v3002, 0
      %v3145 = vsel %vm3131, %v3004, 0
      %v3148 = vsel %vm3131, %v3006, 0
      %v3151 = vsel %vm3131, %v3008, 0
      %v3154 = vsel %vm3131, %v3010, 0
      %3156 = vmatprep.subr.bf16.mxu0 0
      %3157 = vmatpush1.bf16.msra.mxu0 %v3101
      %3158 = vmatprep.subr.bf16.mxu0 0
      %3159 = vmatpush1.bf16.msra.mxu0 %v3102
      %3160 = vmatprep.subr.bf16.mxu0 0
      %3161 = vmatpush1.bf16.msra.mxu0 %v3103
      %3162 = vmatprep.subr.bf16.mxu0 0
      %3163 = vmatpush1.bf16.msra.mxu0 %v3104
      %3164 = vmatprep.subr.bf16.mxu0 0
      %3165 = vmatpush1.bf16.msra.mxu0 %v3105
      %3166 = vmatprep.subr.bf16.mxu0 0
      %3167 = vmatpush1.bf16.msra.mxu0 %v3106
      %3168 = vmatprep.subr.bf16.mxu0 0
      %3169 = vmatpush1.bf16.msra.mxu0 %v3107
      %3170 = vmatprep.subr.bf16.mxu0 0
      %3171 = vmatpush1.bf16.msra.mxu0 %v3108
      %3172 = vmatprep.subr.bf16.mxu0 0
      %3173 = vmatpush1.bf16.msra.mxu0 %v3109
      %3174 = vmatprep.subr.bf16.mxu0 0
      %3175 = vmatpush1.bf16.msra.mxu0 %v3110
      %3176 = vmatprep.subr.bf16.mxu0 0
      %3177 = vmatpush1.bf16.msra.mxu0 %v3111
      %3178 = vmatprep.subr.bf16.mxu0 0
      %3179 = vmatpush1.bf16.msra.mxu0 %v3112
      %3180 = vmatprep.subr.bf16.mxu0 0
      %3181 = vmatpush1.bf16.msra.mxu0 %v3113
      %3182 = vmatprep.subr.bf16.mxu0 0
      %3183 = vmatpush1.bf16.msra.mxu0 %v3114
      %3184 = vmatprep.subr.bf16.mxu0 0
      %3185 = vmatpush1.bf16.msra.mxu0 %v3115
      %3186 = vmatprep.subr.bf16.mxu0 0
      %3187 = vmatpush1.bf16.msra.mxu0 0
      %3188 = vmatprep.mubr.bf16.mxu0 %v3133
      %3189 = vmatmul.mubr.bf16.gmra.mrb[0].mxu0 %v2995
      %v3190 = vpop.f32.mrb[0].mxu0
      %v3191 = vadd.f32 0.0, %v3190
      %v3192 = vpop.f32.mrb[0].mxu0
      %v3193 = vpop.f32.mrb[0].mxu0
      %v3194 = vadd.f32 0.0, %v3193
      %v3195 = vpop.f32.mrb[0].mxu0
      %3196 = vmatprep.mubr.bf16.mxu0 %v3136
      %3197 = vmatmul.mubr.bf16.gmra.mrb[0].mxu0 %v2997
      %v3198 = vpop.f32.mrb[0].mxu0
      %v3199 = vadd.f32 0.0, %v3198
      %v3200 = vpop.f32.mrb[0].mxu0
      %v3201 = vpop.f32.mrb[0].mxu0
      %v3202 = vadd.f32 0.0, %v3201
      %v3203 = vpop.f32.mrb[0].mxu0
      %3204 = vmatprep.mubr.bf16.mxu0 %v3139
      %3205 = vmatmul.mubr.bf16.gmra.mrb[0].mxu0 %v2999
      %v3206 = vpop.f32.mrb[0].mxu0
      %v3207 = vadd.f32 0.0, %v3206
      %v3208 = vpop.f32.mrb[0].mxu0
      %v3209 = vpop.f32.mrb[0].mxu0
      %v3210 = vadd.f32 0.0, %v3209
      %v3211 = vpop.f32.mrb[0].mxu0
      %3212 = vmatprep.mubr.bf16.mxu0 %v3142
      %3213 = vmatmul.mubr.bf16.gmra.mrb[0].mxu0 %v3001
      %v3214 = vpop.f32.mrb[0].mxu0
      %v3215 = vadd.f32 0.0, %v3214
      %v3216 = vpop.f32.mrb[0].mxu0
      %v3217 = vpop.f32.mrb[0].mxu0
      %v3218 = vadd.f32 0.0, %v3217
      %v3219 = vpop.f32.mrb[0].mxu0
      %3220 = vmatprep.mubr.bf16.mxu0 %v3145
      %3221 = vmatmul.mubr.bf16.gmra.mrb[0].mxu0 %v3003
      %v3222 = vpop.f32.mrb[0].mxu0
      %v3223 = vadd.f32 0.0, %v3222
      %v3224 = vpop.f32.mrb[0].mxu0
      %v3225 = vpop.f32.mrb[0].mxu0
      %v3226 = vadd.f32 0.0, %v3225
      %v3227 = vpop.f32.mrb[0].mxu0
      %3228 = vmatprep.mubr.bf16.mxu0 %v3148
      %3229 = vmatmul.mubr.bf16.gmra.mrb[0].mxu0 %v3005
      %v3230 = vpop.f32.mrb[0].mxu0
      %v3231 = vadd.f32 0.0, %v3230
      %v3232 = vpop.f32.mrb[0].mxu0
      %v3233 = vpop.f32.mrb[0].mxu0
      %v3234 = vadd.f32 0.0, %v3233
      %v3235 = vpop.f32.mrb[0].mxu0
      %3236 = vmatprep.mubr.bf16.mxu0 %v3151
      %3237 = vmatmul.mubr.bf16.gmra.mrb[0].mxu0 %v3007
      %v3238 = vpop.f32.mrb[0].mxu0
      %v3239 = vadd.f32 0.0, %v3238
      %v3240 = vpop.f32.mrb[0].mxu0
      %v3241 = vpop.f32.mrb[0].mxu0
      %v3242 = vadd.f32 0.0, %v3241
      %v3243 = vpop.f32.mrb[0].mxu0
      %3244 = vmatprep.mubr.bf16.mxu0 %v3154
      %3245 = vmatmul.mubr.bf16.gmra.mrb[0].mxu0 %v3009
      %v3246 = vpop.f32.mrb[0].mxu0
      %v3247 = vadd.f32 0.0, %v3246
      %v3248 = vpop.f32.mrb[0].mxu0
      %v3249 = vpop.f32.mrb[0].mxu0
      %v3250 = vadd.f32 0.0, %v3249
      %v3251 = vpop.f32.mrb[0].mxu0
      %3252 = vdwg.mxu0
      %3269 = vrot.lane.b32.xlu0 %v3191, 16
      %v3270 = vpop.permute.xlu0 %3269
      %3271 = vrot.lane.b32.xlu0 %v3194, 16
      %v3272 = vpop.permute.xlu0 %3271
      %3273 = vrot.lane.b32.xlu0 %v3199, 16
      %v3274 = vpop.permute.xlu0 %3273
      %3275 = vrot.lane.b32.xlu0 %v3202, 16
      %v3276 = vpop.permute.xlu0 %3275
      %3277 = vrot.lane.b32.xlu0 %v3207, 16
      %v3278 = vpop.permute.xlu0 %3277
      %3279 = vrot.lane.b32.xlu0 %v3210, 16
      %v3280 = vpop.permute.xlu0 %3279
      %3281 = vrot.lane.b32.xlu0 %v3215, 16
      %v3282 = vpop.permute.xlu0 %3281
      %3283 = vrot.lane.b32.xlu0 %v3218, 16
      %v3284 = vpop.permute.xlu0 %3283
      %3285 = vrot.lane.b32.xlu0 %v3223, 16
      %v3286 = vpop.permute.xlu0 %3285
      %3287 = vrot.lane.b32.xlu0 %v3226, 16
      %v3288 = vpop.permute.xlu0 %3287
      %3289 = vrot.lane.b32.xlu0 %v3231, 16
      %v3290 = vpop.permute.xlu0 %3289
      %3291 = vrot.lane.b32.xlu0 %v3234, 16
      %v3292 = vpop.permute.xlu0 %3291
      %3293 = vrot.lane.b32.xlu0 %v3239, 16
      %v3294 = vpop.permute.xlu0 %3293
      %3295 = vrot.lane.b32.xlu0 %v3242, 16
      %v3296 = vpop.permute.xlu0 %3295
      %3297 = vrot.lane.b32.xlu0 %v3247, 16
      %v3298 = vpop.permute.xlu0 %3297
      %3299 = vrot.lane.b32.xlu0 %v3250, 16
      %v3300 = vpop.permute.xlu0 %3299
      %vm3317 = vcmask 130048
      %v3318 = vsel %vm3317, %v848, %v3270
      %v3319 = vsel %vm3317, %v849, %v3272
      %v3320 = vsel %vm3317, %v850, %v3274
      %v3321 = vsel %vm3317, %v851, %v3276
      %v3322 = vsel %vm3317, %v852, %v3278
      %v3323 = vsel %vm3317, %v853, %v3280
      %v3324 = vsel %vm3317, %v854, %v3282
      %v3325 = vsel %vm3317, %v855, %v3284
      %v3326 = vsel %vm3317, %v856, %v3286
      %v3327 = vsel %vm3317, %v857, %v3288
      %v3328 = vsel %vm3317, %v858, %v3290
      %v3329 = vsel %vm3317, %v859, %v3292
      %v3330 = vsel %vm3317, %v860, %v3294
      %v3331 = vsel %vm3317, %v861, %v3296
      %v3332 = vsel %vm3317, %v862, %v3298
      %v3333 = vsel %vm3317, %v863, %v3300
      %v3334 = vpack.c.bf16 %v3319, %v3318
      %v3335 = vpack.c.bf16 %v3321, %v3320
      %v3336 = vpack.c.bf16 %v3323, %v3322
      %v3337 = vpack.c.bf16 %v3325, %v3324
      %v3338 = vpack.c.bf16 %v3327, %v3326
      %v3339 = vpack.c.bf16 %v3329, %v3328
      %v3340 = vpack.c.bf16 %v3331, %v3330
      %v3341 = vpack.c.bf16 %v3333, %v3332
      %v3342 = vld [vmem:[%s3] sm:$0xf]
      %v3343 = vld [vmem:[%s3 + $0x4] sm:$0xf]
      %v3344 = vld [vmem:[%s3 + $0x8] sm:$0xf]
      %v3345 = vld [vmem:[%s3 + $0xc] sm:$0xf]
      %v3346 = vld [vmem:[%s3 + $0x10] sm:$0xf]
      %v3347 = vld [vmem:[%s3 + $0x14] sm:$0xf]
      %v3348 = vld [vmem:[%s3 + $0x18] sm:$0xf]
      %v3349 = vld [vmem:[%s3 + $0x1c] sm:$0xf]
      %v3358 = vunpack.c.l.b16 %v3342
      %v3359 = vunpack.c.l.b16 %v3343
      %v3360 = vunpack.c.l.b16 %v3344
      %v3361 = vunpack.c.l.b16 %v3345
      %v3362 = vunpack.c.l.b16 %v3346
      %v3363 = vunpack.c.l.b16 %v3347
      %v3364 = vunpack.c.l.b16 %v3348
      %v3365 = vunpack.c.l.b16 %v3349
      %v3366 = vpack.c.b16 %v3359, %v3358
      %v3367 = vpack.c.b16 %v3361, %v3360
      %v3368 = vpack.c.b16 %v3363, %v3362
      %v3369 = vpack.c.b16 %v3365, %v3364
      %v3375 = vsel %vm726, %v3334, 0
      %v3378 = vsel %vm726, %v3335, 0
      %v3381 = vsel %vm726, %v3336, 0
      %v3384 = vsel %vm726, %v3337, 0
      %v3387 = vsel %vm726, %v3338, 0
      %v3390 = vsel %vm726, %v3339, 0
      %v3393 = vsel %vm726, %v3340, 0
      %v3396 = vsel %vm726, %v3341, 0
      %3398 = vmatprep.subr.bf16.mxu0 0
      %3399 = vmatpush1.bf16.msra.mxu0 %v3366
      %3400 = vmatprep.subr.bf16.mxu0 0
      %3401 = vmatpush1.bf16.msra.mxu0 %v3367
      %3402 = vmatprep.subr.bf16.mxu0 0
      %3403 = vmatpush1.bf16.msra.mxu0 %v3368
      %3404 = vmatprep.subr.bf16.mxu0 0
      %3405 = vmatpush1.bf16.msra.mxu0 %v3369
      %3406 = vmatprep.subr.bf16.mxu0 0
      %3407 = vmatpush1.bf16.msra.mxu0 0
      %3408 = vmatprep.subr.bf16.mxu0 0
      %3409 = vmatpush1.bf16.msra.mxu0 0
      %3410 = vmatprep.subr.bf16.mxu0 0
      %3411 = vmatpush1.bf16.msra.mxu0 0
      %3412 = vmatprep.subr.bf16.mxu0 0
      %3413 = vmatpush1.bf16.msra.mxu0 0
      %3414 = vmatprep.subr.bf16.mxu0 0
      %3415 = vmatpush1.bf16.msra.mxu0 0
      %3416 = vmatprep.subr.bf16.mxu0 0
      %3417 = vmatpush1.bf16.msra.mxu0 0
      %3418 = vmatprep.subr.bf16.mxu0 0
      %3419 = vmatpush1.bf16.msra.mxu0 0
      %3420 = vmatprep.subr.bf16.mxu0 0
      %3421 = vmatpush1.bf16.msra.mxu0 0
      %3422 = vmatprep.subr.bf16.mxu0 0
      %3423 = vmatpush1.bf16.msra.mxu0 0
      %3424 = vmatprep.subr.bf16.mxu0 0
      %3425 = vmatpush1.bf16.msra.mxu0 0
      %3426 = vmatprep.subr.bf16.mxu0 0
      %3427 = vmatpush1.bf16.msra.mxu0 0
      %3428 = vmatprep.subr.bf16.mxu0 0
      %3429 = vmatpush1.bf16.msra.mxu0 0
      %3430 = vmatprep.mubr.bf16.mxu0 0
      %3431 = vmatmul.mubr.bf16.gmra.mrb[0].mxu0 %v3375
      %v3432 = vpop.f32.mrb[0].mxu0
      %v3433 = vadd.f32 0.0, %v3432
      %v3434 = vpop.f32.mrb[0].mxu0
      %v3435 = vpop.f32.mrb[0].mxu0
      %v3436 = vadd.f32 0.0, %v3435
      %v3437 = vpop.f32.mrb[0].mxu0
      %3438 = vmatprep.mubr.bf16.mxu0 0
      %3439 = vmatmul.mubr.bf16.gmra.mrb[0].mxu0 %v3378
      %v3440 = vpop.f32.mrb[0].mxu0
      %v3441 = vadd.f32 0.0, %v3440
      %v3442 = vpop.f32.mrb[0].mxu0
      %v3443 = vpop.f32.mrb[0].mxu0
      %v3444 = vadd.f32 0.0, %v3443
      %v3445 = vpop.f32.mrb[0].mxu0
      %3446 = vmatprep.mubr.bf16.mxu0 0
      %3447 = vmatmul.mubr.bf16.gmra.mrb[0].mxu0 %v3381
      %v3448 = vpop.f32.mrb[0].mxu0
      %v3449 = vadd.f32 0.0, %v3448
      %v3450 = vpop.f32.mrb[0].mxu0
      %v3451 = vpop.f32.mrb[0].mxu0
      %v3452 = vadd.f32 0.0, %v3451
      %v3453 = vpop.f32.mrb[0].mxu0
      %3454 = vmatprep.mubr.bf16.mxu0 0
      %3455 = vmatmul.mubr.bf16.gmra.mrb[0].mxu0 %v3384
      %v3456 = vpop.f32.mrb[0].mxu0
      %v3457 = vadd.f32 0.0, %v3456
      %v3458 = vpop.f32.mrb[0].mxu0
      %v3459 = vpop.f32.mrb[0].mxu0
      %v3460 = vadd.f32 0.0, %v3459
      %v3461 = vpop.f32.mrb[0].mxu0
      %3462 = vmatprep.mubr.bf16.mxu0 0
      %3463 = vmatmul.mubr.bf16.gmra.mrb[0].mxu0 %v3387
      %v3464 = vpop.f32.mrb[0].mxu0
      %v3465 = vadd.f32 0.0, %v3464
      %v3466 = vpop.f32.mrb[0].mxu0
      %v3467 = vpop.f32.mrb[0].mxu0
      %v3468 = vadd.f32 0.0, %v3467
      %v3469 = vpop.f32.mrb[0].mxu0
      %3470 = vmatprep.mubr.bf16.mxu0 0
      %3471 = vmatmul.mubr.bf16.gmra.mrb[0].mxu0 %v3390
      %v3472 = vpop.f32.mrb[0].mxu0
      %v3473 = vadd.f32 0.0, %v3472
      %v3474 = vpop.f32.mrb[0].mxu0
      %v3475 = vpop.f32.mrb[0].mxu0
      %v3476 = vadd.f32 0.0, %v3475
      %v3477 = vpop.f32.mrb[0].mxu0
      %3478 = vmatprep.mubr.bf16.mxu0 0
      %3479 = vmatmul.mubr.bf16.gmra.mrb[0].mxu0 %v3393
      %v3480 = vpop.f32.mrb[0].mxu0
      %v3481 = vadd.f32 0.0, %v3480
      %v3482 = vpop.f32.mrb[0].mxu0
      %v3483 = vpop.f32.mrb[0].mxu0
      %v3484 = vadd.f32 0.0, %v3483
      %v3485 = vpop.f32.mrb[0].mxu0
      %3486 = vmatprep.mubr.bf16.mxu0 0
      %3487 = vmatmul.mubr.bf16.gmra.mrb[0].mxu0 %v3396
      %v3488 = vpop.f32.mrb[0].mxu0
      %v3489 = vadd.f32 0.0, %v3488
      %v3490 = vpop.f32.mrb[0].mxu0
      %v3491 = vpop.f32.mrb[0].mxu0
      %v3492 = vadd.f32 0.0, %v3491
      %v3493 = vpop.f32.mrb[0].mxu0
      %3494 = vdwg.mxu0
      %v3495 = vld [vmem:[%s4] sm:$0xf]
      %v3496 = vld [vmem:[%s4 + $0x4] sm:$0xf]
      %v3497 = vld [vmem:[%s4 + $0x8] sm:$0xf]
      %v3498 = vld [vmem:[%s4 + $0xc] sm:$0xf]
      %v3499 = vld [vmem:[%s4 + $0x10] sm:$0xf]
      %v3500 = vld [vmem:[%s4 + $0x14] sm:$0xf]
      %v3501 = vld [vmem:[%s4 + $0x18] sm:$0xf]
      %v3502 = vld [vmem:[%s4 + $0x1c] sm:$0xf]
      %v3511 = vunpack.c.l.b16 %v3495
      %v3512 = vunpack.c.l.b16 %v3496
      %v3513 = vunpack.c.l.b16 %v3497
      %v3514 = vunpack.c.l.b16 %v3498
      %v3515 = vunpack.c.l.b16 %v3499
      %v3516 = vunpack.c.l.b16 %v3500
      %v3517 = vunpack.c.l.b16 %v3501
      %v3518 = vunpack.c.l.b16 %v3502
      %v3519 = vpack.c.b16 %v3512, %v3511
      %v3520 = vpack.c.b16 %v3514, %v3513
      %v3521 = vpack.c.b16 %v3516, %v3515
      %v3522 = vpack.c.b16 %v3518, %v3517
      %3527 = vmatprep.subr.bf16.mxu0 0
      %3528 = vmatpush1.bf16.msra.mxu0 %v3519
      %3529 = vmatprep.subr.bf16.mxu0 0
      %3530 = vmatpush1.bf16.msra.mxu0 %v3520
      %3531 = vmatprep.subr.bf16.mxu0 0
      %3532 = vmatpush1.bf16.msra.mxu0 %v3521
      %3533 = vmatprep.subr.bf16.mxu0 0
      %3534 = vmatpush1.bf16.msra.mxu0 %v3522
      %3535 = vmatprep.subr.bf16.mxu0 0
      %3536 = vmatpush1.bf16.msra.mxu0 0
      %3537 = vmatprep.subr.bf16.mxu0 0
      %3538 = vmatpush1.bf16.msra.mxu0 0
      %3539 = vmatprep.subr.bf16.mxu0 0
      %3540 = vmatpush1.bf16.msra.mxu0 0
      %3541 = vmatprep.subr.bf16.mxu0 0
      %3542 = vmatpush1.bf16.msra.mxu0 0
      %3543 = vmatprep.subr.bf16.mxu0 0
      %3544 = vmatpush1.bf16.msra.mxu0 0
      %3545 = vmatprep.subr.bf16.mxu0 0
      %3546 = vmatpush1.bf16.msra.mxu0 0
      %3547 = vmatprep.subr.bf16.mxu0 0
      %3548 = vmatpush1.bf16.msra.mxu0 0
      %3549 = vmatprep.subr.bf16.mxu0 0
      %3550 = vmatpush1.bf16.msra.mxu0 0
      %3551 = vmatprep.subr.bf16.mxu0 0
      %3552 = vmatpush1.bf16.msra.mxu0 0
      %3553 = vmatprep.subr.bf16.mxu0 0
      %3554 = vmatpush1.bf16.msra.mxu0 0
      %3555 = vmatprep.subr.bf16.mxu0 0
      %3556 = vmatpush1.bf16.msra.mxu0 0
      %3557 = vmatprep.subr.bf16.mxu0 0
      %3558 = vmatpush1.bf16.msra.mxu0 0
      %3559 = vmatprep.mubr.bf16.mxu0 0
      %3560 = vmatmul.mubr.bf16.gmra.mrb[0].mxu0 %v3375
      %v3561 = vpop.f32.mrb[0].mxu0
      %v3562 = vadd.f32 0.0, %v3561
      %v3563 = vpop.f32.mrb[0].mxu0
      %v3564 = vpop.f32.mrb[0].mxu0
      %v3565 = vadd.f32 0.0, %v3564
      %v3566 = vpop.f32.mrb[0].mxu0
      %3567 = vmatprep.mubr.bf16.mxu0 0
      %3568 = vmatmul.mubr.bf16.gmra.mrb[0].mxu0 %v3378
      %v3569 = vpop.f32.mrb[0].mxu0
      %v3570 = vadd.f32 0.0, %v3569
      %v3571 = vpop.f32.mrb[0].mxu0
      %v3572 = vpop.f32.mrb[0].mxu0
      %v3573 = vadd.f32 0.0, %v3572
      %v3574 = vpop.f32.mrb[0].mxu0
      %3575 = vmatprep.mubr.bf16.mxu0 0
      %3576 = vmatmul.mubr.bf16.gmra.mrb[0].mxu0 %v3381
      %v3577 = vpop.f32.mrb[0].mxu0
      %v3578 = vadd.f32 0.0, %v3577
      %v3579 = vpop.f32.mrb[0].mxu0
      %v3580 = vpop.f32.mrb[0].mxu0
      %v3581 = vadd.f32 0.0, %v3580
      %v3582 = vpop.f32.mrb[0].mxu0
      %3583 = vmatprep.mubr.bf16.mxu0 0
      %3584 = vmatmul.mubr.bf16.gmra.mrb[0].mxu0 %v3384
      %v3585 = vpop.f32.mrb[0].mxu0
      %v3586 = vadd.f32 0.0, %v3585
      %v3587 = vpop.f32.mrb[0].mxu0
      %v3588 = vpop.f32.mrb[0].mxu0
      %v3589 = vadd.f32 0.0, %v3588
      %v3590 = vpop.f32.mrb[0].mxu0
      %3591 = vmatprep.mubr.bf16.mxu0 0
      %3592 = vmatmul.mubr.bf16.gmra.mrb[0].mxu0 %v3387
      %v3593 = vpop.f32.mrb[0].mxu0
      %v3594 = vadd.f32 0.0, %v3593
      %v3595 = vpop.f32.mrb[0].mxu0
      %v3596 = vpop.f32.mrb[0].mxu0
      %v3597 = vadd.f32 0.0, %v3596
      %v3598 = vpop.f32.mrb[0].mxu0
      %3599 = vmatprep.mubr.bf16.mxu0 0
      %3600 = vmatmul.mubr.bf16.gmra.mrb[0].mxu0 %v3390
      %v3601 = vpop.f32.mrb[0].mxu0
      %v3602 = vadd.f32 0.0, %v3601
      %v3603 = vpop.f32.mrb[0].mxu0
      %v3604 = vpop.f32.mrb[0].mxu0
      %v3605 = vadd.f32 0.0, %v3604
      %v3606 = vpop.f32.mrb[0].mxu0
      %3607 = vmatprep.mubr.bf16.mxu0 0
      %3608 = vmatmul.mubr.bf16.gmra.mrb[0].mxu0 %v3393
      %v3609 = vpop.f32.mrb[0].mxu0
      %v3610 = vadd.f32 0.0, %v3609
      %v3611 = vpop.f32.mrb[0].mxu0
      %v3612 = vpop.f32.mrb[0].mxu0
      %v3613 = vadd.f32 0.0, %v3612
      %v3614 = vpop.f32.mrb[0].mxu0
      %3615 = vmatprep.mubr.bf16.mxu0 0
      %3616 = vmatmul.mubr.bf16.gmra.mrb[0].mxu0 %v3396
      %v3617 = vpop.f32.mrb[0].mxu0
      %v3618 = vadd.f32 0.0, %v3617
      %v3619 = vpop.f32.mrb[0].mxu0
      %v3620 = vpop.f32.mrb[0].mxu0
      %v3621 = vadd.f32 0.0, %v3620
      %v3622 = vpop.f32.mrb[0].mxu0
      %3623 = vdwg.mxu0
      %v3624 = vmul.f32 %v3433, %v3562
      %v3625 = vmul.f32 %v3436, %v3565
      %v3626 = vmul.f32 %v3441, %v3570
      %v3627 = vmul.f32 %v3444, %v3573
      %v3628 = vmul.f32 %v3449, %v3578
      %v3629 = vmul.f32 %v3452, %v3581
      %v3630 = vmul.f32 %v3457, %v3586
      %v3631 = vmul.f32 %v3460, %v3589
      %v3632 = vmul.f32 %v3465, %v3594
      %v3633 = vmul.f32 %v3468, %v3597
      %v3634 = vmul.f32 %v3473, %v3602
      %v3635 = vmul.f32 %v3476, %v3605
      %v3636 = vmul.f32 %v3481, %v3610
      %v3637 = vmul.f32 %v3484, %v3613
      %v3638 = vmul.f32 %v3489, %v3618
      %v3639 = vmul.f32 %v3492, %v3621
      %v3640 = vpack.c.bf16 %v3625, %v3624
      %v3641 = vpack.c.bf16 %v3627, %v3626
      %v3642 = vpack.c.bf16 %v3629, %v3628
      %v3643 = vpack.c.bf16 %v3631, %v3630
      %v3644 = vpack.c.bf16 %v3633, %v3632
      %v3645 = vpack.c.bf16 %v3635, %v3634
      %v3646 = vpack.c.bf16 %v3637, %v3636
      %v3647 = vpack.c.bf16 %v3639, %v3638
      %v3648 = vld [vmem:[%s5] sm:$0xf]
      %v3649 = vld [vmem:[%s5 + $0x4] sm:$0xf]
      %v3650 = vld [vmem:[%s5 + $0x8] sm:$0xf]
      %v3651 = vld [vmem:[%s5 + $0xc] sm:$0xf]
      %v3652 = vld [vmem:[%s5 + $0x10] sm:$0xf]
      %v3653 = vld [vmem:[%s5 + $0x14] sm:$0xf]
      %v3654 = vld [vmem:[%s5 + $0x18] sm:$0xf]
      %v3655 = vld [vmem:[%s5 + $0x1c] sm:$0xf]
      %v3656 = vld [vmem:[%s5 + $0x20] sm:$0xf]
      %v3657 = vld [vmem:[%s5 + $0x24] sm:$0xf]
      %v3658 = vld [vmem:[%s5 + $0x28] sm:$0xf]
      %v3659 = vld [vmem:[%s5 + $0x2c] sm:$0xf]
      %v3672 = vunpack.c.l.b16 %v3648
      %v3673 = vunpack.c.l.b16 %v3649
      %v3674 = vunpack.c.l.b16 %v3650
      %v3675 = vunpack.c.l.b16 %v3651
      %v3676 = vunpack.c.l.b16 %v3652
      %v3677 = vunpack.c.l.b16 %v3653
      %v3678 = vunpack.c.l.b16 %v3654
      %v3679 = vunpack.c.l.b16 %v3655
      %v3680 = vunpack.c.l.b16 %v3656
      %v3681 = vunpack.c.l.b16 %v3657
      %v3682 = vunpack.c.l.b16 %v3658
      %v3683 = vunpack.c.l.b16 %v3659
      %v3684 = vpack.c.b16 %v3673, %v3672
      %v3685 = vpack.c.b16 %v3675, %v3674
      %v3686 = vpack.c.b16 %v3677, %v3676
      %v3687 = vpack.c.b16 %v3679, %v3678
      %v3688 = vpack.c.b16 %v3681, %v3680
      %v3689 = vpack.c.b16 %v3683, %v3682
      %vm3696 = vcmask 785408
      %v3698 = vsel %vm3696, %v3640, 0
      %v3701 = vsel %vm3696, %v3641, 0
      %v3704 = vsel %vm3696, %v3642, 0
      %v3707 = vsel %vm3696, %v3643, 0
      %v3710 = vsel %vm3696, %v3644, 0
      %v3713 = vsel %vm3696, %v3645, 0
      %v3716 = vsel %vm3696, %v3646, 0
      %v3719 = vsel %vm3696, %v3647, 0
      %3721 = vmatprep.subr.bf16.mxu0 0
      %3722 = vmatpush1.bf16.msra.mxu0 %v3684
      %3723 = vmatprep.subr.bf16.mxu0 0
      %3724 = vmatpush1.bf16.msra.mxu0 %v3685
      %3725 = vmatprep.subr.bf16.mxu0 0
      %3726 = vmatpush1.bf16.msra.mxu0 %v3686
      %3727 = vmatprep.subr.bf16.mxu0 0
      %3728 = vmatpush1.bf16.msra.mxu0 %v3687
      %3729 = vmatprep.subr.bf16.mxu0 0
      %3730 = vmatpush1.bf16.msra.mxu0 %v3688
      %3731 = vmatprep.subr.bf16.mxu0 0
      %3732 = vmatpush1.bf16.msra.mxu0 %v3689
      %3733 = vmatprep.subr.bf16.mxu0 0
      %3734 = vmatpush1.bf16.msra.mxu0 0
      %3735 = vmatprep.subr.bf16.mxu0 0
      %3736 = vmatpush1.bf16.msra.mxu0 0
      %3737 = vmatprep.subr.bf16.mxu0 0
      %3738 = vmatpush1.bf16.msra.mxu0 0
      %3739 = vmatprep.subr.bf16.mxu0 0
      %3740 = vmatpush1.bf16.msra.mxu0 0
      %3741 = vmatprep.subr.bf16.mxu0 0
      %3742 = vmatpush1.bf16.msra.mxu0 0
      %3743 = vmatprep.subr.bf16.mxu0 0
      %3744 = vmatpush1.bf16.msra.mxu0 0
      %3745 = vmatprep.subr.bf16.mxu0 0
      %3746 = vmatpush1.bf16.msra.mxu0 0
      %3747 = vmatprep.subr.bf16.mxu0 0
      %3748 = vmatpush1.bf16.msra.mxu0 0
      %3749 = vmatprep.subr.bf16.mxu0 0
      %3750 = vmatpush1.bf16.msra.mxu0 0
      %3751 = vmatprep.subr.bf16.mxu0 0
      %3752 = vmatpush1.bf16.msra.mxu0 0
      %3753 = vmatprep.mubr.bf16.mxu0 0
      %3754 = vmatmul.mubr.bf16.gmra.mrb[0].mxu0 %v3698
      %v3755 = vpop.f32.mrb[0].mxu0
      %v3756 = vadd.f32 0.0, %v3755
      %v3757 = vpop.f32.mrb[0].mxu0
      %v3758 = vpop.f32.mrb[0].mxu0
      %v3759 = vadd.f32 0.0, %v3758
      %v3760 = vpop.f32.mrb[0].mxu0
      %3761 = vmatprep.mubr.bf16.mxu0 0
      %3762 = vmatmul.mubr.bf16.gmra.mrb[0].mxu0 %v3701
      %v3763 = vpop.f32.mrb[0].mxu0
      %v3764 = vadd.f32 0.0, %v3763
      %v3765 = vpop.f32.mrb[0].mxu0
      %v3766 = vpop.f32.mrb[0].mxu0
      %v3767 = vadd.f32 0.0, %v3766
      %v3768 = vpop.f32.mrb[0].mxu0
      %3769 = vmatprep.mubr.bf16.mxu0 0
      %3770 = vmatmul.mubr.bf16.gmra.mrb[0].mxu0 %v3704
      %v3771 = vpop.f32.mrb[0].mxu0
      %v3772 = vadd.f32 0.0, %v3771
      %v3773 = vpop.f32.mrb[0].mxu0
      %v3774 = vpop.f32.mrb[0].mxu0
      %v3775 = vadd.f32 0.0, %v3774
      %v3776 = vpop.f32.mrb[0].mxu0
      %3777 = vmatprep.mubr.bf16.mxu0 0
      %3778 = vmatmul.mubr.bf16.gmra.mrb[0].mxu0 %v3707
      %v3779 = vpop.f32.mrb[0].mxu0
      %v3780 = vadd.f32 0.0, %v3779
      %v3781 = vpop.f32.mrb[0].mxu0
      %v3782 = vpop.f32.mrb[0].mxu0
      %v3783 = vadd.f32 0.0, %v3782
      %v3784 = vpop.f32.mrb[0].mxu0
      %3785 = vmatprep.mubr.bf16.mxu0 0
      %3786 = vmatmul.mubr.bf16.gmra.mrb[0].mxu0 %v3710
      %v3787 = vpop.f32.mrb[0].mxu0
      %v3788 = vadd.f32 0.0, %v3787
      %v3789 = vpop.f32.mrb[0].mxu0
      %v3790 = vpop.f32.mrb[0].mxu0
      %v3791 = vadd.f32 0.0, %v3790
      %v3792 = vpop.f32.mrb[0].mxu0
      %3793 = vmatprep.mubr.bf16.mxu0 0
      %3794 = vmatmul.mubr.bf16.gmra.mrb[0].mxu0 %v3713
      %v3795 = vpop.f32.mrb[0].mxu0
      %v3796 = vadd.f32 0.0, %v3795
      %v3797 = vpop.f32.mrb[0].mxu0
      %v3798 = vpop.f32.mrb[0].mxu0
      %v3799 = vadd.f32 0.0, %v3798
      %v3800 = vpop.f32.mrb[0].mxu0
      %3801 = vmatprep.mubr.bf16.mxu0 0
      %3802 = vmatmul.mubr.bf16.gmra.mrb[0].mxu0 %v3716
      %v3803 = vpop.f32.mrb[0].mxu0
      %v3804 = vadd.f32 0.0, %v3803
      %v3805 = vpop.f32.mrb[0].mxu0
      %v3806 = vpop.f32.mrb[0].mxu0
      %v3807 = vadd.f32 0.0, %v3806
      %v3808 = vpop.f32.mrb[0].mxu0
      %3809 = vmatprep.mubr.bf16.mxu0 0
      %3810 = vmatmul.mubr.bf16.gmra.mrb[0].mxu0 %v3719
      %v3811 = vpop.f32.mrb[0].mxu0
      %v3812 = vadd.f32 0.0, %v3811
      %v3813 = vpop.f32.mrb[0].mxu0
      %v3814 = vpop.f32.mrb[0].mxu0
      %v3815 = vadd.f32 0.0, %v3814
      %v3816 = vpop.f32.mrb[0].mxu0
      %3817 = vdwg.mxu0
      %3834 = vrot.lane.b32.xlu0 %v3756, 16
      %v3835 = vpop.permute.xlu0 %3834
      %3836 = vrot.lane.b32.xlu0 %v3759, 16
      %v3837 = vpop.permute.xlu0 %3836
      %3838 = vrot.lane.b32.xlu0 %v3764, 16
      %v3839 = vpop.permute.xlu0 %3838
      %3840 = vrot.lane.b32.xlu0 %v3767, 16
      %v3841 = vpop.permute.xlu0 %3840
      %3842 = vrot.lane.b32.xlu0 %v3772, 16
      %v3843 = vpop.permute.xlu0 %3842
      %3844 = vrot.lane.b32.xlu0 %v3775, 16
      %v3845 = vpop.permute.xlu0 %3844
      %3846 = vrot.lane.b32.xlu0 %v3780, 16
      %v3847 = vpop.permute.xlu0 %3846
      %3848 = vrot.lane.b32.xlu0 %v3783, 16
      %v3849 = vpop.permute.xlu0 %3848
      %3850 = vrot.lane.b32.xlu0 %v3788, 16
      %v3851 = vpop.permute.xlu0 %3850
      %3852 = vrot.lane.b32.xlu0 %v3791, 16
      %v3853 = vpop.permute.xlu0 %3852
      %3854 = vrot.lane.b32.xlu0 %v3796, 16
      %v3855 = vpop.permute.xlu0 %3854
      %3856 = vrot.lane.b32.xlu0 %v3799, 16
      %v3857 = vpop.permute.xlu0 %3856
      %3858 = vrot.lane.b32.xlu0 %v3804, 16
      %v3859 = vpop.permute.xlu0 %3858
      %3860 = vrot.lane.b32.xlu0 %v3807, 16
      %v3861 = vpop.permute.xlu0 %3860
      %3862 = vrot.lane.b32.xlu0 %v3812, 16
      %v3863 = vpop.permute.xlu0 %3862
      %3864 = vrot.lane.b32.xlu0 %v3815, 16
      %v3865 = vpop.permute.xlu0 %3864
      %v3882 = vsel %vm3317, %v848, %v3835
      %v3883 = vsel %vm3317, %v849, %v3837
      %v3884 = vsel %vm3317, %v850, %v3839
      %v3885 = vsel %vm3317, %v851, %v3841
      %v3886 = vsel %vm3317, %v852, %v3843
      %v3887 = vsel %vm3317, %v853, %v3845
      %v3888 = vsel %vm3317, %v854, %v3847
      %v3889 = vsel %vm3317, %v855, %v3849
      %v3890 = vsel %vm3317, %v856, %v3851
      %v3891 = vsel %vm3317, %v857, %v3853
      %v3892 = vsel %vm3317, %v858, %v3855
      %v3893 = vsel %vm3317, %v859, %v3857
      %v3894 = vsel %vm3317, %v860, %v3859
      %v3895 = vsel %vm3317, %v861, %v3861
      %v3896 = vsel %vm3317, %v862, %v3863
      %v3897 = vsel %vm3317, %v863, %v3865
      %v3898 = vld [vmem:[%s10] sm:$0xf]
      %v3899 = vld [vmem:[%s10 + $0x4] sm:$0xf]
      %v3900 = vld [vmem:[%s10 + $0x8] sm:$0x7]
      %v3901 = vld [vmem:[%s11] sm:$0x1]
      %v3902 = vpack.c.bf16 %v3883, %v3882
      %v3903 = vpack.c.bf16 %v3885, %v3884
      %v3904 = vpack.c.bf16 %v3887, %v3886
      %v3905 = vpack.c.bf16 %v3889, %v3888
      %v3906 = vpack.c.bf16 %v3891, %v3890
      %v3907 = vpack.c.bf16 %v3893, %v3892
      %v3908 = vpack.c.bf16 %v3895, %v3894
      %v3909 = vpack.c.bf16 %v3897, %v3896
      %v3911 = vlaneseq
      %v3912 = vshrl.u32 %v3911, 7
      %v3913 = vsub.s32 0, %v3912
      %v3914 = vrot.slane %v3901, %v3913
      %v3919 = vunpack.c.l.b16 %v3898
      %v3920 = vunpack.c.l.b16 %v3899
      %v3921 = vunpack.c.l.b16 %v3900
      %v3922 = vpack.c.b16 %v3920, %v3919
      %v3923 = vpack.c.b16 %v3921, %v3921
      %vm3925 = vcmask 179200
      %v3927 = vsel %vm3925, %v3902, 0
      %v3930 = vsel %vm3925, %v3903, 0
      %v3933 = vsel %vm3925, %v3904, 0
      %v3936 = vsel %vm3925, %v3905, 0
      %v3939 = vsel %vm3925, %v3906, 0
      %v3942 = vsel %vm3925, %v3907, 0
      %v3945 = vsel %vm3925, %v3908, 0
      %v3948 = vsel %vm3925, %v3909, 0
      %vm3950 = vcmask 1042432
      %v3952 = vsel %vm3950, %v3923, 0
      %3954 = vmatprep.subr.bf16.mxu0 0
      %3955 = vmatpush1.bf16.msra.mxu0 %v3922
      %3956 = vmatprep.subr.bf16.mxu0 0
      %3957 = vmatpush1.bf16.msra.mxu0 %v3952
      %3958 = vmatprep.subr.bf16.mxu0 0
      %3959 = vmatpush1.bf16.msra.mxu0 0
      %3960 = vmatprep.subr.bf16.mxu0 0
      %3961 = vmatpush1.bf16.msra.mxu0 0
      %3962 = vmatprep.subr.bf16.mxu0 0
      %3963 = vmatpush1.bf16.msra.mxu0 0
      %3964 = vmatprep.subr.bf16.mxu0 0
      %3965 = vmatpush1.bf16.msra.mxu0 0
      %3966 = vmatprep.subr.bf16.mxu0 0
      %3967 = vmatpush1.bf16.msra.mxu0 0
      %3968 = vmatprep.subr.bf16.mxu0 0
      %3969 = vmatpush1.bf16.msra.mxu0 0
      %3970 = vmatprep.subr.bf16.mxu0 0
      %3971 = vmatpush1.bf16.msra.mxu0 0
      %3972 = vmatprep.subr.bf16.mxu0 0
      %3973 = vmatpush1.bf16.msra.mxu0 0
      %3974 = vmatprep.subr.bf16.mxu0 0
      %3975 = vmatpush1.bf16.msra.mxu0 0
      %3976 = vmatprep.subr.bf16.mxu0 0
      %3977 = vmatpush1.bf16.msra.mxu0 0
      %3978 = vmatprep.subr.bf16.mxu0 0
      %3979 = vmatpush1.bf16.msra.mxu0 0
      %3980 = vmatprep.subr.bf16.mxu0 0
      %3981 = vmatpush1.bf16.msra.mxu0 0
      %3982 = vmatprep.subr.bf16.mxu0 0
      %3983 = vmatpush1.bf16.msra.mxu0 0
      %3984 = vmatprep.subr.bf16.mxu0 0
      %3985 = vmatpush1.bf16.msra.mxu0 0
      %3986 = vmatprep.mubr.bf16.mxu0 0
      %3987 = vmatmul.mubr.bf16.gmra.mrb[0].mxu0 %v3927
      %v3988 = vpop.f32.mrb[0].mxu0
      %v3989 = vadd.f32 %v3914, %v3988
      %v3990 = vpop.f32.mrb[0].mxu0
      %v3991 = vpop.f32.mrb[0].mxu0
      %v3992 = vadd.f32 %v3914, %v3991
      %v3993 = vpop.f32.mrb[0].mxu0
      %3994 = vmatprep.mubr.bf16.mxu0 0
      %3995 = vmatmul.mubr.bf16.gmra.mrb[0].mxu0 %v3930
      %v3996 = vpop.f32.mrb[0].mxu0
      %v3997 = vadd.f32 %v3914, %v3996
      %v3998 = vpop.f32.mrb[0].mxu0
      %v3999 = vpop.f32.mrb[0].mxu0
      %v4000 = vadd.f32 %v3914, %v3999
      %v4001 = vpop.f32.mrb[0].mxu0
      %4002 = vmatprep.mubr.bf16.mxu0 0
      %4003 = vmatmul.mubr.bf16.gmra.mrb[0].mxu0 %v3933
      %v4004 = vpop.f32.mrb[0].mxu0
      %v4005 = vadd.f32 %v3914, %v4004
      %v4006 = vpop.f32.mrb[0].mxu0
      %v4007 = vpop.f32.mrb[0].mxu0
      %v4008 = vadd.f32 %v3914, %v4007
      %v4009 = vpop.f32.mrb[0].mxu0
      %4010 = vmatprep.mubr.bf16.mxu0 0
      %4011 = vmatmul.mubr.bf16.gmra.mrb[0].mxu0 %v3936
      %v4012 = vpop.f32.mrb[0].mxu0
      %v4013 = vadd.f32 %v3914, %v4012
      %v4014 = vpop.f32.mrb[0].mxu0
      %v4015 = vpop.f32.mrb[0].mxu0
      %v4016 = vadd.f32 %v3914, %v4015
      %v4017 = vpop.f32.mrb[0].mxu0
      %4018 = vmatprep.mubr.bf16.mxu0 0
      %4019 = vmatmul.mubr.bf16.gmra.mrb[0].mxu0 %v3939
      %v4020 = vpop.f32.mrb[0].mxu0
      %v4021 = vadd.f32 %v3914, %v4020
      %v4022 = vpop.f32.mrb[0].mxu0
      %v4023 = vpop.f32.mrb[0].mxu0
      %v4024 = vadd.f32 %v3914, %v4023
      %v4025 = vpop.f32.mrb[0].mxu0
      %4026 = vmatprep.mubr.bf16.mxu0 0
      %4027 = vmatmul.mubr.bf16.gmra.mrb[0].mxu0 %v3942
      %v4028 = vpop.f32.mrb[0].mxu0
      %v4029 = vadd.f32 %v3914, %v4028
      %v4030 = vpop.f32.mrb[0].mxu0
      %v4031 = vpop.f32.mrb[0].mxu0
      %v4032 = vadd.f32 %v3914, %v4031
      %v4033 = vpop.f32.mrb[0].mxu0
      %4034 = vmatprep.mubr.bf16.mxu0 0
      %4035 = vmatmul.mubr.bf16.gmra.mrb[0].mxu0 %v3945
      %v4036 = vpop.f32.mrb[0].mxu0
      %v4037 = vadd.f32 %v3914, %v4036
      %v4038 = vpop.f32.mrb[0].mxu0
      %v4039 = vpop.f32.mrb[0].mxu0
      %v4040 = vadd.f32 %v3914, %v4039
      %v4041 = vpop.f32.mrb[0].mxu0
      %4042 = vmatprep.mubr.bf16.mxu0 0
      %4043 = vmatmul.mubr.bf16.gmra.mrb[0].mxu0 %v3948
      %v4044 = vpop.f32.mrb[0].mxu0
      %v4045 = vadd.f32 %v3914, %v4044
      %v4046 = vpop.f32.mrb[0].mxu0
      %v4047 = vpop.f32.mrb[0].mxu0
      %v4048 = vadd.f32 %v3914, %v4047
      %v4049 = vpop.f32.mrb[0].mxu0
      %4050 = vdwg.mxu0
      %v4051 = vmax.f32 %v3989, 0.0
      %v4052 = vmax.f32 %v3992, 0.0
      %v4053 = vmax.f32 %v3997, 0.0
      %v4054 = vmax.f32 %v4000, 0.0
      %v4055 = vmax.f32 %v4005, 0.0
      %v4056 = vmax.f32 %v4008, 0.0
      %v4057 = vmax.f32 %v4013, 0.0
      %v4058 = vmax.f32 %v4016, 0.0
      %v4059 = vmax.f32 %v4021, 0.0
      %v4060 = vmax.f32 %v4024, 0.0
      %v4061 = vmax.f32 %v4029, 0.0
      %v4062 = vmax.f32 %v4032, 0.0
      %v4063 = vmax.f32 %v4037, 0.0
      %v4064 = vmax.f32 %v4040, 0.0
      %v4065 = vmax.f32 %v4045, 0.0
      %v4066 = vmax.f32 %v4048, 0.0
      %v4067 = vld [vmem:[%s12] sm:$0xf]
      %v4068 = vld [vmem:[%s12 + $0x4] sm:$0xf]
      %v4069 = vld [vmem:[%s12 + $0x8] sm:$0xf]
      %v4070 = vld [vmem:[%s12 + $0xc] sm:$0xf]
      %v4071 = vld [vmem:[#allocation2] sm:$0x1]
      %v4072 = vpack.c.bf16 %v4052, %v4051
      %v4073 = vpack.c.bf16 %v4054, %v4053
      %v4074 = vpack.c.bf16 %v4056, %v4055
      %v4075 = vpack.c.bf16 %v4058, %v4057
      %v4076 = vpack.c.bf16 %v4060, %v4059
      %v4077 = vpack.c.bf16 %v4062, %v4061
      %v4078 = vpack.c.bf16 %v4064, %v4063
      %v4079 = vpack.c.bf16 %v4066, %v4065
      %v4081 = vlaneseq
      %v4082 = vshrl.u32 %v4081, 7
      %v4083 = vsub.s32 0, %v4082
      %v4084 = vrot.slane %v4071, %v4083
      %v4090 = vunpack.c.l.b16 %v4067
      %v4091 = vunpack.c.l.b16 %v4068
      %v4092 = vunpack.c.l.b16 %v4069
      %v4093 = vunpack.c.l.b16 %v4070
      %v4094 = vpack.c.b16 %v4091, %v4090
      %v4095 = vpack.c.b16 %v4093, %v4092
      %vm4098 = vcmask 261120
      %v4100 = vsel %vm4098, %v4072, 0
      %v4103 = vsel %vm4098, %v4073, 0
      %v4106 = vsel %vm4098, %v4074, 0
      %v4109 = vsel %vm4098, %v4075, 0
      %v4112 = vsel %vm4098, %v4076, 0
      %v4115 = vsel %vm4098, %v4077, 0
      %v4118 = vsel %vm4098, %v4078, 0
      %v4121 = vsel %vm4098, %v4079, 0
      %4123 = vmatprep.subr.bf16.mxu0 0
      %4124 = vmatpush1.bf16.msra.mxu0 %v4094
      %4125 = vmatprep.subr.bf16.mxu0 0
      %4126 = vmatpush1.bf16.msra.mxu0 %v4095
      %4127 = vmatprep.subr.bf16.mxu0 0
      %4128 = vmatpush1.bf16.msra.mxu0 0
      %4129 = vmatprep.subr.bf16.mxu0 0
      %4130 = vmatpush1.bf16.msra.mxu0 0
      %4131 = vmatprep.subr.bf16.mxu0 0
      %4132 = vmatpush1.bf16.msra.mxu0 0
      %4133 = vmatprep.subr.bf16.mxu0 0
      %4134 = vmatpush1.bf16.msra.mxu0 0
      %4135 = vmatprep.subr.bf16.mxu0 0
      %4136 = vmatpush1.bf16.msra.mxu0 0
      %4137 = vmatprep.subr.bf16.mxu0 0
      %4138 = vmatpush1.bf16.msra.mxu0 0
      %4139 = vmatprep.subr.bf16.mxu0 0
      %4140 = vmatpush1.bf16.msra.mxu0 0
      %4141 = vmatprep.subr.bf16.mxu0 0
      %4142 = vmatpush1.bf16.msra.mxu0 0
      %4143 = vmatprep.subr.bf16.mxu0 0
      %4144 = vmatpush1.bf16.msra.mxu0 0
      %4145 = vmatprep.subr.bf16.mxu0 0
      %4146 = vmatpush1.bf16.msra.mxu0 0
      %4147 = vmatprep.subr.bf16.mxu0 0
      %4148 = vmatpush1.bf16.msra.mxu0 0
      %4149 = vmatprep.subr.bf16.mxu0 0
      %4150 = vmatpush1.bf16.msra.mxu0 0
      %4151 = vmatprep.subr.bf16.mxu0 0
      %4152 = vmatpush1.bf16.msra.mxu0 0
      %4153 = vmatprep.subr.bf16.mxu0 0
      %4154 = vmatpush1.bf16.msra.mxu0 0
      %4155 = vmatprep.mubr.bf16.mxu0 0
      %4156 = vmatmul.mubr.bf16.gmra.mrb[0].mxu0 %v4100
      %v4157 = vpop.f32.mrb[0].mxu0
      %v4158 = vadd.f32 %v4084, %v4157
      %v4159 = vpop.f32.mrb[0].mxu0
      %v4160 = vpop.f32.mrb[0].mxu0
      %v4161 = vadd.f32 %v4084, %v4160
      %v4162 = vpop.f32.mrb[0].mxu0
      %4163 = vmatprep.mubr.bf16.mxu0 0
      %4164 = vmatmul.mubr.bf16.gmra.mrb[0].mxu0 %v4103
      %v4165 = vpop.f32.mrb[0].mxu0
      %v4166 = vadd.f32 %v4084, %v4165
      %v4167 = vpop.f32.mrb[0].mxu0
      %v4168 = vpop.f32.mrb[0].mxu0
      %v4169 = vadd.f32 %v4084, %v4168
      %v4170 = vpop.f32.mrb[0].mxu0
      %4171 = vmatprep.mubr.bf16.mxu0 0
      %4172 = vmatmul.mubr.bf16.gmra.mrb[0].mxu0 %v4106
      %v4173 = vpop.f32.mrb[0].mxu0
      %v4174 = vadd.f32 %v4084, %v4173
      %v4175 = vpop.f32.mrb[0].mxu0
      %v4176 = vpop.f32.mrb[0].mxu0
      %v4177 = vadd.f32 %v4084, %v4176
      %v4178 = vpop.f32.mrb[0].mxu0
      %4179 = vmatprep.mubr.bf16.mxu0 0
      %4180 = vmatmul.mubr.bf16.gmra.mrb[0].mxu0 %v4109
      %v4181 = vpop.f32.mrb[0].mxu0
      %v4182 = vadd.f32 %v4084, %v4181
      %v4183 = vpop.f32.mrb[0].mxu0
      %v4184 = vpop.f32.mrb[0].mxu0
      %v4185 = vadd.f32 %v4084, %v4184
      %v4186 = vpop.f32.mrb[0].mxu0
      %4187 = vmatprep.mubr.bf16.mxu0 0
      %4188 = vmatmul.mubr.bf16.gmra.mrb[0].mxu0 %v4112
      %v4189 = vpop.f32.mrb[0].mxu0
      %v4190 = vadd.f32 %v4084, %v4189
      %v4191 = vpop.f32.mrb[0].mxu0
      %v4192 = vpop.f32.mrb[0].mxu0
      %v4193 = vadd.f32 %v4084, %v4192
      %v4194 = vpop.f32.mrb[0].mxu0
      %4195 = vmatprep.mubr.bf16.mxu0 0
      %4196 = vmatmul.mubr.bf16.gmra.mrb[0].mxu0 %v4115
      %v4197 = vpop.f32.mrb[0].mxu0
      %v4198 = vadd.f32 %v4084, %v4197
      %v4199 = vpop.f32.mrb[0].mxu0
      %v4200 = vpop.f32.mrb[0].mxu0
      %v4201 = vadd.f32 %v4084, %v4200
      %v4202 = vpop.f32.mrb[0].mxu0
      %4203 = vmatprep.mubr.bf16.mxu0 0
      %4204 = vmatmul.mubr.bf16.gmra.mrb[0].mxu0 %v4118
      %v4205 = vpop.f32.mrb[0].mxu0
      %v4206 = vadd.f32 %v4084, %v4205
      %v4207 = vpop.f32.mrb[0].mxu0
      %v4208 = vpop.f32.mrb[0].mxu0
      %v4209 = vadd.f32 %v4084, %v4208
      %v4210 = vpop.f32.mrb[0].mxu0
      %4211 = vmatprep.mubr.bf16.mxu0 0
      %4212 = vmatmul.mubr.bf16.gmra.mrb[0].mxu0 %v4121
      %v4213 = vpop.f32.mrb[0].mxu0
      %v4214 = vadd.f32 %v4084, %v4213
      %v4215 = vpop.f32.mrb[0].mxu0
      %v4216 = vpop.f32.mrb[0].mxu0
      %v4217 = vadd.f32 %v4084, %v4216
      %v4218 = vpop.f32.mrb[0].mxu0
      %4219 = vdwg.mxu0
      %v4220 = vxor.u32 %v4158, 2147483648
      %v4221 = vxor.u32 %v4161, 2147483648
      %v4222 = vxor.u32 %v4166, 2147483648
      %v4223 = vxor.u32 %v4169, 2147483648
      %v4224 = vxor.u32 %v4174, 2147483648
      %v4225 = vxor.u32 %v4177, 2147483648
      %v4226 = vxor.u32 %v4182, 2147483648
      %v4227 = vxor.u32 %v4185, 2147483648
      %v4228 = vxor.u32 %v4190, 2147483648
      %v4229 = vxor.u32 %v4193, 2147483648
      %v4230 = vxor.u32 %v4198, 2147483648
      %v4231 = vxor.u32 %v4201, 2147483648
      %v4232 = vxor.u32 %v4206, 2147483648
      %v4233 = vxor.u32 %v4209, 2147483648
      %v4234 = vxor.u32 %v4214, 2147483648
      %v4235 = vxor.u32 %v4217, 2147483648
      %v4236 = vmul.f32 %v4220, 1.442695
      %v4237 = vpow.pop %v4236
      %v4238 = vmul.f32 %v4221, 1.442695
      %v4239 = vpow.pop %v4238
      %v4240 = vmul.f32 %v4222, 1.442695
      %v4241 = vpow.pop %v4240
      %v4242 = vmul.f32 %v4223, 1.442695
      %v4243 = vpow.pop %v4242
      %v4244 = vmul.f32 %v4224, 1.442695
      %v4245 = vpow.pop %v4244
      %v4246 = vmul.f32 %v4225, 1.442695
      %v4247 = vpow.pop %v4246
      %v4248 = vmul.f32 %v4226, 1.442695
      %v4249 = vpow.pop %v4248
      %v4250 = vmul.f32 %v4227, 1.442695
      %v4251 = vpow.pop %v4250
      %v4252 = vmul.f32 %v4228, 1.442695
      %v4253 = vpow.pop %v4252
      %v4254 = vmul.f32 %v4229, 1.442695
      %v4255 = vpow.pop %v4254
      %v4256 = vmul.f32 %v4230, 1.442695
      %v4257 = vpow.pop %v4256
      %v4258 = vmul.f32 %v4231, 1.442695
      %v4259 = vpow.pop %v4258
      %v4260 = vmul.f32 %v4232, 1.442695
      %v4261 = vpow.pop %v4260
      %v4262 = vmul.f32 %v4233, 1.442695
      %v4263 = vpow.pop %v4262
      %v4264 = vmul.f32 %v4234, 1.442695
      %v4265 = vpow.pop %v4264
      %v4266 = vmul.f32 %v4235, 1.442695
      %v4267 = vpow.pop %v4266
      %v4268 = vadd.f32 %v4237, 1.0
      %v4269 = vadd.f32 %v4239, 1.0
      %v4270 = vadd.f32 %v4241, 1.0
      %v4271 = vadd.f32 %v4243, 1.0
      %v4272 = vadd.f32 %v4245, 1.0
      %v4273 = vadd.f32 %v4247, 1.0
      %v4274 = vadd.f32 %v4249, 1.0
      %v4275 = vadd.f32 %v4251, 1.0
      %v4276 = vadd.f32 %v4253, 1.0
      %v4277 = vadd.f32 %v4255, 1.0
      %v4278 = vadd.f32 %v4257, 1.0
      %v4279 = vadd.f32 %v4259, 1.0
      %v4280 = vadd.f32 %v4261, 1.0
      %v4281 = vadd.f32 %v4263, 1.0
      %v4282 = vadd.f32 %v4265, 1.0
      %v4283 = vadd.f32 %v4267, 1.0
      %v4284 = vrcp.pop %v4268
      %v4285 = vmul.f32 1.0, %v4284
      %v4286 = vrcp.pop %v4269
      %v4287 = vmul.f32 1.0, %v4286
      %v4288 = vrcp.pop %v4270
      %v4289 = vmul.f32 1.0, %v4288
      %v4290 = vrcp.pop %v4271
      %v4291 = vmul.f32 1.0, %v4290
      %v4292 = vrcp.pop %v4272
      %v4293 = vmul.f32 1.0, %v4292
      %v4294 = vrcp.pop %v4273
      %v4295 = vmul.f32 1.0, %v4294
      %v4296 = vrcp.pop %v4274
      %v4297 = vmul.f32 1.0, %v4296
      %v4298 = vrcp.pop %v4275
      %v4299 = vmul.f32 1.0, %v4298
      %v4300 = vrcp.pop %v4276
      %v4301 = vmul.f32 1.0, %v4300
      %v4302 = vrcp.pop %v4277
      %v4303 = vmul.f32 1.0, %v4302
      %v4304 = vrcp.pop %v4278
      %v4305 = vmul.f32 1.0, %v4304
      %v4306 = vrcp.pop %v4279
      %v4307 = vmul.f32 1.0, %v4306
      %v4308 = vrcp.pop %v4280
      %v4309 = vmul.f32 1.0, %v4308
      %v4310 = vrcp.pop %v4281
      %v4311 = vmul.f32 1.0, %v4310
      %v4312 = vrcp.pop %v4282
      %v4313 = vmul.f32 1.0, %v4312
      %v4314 = vrcp.pop %v4283
      %v4315 = vmul.f32 1.0, %v4314
      %vm4316 = vcmask 7168
      %4317 = vst.msk [vmem:[%s493] sm:$0xff] %vm4316, %v4285
      %4318 = vst.msk [vmem:[%s493 + $0x8] sm:$0xff] %vm4316, %v4287
      %4319 = vst.msk [vmem:[%s493 + $0x10] sm:$0xff] %vm4316, %v4289
      %4320 = vst.msk [vmem:[%s493 + $0x18] sm:$0xff] %vm4316, %v4291
      %4321 = vst.msk [vmem:[%s493 + $0x20] sm:$0xff] %vm4316, %v4293
      %4322 = vst.msk [vmem:[%s493 + $0x28] sm:$0xff] %vm4316, %v4295
      %4323 = vst.msk [vmem:[%s493 + $0x30] sm:$0xff] %vm4316, %v4297
      %4324 = vst.msk [vmem:[%s493 + $0x38] sm:$0xff] %vm4316, %v4299
      %4325 = vst.msk [vmem:[%s493 + $0x40] sm:$0xff] %vm4316, %v4301
      %4326 = vst.msk [vmem:[%s493 + $0x48] sm:$0xff] %vm4316, %v4303
      %4327 = vst.msk [vmem:[%s493 + $0x50] sm:$0xff] %vm4316, %v4305
      %4328 = vst.msk [vmem:[%s493 + $0x58] sm:$0xff] %vm4316, %v4307
      %4329 = vst.msk [vmem:[%s493 + $0x60] sm:$0xff] %vm4316, %v4309
      %4330 = vst.msk [vmem:[%s493 + $0x68] sm:$0xff] %vm4316, %v4311
      %4331 = vst.msk [vmem:[%s493 + $0x70] sm:$0xff] %vm4316, %v4313
      %4332 = vst.msk [vmem:[%s493 + $0x78] sm:$0xff] %vm4316, %v4315
      %s4333 = smul.u32 16, %s27
      %p4334 = scmp.lt.s32.totalorder %s4333, 31
      %s4335 = scalar_select %p4334, %s4333, 31
      %s4336 = smul.addr %s4335, 8
      %s4337 = scalar_lea.vmem %s14, %s4336
      // Predicated region
      $region77: #{tpu_custom_call.1} parent=75 // pred_check
        %p4338 = pneg %p349
      $region78: #{tpu_custom_call.1} parent=75 // pred_check_branch
        %4340 = sbr.rel (%p4338) target = $region80
      $region79: #{tpu_custom_call.1} parent=75 // pred_region
        %s4341 = smul.u32 16, %s27
      $region80: #{tpu_custom_call.1} parent=75 // pred_fallthru
        _
    $region76: #{tpu_custom_call.1} parent=5 // pred_fallthru
      _
    %p4342 = scmp.le.s32.totalorder 2, %s22
    // Predicated region
    $region81: #{tpu_custom_call.1} parent=5 // pred_check
      %p4343 = pneg %p4342
    $region82: #{tpu_custom_call.1} parent=5 // pred_check_branch
      %4345 = sbr.rel (%p4343) target = $region84
    $region83: #{tpu_custom_call.1} parent=5 // pred_region
      %s4346 = ssub.s32 %s22, 2
      // Predicated region
      $region85: #{tpu_custom_call.1} parent=83 // pred_check
        %p4347 = pneg %p355
      $region86: #{tpu_custom_call.1} parent=83 // pred_check_branch
        %4349 = sbr.rel (%p4347) target = $region88
      $region87: #{tpu_custom_call.1} parent=83 // pred_region
        %s4350 = smul.u32 16, %s28
        %p4351 = scmp.lt.s32.totalorder %s4350, 31
        %s4352 = scalar_select %p4351, %s4350, 31
        %s4353 = smul.addr %s4352, 8
        %s4354 = scalar_lea.vmem %s14, %s4353
      $region88: #{tpu_custom_call.1} parent=83 // pred_fallthru
        _
    $region84: #{tpu_custom_call.1} parent=5 // pred_fallthru
      _
  $region6: #{tpu_custom_call.1} parent=0 // loop_footer
    %s26 = sadd.s32 1, %s22
  $region7: #{tpu_custom_call.1} parent=0 // loop_footer_branch
    %21 = sbr.rel target = $region3
  $region8: #{tpu_custom_call.1} parent=0 // loop_exit
    _

// kernel: tpu_custom_call.1
$region0: #{tpu_custom_call.1}
  #allocation0 [shape = 'u32[]', space=smem, size = 0x4, offset = 0x4, fixed_abs, tag = 'smem constant byte address 0x4 - core index']
  #allocation1 [shape = 'u32[144,128]{1,0:T(1,128)}', space=vmem, size = 0x12000, scoped, tag = 'internal scratch']
  #allocation2 [shape = 'f32[1,1]{1,0:T(1,128)S(1)}', space=vmem, size = 0x200, scoped, tag = 'scoped memory for tpu_custom_call.1']
  %s0 = inlined_call_operand.vmem [shape: s32[256,12], index: 0, kind: input, shape index: {}]
  %s1 = inlined_call_operand.vmem [shape: f32[256,13], index: 1, kind: input, shape index: {}]
  %s2 = inlined_call_operand.vmem [shape: bf16[240,48], index: 2, kind: input, shape index: {}]
  %s3 = inlined_call_operand.vmem [shape: bf16[64,96], index: 3, kind: input, shape index: {}]
  %s4 = inlined_call_operand.vmem [shape: bf16[64,96], index: 4, kind: input, shape index: {}]
  %s5 = inlined_call_operand.vmem [shape: bf16[96,6], index: 5, kind: input, shape index: {}]
  %s6 = inlined_call_operand.vmem [shape: bf16[13,64], index: 6, kind: input, shape index: {}]
  %s7 = inlined_call_operand.vmem [shape: f32[1,64], index: 7, kind: input, shape index: {}]
  %s8 = inlined_call_operand.vmem [shape: bf16[64,16], index: 8, kind: input, shape index: {}]
  %s9 = inlined_call_operand.vmem [shape: f32[1,16], index: 9, kind: input, shape index: {}]
  %s10 = inlined_call_operand.vmem [shape: bf16[22,32], index: 10, kind: input, shape index: {}]
  %s11 = inlined_call_operand.vmem [shape: f32[1,32], index: 11, kind: input, shape index: {}]
  %s12 = inlined_call_operand.vmem [shape: bf16[32,1], index: 12, kind: input, shape index: {}]
  %s13 = inlined_call_operand.<no memory space> [shape: f32[1,1], index: 13, kind: input, shape index: {}]
  %s14 = inlined_call_operand.vmem [shape: f32[256,1], index: 14, kind: output, shape index: {}]
  %s15 = sld [smem:[#allocation0]]
  $region89: #{tpu_custom_call.1} parent=0
    _
  %s17 = ssub.s32 1, %s15
  %s18 = scalar_select 0, %s17, %s15
  %v19 = vstv %s13
  %20 = vst [vmem:[#allocation2] sm:$0x1] %v19
  loop: start=0, step=1, limit=4
  $region2: #{tpu_custom_call.1} parent=0 // loop_pre_header
    _
  $region3: #{tpu_custom_call.1} parent=0 // loop_header
    %s22 = sphi 0, %s26
    %p23 = scmp.ge.s32.totalorder %s22, 4
    %s32 = sphi 0, %s34
    %s35 = sphi 0, %s32
    %s36 = sphi 0, %s35
    %s52 = sphi 0, %s36
    %s58 = sphi 0, %s60
    %s61 = sphi 0, %s58
    %s62 = sphi 0, %s61
    %s78 = sphi 0, %s62
    %s82 = sphi 0, %s82
    %s84 = sphi 0, %s82
    %s85 = sphi 0, %s84
    %s99 = sphi 0, %s85
    %s103 = sphi 0, %s103
    %s105 = sphi 0, %s103
    %s106 = sphi 0, %s105
    %s120 = sphi 0, %s106
    %s124 = sphi 0, %s124
    %s126 = sphi 0, %s124
    %s127 = sphi 0, %s126
    %s141 = sphi 0, %s127
    %s145 = sphi 0, %s145
    %s147 = sphi 0, %s145
    %s148 = sphi 0, %s147
    %s162 = sphi 0, %s148
    %s166 = sphi 0, %s166
    %s168 = sphi 0, %s166
    %s169 = sphi 0, %s168
    %s183 = sphi 0, %s169
    %s187 = sphi 0, %s187
    %s189 = sphi 0, %s187
    %s190 = sphi 0, %s189
    %s204 = sphi 0, %s190
    %s208 = sphi 0, %s208
    %s210 = sphi 0, %s208
    %s211 = sphi 0, %s210
    %s225 = sphi 0, %s211
    %s229 = sphi 0, %s229
    %s231 = sphi 0, %s229
    %s232 = sphi 0, %s231
    %s246 = sphi 0, %s232
    %s250 = sphi 0, %s250
    %s252 = sphi 0, %s250
    %s253 = sphi 0, %s252
    %s267 = sphi 0, %s253
    %s271 = sphi 0, %s271
    %s273 = sphi 0, %s271
    %s274 = sphi 0, %s273
    %s288 = sphi 0, %s274
    %s292 = sphi 0, %s292
    %s294 = sphi 0, %s292
    %s295 = sphi 0, %s294
    %s309 = sphi 0, %s295
    %s313 = sphi 0, %s313
    %s315 = sphi 0, %s313
    %s316 = sphi 0, %s315
    %s330 = sphi 0, %s316
    %s336 = sphi 0, %s338
    %s339 = sphi 0, %s336
    %s340 = sphi 0, %s339
    %s356 = sphi 0, %s340
  $region4: #{tpu_custom_call.1} parent=0 // loop_header_branch
    %25 = sbr.rel (%p23) target = $region8
  $region5: #{tpu_custom_call.1} parent=0 // loop_body
    %s27 = ssub.s32 %s22, 1
    %s28 = ssub.s32 %s22, 2
    %s29 = sadd.s32 %s22, 1
    %s30 = ssub.s32 %s22, %s29
    %p31 = scmp.eq.s32.totalorder %s30, 0
    %s33 = sadd.s32 %s32, 1
    %s34 = scalar_select %p31, %s32, %s33
    %p37 = pneg %p31
    %p38 = scmp.eq.s32.totalorder %s22, 1
    %p39 = por %p37, %p38
    %p40 = scmp.ne.s32.totalorder %s32, %s35
    %p41 = scmp.eq.s32.totalorder %s22, 0
    %p42 = por %p40, %p41
    %p43 = scmp.ne.s32.totalorder %s32, %s35
    %p44 = scmp.eq.s32.totalorder %s27, 1
    %p45 = por %p43, %p44
    %p46 = scmp.ne.s32.totalorder %s35, %s36
    %p47 = scmp.eq.s32.totalorder %s27, 0
    %p48 = por %p46, %p47
    %p49 = scmp.ne.s32.totalorder %s35, %s36
    %p50 = scmp.eq.s32.totalorder %s28, 1
    %p51 = por %p49, %p50
    %p53 = scmp.ne.s32.totalorder %s36, %s52
    %p54 = scmp.eq.s32.totalorder %s28, 0
    %p55 = por %p53, %p54
    %s56 = ssub.s32 %s22, %s29
    %p57 = scmp.eq.s32.totalorder %s56, 0
    %s59 = sadd.s32 %s58, 1
    %s60 = scalar_select %p57, %s58, %s59
    %p63 = pneg %p57
    %p64 = scmp.eq.s32.totalorder %s22, 1
    %p65 = por %p63, %p64
    %p66 = scmp.ne.s32.totalorder %s58, %s61
    %p67 = scmp.eq.s32.totalorder %s22, 0
    %p68 = por %p66, %p67
    %p69 = scmp.ne.s32.totalorder %s58, %s61
    %p70 = scmp.eq.s32.totalorder %s27, 1
    %p71 = por %p69, %p70
    %p72 = scmp.ne.s32.totalorder %s61, %s62
    %p73 = scmp.eq.s32.totalorder %s27, 0
    %p74 = por %p72, %p73
    %p75 = scmp.ne.s32.totalorder %s61, %s62
    %p76 = scmp.eq.s32.totalorder %s28, 1
    %p77 = por %p75, %p76
    %p79 = scmp.ne.s32.totalorder %s62, %s78
    %p80 = scmp.eq.s32.totalorder %s28, 0
    %p81 = por %p79, %p80
    %s83 = sadd.s32 %s82, 1
    %p86 = scmp.eq.s32.totalorder %s22, 1
    %p87 = scmp.ne.s32.totalorder %s82, %s84
    %p88 = scmp.eq.s32.totalorder %s22, 0
    %p89 = por %p87, %p88
    %p90 = scmp.ne.s32.totalorder %s82, %s84
    %p91 = scmp.eq.s32.totalorder %s27, 1
    %p92 = por %p90, %p91
    %p93 = scmp.ne.s32.totalorder %s84, %s85
    %p94 = scmp.eq.s32.totalorder %s27, 0
    %p95 = por %p93, %p94
    %p96 = scmp.ne.s32.totalorder %s84, %s85
    %p97 = scmp.eq.s32.totalorder %s28, 1
    %p98 = por %p96, %p97
    %p100 = scmp.ne.s32.totalorder %s85, %s99
    %p101 = scmp.eq.s32.totalorder %s28, 0
    %p102 = por %p100, %p101
    %s104 = sadd.s32 %s103, 1
    %p107 = scmp.eq.s32.totalorder %s22, 1
    %p108 = scmp.ne.s32.totalorder %s103, %s105
    %p109 = scmp.eq.s32.totalorder %s22, 0
    %p110 = por %p108, %p109
    %p111 = scmp.ne.s32.totalorder %s103, %s105
    %p112 = scmp.eq.s32.totalorder %s27, 1
    %p113 = por %p111, %p112
    %p114 = scmp.ne.s32.totalorder %s105, %s106
    %p115 = scmp.eq.s32.totalorder %s27, 0
    %p116 = por %p114, %p115
    %p117 = scmp.ne.s32.totalorder %s105, %s106
    %p118 = scmp.eq.s32.totalorder %s28, 1
    %p119 = por %p117, %p118
    %p121 = scmp.ne.s32.totalorder %s106, %s120
    %p122 = scmp.eq.s32.totalorder %s28, 0
    %p123 = por %p121, %p122
    %s125 = sadd.s32 %s124, 1
    %p128 = scmp.eq.s32.totalorder %s22, 1
    %p129 = scmp.ne.s32.totalorder %s124, %s126
    %p130 = scmp.eq.s32.totalorder %s22, 0
    %p131 = por %p129, %p130
    %p132 = scmp.ne.s32.totalorder %s124, %s126
    %p133 = scmp.eq.s32.totalorder %s27, 1
    %p134 = por %p132, %p133
    %p135 = scmp.ne.s32.totalorder %s126, %s127
    %p136 = scmp.eq.s32.totalorder %s27, 0
    %p137 = por %p135, %p136
    %p138 = scmp.ne.s32.totalorder %s126, %s127
    %p139 = scmp.eq.s32.totalorder %s28, 1
    %p140 = por %p138, %p139
    %p142 = scmp.ne.s32.totalorder %s127, %s141
    %p143 = scmp.eq.s32.totalorder %s28, 0
    %p144 = por %p142, %p143
    %s146 = sadd.s32 %s145, 1
    %p149 = scmp.eq.s32.totalorder %s22, 1
    %p150 = scmp.ne.s32.totalorder %s145, %s147
    %p151 = scmp.eq.s32.totalorder %s22, 0
    %p152 = por %p150, %p151
    %p153 = scmp.ne.s32.totalorder %s145, %s147
    %p154 = scmp.eq.s32.totalorder %s27, 1
    %p155 = por %p153, %p154
    %p156 = scmp.ne.s32.totalorder %s147, %s148
    %p157 = scmp.eq.s32.totalorder %s27, 0
    %p158 = por %p156, %p157
    %p159 = scmp.ne.s32.totalorder %s147, %s148
    %p160 = scmp.eq.s32.totalorder %s28, 1
    %p161 = por %p159, %p160
    %p163 = scmp.ne.s32.totalorder %s148, %s162
    %p164 = scmp.eq.s32.totalorder %s28, 0
    %p165 = por %p163, %p164
    %s167 = sadd.s32 %s166, 1
    %p170 = scmp.eq.s32.totalorder %s22, 1
    %p171 = scmp.ne.s32.totalorder %s166, %s168
    %p172 = scmp.eq.s32.totalorder %s22, 0
    %p173 = por %p171, %p172
    %p174 = scmp.ne.s32.totalorder %s166, %s168
    %p175 = scmp.eq.s32.totalorder %s27, 1
    %p176 = por %p174, %p175
    %p177 = scmp.ne.s32.totalorder %s168, %s169
    %p178 = scmp.eq.s32.totalorder %s27, 0
    %p179 = por %p177, %p178
    %p180 = scmp.ne.s32.totalorder %s168, %s169
    %p181 = scmp.eq.s32.totalorder %s28, 1
    %p182 = por %p180, %p181
    %p184 = scmp.ne.s32.totalorder %s169, %s183
    %p185 = scmp.eq.s32.totalorder %s28, 0
    %p186 = por %p184, %p185
    %s188 = sadd.s32 %s187, 1
    %p191 = scmp.eq.s32.totalorder %s22, 1
    %p192 = scmp.ne.s32.totalorder %s187, %s189
    %p193 = scmp.eq.s32.totalorder %s22, 0
    %p194 = por %p192, %p193
    %p195 = scmp.ne.s32.totalorder %s187, %s189
    %p196 = scmp.eq.s32.totalorder %s27, 1
    %p197 = por %p195, %p196
    %p198 = scmp.ne.s32.totalorder %s189, %s190
    %p199 = scmp.eq.s32.totalorder %s27, 0
    %p200 = por %p198, %p199
    %p201 = scmp.ne.s32.totalorder %s189, %s190
    %p202 = scmp.eq.s32.totalorder %s28, 1
    %p203 = por %p201, %p202
    %p205 = scmp.ne.s32.totalorder %s190, %s204
    %p206 = scmp.eq.s32.totalorder %s28, 0
    %p207 = por %p205, %p206
    %s209 = sadd.s32 %s208, 1
    %p212 = scmp.eq.s32.totalorder %s22, 1
    %p213 = scmp.ne.s32.totalorder %s208, %s210
    %p214 = scmp.eq.s32.totalorder %s22, 0
    %p215 = por %p213, %p214
    %p216 = scmp.ne.s32.totalorder %s208, %s210
    %p217 = scmp.eq.s32.totalorder %s27, 1
    %p218 = por %p216, %p217
    %p219 = scmp.ne.s32.totalorder %s210, %s211
    %p220 = scmp.eq.s32.totalorder %s27, 0
    %p221 = por %p219, %p220
    %p222 = scmp.ne.s32.totalorder %s210, %s211
    %p223 = scmp.eq.s32.totalorder %s28, 1
    %p224 = por %p222, %p223
    %p226 = scmp.ne.s32.totalorder %s211, %s225
    %p227 = scmp.eq.s32.totalorder %s28, 0
    %p228 = por %p226, %p227
    %s230 = sadd.s32 %s229, 1
    %p233 = scmp.eq.s32.totalorder %s22, 1
    %p234 = scmp.ne.s32.totalorder %s229, %s231
    %p235 = scmp.eq.s32.totalorder %s22, 0
    %p236 = por %p234, %p235
    %p237 = scmp.ne.s32.totalorder %s229, %s231
    %p238 = scmp.eq.s32.totalorder %s27, 1
    %p239 = por %p237, %p238
    %p240 = scmp.ne.s32.totalorder %s231, %s232
    %p241 = scmp.eq.s32.totalorder %s27, 0
    %p242 = por %p240, %p241
    %p243 = scmp.ne.s32.totalorder %s231, %s232
    %p244 = scmp.eq.s32.totalorder %s28, 1
    %p245 = por %p243, %p244
    %p247 = scmp.ne.s32.totalorder %s232, %s246
    %p248 = scmp.eq.s32.totalorder %s28, 0
    %p249 = por %p247, %p248
    %s251 = sadd.s32 %s250, 1
    %p254 = scmp.eq.s32.totalorder %s22, 1
    %p255 = scmp.ne.s32.totalorder %s250, %s252
    %p256 = scmp.eq.s32.totalorder %s22, 0
    %p257 = por %p255, %p256
    %p258 = scmp.ne.s32.totalorder %s250, %s252
    %p259 = scmp.eq.s32.totalorder %s27, 1
    %p260 = por %p258, %p259
    %p261 = scmp.ne.s32.totalorder %s252, %s253
    %p262 = scmp.eq.s32.totalorder %s27, 0
    %p263 = por %p261, %p262
    %p264 = scmp.ne.s32.totalorder %s252, %s253
    %p265 = scmp.eq.s32.totalorder %s28, 1
    %p266 = por %p264, %p265
    %p268 = scmp.ne.s32.totalorder %s253, %s267
    %p269 = scmp.eq.s32.totalorder %s28, 0
    %p270 = por %p268, %p269
    %s272 = sadd.s32 %s271, 1
    %p275 = scmp.eq.s32.totalorder %s22, 1
    %p276 = scmp.ne.s32.totalorder %s271, %s273
    %p277 = scmp.eq.s32.totalorder %s22, 0
    %p278 = por %p276, %p277
    %p279 = scmp.ne.s32.totalorder %s271, %s273
    %p280 = scmp.eq.s32.totalorder %s27, 1
    %p281 = por %p279, %p280
    %p282 = scmp.ne.s32.totalorder %s273, %s274
    %p283 = scmp.eq.s32.totalorder %s27, 0
    %p284 = por %p282, %p283
    %p285 = scmp.ne.s32.totalorder %s273, %s274
    %p286 = scmp.eq.s32.totalorder %s28, 1
    %p287 = por %p285, %p286
    %p289 = scmp.ne.s32.totalorder %s274, %s288
    %p290 = scmp.eq.s32.totalorder %s28, 0
    %p291 = por %p289, %p290
    %s293 = sadd.s32 %s292, 1
    %p296 = scmp.eq.s32.totalorder %s22, 1
    %p297 = scmp.ne.s32.totalorder %s292, %s294
    %p298 = scmp.eq.s32.totalorder %s22, 0
    %p299 = por %p297, %p298
    %p300 = scmp.ne.s32.totalorder %s292, %s294
    %p301 = scmp.eq.s32.totalorder %s27, 1
    %p302 = por %p300, %p301
    %p303 = scmp.ne.s32.totalorder %s294, %s295
    %p304 = scmp.eq.s32.totalorder %s27, 0
    %p305 = por %p303, %p304
    %p306 = scmp.ne.s32.totalorder %s294, %s295
    %p307 = scmp.eq.s32.totalorder %s28, 1
    %p308 = por %p306, %p307
    %p310 = scmp.ne.s32.totalorder %s295, %s309
    %p311 = scmp.eq.s32.totalorder %s28, 0
    %p312 = por %p310, %p311
    %s314 = sadd.s32 %s313, 1
    %p317 = scmp.eq.s32.totalorder %s22, 1
    %p318 = scmp.ne.s32.totalorder %s313, %s315
    %p319 = scmp.eq.s32.totalorder %s22, 0
    %p320 = por %p318, %p319
    %p321 = scmp.ne.s32.totalorder %s313, %s315
    %p322 = scmp.eq.s32.totalorder %s27, 1
    %p323 = por %p321, %p322
    %p324 = scmp.ne.s32.totalorder %s315, %s316
    %p325 = scmp.eq.s32.totalorder %s27, 0
    %p326 = por %p324, %p325
    %p327 = scmp.ne.s32.totalorder %s315, %s316
    %p328 = scmp.eq.s32.totalorder %s28, 1
    %p329 = por %p327, %p328
    %p331 = scmp.ne.s32.totalorder %s316, %s330
    %p332 = scmp.eq.s32.totalorder %s28, 0
    %p333 = por %p331, %p332
    %s334 = ssub.s32 %s22, %s29
    %p335 = scmp.eq.s32.totalorder %s334, 0
    %s337 = sadd.s32 %s336, 1
    %s338 = scalar_select %p335, %s336, %s337
    %p341 = pneg %p335
    %p342 = scmp.eq.s32.totalorder %s22, 1
    %p343 = por %p341, %p342
    %p344 = scmp.ne.s32.totalorder %s336, %s339
    %p345 = scmp.eq.s32.totalorder %s22, 0
    %p346 = por %p344, %p345
    %p347 = scmp.ne.s32.totalorder %s336, %s339
    %p348 = scmp.eq.s32.totalorder %s27, 1
    %p349 = por %p347, %p348
    %p350 = scmp.ne.s32.totalorder %s339, %s340
    %p351 = scmp.eq.s32.totalorder %s27, 0
    %p352 = por %p350, %p351
    %p353 = scmp.ne.s32.totalorder %s339, %s340
    %p354 = scmp.eq.s32.totalorder %s28, 1
    %p355 = por %p353, %p354
    %p357 = scmp.ne.s32.totalorder %s340, %s356
    %p358 = scmp.eq.s32.totalorder %s28, 0
    %p359 = por %p357, %p358
    %p360 = scmp.le.s32.totalorder 1, %s22
    %p361 = scmp.lt.s32.totalorder %s22, 3
    %p362 = pnand %p360, %p361
    %p363 = pneg %p362
    // Predicated region
    $region9: #{tpu_custom_call.1} parent=5 // pred_check
      _
    $region10: #{tpu_custom_call.1} parent=5 // pred_check_branch
      %365 = sbr.rel (%p362) target = $region12
    $region11: #{tpu_custom_call.1} parent=5 // pred_region
      %s366 = ssub.s32 %s22, 1
      // Predicated region
      $region13: #{tpu_custom_call.1} parent=11 // pred_check
        %p367 = pneg %p95
      $region14: #{tpu_custom_call.1} parent=11 // pred_check_branch
        %369 = sbr.rel (%p367) target = $region16
      $region15: #{tpu_custom_call.1} parent=11 // pred_region
        _
      $region16: #{tpu_custom_call.1} parent=11 // pred_fallthru
        _
      // Predicated region
      $region17: #{tpu_custom_call.1} parent=11 // pred_check
        %p370 = pneg %p116
      $region18: #{tpu_custom_call.1} parent=11 // pred_check_branch
        %372 = sbr.rel (%p370) target = $region20
      $region19: #{tpu_custom_call.1} parent=11 // pred_region
        _
      $region20: #{tpu_custom_call.1} parent=11 // pred_fallthru
        _
      // Predicated region
      $region21: #{tpu_custom_call.1} parent=11 // pred_check
        %p373 = pneg %p137
      $region22: #{tpu_custom_call.1} parent=11 // pred_check_branch
        %375 = sbr.rel (%p373) target = $region24
      $region23: #{tpu_custom_call.1} parent=11 // pred_region
        _
      $region24: #{tpu_custom_call.1} parent=11 // pred_fallthru
        _
      // Predicated region
      $region25: #{tpu_custom_call.1} parent=11 // pred_check
        %p376 = pneg %p158
      $region26: #{tpu_custom_call.1} parent=11 // pred_check_branch
        %378 = sbr.rel (%p376) target = $region28
      $region27: #{tpu_custom_call.1} parent=11 // pred_region
        _
      $region28: #{tpu_custom_call.1} parent=11 // pred_fallthru
        _
      // Predicated region
      $region29: #{tpu_custom_call.1} parent=11 // pred_check
        %p379 = pneg %p179
      $region30: #{tpu_custom_call.1} parent=11 // pred_check_branch
        %381 = sbr.rel (%p379) target = $region32
      $region31: #{tpu_custom_call.1} parent=11 // pred_region
        _
      $region32: #{tpu_custom_call.1} parent=11 // pred_fallthru
        _
      // Predicated region
      $region33: #{tpu_custom_call.1} parent=11 // pred_check
        %p382 = pneg %p200
      $region34: #{tpu_custom_call.1} parent=11 // pred_check_branch
        %384 = sbr.rel (%p382) target = $region36
      $region35: #{tpu_custom_call.1} parent=11 // pred_region
        _
      $region36: #{tpu_custom_call.1} parent=11 // pred_fallthru
        _
      // Predicated region
      $region37: #{tpu_custom_call.1} parent=11 // pred_check
        %p385 = pneg %p221
      $region38: #{tpu_custom_call.1} parent=11 // pred_check_branch
        %387 = sbr.rel (%p385) target = $region40
      $region39: #{tpu_custom_call.1} parent=11 // pred_region
        _
      $region40: #{tpu_custom_call.1} parent=11 // pred_fallthru
        _
      // Predicated region
      $region41: #{tpu_custom_call.1} parent=11 // pred_check
        %p388 = pneg %p242
      $region42: #{tpu_custom_call.1} parent=11 // pred_check_branch
        %390 = sbr.rel (%p388) target = $region44
      $region43: #{tpu_custom_call.1} parent=11 // pred_region
        _
      $region44: #{tpu_custom_call.1} parent=11 // pred_fallthru
        _
      // Predicated region
      $region45: #{tpu_custom_call.1} parent=11 // pred_check
        %p391 = pneg %p263
      $region46: #{tpu_custom_call.1} parent=11 // pred_check_branch
        %393 = sbr.rel (%p391) target = $region48
      $region47: #{tpu_custom_call.1} parent=11 // pred_region
        _
      $region48: #{tpu_custom_call.1} parent=11 // pred_fallthru
        _
      // Predicated region
      $region49: #{tpu_custom_call.1} parent=11 // pred_check
        %p394 = pneg %p284
      $region50: #{tpu_custom_call.1} parent=11 // pred_check_branch
        %396 = sbr.rel (%p394) target = $region52
      $region51: #{tpu_custom_call.1} parent=11 // pred_region
        _
      $region52: #{tpu_custom_call.1} parent=11 // pred_fallthru
        _
      // Predicated region
      $region53: #{tpu_custom_call.1} parent=11 // pred_check
        %p397 = pneg %p305
      $region54: #{tpu_custom_call.1} parent=11 // pred_check_branch
        %399 = sbr.rel (%p397) target = $region56
      $region55: #{tpu_custom_call.1} parent=11 // pred_region
        _
      $region56: #{tpu_custom_call.1} parent=11 // pred_fallthru
        _
      // Predicated region
      $region57: #{tpu_custom_call.1} parent=11 // pred_check
        %p400 = pneg %p326
      $region58: #{tpu_custom_call.1} parent=11 // pred_check_branch
        %402 = sbr.rel (%p400) target = $region60
      $region59: #{tpu_custom_call.1} parent=11 // pred_region
        _
      $region60: #{tpu_custom_call.1} parent=11 // pred_fallthru
        _
    $region12: #{tpu_custom_call.1} parent=5 // pred_fallthru
      _
    %p403 = scmp.lt.s32.totalorder %s22, 2
    // Predicated region
    $region61: #{tpu_custom_call.1} parent=5 // pred_check
      %p404 = pneg %p403
    $region62: #{tpu_custom_call.1} parent=5 // pred_check_branch
      %406 = sbr.rel (%p404) target = $region64
    $region63: #{tpu_custom_call.1} parent=5 // pred_region
      // Predicated region
      $region65: #{tpu_custom_call.1} parent=63 // pred_check
        %p407 = pneg %p42
      $region66: #{tpu_custom_call.1} parent=63 // pred_check_branch
        %409 = sbr.rel (%p407) target = $region68
      $region67: #{tpu_custom_call.1} parent=63 // pred_region
        %s410 = smul.u32 16, %s22
        %p411 = scmp.lt.s32.totalorder %s410, 31
        %s412 = scalar_select %p411, %s410, 31
        %s413 = smul.addr %s412, 8
        %s414 = scalar_lea.vmem %s0, %s413
        %s415 = smul.u32 16, %s22
      $region68: #{tpu_custom_call.1} parent=63 // pred_fallthru
        _
      // Predicated region
      $region69: #{tpu_custom_call.1} parent=63 // pred_check
        %p416 = pneg %p68
      $region70: #{tpu_custom_call.1} parent=63 // pred_check_branch
        %418 = sbr.rel (%p416) target = $region72
      $region71: #{tpu_custom_call.1} parent=63 // pred_region
        %s419 = smul.u32 16, %s22
        %p420 = scmp.lt.s32.totalorder %s419, 31
        %s421 = scalar_select %p420, %s419, 31
        %s422 = smul.addr %s421, 8
        %s423 = scalar_lea.vmem %s1, %s422
        %s424 = smul.u32 16, %s22
      $region72: #{tpu_custom_call.1} parent=63 // pred_fallthru
        _
    $region64: #{tpu_custom_call.1} parent=5 // pred_fallthru
      _
    %p425 = scmp.le.s32.totalorder 1, %s22
    %p426 = scmp.lt.s32.totalorder %s22, 3
    %p427 = pnand %p425, %p426
    %p428 = pneg %p427
    // Predicated region
    $region73: #{tpu_custom_call.1} parent=5 // pred_check
      _
    $region74: #{tpu_custom_call.1} parent=5 // pred_check_branch
      %430 = sbr.rel (%p427) target = $region76
    $region75: #{tpu_custom_call.1} parent=5 // pred_region
      %s431 = ssub.s32 %s22, 1
      %s432 = smul.u32 16, %s27
      %p433 = scmp.lt.s32.totalorder %s432, 31
      %s434 = scalar_select %p433, %s432, 31
      %s435 = smul.addr %s434, 8
      %s436 = scalar_lea.vmem %s0, %s435
      %p437 = pneg %p48
      %p438 = pneg %p45
      %s439 = smul.u32 16, %s27
      %p440 = scmp.lt.s32.totalorder %s439, 31
      %s441 = scalar_select %p440, %s439, 31
      %s442 = smul.addr %s441, 8
      %s443 = scalar_lea.vmem %s1, %s442
      %p444 = pneg %p74
      %p445 = pneg %p71
      %p446 = pneg %p95
      %p447 = pneg %p92
      %p448 = pneg %p116
      %p449 = pneg %p113
      %p450 = pneg %p137
      %p451 = pneg %p134
      %p452 = pneg %p158
      %p453 = pneg %p155
      %p454 = pneg %p179
      %p455 = pneg %p176
      %p456 = pneg %p200
      %p457 = pneg %p197
      %p458 = pneg %p221
      %p459 = pneg %p218
      %p460 = pneg %p242
      %p461 = pneg %p239
      %p462 = pneg %p263
      %p463 = pneg %p260
      %p464 = pneg %p284
      %p465 = pneg %p281
      %p466 = pneg %p305
      %p467 = pneg %p302
      %p468 = pneg %p326
      %p469 = pneg %p323
      %p470 = pneg %p352
      %p471 = pneg %p349
      %s472 = smul.u32 16, %s27
      %p473 = scmp.lt.s32.totalorder %s472, 31
      %s474 = scalar_select %p473, %s472, 31
      %s475 = smul.addr %s474, 8
      %s476 = scalar_lea.vmem %s14, %s475
      %s477 = smul.u32 16, %s27
      %p478 = scmp.lt.s32.totalorder %s477, 31
      %s479 = scalar_select %p478, %s477, 31
      %s480 = smul.addr %s479, 8
      %s481 = scalar_lea.vmem %s0, %s480
      %s482 = smul.u32 16, %s27
      %s483 = smul.u32 16, %s27
      %p484 = scmp.lt.s32.totalorder %s483, 31
      %s485 = scalar_select %p484, %s483, 31
      %s486 = smul.addr %s485, 8
      %s487 = scalar_lea.vmem %s1, %s486
      %s488 = smul.u32 16, %s27
      %s489 = smul.u32 16, %s27
      %p490 = scmp.lt.s32.totalorder %s489, 31
      %s491 = scalar_select %p490, %s489, 31
      %s492 = smul.addr %s491, 8
      %s493 = scalar_lea.vmem %s14, %s492
      %s494 = smul.u32 16, %s27
      %v496 = vld [vmem:[%s487] sm:$0xff]
      %v497 = vld [vmem:[%s487 + $0x8] sm:$0xff]
      %v498 = vld [vmem:[%s487 + $0x10] sm:$0xff]
      %v499 = vld [vmem:[%s487 + $0x18] sm:$0xff]
      %v500 = vld [vmem:[%s487 + $0x20] sm:$0xff]
      %v501 = vld [vmem:[%s487 + $0x28] sm:$0xff]
      %v502 = vld [vmem:[%s487 + $0x30] sm:$0xff]
      %v503 = vld [vmem:[%s487 + $0x38] sm:$0xff]
      %v504 = vld [vmem:[%s487 + $0x40] sm:$0xff]
      %v505 = vld [vmem:[%s487 + $0x48] sm:$0xff]
      %v506 = vld [vmem:[%s487 + $0x50] sm:$0xff]
      %v507 = vld [vmem:[%s487 + $0x58] sm:$0xff]
      %v508 = vld [vmem:[%s487 + $0x60] sm:$0xff]
      %v509 = vld [vmem:[%s487 + $0x68] sm:$0xff]
      %v510 = vld [vmem:[%s487 + $0x70] sm:$0xff]
      %v511 = vld [vmem:[%s487 + $0x78] sm:$0xff]
      %v512 = vld [vmem:[%s6] sm:$0xf]
      %v513 = vld [vmem:[%s6 + $0x4] sm:$0x7]
      %v514 = vld [vmem:[%s7] sm:$0x1]
      %v515 = vpack.c.bf16 %v497, %v496
      %v516 = vpack.c.bf16 %v499, %v498
      %v517 = vpack.c.bf16 %v501, %v500
      %v518 = vpack.c.bf16 %v503, %v502
      %v519 = vpack.c.bf16 %v505, %v504
      %v520 = vpack.c.bf16 %v507, %v506
      %v521 = vpack.c.bf16 %v509, %v508
      %v522 = vpack.c.bf16 %v511, %v510
      %v524 = vlaneseq
      %v525 = vshrl.u32 %v524, 7
      %v526 = vsub.s32 0, %v525
      %v527 = vrot.slane %v514, %v526
      %v531 = vunpack.c.l.b16 %v512
      %v532 = vunpack.c.l.b16 %v513
      %v533 = vpack.c.b16 %v532, %v531
      %vm534 = vcmask 105472
      %v536 = vsel %vm534, %v515, 0
      %v539 = vsel %vm534, %v516, 0
      %v542 = vsel %vm534, %v517, 0
      %v545 = vsel %vm534, %v518, 0
      %v548 = vsel %vm534, %v519, 0
      %v551 = vsel %vm534, %v520, 0
      %v554 = vsel %vm534, %v521, 0
      %v557 = vsel %vm534, %v522, 0
      %vm559 = vcmask 1045504
      %vm560 = vcmask 1046528
      %v561 = vsel %vm559, 4294967295, 65535
      %v562 = vsel %vm560, %v561, 0
      %v564 = vand.u32 %v533, %v562
      %566 = vmatprep.subr.bf16.mxu0 0
      %567 = vmatpush1.bf16.msra.mxu0 %v564
      %568 = vmatprep.subr.bf16.mxu0 0
      %569 = vmatpush1.bf16.msra.mxu0 0
      %570 = vmatprep.subr.bf16.mxu0 0
      %571 = vmatpush1.bf16.msra.mxu0 0
      %572 = vmatprep.subr.bf16.mxu0 0
      %573 = vmatpush1.bf16.msra.mxu0 0
      %574 = vmatprep.subr.bf16.mxu0 0
      %575 = vmatpush1.bf16.msra.mxu0 0
      %576 = vmatprep.subr.bf16.mxu0 0
      %577 = vmatpush1.bf16.msra.mxu0 0
      %578 = vmatprep.subr.bf16.mxu0 0
      %579 = vmatpush1.bf16.msra.mxu0 0
      %580 = vmatprep.subr.bf16.mxu0 0
      %581 = vmatpush1.bf16.msra.mxu0 0
      %582 = vmatprep.subr.bf16.mxu0 0
      %583 = vmatpush1.bf16.msra.mxu0 0
      %584 = vmatprep.subr.bf16.mxu0 0
      %585 = vmatpush1.bf16.msra.mxu0 0
      %586 = vmatprep.subr.bf16.mxu0 0
      %587 = vmatpush1.bf16.msra.mxu0 0
      %588 = vmatprep.subr.bf16.mxu0 0
      %589 = vmatpush1.bf16.msra.mxu0 0
      %590 = vmatprep.subr.bf16.mxu0 0
      %591 = vmatpush1.bf16.msra.mxu0 0
      %592 = vmatprep.subr.bf16.mxu0 0
      %593 = vmatpush1.bf16.msra.mxu0 0
      %594 = vmatprep.subr.bf16.mxu0 0
      %595 = vmatpush1.bf16.msra.mxu0 0
      %596 = vmatprep.subr.bf16.mxu0 0
      %597 = vmatpush1.bf16.msra.mxu0 0
      %598 = vmatprep.mubr.bf16.mxu0 0
      %599 = vmatmul.mubr.bf16.gmra.mrb[0].mxu0 %v536
      %v600 = vpop.f32.mrb[0].mxu0
      %v601 = vadd.f32 %v527, %v600
      %v602 = vpop.f32.mrb[0].mxu0
      %v603 = vpop.f32.mrb[0].mxu0
      %v604 = vadd.f32 %v527, %v603
      %v605 = vpop.f32.mrb[0].mxu0
      %606 = vmatprep.mubr.bf16.mxu0 0
      %607 = vmatmul.mubr.bf16.gmra.mrb[0].mxu0 %v539
      %v608 = vpop.f32.mrb[0].mxu0
      %v609 = vadd.f32 %v527, %v608
      %v610 = vpop.f32.mrb[0].mxu0
      %v611 = vpop.f32.mrb[0].mxu0
      %v612 = vadd.f32 %v527, %v611
      %v613 = vpop.f32.mrb[0].mxu0
      %614 = vmatprep.mubr.bf16.mxu0 0
      %615 = vmatmul.mubr.bf16.gmra.mrb[0].mxu0 %v542
      %v616 = vpop.f32.mrb[0].mxu0
      %v617 = vadd.f32 %v527, %v616
      %v618 = vpop.f32.mrb[0].mxu0
      %v619 = vpop.f32.mrb[0].mxu0
      %v620 = vadd.f32 %v527, %v619
      %v621 = vpop.f32.mrb[0].mxu0
      %622 = vmatprep.mubr.bf16.mxu0 0
      %623 = vmatmul.mubr.bf16.gmra.mrb[0].mxu0 %v545
      %v624 = vpop.f32.mrb[0].mxu0
      %v625 = vadd.f32 %v527, %v624
      %v626 = vpop.f32.mrb[0].mxu0
      %v627 = vpop.f32.mrb[0].mxu0
      %v628 = vadd.f32 %v527, %v627
      %v629 = vpop.f32.mrb[0].mxu0
      %630 = vmatprep.mubr.bf16.mxu0 0
      %631 = vmatmul.mubr.bf16.gmra.mrb[0].mxu0 %v548
      %v632 = vpop.f32.mrb[0].mxu0
      %v633 = vadd.f32 %v527, %v632
      %v634 = vpop.f32.mrb[0].mxu0
      %v635 = vpop.f32.mrb[0].mxu0
      %v636 = vadd.f32 %v527, %v635
      %v637 = vpop.f32.mrb[0].mxu0
      %638 = vmatprep.mubr.bf16.mxu0 0
      %639 = vmatmul.mubr.bf16.gmra.mrb[0].mxu0 %v551
      %v640 = vpop.f32.mrb[0].mxu0
      %v641 = vadd.f32 %v527, %v640
      %v642 = vpop.f32.mrb[0].mxu0
      %v643 = vpop.f32.mrb[0].mxu0
      %v644 = vadd.f32 %v527, %v643
      %v645 = vpop.f32.mrb[0].mxu0
      %646 = vmatprep.mubr.bf16.mxu0 0
      %647 = vmatmul.mubr.bf16.gmra.mrb[0].mxu0 %v554
      %v648 = vpop.f32.mrb[0].mxu0
      %v649 = vadd.f32 %v527, %v648
      %v650 = vpop.f32.mrb[0].mxu0
      %v651 = vpop.f32.mrb[0].mxu0
      %v652 = vadd.f32 %v527, %v651
      %v653 = vpop.f32.mrb[0].mxu0
      %654 = vmatprep.mubr.bf16.mxu0 0
      %655 = vmatmul.mubr.bf16.gmra.mrb[0].mxu0 %v557
      %v656 = vpop.f32.mrb[0].mxu0
      %v657 = vadd.f32 %v527, %v656
      %v658 = vpop.f32.mrb[0].mxu0
      %v659 = vpop.f32.mrb[0].mxu0
      %v660 = vadd.f32 %v527, %v659
      %v661 = vpop.f32.mrb[0].mxu0
      %662 = vdwg.mxu0
      %v663 = vmax.f32 %v601, 0.0
      %v664 = vmax.f32 %v604, 0.0
      %v665 = vmax.f32 %v609, 0.0
      %v666 = vmax.f32 %v612, 0.0
      %v667 = vmax.f32 %v617, 0.0
      %v668 = vmax.f32 %v620, 0.0
      %v669 = vmax.f32 %v625, 0.0
      %v670 = vmax.f32 %v628, 0.0
      %v671 = vmax.f32 %v633, 0.0
      %v672 = vmax.f32 %v636, 0.0
      %v673 = vmax.f32 %v641, 0.0
      %v674 = vmax.f32 %v644, 0.0
      %v675 = vmax.f32 %v649, 0.0
      %v676 = vmax.f32 %v652, 0.0
      %v677 = vmax.f32 %v657, 0.0
      %v678 = vmax.f32 %v660, 0.0
      %v679 = vld [vmem:[%s8] sm:$0xf]
      %v680 = vld [vmem:[%s8 + $0x4] sm:$0xf]
      %v681 = vld [vmem:[%s8 + $0x8] sm:$0xf]
      %v682 = vld [vmem:[%s8 + $0xc] sm:$0xf]
      %v683 = vld [vmem:[%s8 + $0x10] sm:$0xf]
      %v684 = vld [vmem:[%s8 + $0x14] sm:$0xf]
      %v685 = vld [vmem:[%s8 + $0x18] sm:$0xf]
      %v686 = vld [vmem:[%s8 + $0x1c] sm:$0xf]
      %v687 = vld [vmem:[%s9] sm:$0x1]
      %v688 = vpack.c.bf16 %v664, %v663
      %v689 = vpack.c.bf16 %v666, %v665
      %v690 = vpack.c.bf16 %v668, %v667
      %v691 = vpack.c.bf16 %v670, %v669
      %v692 = vpack.c.bf16 %v672, %v671
      %v693 = vpack.c.bf16 %v674, %v673
      %v694 = vpack.c.bf16 %v676, %v675
      %v695 = vpack.c.bf16 %v678, %v677
      %v697 = vlaneseq
      %v698 = vshrl.u32 %v697, 7
      %v699 = vsub.s32 0, %v698
      %v700 = vrot.slane %v687, %v699
      %v710 = vunpack.c.l.b16 %v679
      %v711 = vunpack.c.l.b16 %v680
      %v712 = vunpack.c.l.b16 %v681
      %v713 = vunpack.c.l.b16 %v682
      %v714 = vunpack.c.l.b16 %v683
      %v715 = vunpack.c.l.b16 %v684
      %v716 = vunpack.c.l.b16 %v685
      %v717 = vunpack.c.l.b16 %v686
      %v718 = vpack.c.b16 %v711, %v710
      %v719 = vpack.c.b16 %v713, %v712
      %v720 = vpack.c.b16 %v715, %v714
      %v721 = vpack.c.b16 %v717, %v716
      %vm726 = vcmask 523264
      %v728 = vsel %vm726, %v688, 0
      %v731 = vsel %vm726, %v689, 0
      %v734 = vsel %vm726, %v690, 0
      %v737 = vsel %vm726, %v691, 0
      %v740 = vsel %vm726, %v692, 0
      %v743 = vsel %vm726, %v693, 0
      %v746 = vsel %vm726, %v694, 0
      %v749 = vsel %vm726, %v695, 0
      %751 = vmatprep.subr.bf16.mxu0 0
      %752 = vmatpush1.bf16.msra.mxu0 %v718
      %753 = vmatprep.subr.bf16.mxu0 0
      %754 = vmatpush1.bf16.msra.mxu0 %v719
      %755 = vmatprep.subr.bf16.mxu0 0
      %756 = vmatpush1.bf16.msra.mxu0 %v720
      %757 = vmatprep.subr.bf16.mxu0 0
      %758 = vmatpush1.bf16.msra.mxu0 %v721
      %759 = vmatprep.subr.bf16.mxu0 0
      %760 = vmatpush1.bf16.msra.mxu0 0
      %761 = vmatprep.subr.bf16.mxu0 0
      %762 = vmatpush1.bf16.msra.mxu0 0
      %763 = vmatprep.subr.bf16.mxu0 0
      %764 = vmatpush1.bf16.msra.mxu0 0
      %765 = vmatprep.subr.bf16.mxu0 0
      %766 = vmatpush1.bf16.msra.mxu0 0
      %767 = vmatprep.subr.bf16.mxu0 0
      %768 = vmatpush1.bf16.msra.mxu0 0
      %769 = vmatprep.subr.bf16.mxu0 0
      %770 = vmatpush1.bf16.msra.mxu0 0
      %771 = vmatprep.subr.bf16.mxu0 0
      %772 = vmatpush1.bf16.msra.mxu0 0
      %773 = vmatprep.subr.bf16.mxu0 0
      %774 = vmatpush1.bf16.msra.mxu0 0
      %775 = vmatprep.subr.bf16.mxu0 0
      %776 = vmatpush1.bf16.msra.mxu0 0
      %777 = vmatprep.subr.bf16.mxu0 0
      %778 = vmatpush1.bf16.msra.mxu0 0
      %779 = vmatprep.subr.bf16.mxu0 0
      %780 = vmatpush1.bf16.msra.mxu0 0
      %781 = vmatprep.subr.bf16.mxu0 0
      %782 = vmatpush1.bf16.msra.mxu0 0
      %783 = vmatprep.mubr.bf16.mxu0 0
      %784 = vmatmul.mubr.bf16.gmra.mrb[0].mxu0 %v728
      %v785 = vpop.f32.mrb[0].mxu0
      %v786 = vadd.f32 %v700, %v785
      %v787 = vpop.f32.mrb[0].mxu0
      %v788 = vpop.f32.mrb[0].mxu0
      %v789 = vadd.f32 %v700, %v788
      %v790 = vpop.f32.mrb[0].mxu0
      %791 = vmatprep.mubr.bf16.mxu0 0
      %792 = vmatmul.mubr.bf16.gmra.mrb[0].mxu0 %v731
      %v793 = vpop.f32.mrb[0].mxu0
      %v794 = vadd.f32 %v700, %v793
      %v795 = vpop.f32.mrb[0].mxu0
      %v796 = vpop.f32.mrb[0].mxu0
      %v797 = vadd.f32 %v700, %v796
      %v798 = vpop.f32.mrb[0].mxu0
      %799 = vmatprep.mubr.bf16.mxu0 0
      %800 = vmatmul.mubr.bf16.gmra.mrb[0].mxu0 %v734
      %v801 = vpop.f32.mrb[0].mxu0
      %v802 = vadd.f32 %v700, %v801
      %v803 = vpop.f32.mrb[0].mxu0
      %v804 = vpop.f32.mrb[0].mxu0
      %v805 = vadd.f32 %v700, %v804
      %v806 = vpop.f32.mrb[0].mxu0
      %807 = vmatprep.mubr.bf16.mxu0 0
      %808 = vmatmul.mubr.bf16.gmra.mrb[0].mxu0 %v737
      %v809 = vpop.f32.mrb[0].mxu0
      %v810 = vadd.f32 %v700, %v809
      %v811 = vpop.f32.mrb[0].mxu0
      %v812 = vpop.f32.mrb[0].mxu0
      %v813 = vadd.f32 %v700, %v812
      %v814 = vpop.f32.mrb[0].mxu0
      %815 = vmatprep.mubr.bf16.mxu0 0
      %816 = vmatmul.mubr.bf16.gmra.mrb[0].mxu0 %v740
      %v817 = vpop.f32.mrb[0].mxu0
      %v818 = vadd.f32 %v700, %v817
      %v819 = vpop.f32.mrb[0].mxu0
      %v820 = vpop.f32.mrb[0].mxu0
      %v821 = vadd.f32 %v700, %v820
      %v822 = vpop.f32.mrb[0].mxu0
      %823 = vmatprep.mubr.bf16.mxu0 0
      %824 = vmatmul.mubr.bf16.gmra.mrb[0].mxu0 %v743
      %v825 = vpop.f32.mrb[0].mxu0
      %v826 = vadd.f32 %v700, %v825
      %v827 = vpop.f32.mrb[0].mxu0
      %v828 = vpop.f32.mrb[0].mxu0
      %v829 = vadd.f32 %v700, %v828
      %v830 = vpop.f32.mrb[0].mxu0
      %831 = vmatprep.mubr.bf16.mxu0 0
      %832 = vmatmul.mubr.bf16.gmra.mrb[0].mxu0 %v746
      %v833 = vpop.f32.mrb[0].mxu0
      %v834 = vadd.f32 %v700, %v833
      %v835 = vpop.f32.mrb[0].mxu0
      %v836 = vpop.f32.mrb[0].mxu0
      %v837 = vadd.f32 %v700, %v836
      %v838 = vpop.f32.mrb[0].mxu0
      %839 = vmatprep.mubr.bf16.mxu0 0
      %840 = vmatmul.mubr.bf16.gmra.mrb[0].mxu0 %v749
      %v841 = vpop.f32.mrb[0].mxu0
      %v842 = vadd.f32 %v700, %v841
      %v843 = vpop.f32.mrb[0].mxu0
      %v844 = vpop.f32.mrb[0].mxu0
      %v845 = vadd.f32 %v700, %v844
      %v846 = vpop.f32.mrb[0].mxu0
      %847 = vdwg.mxu0
      %v848 = vmax.f32 %v786, 0.0
      %v849 = vmax.f32 %v789, 0.0
      %v850 = vmax.f32 %v794, 0.0
      %v851 = vmax.f32 %v797, 0.0
      %v852 = vmax.f32 %v802, 0.0
      %v853 = vmax.f32 %v805, 0.0
      %v854 = vmax.f32 %v810, 0.0
      %v855 = vmax.f32 %v813, 0.0
      %v856 = vmax.f32 %v818, 0.0
      %v857 = vmax.f32 %v821, 0.0
      %v858 = vmax.f32 %v826, 0.0
      %v859 = vmax.f32 %v829, 0.0
      %v860 = vmax.f32 %v834, 0.0
      %v861 = vmax.f32 %v837, 0.0
      %v862 = vmax.f32 %v842, 0.0
      %v863 = vmax.f32 %v845, 0.0
      %v864 = vld [vmem:[%s481] sm:$0xff]
      %v865 = vld [vmem:[%s481 + $0x8] sm:$0xff]
      %v866 = vld [vmem:[%s481 + $0x10] sm:$0xff]
      %v867 = vld [vmem:[%s481 + $0x18] sm:$0xff]
      %v868 = vld [vmem:[%s481 + $0x20] sm:$0xff]
      %v869 = vld [vmem:[%s481 + $0x28] sm:$0xff]
      %v870 = vld [vmem:[%s481 + $0x30] sm:$0xff]
      %v871 = vld [vmem:[%s481 + $0x38] sm:$0xff]
      %v872 = vld [vmem:[%s481 + $0x40] sm:$0xff]
      %v873 = vld [vmem:[%s481 + $0x48] sm:$0xff]
      %v874 = vld [vmem:[%s481 + $0x50] sm:$0xff]
      %v875 = vld [vmem:[%s481 + $0x58] sm:$0xff]
      %v876 = vld [vmem:[%s481 + $0x60] sm:$0xff]
      %v877 = vld [vmem:[%s481 + $0x68] sm:$0xff]
      %v878 = vld [vmem:[%s481 + $0x70] sm:$0xff]
      %v879 = vld [vmem:[%s481 + $0x78] sm:$0xff]
      %v880 = vlaneseq
      %v881 = vand.u32 %v880, 127
      %v882 = vadd.s32 %v881, 128
      %883 = vset.pattern.permute.xlu0 0
      %884 = vperm.xlu0 %883, %v864
      %v885 = vpop.permute.xlu0 %884
      %886 = vset.pattern.permute.xlu0 0
      %887 = vperm.xlu0 %886, %v865
      %v888 = vpop.permute.xlu0 %887
      %889 = vset.pattern.permute.xlu0 0
      %890 = vperm.xlu0 %889, %v866
      %v891 = vpop.permute.xlu0 %890
      %892 = vset.pattern.permute.xlu0 0
      %893 = vperm.xlu0 %892, %v867
      %v894 = vpop.permute.xlu0 %893
      %895 = vset.pattern.permute.xlu0 0
      %896 = vperm.xlu0 %895, %v868
      %v897 = vpop.permute.xlu0 %896
      %898 = vset.pattern.permute.xlu0 0
      %899 = vperm.xlu0 %898, %v869
      %v900 = vpop.permute.xlu0 %899
      %901 = vset.pattern.permute.xlu0 0
      %902 = vperm.xlu0 %901, %v870
      %v903 = vpop.permute.xlu0 %902
      %904 = vset.pattern.permute.xlu0 0
      %905 = vperm.xlu0 %904, %v871
      %v906 = vpop.permute.xlu0 %905
      %907 = vset.pattern.permute.xlu0 0
      %908 = vperm.xlu0 %907, %v872
      %v909 = vpop.permute.xlu0 %908
      %910 = vset.pattern.permute.xlu0 0
      %911 = vperm.xlu0 %910, %v873
      %v912 = vpop.permute.xlu0 %911
      %913 = vset.pattern.permute.xlu0 0
      %914 = vperm.xlu0 %913, %v874
      %v915 = vpop.permute.xlu0 %914
      %916 = vset.pattern.permute.xlu0 0
      %917 = vperm.xlu0 %916, %v875
      %v918 = vpop.permute.xlu0 %917
      %919 = vset.pattern.permute.xlu0 0
      %920 = vperm.xlu0 %919, %v876
      %v921 = vpop.permute.xlu0 %920
      %922 = vset.pattern.permute.xlu0 0
      %923 = vperm.xlu0 %922, %v877
      %v924 = vpop.permute.xlu0 %923
      %925 = vset.pattern.permute.xlu0 0
      %926 = vperm.xlu0 %925, %v878
      %v927 = vpop.permute.xlu0 %926
      %928 = vset.pattern.permute.xlu0 0
      %929 = vperm.xlu0 %928, %v879
      %v930 = vpop.permute.xlu0 %929
      %vm931 = vcmp.eq.s32.totalorder %v885, %v881
      %vm932 = vcmp.eq.s32.totalorder %v885, %v882
      %vm933 = vcmp.eq.s32.totalorder %v888, %v881
      %vm934 = vcmp.eq.s32.totalorder %v888, %v882
      %vm935 = vcmp.eq.s32.totalorder %v891, %v881
      %vm936 = vcmp.eq.s32.totalorder %v891, %v882
      %vm937 = vcmp.eq.s32.totalorder %v894, %v881
      %vm938 = vcmp.eq.s32.totalorder %v894, %v882
      %vm939 = vcmp.eq.s32.totalorder %v897, %v881
      %vm940 = vcmp.eq.s32.totalorder %v897, %v882
      %vm941 = vcmp.eq.s32.totalorder %v900, %v881
      %vm942 = vcmp.eq.s32.totalorder %v900, %v882
      %vm943 = vcmp.eq.s32.totalorder %v903, %v881
      %vm944 = vcmp.eq.s32.totalorder %v903, %v882
      %vm945 = vcmp.eq.s32.totalorder %v906, %v881
      %vm946 = vcmp.eq.s32.totalorder %v906, %v882
      %vm947 = vcmp.eq.s32.totalorder %v909, %v881
      %vm948 = vcmp.eq.s32.totalorder %v909, %v882
      %vm949 = vcmp.eq.s32.totalorder %v912, %v881
      %vm950 = vcmp.eq.s32.totalorder %v912, %v882
      %vm951 = vcmp.eq.s32.totalorder %v915, %v881
      %vm952 = vcmp.eq.s32.totalorder %v915, %v882
      %vm953 = vcmp.eq.s32.totalorder %v918, %v881
      %vm954 = vcmp.eq.s32.totalorder %v918, %v882
      %vm955 = vcmp.eq.s32.totalorder %v921, %v881
      %vm956 = vcmp.eq.s32.totalorder %v921, %v882
      %vm957 = vcmp.eq.s32.totalorder %v924, %v881
      %vm958 = vcmp.eq.s32.totalorder %v924, %v882
      %vm959 = vcmp.eq.s32.totalorder %v927, %v881
      %vm960 = vcmp.eq.s32.totalorder %v927, %v882
      %vm961 = vcmp.eq.s32.totalorder %v930, %v881
      %vm962 = vcmp.eq.s32.totalorder %v930, %v882
      %v963 = vsel %vm931, 1, 0
      %v964 = vsel %vm932, 1, 0
      %v965 = vsel %vm933, 1, 0
      %v966 = vsel %vm934, 1, 0
      %v967 = vsel %vm935, 1, 0
      %v968 = vsel %vm936, 1, 0
      %v969 = vsel %vm937, 1, 0
      %v970 = vsel %vm938, 1, 0
      %v971 = vsel %vm939, 1, 0
      %v972 = vsel %vm940, 1, 0
      %v973 = vsel %vm941, 1, 0
      %v974 = vsel %vm942, 1, 0
      %v975 = vsel %vm943, 1, 0
      %v976 = vsel %vm944, 1, 0
      %v977 = vsel %vm945, 1, 0
      %v978 = vsel %vm946, 1, 0
      %v979 = vsel %vm947, 1, 0
      %v980 = vsel %vm948, 1, 0
      %v981 = vsel %vm949, 1, 0
      %v982 = vsel %vm950, 1, 0
      %v983 = vsel %vm951, 1, 0
      %v984 = vsel %vm952, 1, 0
      %v985 = vsel %vm953, 1, 0
      %v986 = vsel %vm954, 1, 0
      %v987 = vsel %vm955, 1, 0
      %v988 = vsel %vm956, 1, 0
      %v989 = vsel %vm957, 1, 0
      %v990 = vsel %vm958, 1, 0
      %v991 = vsel %vm959, 1, 0
      %v992 = vsel %vm960, 1, 0
      %v993 = vsel %vm961, 1, 0
      %v994 = vsel %vm962, 1, 0
      %v995 = vcvt.s32.f32 %v963
      %v996 = vcvt.s32.f32 %v964
      %v997 = vcvt.s32.f32 %v965
      %v998 = vcvt.s32.f32 %v966
      %v999 = vcvt.s32.f32 %v967
      %v1000 = vcvt.s32.f32 %v968
      %v1001 = vcvt.s32.f32 %v969
      %v1002 = vcvt.s32.f32 %v970
      %v1003 = vcvt.s32.f32 %v971
      %v1004 = vcvt.s32.f32 %v972
      %v1005 = vcvt.s32.f32 %v973
      %v1006 = vcvt.s32.f32 %v974
      %v1007 = vcvt.s32.f32 %v975
      %v1008 = vcvt.s32.f32 %v976
      %v1009 = vcvt.s32.f32 %v977
      %v1010 = vcvt.s32.f32 %v978
      %v1011 = vcvt.s32.f32 %v979
      %v1012 = vcvt.s32.f32 %v980
      %v1013 = vcvt.s32.f32 %v981
      %v1014 = vcvt.s32.f32 %v982
      %v1015 = vcvt.s32.f32 %v983
      %v1016 = vcvt.s32.f32 %v984
      %v1017 = vcvt.s32.f32 %v985
      %v1018 = vcvt.s32.f32 %v986
      %v1019 = vcvt.s32.f32 %v987
      %v1020 = vcvt.s32.f32 %v988
      %v1021 = vcvt.s32.f32 %v989
      %v1022 = vcvt.s32.f32 %v990
      %v1023 = vcvt.s32.f32 %v991
      %v1024 = vcvt.s32.f32 %v992
      %v1025 = vcvt.s32.f32 %v993
      %v1026 = vcvt.s32.f32 %v994
      %v1027 = vadd.f32 %v995, 0.0
      %v1028 = vadd.f32 %v996, 0.0
      %v1029 = vadd.f32 %v997, 0.0
      %v1030 = vadd.f32 %v998, 0.0
      %v1031 = vadd.f32 %v999, 0.0
      %v1032 = vadd.f32 %v1000, 0.0
      %v1033 = vadd.f32 %v1001, 0.0
      %v1034 = vadd.f32 %v1002, 0.0
      %v1035 = vadd.f32 %v1003, 0.0
      %v1036 = vadd.f32 %v1004, 0.0
      %v1037 = vadd.f32 %v1005, 0.0
      %v1038 = vadd.f32 %v1006, 0.0
      %v1039 = vadd.f32 %v1007, 0.0
      %v1040 = vadd.f32 %v1008, 0.0
      %v1041 = vadd.f32 %v1009, 0.0
      %v1042 = vadd.f32 %v1010, 0.0
      %v1043 = vadd.f32 %v1011, 0.0
      %v1044 = vadd.f32 %v1012, 0.0
      %v1045 = vadd.f32 %v1013, 0.0
      %v1046 = vadd.f32 %v1014, 0.0
      %v1047 = vadd.f32 %v1015, 0.0
      %v1048 = vadd.f32 %v1016, 0.0
      %v1049 = vadd.f32 %v1017, 0.0
      %v1050 = vadd.f32 %v1018, 0.0
      %v1051 = vadd.f32 %v1019, 0.0
      %v1052 = vadd.f32 %v1020, 0.0
      %v1053 = vadd.f32 %v1021, 0.0
      %v1054 = vadd.f32 %v1022, 0.0
      %v1055 = vadd.f32 %v1023, 0.0
      %v1056 = vadd.f32 %v1024, 0.0
      %v1057 = vadd.f32 %v1025, 0.0
      %v1058 = vadd.f32 %v1026, 0.0
      %1059 = vset.pattern.permute.xlu0 1
      %1060 = vperm.xlu0 %1059, %v864
      %v1061 = vpop.permute.xlu0 %1060
      %1062 = vset.pattern.permute.xlu0 1
      %1063 = vperm.xlu0 %1062, %v865
      %v1064 = vpop.permute.xlu0 %1063
      %1065 = vset.pattern.permute.xlu0 1
      %1066 = vperm.xlu0 %1065, %v866
      %v1067 = vpop.permute.xlu0 %1066
      %1068 = vset.pattern.permute.xlu0 1
      %1069 = vperm.xlu0 %1068, %v867
      %v1070 = vpop.permute.xlu0 %1069
      %1071 = vset.pattern.permute.xlu0 1
      %1072 = vperm.xlu0 %1071, %v868
      %v1073 = vpop.permute.xlu0 %1072
      %1074 = vset.pattern.permute.xlu0 1
      %1075 = vperm.xlu0 %1074, %v869
      %v1076 = vpop.permute.xlu0 %1075
      %1077 = vset.pattern.permute.xlu0 1
      %1078 = vperm.xlu0 %1077, %v870
      %v1079 = vpop.permute.xlu0 %1078
      %1080 = vset.pattern.permute.xlu0 1
      %1081 = vperm.xlu0 %1080, %v871
      %v1082 = vpop.permute.xlu0 %1081
      %1083 = vset.pattern.permute.xlu0 1
      %1084 = vperm.xlu0 %1083, %v872
      %v1085 = vpop.permute.xlu0 %1084
      %1086 = vset.pattern.permute.xlu0 1
      %1087 = vperm.xlu0 %1086, %v873
      %v1088 = vpop.permute.xlu0 %1087
      %1089 = vset.pattern.permute.xlu0 1
      %1090 = vperm.xlu0 %1089, %v874
      %v1091 = vpop.permute.xlu0 %1090
      %1092 = vset.pattern.permute.xlu0 1
      %1093 = vperm.xlu0 %1092, %v875
      %v1094 = vpop.permute.xlu0 %1093
      %1095 = vset.pattern.permute.xlu0 1
      %1096 = vperm.xlu0 %1095, %v876
      %v1097 = vpop.permute.xlu0 %1096
      %1098 = vset.pattern.permute.xlu0 1
      %1099 = vperm.xlu0 %1098, %v877
      %v1100 = vpop.permute.xlu0 %1099
      %1101 = vset.pattern.permute.xlu0 1
      %1102 = vperm.xlu0 %1101, %v878
      %v1103 = vpop.permute.xlu0 %1102
      %1104 = vset.pattern.permute.xlu0 1
      %1105 = vperm.xlu0 %1104, %v879
      %v1106 = vpop.permute.xlu0 %1105
      %vm1107 = vcmp.eq.s32.totalorder %v1061, %v881
      %vm1108 = vcmp.eq.s32.totalorder %v1061, %v882
      %vm1109 = vcmp.eq.s32.totalorder %v1064, %v881
      %vm1110 = vcmp.eq.s32.totalorder %v1064, %v882
      %vm1111 = vcmp.eq.s32.totalorder %v1067, %v881
      %vm1112 = vcmp.eq.s32.totalorder %v1067, %v882
      %vm1113 = vcmp.eq.s32.totalorder %v1070, %v881
      %vm1114 = vcmp.eq.s32.totalorder %v1070, %v882
      %vm1115 = vcmp.eq.s32.totalorder %v1073, %v881
      %vm1116 = vcmp.eq.s32.totalorder %v1073, %v882
      %vm1117 = vcmp.eq.s32.totalorder %v1076, %v881
      %vm1118 = vcmp.eq.s32.totalorder %v1076, %v882
      %vm1119 = vcmp.eq.s32.totalorder %v1079, %v881
      %vm1120 = vcmp.eq.s32.totalorder %v1079, %v882
      %vm1121 = vcmp.eq.s32.totalorder %v1082, %v881
      %vm1122 = vcmp.eq.s32.totalorder %v1082, %v882
      %vm1123 = vcmp.eq.s32.totalorder %v1085, %v881
      %vm1124 = vcmp.eq.s32.totalorder %v1085, %v882
      %vm1125 = vcmp.eq.s32.totalorder %v1088, %v881
      %vm1126 = vcmp.eq.s32.totalorder %v1088, %v882
      %vm1127 = vcmp.eq.s32.totalorder %v1091, %v881
      %vm1128 = vcmp.eq.s32.totalorder %v1091, %v882
      %vm1129 = vcmp.eq.s32.totalorder %v1094, %v881
      %vm1130 = vcmp.eq.s32.totalorder %v1094, %v882
      %vm1131 = vcmp.eq.s32.totalorder %v1097, %v881
      %vm1132 = vcmp.eq.s32.totalorder %v1097, %v882
      %vm1133 = vcmp.eq.s32.totalorder %v1100, %v881
      %vm1134 = vcmp.eq.s32.totalorder %v1100, %v882
      %vm1135 = vcmp.eq.s32.totalorder %v1103, %v881
      %vm1136 = vcmp.eq.s32.totalorder %v1103, %v882
      %vm1137 = vcmp.eq.s32.totalorder %v1106, %v881
      %vm1138 = vcmp.eq.s32.totalorder %v1106, %v882
      %v1139 = vsel %vm1107, 1, 0
      %v1140 = vsel %vm1108, 1, 0
      %v1141 = vsel %vm1109, 1, 0
      %v1142 = vsel %vm1110, 1, 0
      %v1143 = vsel %vm1111, 1, 0
      %v1144 = vsel %vm1112, 1, 0
      %v1145 = vsel %vm1113, 1, 0
      %v1146 = vsel %vm1114, 1, 0
      %v1147 = vsel %vm1115, 1, 0
      %v1148 = vsel %vm1116, 1, 0
      %v1149 = vsel %vm1117, 1, 0
      %v1150 = vsel %vm1118, 1, 0
      %v1151 = vsel %vm1119, 1, 0
      %v1152 = vsel %vm1120, 1, 0
      %v1153 = vsel %vm1121, 1, 0
      %v1154 = vsel %vm1122, 1, 0
      %v1155 = vsel %vm1123, 1, 0
      %v1156 = vsel %vm1124, 1, 0
      %v1157 = vsel %vm1125, 1, 0
      %v1158 = vsel %vm1126, 1, 0
      %v1159 = vsel %vm1127, 1, 0
      %v1160 = vsel %vm1128, 1, 0
      %v1161 = vsel %vm1129, 1, 0
      %v1162 = vsel %vm1130, 1, 0
      %v1163 = vsel %vm1131, 1, 0
      %v1164 = vsel %vm1132, 1, 0
      %v1165 = vsel %vm1133, 1, 0
      %v1166 = vsel %vm1134, 1, 0
      %v1167 = vsel %vm1135, 1, 0
      %v1168 = vsel %vm1136, 1, 0
      %v1169 = vsel %vm1137, 1, 0
      %v1170 = vsel %vm1138, 1, 0
      %v1171 = vcvt.s32.f32 %v1139
      %v1172 = vcvt.s32.f32 %v1140
      %v1173 = vcvt.s32.f32 %v1141
      %v1174 = vcvt.s32.f32 %v1142
      %v1175 = vcvt.s32.f32 %v1143
      %v1176 = vcvt.s32.f32 %v1144
      %v1177 = vcvt.s32.f32 %v1145
      %v1178 = vcvt.s32.f32 %v1146
      %v1179 = vcvt.s32.f32 %v1147
      %v1180 = vcvt.s32.f32 %v1148
      %v1181 = vcvt.s32.f32 %v1149
      %v1182 = vcvt.s32.f32 %v1150
      %v1183 = vcvt.s32.f32 %v1151
      %v1184 = vcvt.s32.f32 %v1152
      %v1185 = vcvt.s32.f32 %v1153
      %v1186 = vcvt.s32.f32 %v1154
      %v1187 = vcvt.s32.f32 %v1155
      %v1188 = vcvt.s32.f32 %v1156
      %v1189 = vcvt.s32.f32 %v1157
      %v1190 = vcvt.s32.f32 %v1158
      %v1191 = vcvt.s32.f32 %v1159
      %v1192 = vcvt.s32.f32 %v1160
      %v1193 = vcvt.s32.f32 %v1161
      %v1194 = vcvt.s32.f32 %v1162
      %v1195 = vcvt.s32.f32 %v1163
      %v1196 = vcvt.s32.f32 %v1164
      %v1197 = vcvt.s32.f32 %v1165
      %v1198 = vcvt.s32.f32 %v1166
      %v1199 = vcvt.s32.f32 %v1167
      %v1200 = vcvt.s32.f32 %v1168
      %v1201 = vcvt.s32.f32 %v1169
      %v1202 = vcvt.s32.f32 %v1170
      %v1203 = vadd.f32 %v1027, %v1171
      %v1204 = vadd.f32 %v1028, %v1172
      %v1205 = vadd.f32 %v1029, %v1173
      %v1206 = vadd.f32 %v1030, %v1174
      %v1207 = vadd.f32 %v1031, %v1175
      %v1208 = vadd.f32 %v1032, %v1176
      %v1209 = vadd.f32 %v1033, %v1177
      %v1210 = vadd.f32 %v1034, %v1178
      %v1211 = vadd.f32 %v1035, %v1179
      %v1212 = vadd.f32 %v1036, %v1180
      %v1213 = vadd.f32 %v1037, %v1181
      %v1214 = vadd.f32 %v1038, %v1182
      %v1215 = vadd.f32 %v1039, %v1183
      %v1216 = vadd.f32 %v1040, %v1184
      %v1217 = vadd.f32 %v1041, %v1185
      %v1218 = vadd.f32 %v1042, %v1186
      %v1219 = vadd.f32 %v1043, %v1187
      %v1220 = vadd.f32 %v1044, %v1188
      %v1221 = vadd.f32 %v1045, %v1189
      %v1222 = vadd.f32 %v1046, %v1190
      %v1223 = vadd.f32 %v1047, %v1191
      %v1224 = vadd.f32 %v1048, %v1192
      %v1225 = vadd.f32 %v1049, %v1193
      %v1226 = vadd.f32 %v1050, %v1194
      %v1227 = vadd.f32 %v1051, %v1195
      %v1228 = vadd.f32 %v1052, %v1196
      %v1229 = vadd.f32 %v1053, %v1197
      %v1230 = vadd.f32 %v1054, %v1198
      %v1231 = vadd.f32 %v1055, %v1199
      %v1232 = vadd.f32 %v1056, %v1200
      %v1233 = vadd.f32 %v1057, %v1201
      %v1234 = vadd.f32 %v1058, %v1202
      %1235 = vset.pattern.permute.xlu0 2
      %1236 = vperm.xlu0 %1235, %v864
      %v1237 = vpop.permute.xlu0 %1236
      %1238 = vset.pattern.permute.xlu0 2
      %1239 = vperm.xlu0 %1238, %v865
      %v1240 = vpop.permute.xlu0 %1239
      %1241 = vset.pattern.permute.xlu0 2
      %1242 = vperm.xlu0 %1241, %v866
      %v1243 = vpop.permute.xlu0 %1242
      %1244 = vset.pattern.permute.xlu0 2
      %1245 = vperm.xlu0 %1244, %v867
      %v1246 = vpop.permute.xlu0 %1245
      %1247 = vset.pattern.permute.xlu0 2
      %1248 = vperm.xlu0 %1247, %v868
      %v1249 = vpop.permute.xlu0 %1248
      %1250 = vset.pattern.permute.xlu0 2
      %1251 = vperm.xlu0 %1250, %v869
      %v1252 = vpop.permute.xlu0 %1251
      %1253 = vset.pattern.permute.xlu0 2
      %1254 = vperm.xlu0 %1253, %v870
      %v1255 = vpop.permute.xlu0 %1254
      %1256 = vset.pattern.permute.xlu0 2
      %1257 = vperm.xlu0 %1256, %v871
      %v1258 = vpop.permute.xlu0 %1257
      %1259 = vset.pattern.permute.xlu0 2
      %1260 = vperm.xlu0 %1259, %v872
      %v1261 = vpop.permute.xlu0 %1260
      %1262 = vset.pattern.permute.xlu0 2
      %1263 = vperm.xlu0 %1262, %v873
      %v1264 = vpop.permute.xlu0 %1263
      %1265 = vset.pattern.permute.xlu0 2
      %1266 = vperm.xlu0 %1265, %v874
      %v1267 = vpop.permute.xlu0 %1266
      %1268 = vset.pattern.permute.xlu0 2
      %1269 = vperm.xlu0 %1268, %v875
      %v1270 = vpop.permute.xlu0 %1269
      %1271 = vset.pattern.permute.xlu0 2
      %1272 = vperm.xlu0 %1271, %v876
      %v1273 = vpop.permute.xlu0 %1272
      %1274 = vset.pattern.permute.xlu0 2
      %1275 = vperm.xlu0 %1274, %v877
      %v1276 = vpop.permute.xlu0 %1275
      %1277 = vset.pattern.permute.xlu0 2
      %1278 = vperm.xlu0 %1277, %v878
      %v1279 = vpop.permute.xlu0 %1278
      %1280 = vset.pattern.permute.xlu0 2
      %1281 = vperm.xlu0 %1280, %v879
      %v1282 = vpop.permute.xlu0 %1281
      %vm1283 = vcmp.eq.s32.totalorder %v1237, %v881
      %vm1284 = vcmp.eq.s32.totalorder %v1237, %v882
      %vm1285 = vcmp.eq.s32.totalorder %v1240, %v881
      %vm1286 = vcmp.eq.s32.totalorder %v1240, %v882
      %vm1287 = vcmp.eq.s32.totalorder %v1243, %v881
      %vm1288 = vcmp.eq.s32.totalorder %v1243, %v882
      %vm1289 = vcmp.eq.s32.totalorder %v1246, %v881
      %vm1290 = vcmp.eq.s32.totalorder %v1246, %v882
      %vm1291 = vcmp.eq.s32.totalorder %v1249, %v881
      %vm1292 = vcmp.eq.s32.totalorder %v1249, %v882
      %vm1293 = vcmp.eq.s32.totalorder %v1252, %v881
      %vm1294 = vcmp.eq.s32.totalorder %v1252, %v882
      %vm1295 = vcmp.eq.s32.totalorder %v1255, %v881
      %vm1296 = vcmp.eq.s32.totalorder %v1255, %v882
      %vm1297 = vcmp.eq.s32.totalorder %v1258, %v881
      %vm1298 = vcmp.eq.s32.totalorder %v1258, %v882
      %vm1299 = vcmp.eq.s32.totalorder %v1261, %v881
      %vm1300 = vcmp.eq.s32.totalorder %v1261, %v882
      %vm1301 = vcmp.eq.s32.totalorder %v1264, %v881
      %vm1302 = vcmp.eq.s32.totalorder %v1264, %v882
      %vm1303 = vcmp.eq.s32.totalorder %v1267, %v881
      %vm1304 = vcmp.eq.s32.totalorder %v1267, %v882
      %vm1305 = vcmp.eq.s32.totalorder %v1270, %v881
      %vm1306 = vcmp.eq.s32.totalorder %v1270, %v882
      %vm1307 = vcmp.eq.s32.totalorder %v1273, %v881
      %vm1308 = vcmp.eq.s32.totalorder %v1273, %v882
      %vm1309 = vcmp.eq.s32.totalorder %v1276, %v881
      %vm1310 = vcmp.eq.s32.totalorder %v1276, %v882
      %vm1311 = vcmp.eq.s32.totalorder %v1279, %v881
      %vm1312 = vcmp.eq.s32.totalorder %v1279, %v882
      %vm1313 = vcmp.eq.s32.totalorder %v1282, %v881
      %vm1314 = vcmp.eq.s32.totalorder %v1282, %v882
      %v1315 = vsel %vm1283, 1, 0
      %v1316 = vsel %vm1284, 1, 0
      %v1317 = vsel %vm1285, 1, 0
      %v1318 = vsel %vm1286, 1, 0
      %v1319 = vsel %vm1287, 1, 0
      %v1320 = vsel %vm1288, 1, 0
      %v1321 = vsel %vm1289, 1, 0
      %v1322 = vsel %vm1290, 1, 0
      %v1323 = vsel %vm1291, 1, 0
      %v1324 = vsel %vm1292, 1, 0
      %v1325 = vsel %vm1293, 1, 0
      %v1326 = vsel %vm1294, 1, 0
      %v1327 = vsel %vm1295, 1, 0
      %v1328 = vsel %vm1296, 1, 0
      %v1329 = vsel %vm1297, 1, 0
      %v1330 = vsel %vm1298, 1, 0
      %v1331 = vsel %vm1299, 1, 0
      %v1332 = vsel %vm1300, 1, 0
      %v1333 = vsel %vm1301, 1, 0
      %v1334 = vsel %vm1302, 1, 0
      %v1335 = vsel %vm1303, 1, 0
      %v1336 = vsel %vm1304, 1, 0
      %v1337 = vsel %vm1305, 1, 0
      %v1338 = vsel %vm1306, 1, 0
      %v1339 = vsel %vm1307, 1, 0
      %v1340 = vsel %vm1308, 1, 0
      %v1341 = vsel %vm1309, 1, 0
      %v1342 = vsel %vm1310, 1, 0
      %v1343 = vsel %vm1311, 1, 0
      %v1344 = vsel %vm1312, 1, 0
      %v1345 = vsel %vm1313, 1, 0
      %v1346 = vsel %vm1314, 1, 0
      %v1347 = vcvt.s32.f32 %v1315
      %v1348 = vcvt.s32.f32 %v1316
      %v1349 = vcvt.s32.f32 %v1317
      %v1350 = vcvt.s32.f32 %v1318
      %v1351 = vcvt.s32.f32 %v1319
      %v1352 = vcvt.s32.f32 %v1320
      %v1353 = vcvt.s32.f32 %v1321
      %v1354 = vcvt.s32.f32 %v1322
      %v1355 = vcvt.s32.f32 %v1323
      %v1356 = vcvt.s32.f32 %v1324
      %v1357 = vcvt.s32.f32 %v1325
      %v1358 = vcvt.s32.f32 %v1326
      %v1359 = vcvt.s32.f32 %v1327
      %v1360 = vcvt.s32.f32 %v1328
      %v1361 = vcvt.s32.f32 %v1329
      %v1362 = vcvt.s32.f32 %v1330
      %v1363 = vcvt.s32.f32 %v1331
      %v1364 = vcvt.s32.f32 %v1332
      %v1365 = vcvt.s32.f32 %v1333
      %v1366 = vcvt.s32.f32 %v1334
      %v1367 = vcvt.s32.f32 %v1335
      %v1368 = vcvt.s32.f32 %v1336
      %v1369 = vcvt.s32.f32 %v1337
      %v1370 = vcvt.s32.f32 %v1338
      %v1371 = vcvt.s32.f32 %v1339
      %v1372 = vcvt.s32.f32 %v1340
      %v1373 = vcvt.s32.f32 %v1341
      %v1374 = vcvt.s32.f32 %v1342
      %v1375 = vcvt.s32.f32 %v1343
      %v1376 = vcvt.s32.f32 %v1344
      %v1377 = vcvt.s32.f32 %v1345
      %v1378 = vcvt.s32.f32 %v1346
      %v1379 = vadd.f32 %v1203, %v1347
      %v1380 = vadd.f32 %v1204, %v1348
      %v1381 = vadd.f32 %v1205, %v1349
      %v1382 = vadd.f32 %v1206, %v1350
      %v1383 = vadd.f32 %v1207, %v1351
      %v1384 = vadd.f32 %v1208, %v1352
      %v1385 = vadd.f32 %v1209, %v1353
      %v1386 = vadd.f32 %v1210, %v1354
      %v1387 = vadd.f32 %v1211, %v1355
      %v1388 = vadd.f32 %v1212, %v1356
      %v1389 = vadd.f32 %v1213, %v1357
      %v1390 = vadd.f32 %v1214, %v1358
      %v1391 = vadd.f32 %v1215, %v1359
      %v1392 = vadd.f32 %v1216, %v1360
      %v1393 = vadd.f32 %v1217, %v1361
      %v1394 = vadd.f32 %v1218, %v1362
      %v1395 = vadd.f32 %v1219, %v1363
      %v1396 = vadd.f32 %v1220, %v1364
      %v1397 = vadd.f32 %v1221, %v1365
      %v1398 = vadd.f32 %v1222, %v1366
      %v1399 = vadd.f32 %v1223, %v1367
      %v1400 = vadd.f32 %v1224, %v1368
      %v1401 = vadd.f32 %v1225, %v1369
      %v1402 = vadd.f32 %v1226, %v1370
      %v1403 = vadd.f32 %v1227, %v1371
      %v1404 = vadd.f32 %v1228, %v1372
      %v1405 = vadd.f32 %v1229, %v1373
      %v1406 = vadd.f32 %v1230, %v1374
      %v1407 = vadd.f32 %v1231, %v1375
      %v1408 = vadd.f32 %v1232, %v1376
      %v1409 = vadd.f32 %v1233, %v1377
      %v1410 = vadd.f32 %v1234, %v1378
      %1411 = vset.pattern.permute.xlu0 3
      %1412 = vperm.xlu0 %1411, %v864
      %v1413 = vpop.permute.xlu0 %1412
      %1414 = vset.pattern.permute.xlu0 3
      %1415 = vperm.xlu0 %1414, %v865
      %v1416 = vpop.permute.xlu0 %1415
      %1417 = vset.pattern.permute.xlu0 3
      %1418 = vperm.xlu0 %1417, %v866
      %v1419 = vpop.permute.xlu0 %1418
      %1420 = vset.pattern.permute.xlu0 3
      %1421 = vperm.xlu0 %1420, %v867
      %v1422 = vpop.permute.xlu0 %1421
      %1423 = vset.pattern.permute.xlu0 3
      %1424 = vperm.xlu0 %1423, %v868
      %v1425 = vpop.permute.xlu0 %1424
      %1426 = vset.pattern.permute.xlu0 3
      %1427 = vperm.xlu0 %1426, %v869
      %v1428 = vpop.permute.xlu0 %1427
      %1429 = vset.pattern.permute.xlu0 3
      %1430 = vperm.xlu0 %1429, %v870
      %v1431 = vpop.permute.xlu0 %1430
      %1432 = vset.pattern.permute.xlu0 3
      %1433 = vperm.xlu0 %1432, %v871
      %v1434 = vpop.permute.xlu0 %1433
      %1435 = vset.pattern.permute.xlu0 3
      %1436 = vperm.xlu0 %1435, %v872
      %v1437 = vpop.permute.xlu0 %1436
      %1438 = vset.pattern.permute.xlu0 3
      %1439 = vperm.xlu0 %1438, %v873
      %v1440 = vpop.permute.xlu0 %1439
      %1441 = vset.pattern.permute.xlu0 3
      %1442 = vperm.xlu0 %1441, %v874
      %v1443 = vpop.permute.xlu0 %1442
      %1444 = vset.pattern.permute.xlu0 3
      %1445 = vperm.xlu0 %1444, %v875
      %v1446 = vpop.permute.xlu0 %1445
      %1447 = vset.pattern.permute.xlu0 3
      %1448 = vperm.xlu0 %1447, %v876
      %v1449 = vpop.permute.xlu0 %1448
      %1450 = vset.pattern.permute.xlu0 3
      %1451 = vperm.xlu0 %1450, %v877
      %v1452 = vpop.permute.xlu0 %1451
      %1453 = vset.pattern.permute.xlu0 3
      %1454 = vperm.xlu0 %1453, %v878
      %v1455 = vpop.permute.xlu0 %1454
      %1456 = vset.pattern.permute.xlu0 3
      %1457 = vperm.xlu0 %1456, %v879
      %v1458 = vpop.permute.xlu0 %1457
      %vm1459 = vcmp.eq.s32.totalorder %v1413, %v881
      %vm1460 = vcmp.eq.s32.totalorder %v1413, %v882
      %vm1461 = vcmp.eq.s32.totalorder %v1416, %v881
      %vm1462 = vcmp.eq.s32.totalorder %v1416, %v882
      %vm1463 = vcmp.eq.s32.totalorder %v1419, %v881
      %vm1464 = vcmp.eq.s32.totalorder %v1419, %v882
      %vm1465 = vcmp.eq.s32.totalorder %v1422, %v881
      %vm1466 = vcmp.eq.s32.totalorder %v1422, %v882
      %vm1467 = vcmp.eq.s32.totalorder %v1425, %v881
      %vm1468 = vcmp.eq.s32.totalorder %v1425, %v882
      %vm1469 = vcmp.eq.s32.totalorder %v1428, %v881
      %vm1470 = vcmp.eq.s32.totalorder %v1428, %v882
      %vm1471 = vcmp.eq.s32.totalorder %v1431, %v881
      %vm1472 = vcmp.eq.s32.totalorder %v1431, %v882
      %vm1473 = vcmp.eq.s32.totalorder %v1434, %v881
      %vm1474 = vcmp.eq.s32.totalorder %v1434, %v882
      %vm1475 = vcmp.eq.s32.totalorder %v1437, %v881
      %vm1476 = vcmp.eq.s32.totalorder %v1437, %v882
      %vm1477 = vcmp.eq.s32.totalorder %v1440, %v881
      %vm1478 = vcmp.eq.s32.totalorder %v1440, %v882
      %vm1479 = vcmp.eq.s32.totalorder %v1443, %v881
      %vm1480 = vcmp.eq.s32.totalorder %v1443, %v882
      %vm1481 = vcmp.eq.s32.totalorder %v1446, %v881
      %vm1482 = vcmp.eq.s32.totalorder %v1446, %v882
      %vm1483 = vcmp.eq.s32.totalorder %v1449, %v881
      %vm1484 = vcmp.eq.s32.totalorder %v1449, %v882
      %vm1485 = vcmp.eq.s32.totalorder %v1452, %v881
      %vm1486 = vcmp.eq.s32.totalorder %v1452, %v882
      %vm1487 = vcmp.eq.s32.totalorder %v1455, %v881
      %vm1488 = vcmp.eq.s32.totalorder %v1455, %v882
      %vm1489 = vcmp.eq.s32.totalorder %v1458, %v881
      %vm1490 = vcmp.eq.s32.totalorder %v1458, %v882
      %v1491 = vsel %vm1459, 1, 0
      %v1492 = vsel %vm1460, 1, 0
      %v1493 = vsel %vm1461, 1, 0
      %v1494 = vsel %vm1462, 1, 0
      %v1495 = vsel %vm1463, 1, 0
      %v1496 = vsel %vm1464, 1, 0
      %v1497 = vsel %vm1465, 1, 0
      %v1498 = vsel %vm1466, 1, 0
      %v1499 = vsel %vm1467, 1, 0
      %v1500 = vsel %vm1468, 1, 0
      %v1501 = vsel %vm1469, 1, 0
      %v1502 = vsel %vm1470, 1, 0
      %v1503 = vsel %vm1471, 1, 0
      %v1504 = vsel %vm1472, 1, 0
      %v1505 = vsel %vm1473, 1, 0
      %v1506 = vsel %vm1474, 1, 0
      %v1507 = vsel %vm1475, 1, 0
      %v1508 = vsel %vm1476, 1, 0
      %v1509 = vsel %vm1477, 1, 0
      %v1510 = vsel %vm1478, 1, 0
      %v1511 = vsel %vm1479, 1, 0
      %v1512 = vsel %vm1480, 1, 0
      %v1513 = vsel %vm1481, 1, 0
      %v1514 = vsel %vm1482, 1, 0
      %v1515 = vsel %vm1483, 1, 0
      %v1516 = vsel %vm1484, 1, 0
      %v1517 = vsel %vm1485, 1, 0
      %v1518 = vsel %vm1486, 1, 0
      %v1519 = vsel %vm1487, 1, 0
      %v1520 = vsel %vm1488, 1, 0
      %v1521 = vsel %vm1489, 1, 0
      %v1522 = vsel %vm1490, 1, 0
      %v1523 = vcvt.s32.f32 %v1491
      %v1524 = vcvt.s32.f32 %v1492
      %v1525 = vcvt.s32.f32 %v1493
      %v1526 = vcvt.s32.f32 %v1494
      %v1527 = vcvt.s32.f32 %v1495
      %v1528 = vcvt.s32.f32 %v1496
      %v1529 = vcvt.s32.f32 %v1497
      %v1530 = vcvt.s32.f32 %v1498
      %v1531 = vcvt.s32.f32 %v1499
      %v1532 = vcvt.s32.f32 %v1500
      %v1533 = vcvt.s32.f32 %v1501
      %v1534 = vcvt.s32.f32 %v1502
      %v1535 = vcvt.s32.f32 %v1503
      %v1536 = vcvt.s32.f32 %v1504
      %v1537 = vcvt.s32.f32 %v1505
      %v1538 = vcvt.s32.f32 %v1506
      %v1539 = vcvt.s32.f32 %v1507
      %v1540 = vcvt.s32.f32 %v1508
      %v1541 = vcvt.s32.f32 %v1509
      %v1542 = vcvt.s32.f32 %v1510
      %v1543 = vcvt.s32.f32 %v1511
      %v1544 = vcvt.s32.f32 %v1512
      %v1545 = vcvt.s32.f32 %v1513
      %v1546 = vcvt.s32.f32 %v1514
      %v1547 = vcvt.s32.f32 %v1515
      %v1548 = vcvt.s32.f32 %v1516
      %v1549 = vcvt.s32.f32 %v1517
      %v1550 = vcvt.s32.f32 %v1518
      %v1551 = vcvt.s32.f32 %v1519
      %v1552 = vcvt.s32.f32 %v1520
      %v1553 = vcvt.s32.f32 %v1521
      %v1554 = vcvt.s32.f32 %v1522
      %v1555 = vadd.f32 %v1379, %v1523
      %v1556 = vadd.f32 %v1380, %v1524
      %v1557 = vadd.f32 %v1381, %v1525
      %v1558 = vadd.f32 %v1382, %v1526
      %v1559 = vadd.f32 %v1383, %v1527
      %v1560 = vadd.f32 %v1384, %v1528
      %v1561 = vadd.f32 %v1385, %v1529
      %v1562 = vadd.f32 %v1386, %v1530
      %v1563 = vadd.f32 %v1387, %v1531
      %v1564 = vadd.f32 %v1388, %v1532
      %v1565 = vadd.f32 %v1389, %v1533
      %v1566 = vadd.f32 %v1390, %v1534
      %v1567 = vadd.f32 %v1391, %v1535
      %v1568 = vadd.f32 %v1392, %v1536
      %v1569 = vadd.f32 %v1393, %v1537
      %v1570 = vadd.f32 %v1394, %v1538
      %v1571 = vadd.f32 %v1395, %v1539
      %v1572 = vadd.f32 %v1396, %v1540
      %v1573 = vadd.f32 %v1397, %v1541
      %v1574 = vadd.f32 %v1398, %v1542
      %v1575 = vadd.f32 %v1399, %v1543
      %v1576 = vadd.f32 %v1400, %v1544
      %v1577 = vadd.f32 %v1401, %v1545
      %v1578 = vadd.f32 %v1402, %v1546
      %v1579 = vadd.f32 %v1403, %v1547
      %v1580 = vadd.f32 %v1404, %v1548
      %v1581 = vadd.f32 %v1405, %v1549
      %v1582 = vadd.f32 %v1406, %v1550
      %v1583 = vadd.f32 %v1407, %v1551
      %v1584 = vadd.f32 %v1408, %v1552
      %v1585 = vadd.f32 %v1409, %v1553
      %v1586 = vadd.f32 %v1410, %v1554
      %1587 = vset.pattern.permute.xlu0 4
      %1588 = vperm.xlu0 %1587, %v864
      %v1589 = vpop.permute.xlu0 %1588
      %1590 = vset.pattern.permute.xlu0 4
      %1591 = vperm.xlu0 %1590, %v865
      %v1592 = vpop.permute.xlu0 %1591
      %1593 = vset.pattern.permute.xlu0 4
      %1594 = vperm.xlu0 %1593, %v866
      %v1595 = vpop.permute.xlu0 %1594
      %1596 = vset.pattern.permute.xlu0 4
      %1597 = vperm.xlu0 %1596, %v867
      %v1598 = vpop.permute.xlu0 %1597
      %1599 = vset.pattern.permute.xlu0 4
      %1600 = vperm.xlu0 %1599, %v868
      %v1601 = vpop.permute.xlu0 %1600
      %1602 = vset.pattern.permute.xlu0 4
      %1603 = vperm.xlu0 %1602, %v869
      %v1604 = vpop.permute.xlu0 %1603
      %1605 = vset.pattern.permute.xlu0 4
      %1606 = vperm.xlu0 %1605, %v870
      %v1607 = vpop.permute.xlu0 %1606
      %1608 = vset.pattern.permute.xlu0 4
      %1609 = vperm.xlu0 %1608, %v871
      %v1610 = vpop.permute.xlu0 %1609
      %1611 = vset.pattern.permute.xlu0 4
      %1612 = vperm.xlu0 %1611, %v872
      %v1613 = vpop.permute.xlu0 %1612
      %1614 = vset.pattern.permute.xlu0 4
      %1615 = vperm.xlu0 %1614, %v873
      %v1616 = vpop.permute.xlu0 %1615
      %1617 = vset.pattern.permute.xlu0 4
      %1618 = vperm.xlu0 %1617, %v874
      %v1619 = vpop.permute.xlu0 %1618
      %1620 = vset.pattern.permute.xlu0 4
      %1621 = vperm.xlu0 %1620, %v875
      %v1622 = vpop.permute.xlu0 %1621
      %1623 = vset.pattern.permute.xlu0 4
      %1624 = vperm.xlu0 %1623, %v876
      %v1625 = vpop.permute.xlu0 %1624
      %1626 = vset.pattern.permute.xlu0 4
      %1627 = vperm.xlu0 %1626, %v877
      %v1628 = vpop.permute.xlu0 %1627
      %1629 = vset.pattern.permute.xlu0 4
      %1630 = vperm.xlu0 %1629, %v878
      %v1631 = vpop.permute.xlu0 %1630
      %1632 = vset.pattern.permute.xlu0 4
      %1633 = vperm.xlu0 %1632, %v879
      %v1634 = vpop.permute.xlu0 %1633
      %vm1635 = vcmp.eq.s32.totalorder %v1589, %v881
      %vm1636 = vcmp.eq.s32.totalorder %v1589, %v882
      %vm1637 = vcmp.eq.s32.totalorder %v1592, %v881
      %vm1638 = vcmp.eq.s32.totalorder %v1592, %v882
      %vm1639 = vcmp.eq.s32.totalorder %v1595, %v881
      %vm1640 = vcmp.eq.s32.totalorder %v1595, %v882
      %vm1641 = vcmp.eq.s32.totalorder %v1598, %v881
      %vm1642 = vcmp.eq.s32.totalorder %v1598, %v882
      %vm1643 = vcmp.eq.s32.totalorder %v1601, %v881
      %vm1644 = vcmp.eq.s32.totalorder %v1601, %v882
      %vm1645 = vcmp.eq.s32.totalorder %v1604, %v881
      %vm1646 = vcmp.eq.s32.totalorder %v1604, %v882
      %vm1647 = vcmp.eq.s32.totalorder %v1607, %v881
      %vm1648 = vcmp.eq.s32.totalorder %v1607, %v882
      %vm1649 = vcmp.eq.s32.totalorder %v1610, %v881
      %vm1650 = vcmp.eq.s32.totalorder %v1610, %v882
      %vm1651 = vcmp.eq.s32.totalorder %v1613, %v881
      %vm1652 = vcmp.eq.s32.totalorder %v1613, %v882
      %vm1653 = vcmp.eq.s32.totalorder %v1616, %v881
      %vm1654 = vcmp.eq.s32.totalorder %v1616, %v882
      %vm1655 = vcmp.eq.s32.totalorder %v1619, %v881
      %vm1656 = vcmp.eq.s32.totalorder %v1619, %v882
      %vm1657 = vcmp.eq.s32.totalorder %v1622, %v881
      %vm1658 = vcmp.eq.s32.totalorder %v1622, %v882
      %vm1659 = vcmp.eq.s32.totalorder %v1625, %v881
      %vm1660 = vcmp.eq.s32.totalorder %v1625, %v882
      %vm1661 = vcmp.eq.s32.totalorder %v1628, %v881
      %vm1662 = vcmp.eq.s32.totalorder %v1628, %v882
      %vm1663 = vcmp.eq.s32.totalorder %v1631, %v881
      %vm1664 = vcmp.eq.s32.totalorder %v1631, %v882
      %vm1665 = vcmp.eq.s32.totalorder %v1634, %v881
      %vm1666 = vcmp.eq.s32.totalorder %v1634, %v882
      %v1667 = vsel %vm1635, 1, 0
      %v1668 = vsel %vm1636, 1, 0
      %v1669 = vsel %vm1637, 1, 0
      %v1670 = vsel %vm1638, 1, 0
      %v1671 = vsel %vm1639, 1, 0
      %v1672 = vsel %vm1640, 1, 0
      %v1673 = vsel %vm1641, 1, 0
      %v1674 = vsel %vm1642, 1, 0
      %v1675 = vsel %vm1643, 1, 0
      %v1676 = vsel %vm1644, 1, 0
      %v1677 = vsel %vm1645, 1, 0
      %v1678 = vsel %vm1646, 1, 0
      %v1679 = vsel %vm1647, 1, 0
      %v1680 = vsel %vm1648, 1, 0
      %v1681 = vsel %vm1649, 1, 0
      %v1682 = vsel %vm1650, 1, 0
      %v1683 = vsel %vm1651, 1, 0
      %v1684 = vsel %vm1652, 1, 0
      %v1685 = vsel %vm1653, 1, 0
      %v1686 = vsel %vm1654, 1, 0
      %v1687 = vsel %vm1655, 1, 0
      %v1688 = vsel %vm1656, 1, 0
      %v1689 = vsel %vm1657, 1, 0
      %v1690 = vsel %vm1658, 1, 0
      %v1691 = vsel %vm1659, 1, 0
      %v1692 = vsel %vm1660, 1, 0
      %v1693 = vsel %vm1661, 1, 0
      %v1694 = vsel %vm1662, 1, 0
      %v1695 = vsel %vm1663, 1, 0
      %v1696 = vsel %vm1664, 1, 0
      %v1697 = vsel %vm1665, 1, 0
      %v1698 = vsel %vm1666, 1, 0
      %v1699 = vcvt.s32.f32 %v1667
      %v1700 = vcvt.s32.f32 %v1668
      %v1701 = vcvt.s32.f32 %v1669
      %v1702 = vcvt.s32.f32 %v1670
      %v1703 = vcvt.s32.f32 %v1671
      %v1704 = vcvt.s32.f32 %v1672
      %v1705 = vcvt.s32.f32 %v1673
      %v1706 = vcvt.s32.f32 %v1674
      %v1707 = vcvt.s32.f32 %v1675
      %v1708 = vcvt.s32.f32 %v1676
      %v1709 = vcvt.s32.f32 %v1677
      %v1710 = vcvt.s32.f32 %v1678
      %v1711 = vcvt.s32.f32 %v1679
      %v1712 = vcvt.s32.f32 %v1680
      %v1713 = vcvt.s32.f32 %v1681
      %v1714 = vcvt.s32.f32 %v1682
      %v1715 = vcvt.s32.f32 %v1683
      %v1716 = vcvt.s32.f32 %v1684
      %v1717 = vcvt.s32.f32 %v1685
      %v1718 = vcvt.s32.f32 %v1686
      %v1719 = vcvt.s32.f32 %v1687
      %v1720 = vcvt.s32.f32 %v1688
      %v1721 = vcvt.s32.f32 %v1689
      %v1722 = vcvt.s32.f32 %v1690
      %v1723 = vcvt.s32.f32 %v1691
      %v1724 = vcvt.s32.f32 %v1692
      %v1725 = vcvt.s32.f32 %v1693
      %v1726 = vcvt.s32.f32 %v1694
      %v1727 = vcvt.s32.f32 %v1695
      %v1728 = vcvt.s32.f32 %v1696
      %v1729 = vcvt.s32.f32 %v1697
      %v1730 = vcvt.s32.f32 %v1698
      %v1731 = vadd.f32 %v1555, %v1699
      %v1732 = vadd.f32 %v1556, %v1700
      %v1733 = vadd.f32 %v1557, %v1701
      %v1734 = vadd.f32 %v1558, %v1702
      %v1735 = vadd.f32 %v1559, %v1703
      %v1736 = vadd.f32 %v1560, %v1704
      %v1737 = vadd.f32 %v1561, %v1705
      %v1738 = vadd.f32 %v1562, %v1706
      %v1739 = vadd.f32 %v1563, %v1707
      %v1740 = vadd.f32 %v1564, %v1708
      %v1741 = vadd.f32 %v1565, %v1709
      %v1742 = vadd.f32 %v1566, %v1710
      %v1743 = vadd.f32 %v1567, %v1711
      %v1744 = vadd.f32 %v1568, %v1712
      %v1745 = vadd.f32 %v1569, %v1713
      %v1746 = vadd.f32 %v1570, %v1714
      %v1747 = vadd.f32 %v1571, %v1715
      %v1748 = vadd.f32 %v1572, %v1716
      %v1749 = vadd.f32 %v1573, %v1717
      %v1750 = vadd.f32 %v1574, %v1718
      %v1751 = vadd.f32 %v1575, %v1719
      %v1752 = vadd.f32 %v1576, %v1720
      %v1753 = vadd.f32 %v1577, %v1721
      %v1754 = vadd.f32 %v1578, %v1722
      %v1755 = vadd.f32 %v1579, %v1723
      %v1756 = vadd.f32 %v1580, %v1724
      %v1757 = vadd.f32 %v1581, %v1725
      %v1758 = vadd.f32 %v1582, %v1726
      %v1759 = vadd.f32 %v1583, %v1727
      %v1760 = vadd.f32 %v1584, %v1728
      %v1761 = vadd.f32 %v1585, %v1729
      %v1762 = vadd.f32 %v1586, %v1730
      %1763 = vset.pattern.permute.xlu0 5
      %1764 = vperm.xlu0 %1763, %v864
      %v1765 = vpop.permute.xlu0 %1764
      %1766 = vset.pattern.permute.xlu0 5
      %1767 = vperm.xlu0 %1766, %v865
      %v1768 = vpop.permute.xlu0 %1767
      %1769 = vset.pattern.permute.xlu0 5
      %1770 = vperm.xlu0 %1769, %v866
      %v1771 = vpop.permute.xlu0 %1770
      %1772 = vset.pattern.permute.xlu0 5
      %1773 = vperm.xlu0 %1772, %v867
      %v1774 = vpop.permute.xlu0 %1773
      %1775 = vset.pattern.permute.xlu0 5
      %1776 = vperm.xlu0 %1775, %v868
      %v1777 = vpop.permute.xlu0 %1776
      %1778 = vset.pattern.permute.xlu0 5
      %1779 = vperm.xlu0 %1778, %v869
      %v1780 = vpop.permute.xlu0 %1779
      %1781 = vset.pattern.permute.xlu0 5
      %1782 = vperm.xlu0 %1781, %v870
      %v1783 = vpop.permute.xlu0 %1782
      %1784 = vset.pattern.permute.xlu0 5
      %1785 = vperm.xlu0 %1784, %v871
      %v1786 = vpop.permute.xlu0 %1785
      %1787 = vset.pattern.permute.xlu0 5
      %1788 = vperm.xlu0 %1787, %v872
      %v1789 = vpop.permute.xlu0 %1788
      %1790 = vset.pattern.permute.xlu0 5
      %1791 = vperm.xlu0 %1790, %v873
      %v1792 = vpop.permute.xlu0 %1791
      %1793 = vset.pattern.permute.xlu0 5
      %1794 = vperm.xlu0 %1793, %v874
      %v1795 = vpop.permute.xlu0 %1794
      %1796 = vset.pattern.permute.xlu0 5
      %1797 = vperm.xlu0 %1796, %v875
      %v1798 = vpop.permute.xlu0 %1797
      %1799 = vset.pattern.permute.xlu0 5
      %1800 = vperm.xlu0 %1799, %v876
      %v1801 = vpop.permute.xlu0 %1800
      %1802 = vset.pattern.permute.xlu0 5
      %1803 = vperm.xlu0 %1802, %v877
      %v1804 = vpop.permute.xlu0 %1803
      %1805 = vset.pattern.permute.xlu0 5
      %1806 = vperm.xlu0 %1805, %v878
      %v1807 = vpop.permute.xlu0 %1806
      %1808 = vset.pattern.permute.xlu0 5
      %1809 = vperm.xlu0 %1808, %v879
      %v1810 = vpop.permute.xlu0 %1809
      %vm1811 = vcmp.eq.s32.totalorder %v1765, %v881
      %vm1812 = vcmp.eq.s32.totalorder %v1765, %v882
      %vm1813 = vcmp.eq.s32.totalorder %v1768, %v881
      %vm1814 = vcmp.eq.s32.totalorder %v1768, %v882
      %vm1815 = vcmp.eq.s32.totalorder %v1771, %v881
      %vm1816 = vcmp.eq.s32.totalorder %v1771, %v882
      %vm1817 = vcmp.eq.s32.totalorder %v1774, %v881
      %vm1818 = vcmp.eq.s32.totalorder %v1774, %v882
      %vm1819 = vcmp.eq.s32.totalorder %v1777, %v881
      %vm1820 = vcmp.eq.s32.totalorder %v1777, %v882
      %vm1821 = vcmp.eq.s32.totalorder %v1780, %v881
      %vm1822 = vcmp.eq.s32.totalorder %v1780, %v882
      %vm1823 = vcmp.eq.s32.totalorder %v1783, %v881
      %vm1824 = vcmp.eq.s32.totalorder %v1783, %v882
      %vm1825 = vcmp.eq.s32.totalorder %v1786, %v881
      %vm1826 = vcmp.eq.s32.totalorder %v1786, %v882
      %vm1827 = vcmp.eq.s32.totalorder %v1789, %v881
      %vm1828 = vcmp.eq.s32.totalorder %v1789, %v882
      %vm1829 = vcmp.eq.s32.totalorder %v1792, %v881
      %vm1830 = vcmp.eq.s32.totalorder %v1792, %v882
      %vm1831 = vcmp.eq.s32.totalorder %v1795, %v881
      %vm1832 = vcmp.eq.s32.totalorder %v1795, %v882
      %vm1833 = vcmp.eq.s32.totalorder %v1798, %v881
      %vm1834 = vcmp.eq.s32.totalorder %v1798, %v882
      %vm1835 = vcmp.eq.s32.totalorder %v1801, %v881
      %vm1836 = vcmp.eq.s32.totalorder %v1801, %v882
      %vm1837 = vcmp.eq.s32.totalorder %v1804, %v881
      %vm1838 = vcmp.eq.s32.totalorder %v1804, %v882
      %vm1839 = vcmp.eq.s32.totalorder %v1807, %v881
      %vm1840 = vcmp.eq.s32.totalorder %v1807, %v882
      %vm1841 = vcmp.eq.s32.totalorder %v1810, %v881
      %vm1842 = vcmp.eq.s32.totalorder %v1810, %v882
      %v1843 = vsel %vm1811, 1, 0
      %v1844 = vsel %vm1812, 1, 0
      %v1845 = vsel %vm1813, 1, 0
      %v1846 = vsel %vm1814, 1, 0
      %v1847 = vsel %vm1815, 1, 0
      %v1848 = vsel %vm1816, 1, 0
      %v1849 = vsel %vm1817, 1, 0
      %v1850 = vsel %vm1818, 1, 0
      %v1851 = vsel %vm1819, 1, 0
      %v1852 = vsel %vm1820, 1, 0
      %v1853 = vsel %vm1821, 1, 0
      %v1854 = vsel %vm1822, 1, 0
      %v1855 = vsel %vm1823, 1, 0
      %v1856 = vsel %vm1824, 1, 0
      %v1857 = vsel %vm1825, 1, 0
      %v1858 = vsel %vm1826, 1, 0
      %v1859 = vsel %vm1827, 1, 0
      %v1860 = vsel %vm1828, 1, 0
      %v1861 = vsel %vm1829, 1, 0
      %v1862 = vsel %vm1830, 1, 0
      %v1863 = vsel %vm1831, 1, 0
      %v1864 = vsel %vm1832, 1, 0
      %v1865 = vsel %vm1833, 1, 0
      %v1866 = vsel %vm1834, 1, 0
      %v1867 = vsel %vm1835, 1, 0
      %v1868 = vsel %vm1836, 1, 0
      %v1869 = vsel %vm1837, 1, 0
      %v1870 = vsel %vm1838, 1, 0
      %v1871 = vsel %vm1839, 1, 0
      %v1872 = vsel %vm1840, 1, 0
      %v1873 = vsel %vm1841, 1, 0
      %v1874 = vsel %vm1842, 1, 0
      %v1875 = vcvt.s32.f32 %v1843
      %v1876 = vcvt.s32.f32 %v1844
      %v1877 = vcvt.s32.f32 %v1845
      %v1878 = vcvt.s32.f32 %v1846
      %v1879 = vcvt.s32.f32 %v1847
      %v1880 = vcvt.s32.f32 %v1848
      %v1881 = vcvt.s32.f32 %v1849
      %v1882 = vcvt.s32.f32 %v1850
      %v1883 = vcvt.s32.f32 %v1851
      %v1884 = vcvt.s32.f32 %v1852
      %v1885 = vcvt.s32.f32 %v1853
      %v1886 = vcvt.s32.f32 %v1854
      %v1887 = vcvt.s32.f32 %v1855
      %v1888 = vcvt.s32.f32 %v1856
      %v1889 = vcvt.s32.f32 %v1857
      %v1890 = vcvt.s32.f32 %v1858
      %v1891 = vcvt.s32.f32 %v1859
      %v1892 = vcvt.s32.f32 %v1860
      %v1893 = vcvt.s32.f32 %v1861
      %v1894 = vcvt.s32.f32 %v1862
      %v1895 = vcvt.s32.f32 %v1863
      %v1896 = vcvt.s32.f32 %v1864
      %v1897 = vcvt.s32.f32 %v1865
      %v1898 = vcvt.s32.f32 %v1866
      %v1899 = vcvt.s32.f32 %v1867
      %v1900 = vcvt.s32.f32 %v1868
      %v1901 = vcvt.s32.f32 %v1869
      %v1902 = vcvt.s32.f32 %v1870
      %v1903 = vcvt.s32.f32 %v1871
      %v1904 = vcvt.s32.f32 %v1872
      %v1905 = vcvt.s32.f32 %v1873
      %v1906 = vcvt.s32.f32 %v1874
      %v1907 = vadd.f32 %v1731, %v1875
      %v1908 = vadd.f32 %v1732, %v1876
      %v1909 = vadd.f32 %v1733, %v1877
      %v1910 = vadd.f32 %v1734, %v1878
      %v1911 = vadd.f32 %v1735, %v1879
      %v1912 = vadd.f32 %v1736, %v1880
      %v1913 = vadd.f32 %v1737, %v1881
      %v1914 = vadd.f32 %v1738, %v1882
      %v1915 = vadd.f32 %v1739, %v1883
      %v1916 = vadd.f32 %v1740, %v1884
      %v1917 = vadd.f32 %v1741, %v1885
      %v1918 = vadd.f32 %v1742, %v1886
      %v1919 = vadd.f32 %v1743, %v1887
      %v1920 = vadd.f32 %v1744, %v1888
      %v1921 = vadd.f32 %v1745, %v1889
      %v1922 = vadd.f32 %v1746, %v1890
      %v1923 = vadd.f32 %v1747, %v1891
      %v1924 = vadd.f32 %v1748, %v1892
      %v1925 = vadd.f32 %v1749, %v1893
      %v1926 = vadd.f32 %v1750, %v1894
      %v1927 = vadd.f32 %v1751, %v1895
      %v1928 = vadd.f32 %v1752, %v1896
      %v1929 = vadd.f32 %v1753, %v1897
      %v1930 = vadd.f32 %v1754, %v1898
      %v1931 = vadd.f32 %v1755, %v1899
      %v1932 = vadd.f32 %v1756, %v1900
      %v1933 = vadd.f32 %v1757, %v1901
      %v1934 = vadd.f32 %v1758, %v1902
      %v1935 = vadd.f32 %v1759, %v1903
      %v1936 = vadd.f32 %v1760, %v1904
      %v1937 = vadd.f32 %v1761, %v1905
      %v1938 = vadd.f32 %v1762, %v1906
      %1939 = vset.pattern.permute.xlu0 6
      %1940 = vperm.xlu0 %1939, %v864
      %v1941 = vpop.permute.xlu0 %1940
      %1942 = vset.pattern.permute.xlu0 6
      %1943 = vperm.xlu0 %1942, %v865
      %v1944 = vpop.permute.xlu0 %1943
      %1945 = vset.pattern.permute.xlu0 6
      %1946 = vperm.xlu0 %1945, %v866
      %v1947 = vpop.permute.xlu0 %1946
      %1948 = vset.pattern.permute.xlu0 6
      %1949 = vperm.xlu0 %1948, %v867
      %v1950 = vpop.permute.xlu0 %1949
      %1951 = vset.pattern.permute.xlu0 6
      %1952 = vperm.xlu0 %1951, %v868
      %v1953 = vpop.permute.xlu0 %1952
      %1954 = vset.pattern.permute.xlu0 6
      %1955 = vperm.xlu0 %1954, %v869
      %v1956 = vpop.permute.xlu0 %1955
      %1957 = vset.pattern.permute.xlu0 6
      %1958 = vperm.xlu0 %1957, %v870
      %v1959 = vpop.permute.xlu0 %1958
      %1960 = vset.pattern.permute.xlu0 6
      %1961 = vperm.xlu0 %1960, %v871
      %v1962 = vpop.permute.xlu0 %1961
      %1963 = vset.pattern.permute.xlu0 6
      %1964 = vperm.xlu0 %1963, %v872
      %v1965 = vpop.permute.xlu0 %1964
      %1966 = vset.pattern.permute.xlu0 6
      %1967 = vperm.xlu0 %1966, %v873
      %v1968 = vpop.permute.xlu0 %1967
      %1969 = vset.pattern.permute.xlu0 6
      %1970 = vperm.xlu0 %1969, %v874
      %v1971 = vpop.permute.xlu0 %1970
      %1972 = vset.pattern.permute.xlu0 6
      %1973 = vperm.xlu0 %1972, %v875
      %v1974 = vpop.permute.xlu0 %1973
      %1975 = vset.pattern.permute.xlu0 6
      %1976 = vperm.xlu0 %1975, %v876
      %v1977 = vpop.permute.xlu0 %1976
      %1978 = vset.pattern.permute.xlu0 6
      %1979 = vperm.xlu0 %1978, %v877
      %v1980 = vpop.permute.xlu0 %1979
      %1981 = vset.pattern.permute.xlu0 6
      %1982 = vperm.xlu0 %1981, %v878
      %v1983 = vpop.permute.xlu0 %1982
      %1984 = vset.pattern.permute.xlu0 6
      %1985 = vperm.xlu0 %1984, %v879
      %v1986 = vpop.permute.xlu0 %1985
      %vm1987 = vcmp.eq.s32.totalorder %v1941, %v881
      %vm1988 = vcmp.eq.s32.totalorder %v1941, %v882
      %vm1989 = vcmp.eq.s32.totalorder %v1944, %v881
      %vm1990 = vcmp.eq.s32.totalorder %v1944, %v882
      %vm1991 = vcmp.eq.s32.totalorder %v1947, %v881
      %vm1992 = vcmp.eq.s32.totalorder %v1947, %v882
      %vm1993 = vcmp.eq.s32.totalorder %v1950, %v881
      %vm1994 = vcmp.eq.s32.totalorder %v1950, %v882
      %vm1995 = vcmp.eq.s32.totalorder %v1953, %v881
      %vm1996 = vcmp.eq.s32.totalorder %v1953, %v882
      %vm1997 = vcmp.eq.s32.totalorder %v1956, %v881
      %vm1998 = vcmp.eq.s32.totalorder %v1956, %v882
      %vm1999 = vcmp.eq.s32.totalorder %v1959, %v881
      %vm2000 = vcmp.eq.s32.totalorder %v1959, %v882
      %vm2001 = vcmp.eq.s32.totalorder %v1962, %v881
      %vm2002 = vcmp.eq.s32.totalorder %v1962, %v882
      %vm2003 = vcmp.eq.s32.totalorder %v1965, %v881
      %vm2004 = vcmp.eq.s32.totalorder %v1965, %v882
      %vm2005 = vcmp.eq.s32.totalorder %v1968, %v881
      %vm2006 = vcmp.eq.s32.totalorder %v1968, %v882
      %vm2007 = vcmp.eq.s32.totalorder %v1971, %v881
      %vm2008 = vcmp.eq.s32.totalorder %v1971, %v882
      %vm2009 = vcmp.eq.s32.totalorder %v1974, %v881
      %vm2010 = vcmp.eq.s32.totalorder %v1974, %v882
      %vm2011 = vcmp.eq.s32.totalorder %v1977, %v881
      %vm2012 = vcmp.eq.s32.totalorder %v1977, %v882
      %vm2013 = vcmp.eq.s32.totalorder %v1980, %v881
      %vm2014 = vcmp.eq.s32.totalorder %v1980, %v882
      %vm2015 = vcmp.eq.s32.totalorder %v1983, %v881
      %vm2016 = vcmp.eq.s32.totalorder %v1983, %v882
      %vm2017 = vcmp.eq.s32.totalorder %v1986, %v881
      %vm2018 = vcmp.eq.s32.totalorder %v1986, %v882
      %v2019 = vsel %vm1987, 1, 0
      %v2020 = vsel %vm1988, 1, 0
      %v2021 = vsel %vm1989, 1, 0
      %v2022 = vsel %vm1990, 1, 0
      %v2023 = vsel %vm1991, 1, 0
      %v2024 = vsel %vm1992, 1, 0
      %v2025 = vsel %vm1993, 1, 0
      %v2026 = vsel %vm1994, 1, 0
      %v2027 = vsel %vm1995, 1, 0
      %v2028 = vsel %vm1996, 1, 0
      %v2029 = vsel %vm1997, 1, 0
      %v2030 = vsel %vm1998, 1, 0
      %v2031 = vsel %vm1999, 1, 0
      %v2032 = vsel %vm2000, 1, 0
      %v2033 = vsel %vm2001, 1, 0
      %v2034 = vsel %vm2002, 1, 0
      %v2035 = vsel %vm2003, 1, 0
      %v2036 = vsel %vm2004, 1, 0
      %v2037 = vsel %vm2005, 1, 0
      %v2038 = vsel %vm2006, 1, 0
      %v2039 = vsel %vm2007, 1, 0
      %v2040 = vsel %vm2008, 1, 0
      %v2041 = vsel %vm2009, 1, 0
      %v2042 = vsel %vm2010, 1, 0
      %v2043 = vsel %vm2011, 1, 0
      %v2044 = vsel %vm2012, 1, 0
      %v2045 = vsel %vm2013, 1, 0
      %v2046 = vsel %vm2014, 1, 0
      %v2047 = vsel %vm2015, 1, 0
      %v2048 = vsel %vm2016, 1, 0
      %v2049 = vsel %vm2017, 1, 0
      %v2050 = vsel %vm2018, 1, 0
      %v2051 = vcvt.s32.f32 %v2019
      %v2052 = vcvt.s32.f32 %v2020
      %v2053 = vcvt.s32.f32 %v2021
      %v2054 = vcvt.s32.f32 %v2022
      %v2055 = vcvt.s32.f32 %v2023
      %v2056 = vcvt.s32.f32 %v2024
      %v2057 = vcvt.s32.f32 %v2025
      %v2058 = vcvt.s32.f32 %v2026
      %v2059 = vcvt.s32.f32 %v2027
      %v2060 = vcvt.s32.f32 %v2028
      %v2061 = vcvt.s32.f32 %v2029
      %v2062 = vcvt.s32.f32 %v2030
      %v2063 = vcvt.s32.f32 %v2031
      %v2064 = vcvt.s32.f32 %v2032
      %v2065 = vcvt.s32.f32 %v2033
      %v2066 = vcvt.s32.f32 %v2034
      %v2067 = vcvt.s32.f32 %v2035
      %v2068 = vcvt.s32.f32 %v2036
      %v2069 = vcvt.s32.f32 %v2037
      %v2070 = vcvt.s32.f32 %v2038
      %v2071 = vcvt.s32.f32 %v2039
      %v2072 = vcvt.s32.f32 %v2040
      %v2073 = vcvt.s32.f32 %v2041
      %v2074 = vcvt.s32.f32 %v2042
      %v2075 = vcvt.s32.f32 %v2043
      %v2076 = vcvt.s32.f32 %v2044
      %v2077 = vcvt.s32.f32 %v2045
      %v2078 = vcvt.s32.f32 %v2046
      %v2079 = vcvt.s32.f32 %v2047
      %v2080 = vcvt.s32.f32 %v2048
      %v2081 = vcvt.s32.f32 %v2049
      %v2082 = vcvt.s32.f32 %v2050
      %v2083 = vadd.f32 %v1907, %v2051
      %v2084 = vadd.f32 %v1908, %v2052
      %v2085 = vadd.f32 %v1909, %v2053
      %v2086 = vadd.f32 %v1910, %v2054
      %v2087 = vadd.f32 %v1911, %v2055
      %v2088 = vadd.f32 %v1912, %v2056
      %v2089 = vadd.f32 %v1913, %v2057
      %v2090 = vadd.f32 %v1914, %v2058
      %v2091 = vadd.f32 %v1915, %v2059
      %v2092 = vadd.f32 %v1916, %v2060
      %v2093 = vadd.f32 %v1917, %v2061
      %v2094 = vadd.f32 %v1918, %v2062
      %v2095 = vadd.f32 %v1919, %v2063
      %v2096 = vadd.f32 %v1920, %v2064
      %v2097 = vadd.f32 %v1921, %v2065
      %v2098 = vadd.f32 %v1922, %v2066
      %v2099 = vadd.f32 %v1923, %v2067
      %v2100 = vadd.f32 %v1924, %v2068
      %v2101 = vadd.f32 %v1925, %v2069
      %v2102 = vadd.f32 %v1926, %v2070
      %v2103 = vadd.f32 %v1927, %v2071
      %v2104 = vadd.f32 %v1928, %v2072
      %v2105 = vadd.f32 %v1929, %v2073
      %v2106 = vadd.f32 %v1930, %v2074
      %v2107 = vadd.f32 %v1931, %v2075
      %v2108 = vadd.f32 %v1932, %v2076
      %v2109 = vadd.f32 %v1933, %v2077
      %v2110 = vadd.f32 %v1934, %v2078
      %v2111 = vadd.f32 %v1935, %v2079
      %v2112 = vadd.f32 %v1936, %v2080
      %v2113 = vadd.f32 %v1937, %v2081
      %v2114 = vadd.f32 %v1938, %v2082
      %2115 = vset.pattern.permute.xlu0 7
      %2116 = vperm.xlu0 %2115, %v864
      %v2117 = vpop.permute.xlu0 %2116
      %2118 = vset.pattern.permute.xlu0 7
      %2119 = vperm.xlu0 %2118, %v865
      %v2120 = vpop.permute.xlu0 %2119
      %2121 = vset.pattern.permute.xlu0 7
      %2122 = vperm.xlu0 %2121, %v866
      %v2123 = vpop.permute.xlu0 %2122
      %2124 = vset.pattern.permute.xlu0 7
      %2125 = vperm.xlu0 %2124, %v867
      %v2126 = vpop.permute.xlu0 %2125
      %2127 = vset.pattern.permute.xlu0 7
      %2128 = vperm.xlu0 %2127, %v868
      %v2129 = vpop.permute.xlu0 %2128
      %2130 = vset.pattern.permute.xlu0 7
      %2131 = vperm.xlu0 %2130, %v869
      %v2132 = vpop.permute.xlu0 %2131
      %2133 = vset.pattern.permute.xlu0 7
      %2134 = vperm.xlu0 %2133, %v870
      %v2135 = vpop.permute.xlu0 %2134
      %2136 = vset.pattern.permute.xlu0 7
      %2137 = vperm.xlu0 %2136, %v871
      %v2138 = vpop.permute.xlu0 %2137
      %2139 = vset.pattern.permute.xlu0 7
      %2140 = vperm.xlu0 %2139, %v872
      %v2141 = vpop.permute.xlu0 %2140
      %2142 = vset.pattern.permute.xlu0 7
      %2143 = vperm.xlu0 %2142, %v873
      %v2144 = vpop.permute.xlu0 %2143
      %2145 = vset.pattern.permute.xlu0 7
      %2146 = vperm.xlu0 %2145, %v874
      %v2147 = vpop.permute.xlu0 %2146
      %2148 = vset.pattern.permute.xlu0 7
      %2149 = vperm.xlu0 %2148, %v875
      %v2150 = vpop.permute.xlu0 %2149
      %2151 = vset.pattern.permute.xlu0 7
      %2152 = vperm.xlu0 %2151, %v876
      %v2153 = vpop.permute.xlu0 %2152
      %2154 = vset.pattern.permute.xlu0 7
      %2155 = vperm.xlu0 %2154, %v877
      %v2156 = vpop.permute.xlu0 %2155
      %2157 = vset.pattern.permute.xlu0 7
      %2158 = vperm.xlu0 %2157, %v878
      %v2159 = vpop.permute.xlu0 %2158
      %2160 = vset.pattern.permute.xlu0 7
      %2161 = vperm.xlu0 %2160, %v879
      %v2162 = vpop.permute.xlu0 %2161
      %vm2163 = vcmp.eq.s32.totalorder %v2117, %v881
      %vm2164 = vcmp.eq.s32.totalorder %v2117, %v882
      %vm2165 = vcmp.eq.s32.totalorder %v2120, %v881
      %vm2166 = vcmp.eq.s32.totalorder %v2120, %v882
      %vm2167 = vcmp.eq.s32.totalorder %v2123, %v881
      %vm2168 = vcmp.eq.s32.totalorder %v2123, %v882
      %vm2169 = vcmp.eq.s32.totalorder %v2126, %v881
      %vm2170 = vcmp.eq.s32.totalorder %v2126, %v882
      %vm2171 = vcmp.eq.s32.totalorder %v2129, %v881
      %vm2172 = vcmp.eq.s32.totalorder %v2129, %v882
      %vm2173 = vcmp.eq.s32.totalorder %v2132, %v881
      %vm2174 = vcmp.eq.s32.totalorder %v2132, %v882
      %vm2175 = vcmp.eq.s32.totalorder %v2135, %v881
      %vm2176 = vcmp.eq.s32.totalorder %v2135, %v882
      %vm2177 = vcmp.eq.s32.totalorder %v2138, %v881
      %vm2178 = vcmp.eq.s32.totalorder %v2138, %v882
      %vm2179 = vcmp.eq.s32.totalorder %v2141, %v881
      %vm2180 = vcmp.eq.s32.totalorder %v2141, %v882
      %vm2181 = vcmp.eq.s32.totalorder %v2144, %v881
      %vm2182 = vcmp.eq.s32.totalorder %v2144, %v882
      %vm2183 = vcmp.eq.s32.totalorder %v2147, %v881
      %vm2184 = vcmp.eq.s32.totalorder %v2147, %v882
      %vm2185 = vcmp.eq.s32.totalorder %v2150, %v881
      %vm2186 = vcmp.eq.s32.totalorder %v2150, %v882
      %vm2187 = vcmp.eq.s32.totalorder %v2153, %v881
      %vm2188 = vcmp.eq.s32.totalorder %v2153, %v882
      %vm2189 = vcmp.eq.s32.totalorder %v2156, %v881
      %vm2190 = vcmp.eq.s32.totalorder %v2156, %v882
      %vm2191 = vcmp.eq.s32.totalorder %v2159, %v881
      %vm2192 = vcmp.eq.s32.totalorder %v2159, %v882
      %vm2193 = vcmp.eq.s32.totalorder %v2162, %v881
      %vm2194 = vcmp.eq.s32.totalorder %v2162, %v882
      %v2195 = vsel %vm2163, 1, 0
      %v2196 = vsel %vm2164, 1, 0
      %v2197 = vsel %vm2165, 1, 0
      %v2198 = vsel %vm2166, 1, 0
      %v2199 = vsel %vm2167, 1, 0
      %v2200 = vsel %vm2168, 1, 0
      %v2201 = vsel %vm2169, 1, 0
      %v2202 = vsel %vm2170, 1, 0
      %v2203 = vsel %vm2171, 1, 0
      %v2204 = vsel %vm2172, 1, 0
      %v2205 = vsel %vm2173, 1, 0
      %v2206 = vsel %vm2174, 1, 0
      %v2207 = vsel %vm2175, 1, 0
      %v2208 = vsel %vm2176, 1, 0
      %v2209 = vsel %vm2177, 1, 0
      %v2210 = vsel %vm2178, 1, 0
      %v2211 = vsel %vm2179, 1, 0
      %v2212 = vsel %vm2180, 1, 0
      %v2213 = vsel %vm2181, 1, 0
      %v2214 = vsel %vm2182, 1, 0
      %v2215 = vsel %vm2183, 1, 0
      %v2216 = vsel %vm2184, 1, 0
      %v2217 = vsel %vm2185, 1, 0
      %v2218 = vsel %vm2186, 1, 0
      %v2219 = vsel %vm2187, 1, 0
      %v2220 = vsel %vm2188, 1, 0
      %v2221 = vsel %vm2189, 1, 0
      %v2222 = vsel %vm2190, 1, 0
      %v2223 = vsel %vm2191, 1, 0
      %v2224 = vsel %vm2192, 1, 0
      %v2225 = vsel %vm2193, 1, 0
      %v2226 = vsel %vm2194, 1, 0
      %v2227 = vcvt.s32.f32 %v2195
      %v2228 = vcvt.s32.f32 %v2196
      %v2229 = vcvt.s32.f32 %v2197
      %v2230 = vcvt.s32.f32 %v2198
      %v2231 = vcvt.s32.f32 %v2199
      %v2232 = vcvt.s32.f32 %v2200
      %v2233 = vcvt.s32.f32 %v2201
      %v2234 = vcvt.s32.f32 %v2202
      %v2235 = vcvt.s32.f32 %v2203
      %v2236 = vcvt.s32.f32 %v2204
      %v2237 = vcvt.s32.f32 %v2205
      %v2238 = vcvt.s32.f32 %v2206
      %v2239 = vcvt.s32.f32 %v2207
      %v2240 = vcvt.s32.f32 %v2208
      %v2241 = vcvt.s32.f32 %v2209
      %v2242 = vcvt.s32.f32 %v2210
      %v2243 = vcvt.s32.f32 %v2211
      %v2244 = vcvt.s32.f32 %v2212
      %v2245 = vcvt.s32.f32 %v2213
      %v2246 = vcvt.s32.f32 %v2214
      %v2247 = vcvt.s32.f32 %v2215
      %v2248 = vcvt.s32.f32 %v2216
      %v2249 = vcvt.s32.f32 %v2217
      %v2250 = vcvt.s32.f32 %v2218
      %v2251 = vcvt.s32.f32 %v2219
      %v2252 = vcvt.s32.f32 %v2220
      %v2253 = vcvt.s32.f32 %v2221
      %v2254 = vcvt.s32.f32 %v2222
      %v2255 = vcvt.s32.f32 %v2223
      %v2256 = vcvt.s32.f32 %v2224
      %v2257 = vcvt.s32.f32 %v2225
      %v2258 = vcvt.s32.f32 %v2226
      %v2259 = vadd.f32 %v2083, %v2227
      %v2260 = vadd.f32 %v2084, %v2228
      %v2261 = vadd.f32 %v2085, %v2229
      %v2262 = vadd.f32 %v2086, %v2230
      %v2263 = vadd.f32 %v2087, %v2231
      %v2264 = vadd.f32 %v2088, %v2232
      %v2265 = vadd.f32 %v2089, %v2233
      %v2266 = vadd.f32 %v2090, %v2234
      %v2267 = vadd.f32 %v2091, %v2235
      %v2268 = vadd.f32 %v2092, %v2236
      %v2269 = vadd.f32 %v2093, %v2237
      %v2270 = vadd.f32 %v2094, %v2238
      %v2271 = vadd.f32 %v2095, %v2239
      %v2272 = vadd.f32 %v2096, %v2240
      %v2273 = vadd.f32 %v2097, %v2241
      %v2274 = vadd.f32 %v2098, %v2242
      %v2275 = vadd.f32 %v2099, %v2243
      %v2276 = vadd.f32 %v2100, %v2244
      %v2277 = vadd.f32 %v2101, %v2245
      %v2278 = vadd.f32 %v2102, %v2246
      %v2279 = vadd.f32 %v2103, %v2247
      %v2280 = vadd.f32 %v2104, %v2248
      %v2281 = vadd.f32 %v2105, %v2249
      %v2282 = vadd.f32 %v2106, %v2250
      %v2283 = vadd.f32 %v2107, %v2251
      %v2284 = vadd.f32 %v2108, %v2252
      %v2285 = vadd.f32 %v2109, %v2253
      %v2286 = vadd.f32 %v2110, %v2254
      %v2287 = vadd.f32 %v2111, %v2255
      %v2288 = vadd.f32 %v2112, %v2256
      %v2289 = vadd.f32 %v2113, %v2257
      %v2290 = vadd.f32 %v2114, %v2258
      %2291 = vset.pattern.permute.xlu0 8
      %2292 = vperm.xlu0 %2291, %v864
      %v2293 = vpop.permute.xlu0 %2292
      %2294 = vset.pattern.permute.xlu0 8
      %2295 = vperm.xlu0 %2294, %v865
      %v2296 = vpop.permute.xlu0 %2295
      %2297 = vset.pattern.permute.xlu0 8
      %2298 = vperm.xlu0 %2297, %v866
      %v2299 = vpop.permute.xlu0 %2298
      %2300 = vset.pattern.permute.xlu0 8
      %2301 = vperm.xlu0 %2300, %v867
      %v2302 = vpop.permute.xlu0 %2301
      %2303 = vset.pattern.permute.xlu0 8
      %2304 = vperm.xlu0 %2303, %v868
      %v2305 = vpop.permute.xlu0 %2304
      %2306 = vset.pattern.permute.xlu0 8
      %2307 = vperm.xlu0 %2306, %v869
      %v2308 = vpop.permute.xlu0 %2307
      %2309 = vset.pattern.permute.xlu0 8
      %2310 = vperm.xlu0 %2309, %v870
      %v2311 = vpop.permute.xlu0 %2310
      %2312 = vset.pattern.permute.xlu0 8
      %2313 = vperm.xlu0 %2312, %v871
      %v2314 = vpop.permute.xlu0 %2313
      %2315 = vset.pattern.permute.xlu0 8
      %2316 = vperm.xlu0 %2315, %v872
      %v2317 = vpop.permute.xlu0 %2316
      %2318 = vset.pattern.permute.xlu0 8
      %2319 = vperm.xlu0 %2318, %v873
      %v2320 = vpop.permute.xlu0 %2319
      %2321 = vset.pattern.permute.xlu0 8
      %2322 = vperm.xlu0 %2321, %v874
      %v2323 = vpop.permute.xlu0 %2322
      %2324 = vset.pattern.permute.xlu0 8
      %2325 = vperm.xlu0 %2324, %v875
      %v2326 = vpop.permute.xlu0 %2325
      %2327 = vset.pattern.permute.xlu0 8
      %2328 = vperm.xlu0 %2327, %v876
      %v2329 = vpop.permute.xlu0 %2328
      %2330 = vset.pattern.permute.xlu0 8
      %2331 = vperm.xlu0 %2330, %v877
      %v2332 = vpop.permute.xlu0 %2331
      %2333 = vset.pattern.permute.xlu0 8
      %2334 = vperm.xlu0 %2333, %v878
      %v2335 = vpop.permute.xlu0 %2334
      %2336 = vset.pattern.permute.xlu0 8
      %2337 = vperm.xlu0 %2336, %v879
      %v2338 = vpop.permute.xlu0 %2337
      %vm2339 = vcmp.eq.s32.totalorder %v2293, %v881
      %vm2340 = vcmp.eq.s32.totalorder %v2293, %v882
      %vm2341 = vcmp.eq.s32.totalorder %v2296, %v881
      %vm2342 = vcmp.eq.s32.totalorder %v2296, %v882
      %vm2343 = vcmp.eq.s32.totalorder %v2299, %v881
      %vm2344 = vcmp.eq.s32.totalorder %v2299, %v882
      %vm2345 = vcmp.eq.s32.totalorder %v2302, %v881
      %vm2346 = vcmp.eq.s32.totalorder %v2302, %v882
      %vm2347 = vcmp.eq.s32.totalorder %v2305, %v881
      %vm2348 = vcmp.eq.s32.totalorder %v2305, %v882
      %vm2349 = vcmp.eq.s32.totalorder %v2308, %v881
      %vm2350 = vcmp.eq.s32.totalorder %v2308, %v882
      %vm2351 = vcmp.eq.s32.totalorder %v2311, %v881
      %vm2352 = vcmp.eq.s32.totalorder %v2311, %v882
      %vm2353 = vcmp.eq.s32.totalorder %v2314, %v881
      %vm2354 = vcmp.eq.s32.totalorder %v2314, %v882
      %vm2355 = vcmp.eq.s32.totalorder %v2317, %v881
      %vm2356 = vcmp.eq.s32.totalorder %v2317, %v882
      %vm2357 = vcmp.eq.s32.totalorder %v2320, %v881
      %vm2358 = vcmp.eq.s32.totalorder %v2320, %v882
      %vm2359 = vcmp.eq.s32.totalorder %v2323, %v881
      %vm2360 = vcmp.eq.s32.totalorder %v2323, %v882
      %vm2361 = vcmp.eq.s32.totalorder %v2326, %v881
      %vm2362 = vcmp.eq.s32.totalorder %v2326, %v882
      %vm2363 = vcmp.eq.s32.totalorder %v2329, %v881
      %vm2364 = vcmp.eq.s32.totalorder %v2329, %v882
      %vm2365 = vcmp.eq.s32.totalorder %v2332, %v881
      %vm2366 = vcmp.eq.s32.totalorder %v2332, %v882
      %vm2367 = vcmp.eq.s32.totalorder %v2335, %v881
      %vm2368 = vcmp.eq.s32.totalorder %v2335, %v882
      %vm2369 = vcmp.eq.s32.totalorder %v2338, %v881
      %vm2370 = vcmp.eq.s32.totalorder %v2338, %v882
      %v2371 = vsel %vm2339, 1, 0
      %v2372 = vsel %vm2340, 1, 0
      %v2373 = vsel %vm2341, 1, 0
      %v2374 = vsel %vm2342, 1, 0
      %v2375 = vsel %vm2343, 1, 0
      %v2376 = vsel %vm2344, 1, 0
      %v2377 = vsel %vm2345, 1, 0
      %v2378 = vsel %vm2346, 1, 0
      %v2379 = vsel %vm2347, 1, 0
      %v2380 = vsel %vm2348, 1, 0
      %v2381 = vsel %vm2349, 1, 0
      %v2382 = vsel %vm2350, 1, 0
      %v2383 = vsel %vm2351, 1, 0
      %v2384 = vsel %vm2352, 1, 0
      %v2385 = vsel %vm2353, 1, 0
      %v2386 = vsel %vm2354, 1, 0
      %v2387 = vsel %vm2355, 1, 0
      %v2388 = vsel %vm2356, 1, 0
      %v2389 = vsel %vm2357, 1, 0
      %v2390 = vsel %vm2358, 1, 0
      %v2391 = vsel %vm2359, 1, 0
      %v2392 = vsel %vm2360, 1, 0
      %v2393 = vsel %vm2361, 1, 0
      %v2394 = vsel %vm2362, 1, 0
      %v2395 = vsel %vm2363, 1, 0
      %v2396 = vsel %vm2364, 1, 0
      %v2397 = vsel %vm2365, 1, 0
      %v2398 = vsel %vm2366, 1, 0
      %v2399 = vsel %vm2367, 1, 0
      %v2400 = vsel %vm2368, 1, 0
      %v2401 = vsel %vm2369, 1, 0
      %v2402 = vsel %vm2370, 1, 0
      %v2403 = vcvt.s32.f32 %v2371
      %v2404 = vcvt.s32.f32 %v2372
      %v2405 = vcvt.s32.f32 %v2373
      %v2406 = vcvt.s32.f32 %v2374
      %v2407 = vcvt.s32.f32 %v2375
      %v2408 = vcvt.s32.f32 %v2376
      %v2409 = vcvt.s32.f32 %v2377
      %v2410 = vcvt.s32.f32 %v2378
      %v2411 = vcvt.s32.f32 %v2379
      %v2412 = vcvt.s32.f32 %v2380
      %v2413 = vcvt.s32.f32 %v2381
      %v2414 = vcvt.s32.f32 %v2382
      %v2415 = vcvt.s32.f32 %v2383
      %v2416 = vcvt.s32.f32 %v2384
      %v2417 = vcvt.s32.f32 %v2385
      %v2418 = vcvt.s32.f32 %v2386
      %v2419 = vcvt.s32.f32 %v2387
      %v2420 = vcvt.s32.f32 %v2388
      %v2421 = vcvt.s32.f32 %v2389
      %v2422 = vcvt.s32.f32 %v2390
      %v2423 = vcvt.s32.f32 %v2391
      %v2424 = vcvt.s32.f32 %v2392
      %v2425 = vcvt.s32.f32 %v2393
      %v2426 = vcvt.s32.f32 %v2394
      %v2427 = vcvt.s32.f32 %v2395
      %v2428 = vcvt.s32.f32 %v2396
      %v2429 = vcvt.s32.f32 %v2397
      %v2430 = vcvt.s32.f32 %v2398
      %v2431 = vcvt.s32.f32 %v2399
      %v2432 = vcvt.s32.f32 %v2400
      %v2433 = vcvt.s32.f32 %v2401
      %v2434 = vcvt.s32.f32 %v2402
      %v2435 = vadd.f32 %v2259, %v2403
      %v2436 = vadd.f32 %v2260, %v2404
      %v2437 = vadd.f32 %v2261, %v2405
      %v2438 = vadd.f32 %v2262, %v2406
      %v2439 = vadd.f32 %v2263, %v2407
      %v2440 = vadd.f32 %v2264, %v2408
      %v2441 = vadd.f32 %v2265, %v2409
      %v2442 = vadd.f32 %v2266, %v2410
      %v2443 = vadd.f32 %v2267, %v2411
      %v2444 = vadd.f32 %v2268, %v2412
      %v2445 = vadd.f32 %v2269, %v2413
      %v2446 = vadd.f32 %v2270, %v2414
      %v2447 = vadd.f32 %v2271, %v2415
      %v2448 = vadd.f32 %v2272, %v2416
      %v2449 = vadd.f32 %v2273, %v2417
      %v2450 = vadd.f32 %v2274, %v2418
      %v2451 = vadd.f32 %v2275, %v2419
      %v2452 = vadd.f32 %v2276, %v2420
      %v2453 = vadd.f32 %v2277, %v2421
      %v2454 = vadd.f32 %v2278, %v2422
      %v2455 = vadd.f32 %v2279, %v2423
      %v2456 = vadd.f32 %v2280, %v2424
      %v2457 = vadd.f32 %v2281, %v2425
      %v2458 = vadd.f32 %v2282, %v2426
      %v2459 = vadd.f32 %v2283, %v2427
      %v2460 = vadd.f32 %v2284, %v2428
      %v2461 = vadd.f32 %v2285, %v2429
      %v2462 = vadd.f32 %v2286, %v2430
      %v2463 = vadd.f32 %v2287, %v2431
      %v2464 = vadd.f32 %v2288, %v2432
      %v2465 = vadd.f32 %v2289, %v2433
      %v2466 = vadd.f32 %v2290, %v2434
      %2467 = vset.pattern.permute.xlu0 9
      %2468 = vperm.xlu0 %2467, %v864
      %v2469 = vpop.permute.xlu0 %2468
      %2470 = vset.pattern.permute.xlu0 9
      %2471 = vperm.xlu0 %2470, %v865
      %v2472 = vpop.permute.xlu0 %2471
      %2473 = vset.pattern.permute.xlu0 9
      %2474 = vperm.xlu0 %2473, %v866
      %v2475 = vpop.permute.xlu0 %2474
      %2476 = vset.pattern.permute.xlu0 9
      %2477 = vperm.xlu0 %2476, %v867
      %v2478 = vpop.permute.xlu0 %2477
      %2479 = vset.pattern.permute.xlu0 9
      %2480 = vperm.xlu0 %2479, %v868
      %v2481 = vpop.permute.xlu0 %2480
      %2482 = vset.pattern.permute.xlu0 9
      %2483 = vperm.xlu0 %2482, %v869
      %v2484 = vpop.permute.xlu0 %2483
      %2485 = vset.pattern.permute.xlu0 9
      %2486 = vperm.xlu0 %2485, %v870
      %v2487 = vpop.permute.xlu0 %2486
      %2488 = vset.pattern.permute.xlu0 9
      %2489 = vperm.xlu0 %2488, %v871
      %v2490 = vpop.permute.xlu0 %2489
      %2491 = vset.pattern.permute.xlu0 9
      %2492 = vperm.xlu0 %2491, %v872
      %v2493 = vpop.permute.xlu0 %2492
      %2494 = vset.pattern.permute.xlu0 9
      %2495 = vperm.xlu0 %2494, %v873
      %v2496 = vpop.permute.xlu0 %2495
      %2497 = vset.pattern.permute.xlu0 9
      %2498 = vperm.xlu0 %2497, %v874
      %v2499 = vpop.permute.xlu0 %2498
      %2500 = vset.pattern.permute.xlu0 9
      %2501 = vperm.xlu0 %2500, %v875
      %v2502 = vpop.permute.xlu0 %2501
      %2503 = vset.pattern.permute.xlu0 9
      %2504 = vperm.xlu0 %2503, %v876
      %v2505 = vpop.permute.xlu0 %2504
      %2506 = vset.pattern.permute.xlu0 9
      %2507 = vperm.xlu0 %2506, %v877
      %v2508 = vpop.permute.xlu0 %2507
      %2509 = vset.pattern.permute.xlu0 9
      %2510 = vperm.xlu0 %2509, %v878
      %v2511 = vpop.permute.xlu0 %2510
      %2512 = vset.pattern.permute.xlu0 9
      %2513 = vperm.xlu0 %2512, %v879
      %v2514 = vpop.permute.xlu0 %2513
      %vm2515 = vcmp.eq.s32.totalorder %v2469, %v881
      %vm2516 = vcmp.eq.s32.totalorder %v2469, %v882
      %vm2517 = vcmp.eq.s32.totalorder %v2472, %v881
      %vm2518 = vcmp.eq.s32.totalorder %v2472, %v882
      %vm2519 = vcmp.eq.s32.totalorder %v2475, %v881
      %vm2520 = vcmp.eq.s32.totalorder %v2475, %v882
      %vm2521 = vcmp.eq.s32.totalorder %v2478, %v881
      %vm2522 = vcmp.eq.s32.totalorder %v2478, %v882
      %vm2523 = vcmp.eq.s32.totalorder %v2481, %v881
      %vm2524 = vcmp.eq.s32.totalorder %v2481, %v882
      %vm2525 = vcmp.eq.s32.totalorder %v2484, %v881
      %vm2526 = vcmp.eq.s32.totalorder %v2484, %v882
      %vm2527 = vcmp.eq.s32.totalorder %v2487, %v881
      %vm2528 = vcmp.eq.s32.totalorder %v2487, %v882
      %vm2529 = vcmp.eq.s32.totalorder %v2490, %v881
      %vm2530 = vcmp.eq.s32.totalorder %v2490, %v882
      %vm2531 = vcmp.eq.s32.totalorder %v2493, %v881
      %vm2532 = vcmp.eq.s32.totalorder %v2493, %v882
      %vm2533 = vcmp.eq.s32.totalorder %v2496, %v881
      %vm2534 = vcmp.eq.s32.totalorder %v2496, %v882
      %vm2535 = vcmp.eq.s32.totalorder %v2499, %v881
      %vm2536 = vcmp.eq.s32.totalorder %v2499, %v882
      %vm2537 = vcmp.eq.s32.totalorder %v2502, %v881
      %vm2538 = vcmp.eq.s32.totalorder %v2502, %v882
      %vm2539 = vcmp.eq.s32.totalorder %v2505, %v881
      %vm2540 = vcmp.eq.s32.totalorder %v2505, %v882
      %vm2541 = vcmp.eq.s32.totalorder %v2508, %v881
      %vm2542 = vcmp.eq.s32.totalorder %v2508, %v882
      %vm2543 = vcmp.eq.s32.totalorder %v2511, %v881
      %vm2544 = vcmp.eq.s32.totalorder %v2511, %v882
      %vm2545 = vcmp.eq.s32.totalorder %v2514, %v881
      %vm2546 = vcmp.eq.s32.totalorder %v2514, %v882
      %v2547 = vsel %vm2515, 1, 0
      %v2548 = vsel %vm2516, 1, 0
      %v2549 = vsel %vm2517, 1, 0
      %v2550 = vsel %vm2518, 1, 0
      %v2551 = vsel %vm2519, 1, 0
      %v2552 = vsel %vm2520, 1, 0
      %v2553 = vsel %vm2521, 1, 0
      %v2554 = vsel %vm2522, 1, 0
      %v2555 = vsel %vm2523, 1, 0
      %v2556 = vsel %vm2524, 1, 0
      %v2557 = vsel %vm2525, 1, 0
      %v2558 = vsel %vm2526, 1, 0
      %v2559 = vsel %vm2527, 1, 0
      %v2560 = vsel %vm2528, 1, 0
      %v2561 = vsel %vm2529, 1, 0
      %v2562 = vsel %vm2530, 1, 0
      %v2563 = vsel %vm2531, 1, 0
      %v2564 = vsel %vm2532, 1, 0
      %v2565 = vsel %vm2533, 1, 0
      %v2566 = vsel %vm2534, 1, 0
      %v2567 = vsel %vm2535, 1, 0
      %v2568 = vsel %vm2536, 1, 0
      %v2569 = vsel %vm2537, 1, 0
      %v2570 = vsel %vm2538, 1, 0
      %v2571 = vsel %vm2539, 1, 0
      %v2572 = vsel %vm2540, 1, 0
      %v2573 = vsel %vm2541, 1, 0
      %v2574 = vsel %vm2542, 1, 0
      %v2575 = vsel %vm2543, 1, 0
      %v2576 = vsel %vm2544, 1, 0
      %v2577 = vsel %vm2545, 1, 0
      %v2578 = vsel %vm2546, 1, 0
      %v2579 = vcvt.s32.f32 %v2547
      %v2580 = vcvt.s32.f32 %v2548
      %v2581 = vcvt.s32.f32 %v2549
      %v2582 = vcvt.s32.f32 %v2550
      %v2583 = vcvt.s32.f32 %v2551
      %v2584 = vcvt.s32.f32 %v2552
      %v2585 = vcvt.s32.f32 %v2553
      %v2586 = vcvt.s32.f32 %v2554
      %v2587 = vcvt.s32.f32 %v2555
      %v2588 = vcvt.s32.f32 %v2556
      %v2589 = vcvt.s32.f32 %v2557
      %v2590 = vcvt.s32.f32 %v2558
      %v2591 = vcvt.s32.f32 %v2559
      %v2592 = vcvt.s32.f32 %v2560
      %v2593 = vcvt.s32.f32 %v2561
      %v2594 = vcvt.s32.f32 %v2562
      %v2595 = vcvt.s32.f32 %v2563
      %v2596 = vcvt.s32.f32 %v2564
      %v2597 = vcvt.s32.f32 %v2565
      %v2598 = vcvt.s32.f32 %v2566
      %v2599 = vcvt.s32.f32 %v2567
      %v2600 = vcvt.s32.f32 %v2568
      %v2601 = vcvt.s32.f32 %v2569
      %v2602 = vcvt.s32.f32 %v2570
      %v2603 = vcvt.s32.f32 %v2571
      %v2604 = vcvt.s32.f32 %v2572
      %v2605 = vcvt.s32.f32 %v2573
      %v2606 = vcvt.s32.f32 %v2574
      %v2607 = vcvt.s32.f32 %v2575
      %v2608 = vcvt.s32.f32 %v2576
      %v2609 = vcvt.s32.f32 %v2577
      %v2610 = vcvt.s32.f32 %v2578
      %v2611 = vadd.f32 %v2435, %v2579
      %v2612 = vadd.f32 %v2436, %v2580
      %v2613 = vadd.f32 %v2437, %v2581
      %v2614 = vadd.f32 %v2438, %v2582
      %v2615 = vadd.f32 %v2439, %v2583
      %v2616 = vadd.f32 %v2440, %v2584
      %v2617 = vadd.f32 %v2441, %v2585
      %v2618 = vadd.f32 %v2442, %v2586
      %v2619 = vadd.f32 %v2443, %v2587
      %v2620 = vadd.f32 %v2444, %v2588
      %v2621 = vadd.f32 %v2445, %v2589
      %v2622 = vadd.f32 %v2446, %v2590
      %v2623 = vadd.f32 %v2447, %v2591
      %v2624 = vadd.f32 %v2448, %v2592
      %v2625 = vadd.f32 %v2449, %v2593
      %v2626 = vadd.f32 %v2450, %v2594
      %v2627 = vadd.f32 %v2451, %v2595
      %v2628 = vadd.f32 %v2452, %v2596
      %v2629 = vadd.f32 %v2453, %v2597
      %v2630 = vadd.f32 %v2454, %v2598
      %v2631 = vadd.f32 %v2455, %v2599
      %v2632 = vadd.f32 %v2456, %v2600
      %v2633 = vadd.f32 %v2457, %v2601
      %v2634 = vadd.f32 %v2458, %v2602
      %v2635 = vadd.f32 %v2459, %v2603
      %v2636 = vadd.f32 %v2460, %v2604
      %v2637 = vadd.f32 %v2461, %v2605
      %v2638 = vadd.f32 %v2462, %v2606
      %v2639 = vadd.f32 %v2463, %v2607
      %v2640 = vadd.f32 %v2464, %v2608
      %v2641 = vadd.f32 %v2465, %v2609
      %v2642 = vadd.f32 %v2466, %v2610
      %2643 = vset.pattern.permute.xlu0 10
      %2644 = vperm.xlu0 %2643, %v864
      %v2645 = vpop.permute.xlu0 %2644
      %2646 = vset.pattern.permute.xlu0 10
      %2647 = vperm.xlu0 %2646, %v865
      %v2648 = vpop.permute.xlu0 %2647
      %2649 = vset.pattern.permute.xlu0 10
      %2650 = vperm.xlu0 %2649, %v866
      %v2651 = vpop.permute.xlu0 %2650
      %2652 = vset.pattern.permute.xlu0 10
      %2653 = vperm.xlu0 %2652, %v867
      %v2654 = vpop.permute.xlu0 %2653
      %2655 = vset.pattern.permute.xlu0 10
      %2656 = vperm.xlu0 %2655, %v868
      %v2657 = vpop.permute.xlu0 %2656
      %2658 = vset.pattern.permute.xlu0 10
      %2659 = vperm.xlu0 %2658, %v869
      %v2660 = vpop.permute.xlu0 %2659
      %2661 = vset.pattern.permute.xlu0 10
      %2662 = vperm.xlu0 %2661, %v870
      %v2663 = vpop.permute.xlu0 %2662
      %2664 = vset.pattern.permute.xlu0 10
      %2665 = vperm.xlu0 %2664, %v871
      %v2666 = vpop.permute.xlu0 %2665
      %2667 = vset.pattern.permute.xlu0 10
      %2668 = vperm.xlu0 %2667, %v872
      %v2669 = vpop.permute.xlu0 %2668
      %2670 = vset.pattern.permute.xlu0 10
      %2671 = vperm.xlu0 %2670, %v873
      %v2672 = vpop.permute.xlu0 %2671
      %2673 = vset.pattern.permute.xlu0 10
      %2674 = vperm.xlu0 %2673, %v874
      %v2675 = vpop.permute.xlu0 %2674
      %2676 = vset.pattern.permute.xlu0 10
      %2677 = vperm.xlu0 %2676, %v875
      %v2678 = vpop.permute.xlu0 %2677
      %2679 = vset.pattern.permute.xlu0 10
      %2680 = vperm.xlu0 %2679, %v876
      %v2681 = vpop.permute.xlu0 %2680
      %2682 = vset.pattern.permute.xlu0 10
      %2683 = vperm.xlu0 %2682, %v877
      %v2684 = vpop.permute.xlu0 %2683
      %2685 = vset.pattern.permute.xlu0 10
      %2686 = vperm.xlu0 %2685, %v878
      %v2687 = vpop.permute.xlu0 %2686
      %2688 = vset.pattern.permute.xlu0 10
      %2689 = vperm.xlu0 %2688, %v879
      %v2690 = vpop.permute.xlu0 %2689
      %vm2691 = vcmp.eq.s32.totalorder %v2645, %v881
      %vm2692 = vcmp.eq.s32.totalorder %v2645, %v882
      %vm2693 = vcmp.eq.s32.totalorder %v2648, %v881
      %vm2694 = vcmp.eq.s32.totalorder %v2648, %v882
      %vm2695 = vcmp.eq.s32.totalorder %v2651, %v881
      %vm2696 = vcmp.eq.s32.totalorder %v2651, %v882
      %vm2697 = vcmp.eq.s32.totalorder %v2654, %v881
      %vm2698 = vcmp.eq.s32.totalorder %v2654, %v882
      %vm2699 = vcmp.eq.s32.totalorder %v2657, %v881
      %vm2700 = vcmp.eq.s32.totalorder %v2657, %v882
      %vm2701 = vcmp.eq.s32.totalorder %v2660, %v881
      %vm2702 = vcmp.eq.s32.totalorder %v2660, %v882
      %vm2703 = vcmp.eq.s32.totalorder %v2663, %v881
      %vm2704 = vcmp.eq.s32.totalorder %v2663, %v882
      %vm2705 = vcmp.eq.s32.totalorder %v2666, %v881
      %vm2706 = vcmp.eq.s32.totalorder %v2666, %v882
      %vm2707 = vcmp.eq.s32.totalorder %v2669, %v881
      %vm2708 = vcmp.eq.s32.totalorder %v2669, %v882
      %vm2709 = vcmp.eq.s32.totalorder %v2672, %v881
      %vm2710 = vcmp.eq.s32.totalorder %v2672, %v882
      %vm2711 = vcmp.eq.s32.totalorder %v2675, %v881
      %vm2712 = vcmp.eq.s32.totalorder %v2675, %v882
      %vm2713 = vcmp.eq.s32.totalorder %v2678, %v881
      %vm2714 = vcmp.eq.s32.totalorder %v2678, %v882
      %vm2715 = vcmp.eq.s32.totalorder %v2681, %v881
      %vm2716 = vcmp.eq.s32.totalorder %v2681, %v882
      %vm2717 = vcmp.eq.s32.totalorder %v2684, %v881
      %vm2718 = vcmp.eq.s32.totalorder %v2684, %v882
      %vm2719 = vcmp.eq.s32.totalorder %v2687, %v881
      %vm2720 = vcmp.eq.s32.totalorder %v2687, %v882
      %vm2721 = vcmp.eq.s32.totalorder %v2690, %v881
      %vm2722 = vcmp.eq.s32.totalorder %v2690, %v882
      %v2723 = vsel %vm2691, 1, 0
      %v2724 = vsel %vm2692, 1, 0
      %v2725 = vsel %vm2693, 1, 0
      %v2726 = vsel %vm2694, 1, 0
      %v2727 = vsel %vm2695, 1, 0
      %v2728 = vsel %vm2696, 1, 0
      %v2729 = vsel %vm2697, 1, 0
      %v2730 = vsel %vm2698, 1, 0
      %v2731 = vsel %vm2699, 1, 0
      %v2732 = vsel %vm2700, 1, 0
      %v2733 = vsel %vm2701, 1, 0
      %v2734 = vsel %vm2702, 1, 0
      %v2735 = vsel %vm2703, 1, 0
      %v2736 = vsel %vm2704, 1, 0
      %v2737 = vsel %vm2705, 1, 0
      %v2738 = vsel %vm2706, 1, 0
      %v2739 = vsel %vm2707, 1, 0
      %v2740 = vsel %vm2708, 1, 0
      %v2741 = vsel %vm2709, 1, 0
      %v2742 = vsel %vm2710, 1, 0
      %v2743 = vsel %vm2711, 1, 0
      %v2744 = vsel %vm2712, 1, 0
      %v2745 = vsel %vm2713, 1, 0
      %v2746 = vsel %vm2714, 1, 0
      %v2747 = vsel %vm2715, 1, 0
      %v2748 = vsel %vm2716, 1, 0
      %v2749 = vsel %vm2717, 1, 0
      %v2750 = vsel %vm2718, 1, 0
      %v2751 = vsel %vm2719, 1, 0
      %v2752 = vsel %vm2720, 1, 0
      %v2753 = vsel %vm2721, 1, 0
      %v2754 = vsel %vm2722, 1, 0
      %v2755 = vcvt.s32.f32 %v2723
      %v2756 = vcvt.s32.f32 %v2724
      %v2757 = vcvt.s32.f32 %v2725
      %v2758 = vcvt.s32.f32 %v2726
      %v2759 = vcvt.s32.f32 %v2727
      %v2760 = vcvt.s32.f32 %v2728
      %v2761 = vcvt.s32.f32 %v2729
      %v2762 = vcvt.s32.f32 %v2730
      %v2763 = vcvt.s32.f32 %v2731
      %v2764 = vcvt.s32.f32 %v2732
      %v2765 = vcvt.s32.f32 %v2733
      %v2766 = vcvt.s32.f32 %v2734
      %v2767 = vcvt.s32.f32 %v2735
      %v2768 = vcvt.s32.f32 %v2736
      %v2769 = vcvt.s32.f32 %v2737
      %v2770 = vcvt.s32.f32 %v2738
      %v2771 = vcvt.s32.f32 %v2739
      %v2772 = vcvt.s32.f32 %v2740
      %v2773 = vcvt.s32.f32 %v2741
      %v2774 = vcvt.s32.f32 %v2742
      %v2775 = vcvt.s32.f32 %v2743
      %v2776 = vcvt.s32.f32 %v2744
      %v2777 = vcvt.s32.f32 %v2745
      %v2778 = vcvt.s32.f32 %v2746
      %v2779 = vcvt.s32.f32 %v2747
      %v2780 = vcvt.s32.f32 %v2748
      %v2781 = vcvt.s32.f32 %v2749
      %v2782 = vcvt.s32.f32 %v2750
      %v2783 = vcvt.s32.f32 %v2751
      %v2784 = vcvt.s32.f32 %v2752
      %v2785 = vcvt.s32.f32 %v2753
      %v2786 = vcvt.s32.f32 %v2754
      %v2787 = vadd.f32 %v2611, %v2755
      %v2788 = vadd.f32 %v2612, %v2756
      %v2789 = vadd.f32 %v2613, %v2757
      %v2790 = vadd.f32 %v2614, %v2758
      %v2791 = vadd.f32 %v2615, %v2759
      %v2792 = vadd.f32 %v2616, %v2760
      %v2793 = vadd.f32 %v2617, %v2761
      %v2794 = vadd.f32 %v2618, %v2762
      %v2795 = vadd.f32 %v2619, %v2763
      %v2796 = vadd.f32 %v2620, %v2764
      %v2797 = vadd.f32 %v2621, %v2765
      %v2798 = vadd.f32 %v2622, %v2766
      %v2799 = vadd.f32 %v2623, %v2767
      %v2800 = vadd.f32 %v2624, %v2768
      %v2801 = vadd.f32 %v2625, %v2769
      %v2802 = vadd.f32 %v2626, %v2770
      %v2803 = vadd.f32 %v2627, %v2771
      %v2804 = vadd.f32 %v2628, %v2772
      %v2805 = vadd.f32 %v2629, %v2773
      %v2806 = vadd.f32 %v2630, %v2774
      %v2807 = vadd.f32 %v2631, %v2775
      %v2808 = vadd.f32 %v2632, %v2776
      %v2809 = vadd.f32 %v2633, %v2777
      %v2810 = vadd.f32 %v2634, %v2778
      %v2811 = vadd.f32 %v2635, %v2779
      %v2812 = vadd.f32 %v2636, %v2780
      %v2813 = vadd.f32 %v2637, %v2781
      %v2814 = vadd.f32 %v2638, %v2782
      %v2815 = vadd.f32 %v2639, %v2783
      %v2816 = vadd.f32 %v2640, %v2784
      %v2817 = vadd.f32 %v2641, %v2785
      %v2818 = vadd.f32 %v2642, %v2786
      %2819 = vset.pattern.permute.xlu0 11
      %2820 = vperm.xlu0 %2819, %v864
      %v2821 = vpop.permute.xlu0 %2820
      %2822 = vset.pattern.permute.xlu0 11
      %2823 = vperm.xlu0 %2822, %v865
      %v2824 = vpop.permute.xlu0 %2823
      %2825 = vset.pattern.permute.xlu0 11
      %2826 = vperm.xlu0 %2825, %v866
      %v2827 = vpop.permute.xlu0 %2826
      %2828 = vset.pattern.permute.xlu0 11
      %2829 = vperm.xlu0 %2828, %v867
      %v2830 = vpop.permute.xlu0 %2829
      %2831 = vset.pattern.permute.xlu0 11
      %2832 = vperm.xlu0 %2831, %v868
      %v2833 = vpop.permute.xlu0 %2832
      %2834 = vset.pattern.permute.xlu0 11
      %2835 = vperm.xlu0 %2834, %v869
      %v2836 = vpop.permute.xlu0 %2835
      %2837 = vset.pattern.permute.xlu0 11
      %2838 = vperm.xlu0 %2837, %v870
      %v2839 = vpop.permute.xlu0 %2838
      %2840 = vset.pattern.permute.xlu0 11
      %2841 = vperm.xlu0 %2840, %v871
      %v2842 = vpop.permute.xlu0 %2841
      %2843 = vset.pattern.permute.xlu0 11
      %2844 = vperm.xlu0 %2843, %v872
      %v2845 = vpop.permute.xlu0 %2844
      %2846 = vset.pattern.permute.xlu0 11
      %2847 = vperm.xlu0 %2846, %v873
      %v2848 = vpop.permute.xlu0 %2847
      %2849 = vset.pattern.permute.xlu0 11
      %2850 = vperm.xlu0 %2849, %v874
      %v2851 = vpop.permute.xlu0 %2850
      %2852 = vset.pattern.permute.xlu0 11
      %2853 = vperm.xlu0 %2852, %v875
      %v2854 = vpop.permute.xlu0 %2853
      %2855 = vset.pattern.permute.xlu0 11
      %2856 = vperm.xlu0 %2855, %v876
      %v2857 = vpop.permute.xlu0 %2856
      %2858 = vset.pattern.permute.xlu0 11
      %2859 = vperm.xlu0 %2858, %v877
      %v2860 = vpop.permute.xlu0 %2859
      %2861 = vset.pattern.permute.xlu0 11
      %2862 = vperm.xlu0 %2861, %v878
      %v2863 = vpop.permute.xlu0 %2862
      %2864 = vset.pattern.permute.xlu0 11
      %2865 = vperm.xlu0 %2864, %v879
      %v2866 = vpop.permute.xlu0 %2865
      %vm2867 = vcmp.eq.s32.totalorder %v2821, %v881
      %vm2868 = vcmp.eq.s32.totalorder %v2821, %v882
      %vm2869 = vcmp.eq.s32.totalorder %v2824, %v881
      %vm2870 = vcmp.eq.s32.totalorder %v2824, %v882
      %vm2871 = vcmp.eq.s32.totalorder %v2827, %v881
      %vm2872 = vcmp.eq.s32.totalorder %v2827, %v882
      %vm2873 = vcmp.eq.s32.totalorder %v2830, %v881
      %vm2874 = vcmp.eq.s32.totalorder %v2830, %v882
      %vm2875 = vcmp.eq.s32.totalorder %v2833, %v881
      %vm2876 = vcmp.eq.s32.totalorder %v2833, %v882
      %vm2877 = vcmp.eq.s32.totalorder %v2836, %v881
      %vm2878 = vcmp.eq.s32.totalorder %v2836, %v882
      %vm2879 = vcmp.eq.s32.totalorder %v2839, %v881
      %vm2880 = vcmp.eq.s32.totalorder %v2839, %v882
      %vm2881 = vcmp.eq.s32.totalorder %v2842, %v881
      %vm2882 = vcmp.eq.s32.totalorder %v2842, %v882
      %vm2883 = vcmp.eq.s32.totalorder %v2845, %v881
      %vm2884 = vcmp.eq.s32.totalorder %v2845, %v882
      %vm2885 = vcmp.eq.s32.totalorder %v2848, %v881
      %vm2886 = vcmp.eq.s32.totalorder %v2848, %v882
      %vm2887 = vcmp.eq.s32.totalorder %v2851, %v881
      %vm2888 = vcmp.eq.s32.totalorder %v2851, %v882
      %vm2889 = vcmp.eq.s32.totalorder %v2854, %v881
      %vm2890 = vcmp.eq.s32.totalorder %v2854, %v882
      %vm2891 = vcmp.eq.s32.totalorder %v2857, %v881
      %vm2892 = vcmp.eq.s32.totalorder %v2857, %v882
      %vm2893 = vcmp.eq.s32.totalorder %v2860, %v881
      %vm2894 = vcmp.eq.s32.totalorder %v2860, %v882
      %vm2895 = vcmp.eq.s32.totalorder %v2863, %v881
      %vm2896 = vcmp.eq.s32.totalorder %v2863, %v882
      %vm2897 = vcmp.eq.s32.totalorder %v2866, %v881
      %vm2898 = vcmp.eq.s32.totalorder %v2866, %v882
      %v2899 = vsel %vm2867, 1, 0
      %v2900 = vsel %vm2868, 1, 0
      %v2901 = vsel %vm2869, 1, 0
      %v2902 = vsel %vm2870, 1, 0
      %v2903 = vsel %vm2871, 1, 0
      %v2904 = vsel %vm2872, 1, 0
      %v2905 = vsel %vm2873, 1, 0
      %v2906 = vsel %vm2874, 1, 0
      %v2907 = vsel %vm2875, 1, 0
      %v2908 = vsel %vm2876, 1, 0
      %v2909 = vsel %vm2877, 1, 0
      %v2910 = vsel %vm2878, 1, 0
      %v2911 = vsel %vm2879, 1, 0
      %v2912 = vsel %vm2880, 1, 0
      %v2913 = vsel %vm2881, 1, 0
      %v2914 = vsel %vm2882, 1, 0
      %v2915 = vsel %vm2883, 1, 0
      %v2916 = vsel %vm2884, 1, 0
      %v2917 = vsel %vm2885, 1, 0
      %v2918 = vsel %vm2886, 1, 0
      %v2919 = vsel %vm2887, 1, 0
      %v2920 = vsel %vm2888, 1, 0
      %v2921 = vsel %vm2889, 1, 0
      %v2922 = vsel %vm2890, 1, 0
      %v2923 = vsel %vm2891, 1, 0
      %v2924 = vsel %vm2892, 1, 0
      %v2925 = vsel %vm2893, 1, 0
      %v2926 = vsel %vm2894, 1, 0
      %v2927 = vsel %vm2895, 1, 0
      %v2928 = vsel %vm2896, 1, 0
      %v2929 = vsel %vm2897, 1, 0
      %v2930 = vsel %vm2898, 1, 0
      %v2931 = vcvt.s32.f32 %v2899
      %v2932 = vcvt.s32.f32 %v2900
      %v2933 = vcvt.s32.f32 %v2901
      %v2934 = vcvt.s32.f32 %v2902
      %v2935 = vcvt.s32.f32 %v2903
      %v2936 = vcvt.s32.f32 %v2904
      %v2937 = vcvt.s32.f32 %v2905
      %v2938 = vcvt.s32.f32 %v2906
      %v2939 = vcvt.s32.f32 %v2907
      %v2940 = vcvt.s32.f32 %v2908
      %v2941 = vcvt.s32.f32 %v2909
      %v2942 = vcvt.s32.f32 %v2910
      %v2943 = vcvt.s32.f32 %v2911
      %v2944 = vcvt.s32.f32 %v2912
      %v2945 = vcvt.s32.f32 %v2913
      %v2946 = vcvt.s32.f32 %v2914
      %v2947 = vcvt.s32.f32 %v2915
      %v2948 = vcvt.s32.f32 %v2916
      %v2949 = vcvt.s32.f32 %v2917
      %v2950 = vcvt.s32.f32 %v2918
      %v2951 = vcvt.s32.f32 %v2919
      %v2952 = vcvt.s32.f32 %v2920
      %v2953 = vcvt.s32.f32 %v2921
      %v2954 = vcvt.s32.f32 %v2922
      %v2955 = vcvt.s32.f32 %v2923
      %v2956 = vcvt.s32.f32 %v2924
      %v2957 = vcvt.s32.f32 %v2925
      %v2958 = vcvt.s32.f32 %v2926
      %v2959 = vcvt.s32.f32 %v2927
      %v2960 = vcvt.s32.f32 %v2928
      %v2961 = vcvt.s32.f32 %v2929
      %v2962 = vcvt.s32.f32 %v2930
      %v2963 = vadd.f32 %v2787, %v2931
      %v2964 = vadd.f32 %v2788, %v2932
      %v2965 = vadd.f32 %v2789, %v2933
      %v2966 = vadd.f32 %v2790, %v2934
      %v2967 = vadd.f32 %v2791, %v2935
      %v2968 = vadd.f32 %v2792, %v2936
      %v2969 = vadd.f32 %v2793, %v2937
      %v2970 = vadd.f32 %v2794, %v2938
      %v2971 = vadd.f32 %v2795, %v2939
      %v2972 = vadd.f32 %v2796, %v2940
      %v2973 = vadd.f32 %v2797, %v2941
      %v2974 = vadd.f32 %v2798, %v2942
      %v2975 = vadd.f32 %v2799, %v2943
      %v2976 = vadd.f32 %v2800, %v2944
      %v2977 = vadd.f32 %v2801, %v2945
      %v2978 = vadd.f32 %v2802, %v2946
      %v2979 = vadd.f32 %v2803, %v2947
      %v2980 = vadd.f32 %v2804, %v2948
      %v2981 = vadd.f32 %v2805, %v2949
      %v2982 = vadd.f32 %v2806, %v2950
      %v2983 = vadd.f32 %v2807, %v2951
      %v2984 = vadd.f32 %v2808, %v2952
      %v2985 = vadd.f32 %v2809, %v2953
      %v2986 = vadd.f32 %v2810, %v2954
      %v2987 = vadd.f32 %v2811, %v2955
      %v2988 = vadd.f32 %v2812, %v2956
      %v2989 = vadd.f32 %v2813, %v2957
      %v2990 = vadd.f32 %v2814, %v2958
      %v2991 = vadd.f32 %v2815, %v2959
      %v2992 = vadd.f32 %v2816, %v2960
      %v2993 = vadd.f32 %v2817, %v2961
      %v2994 = vadd.f32 %v2818, %v2962
      %v2995 = vpack.c.bf16 %v2965, %v2963
      %v2996 = vpack.c.bf16 %v2966, %v2964
      %v2997 = vpack.c.bf16 %v2969, %v2967
      %v2998 = vpack.c.bf16 %v2970, %v2968
      %v2999 = vpack.c.bf16 %v2973, %v2971
      %v3000 = vpack.c.bf16 %v2974, %v2972
      %v3001 = vpack.c.bf16 %v2977, %v2975
      %v3002 = vpack.c.bf16 %v2978, %v2976
      %v3003 = vpack.c.bf16 %v2981, %v2979
      %v3004 = vpack.c.bf16 %v2982, %v2980
      %v3005 = vpack.c.bf16 %v2985, %v2983
      %v3006 = vpack.c.bf16 %v2986, %v2984
      %v3007 = vpack.c.bf16 %v2989, %v2987
      %v3008 = vpack.c.bf16 %v2990, %v2988
      %v3009 = vpack.c.bf16 %v2993, %v2991
      %v3010 = vpack.c.bf16 %v2994, %v2992
      %v3011 = vld [vmem:[%s2] sm:$0xf]
      %v3012 = vld [vmem:[%s2 + $0x4] sm:$0xf]
      %v3013 = vld [vmem:[%s2 + $0x8] sm:$0xf]
      %v3014 = vld [vmem:[%s2 + $0xc] sm:$0xf]
      %v3015 = vld [vmem:[%s2 + $0x10] sm:$0xf]
      %v3016 = vld [vmem:[%s2 + $0x14] sm:$0xf]
      %v3017 = vld [vmem:[%s2 + $0x18] sm:$0xf]
      %v3018 = vld [vmem:[%s2 + $0x1c] sm:$0xf]
      %v3019 = vld [vmem:[%s2 + $0x20] sm:$0xf]
      %v3020 = vld [vmem:[%s2 + $0x24] sm:$0xf]
      %v3021 = vld [vmem:[%s2 + $0x28] sm:$0xf]
      %v3022 = vld [vmem:[%s2 + $0x2c] sm:$0xf]
      %v3023 = vld [vmem:[%s2 + $0x30] sm:$0xf]
      %v3024 = vld [vmem:[%s2 + $0x34] sm:$0xf]
      %v3025 = vld [vmem:[%s2 + $0x38] sm:$0xf]
      %v3026 = vld [vmem:[%s2 + $0x3c] sm:$0xf]
      %v3027 = vld [vmem:[%s2 + $0x40] sm:$0xf]
      %v3028 = vld [vmem:[%s2 + $0x44] sm:$0xf]
      %v3029 = vld [vmem:[%s2 + $0x48] sm:$0xf]
      %v3030 = vld [vmem:[%s2 + $0x4c] sm:$0xf]
      %v3031 = vld [vmem:[%s2 + $0x50] sm:$0xf]
      %v3032 = vld [vmem:[%s2 + $0x54] sm:$0xf]
      %v3033 = vld [vmem:[%s2 + $0x58] sm:$0xf]
      %v3034 = vld [vmem:[%s2 + $0x5c] sm:$0xf]
      %v3035 = vld [vmem:[%s2 + $0x60] sm:$0xf]
      %v3036 = vld [vmem:[%s2 + $0x64] sm:$0xf]
      %v3037 = vld [vmem:[%s2 + $0x68] sm:$0xf]
      %v3038 = vld [vmem:[%s2 + $0x6c] sm:$0xf]
      %v3039 = vld [vmem:[%s2 + $0x70] sm:$0xf]
      %v3040 = vld [vmem:[%s2 + $0x74] sm:$0xf]
      %v3071 = vunpack.c.l.b16 %v3011
      %v3072 = vunpack.c.l.b16 %v3012
      %v3073 = vunpack.c.l.b16 %v3013
      %v3074 = vunpack.c.l.b16 %v3014
      %v3075 = vunpack.c.l.b16 %v3015
      %v3076 = vunpack.c.l.b16 %v3016
      %v3077 = vunpack.c.l.b16 %v3017
      %v3078 = vunpack.c.l.b16 %v3018
      %v3079 = vunpack.c.l.b16 %v3019
      %v3080 = vunpack.c.l.b16 %v3020
      %v3081 = vunpack.c.l.b16 %v3021
      %v3082 = vunpack.c.l.b16 %v3022
      %v3083 = vunpack.c.l.b16 %v3023
      %v3084 = vunpack.c.l.b16 %v3024
      %v3085 = vunpack.c.l.b16 %v3025
      %v3086 = vunpack.c.l.b16 %v3026
      %v3087 = vunpack.c.l.b16 %v3027
      %v3088 = vunpack.c.l.b16 %v3028
      %v3089 = vunpack.c.l.b16 %v3029
      %v3090 = vunpack.c.l.b16 %v3030
      %v3091 = vunpack.c.l.b16 %v3031
      %v3092 = vunpack.c.l.b16 %v3032
      %v3093 = vunpack.c.l.b16 %v3033
      %v3094 = vunpack.c.l.b16 %v3034
      %v3095 = vunpack.c.l.b16 %v3035
      %v3096 = vunpack.c.l.b16 %v3036
      %v3097 = vunpack.c.l.b16 %v3037
      %v3098 = vunpack.c.l.b16 %v3038
      %v3099 = vunpack.c.l.b16 %v3039
      %v3100 = vunpack.c.l.b16 %v3040
      %v3101 = vpack.c.b16 %v3072, %v3071
      %v3102 = vpack.c.b16 %v3074, %v3073
      %v3103 = vpack.c.b16 %v3076, %v3075
      %v3104 = vpack.c.b16 %v3078, %v3077
      %v3105 = vpack.c.b16 %v3080, %v3079
      %v3106 = vpack.c.b16 %v3082, %v3081
      %v3107 = vpack.c.b16 %v3084, %v3083
      %v3108 = vpack.c.b16 %v3086, %v3085
      %v3109 = vpack.c.b16 %v3088, %v3087
      %v3110 = vpack.c.b16 %v3090, %v3089
      %v3111 = vpack.c.b16 %v3092, %v3091
      %v3112 = vpack.c.b16 %v3094, %v3093
      %v3113 = vpack.c.b16 %v3096, %v3095
      %v3114 = vpack.c.b16 %v3098, %v3097
      %v3115 = vpack.c.b16 %v3100, %v3099
      %vm3131 = vcmask 916480
      %v3133 = vsel %vm3131, %v2996, 0
      %v3136 = vsel %vm3131, %v2998, 0
      %v3139 = vsel %vm3131, %v3000, 0
      %v3142 = vsel %vm3131, %v3002, 0
      %v3145 = vsel %vm3131, %v3004, 0
      %v3148 = vsel %vm3131, %v3006, 0
      %v3151 = vsel %vm3131, %v3008, 0
      %v3154 = vsel %vm3131, %v3010, 0
      %3156 = vmatprep.subr.bf16.mxu0 0
      %3157 = vmatpush1.bf16.msra.mxu0 %v3101
      %3158 = vmatprep.subr.bf16.mxu0 0
      %3159 = vmatpush1.bf16.msra.mxu0 %v3102
      %3160 = vmatprep.subr.bf16.mxu0 0
      %3161 = vmatpush1.bf16.msra.mxu0 %v3103
      %3162 = vmatprep.subr.bf16.mxu0 0
      %3163 = vmatpush1.bf16.msra.mxu0 %v3104
      %3164 = vmatprep.subr.bf16.mxu0 0
      %3165 = vmatpush1.bf16.msra.mxu0 %v3105
      %3166 = vmatprep.subr.bf16.mxu0 0
      %3167 = vmatpush1.bf16.msra.mxu0 %v3106
      %3168 = vmatprep.subr.bf16.mxu0 0
      %3169 = vmatpush1.bf16.msra.mxu0 %v3107
      %3170 = vmatprep.subr.bf16.mxu0 0
      %3171 = vmatpush1.bf16.msra.mxu0 %v3108
      %3172 = vmatprep.subr.bf16.mxu0 0
      %3173 = vmatpush1.bf16.msra.mxu0 %v3109
      %3174 = vmatprep.subr.bf16.mxu0 0
      %3175 = vmatpush1.bf16.msra.mxu0 %v3110
      %3176 = vmatprep.subr.bf16.mxu0 0
      %3177 = vmatpush1.bf16.msra.mxu0 %v3111
      %3178 = vmatprep.subr.bf16.mxu0 0
      %3179 = vmatpush1.bf16.msra.mxu0 %v3112
      %3180 = vmatprep.subr.bf16.mxu0 0
      %3181 = vmatpush1.bf16.msra.mxu0 %v3113
      %3182 = vmatprep.subr.bf16.mxu0 0
      %3183 = vmatpush1.bf16.msra.mxu0 %v3114
      %3184 = vmatprep.subr.bf16.mxu0 0
      %3185 = vmatpush1.bf16.msra.mxu0 %v3115
      %3186 = vmatprep.subr.bf16.mxu0 0
      %3187 = vmatpush1.bf16.msra.mxu0 0
      %3188 = vmatprep.mubr.bf16.mxu0 %v3133
      %3189 = vmatmul.mubr.bf16.gmra.mrb[0].mxu0 %v2995
      %v3190 = vpop.f32.mrb[0].mxu0
      %v3191 = vadd.f32 0.0, %v3190
      %v3192 = vpop.f32.mrb[0].mxu0
      %v3193 = vpop.f32.mrb[0].mxu0
      %v3194 = vadd.f32 0.0, %v3193
      %v3195 = vpop.f32.mrb[0].mxu0
      %3196 = vmatprep.mubr.bf16.mxu0 %v3136
      %3197 = vmatmul.mubr.bf16.gmra.mrb[0].mxu0 %v2997
      %v3198 = vpop.f32.mrb[0].mxu0
      %v3199 = vadd.f32 0.0, %v3198
      %v3200 = vpop.f32.mrb[0].mxu0
      %v3201 = vpop.f32.mrb[0].mxu0
      %v3202 = vadd.f32 0.0, %v3201
      %v3203 = vpop.f32.mrb[0].mxu0
      %3204 = vmatprep.mubr.bf16.mxu0 %v3139
      %3205 = vmatmul.mubr.bf16.gmra.mrb[0].mxu0 %v2999
      %v3206 = vpop.f32.mrb[0].mxu0
      %v3207 = vadd.f32 0.0, %v3206
      %v3208 = vpop.f32.mrb[0].mxu0
      %v3209 = vpop.f32.mrb[0].mxu0
      %v3210 = vadd.f32 0.0, %v3209
      %v3211 = vpop.f32.mrb[0].mxu0
      %3212 = vmatprep.mubr.bf16.mxu0 %v3142
      %3213 = vmatmul.mubr.bf16.gmra.mrb[0].mxu0 %v3001
      %v3214 = vpop.f32.mrb[0].mxu0
      %v3215 = vadd.f32 0.0, %v3214
      %v3216 = vpop.f32.mrb[0].mxu0
      %v3217 = vpop.f32.mrb[0].mxu0
      %v3218 = vadd.f32 0.0, %v3217
      %v3219 = vpop.f32.mrb[0].mxu0
      %3220 = vmatprep.mubr.bf16.mxu0 %v3145
      %3221 = vmatmul.mubr.bf16.gmra.mrb[0].mxu0 %v3003
      %v3222 = vpop.f32.mrb[0].mxu0
      %v3223 = vadd.f32 0.0, %v3222
      %v3224 = vpop.f32.mrb[0].mxu0
      %v3225 = vpop.f32.mrb[0].mxu0
      %v3226 = vadd.f32 0.0, %v3225
      %v3227 = vpop.f32.mrb[0].mxu0
      %3228 = vmatprep.mubr.bf16.mxu0 %v3148
      %3229 = vmatmul.mubr.bf16.gmra.mrb[0].mxu0 %v3005
      %v3230 = vpop.f32.mrb[0].mxu0
      %v3231 = vadd.f32 0.0, %v3230
      %v3232 = vpop.f32.mrb[0].mxu0
      %v3233 = vpop.f32.mrb[0].mxu0
      %v3234 = vadd.f32 0.0, %v3233
      %v3235 = vpop.f32.mrb[0].mxu0
      %3236 = vmatprep.mubr.bf16.mxu0 %v3151
      %3237 = vmatmul.mubr.bf16.gmra.mrb[0].mxu0 %v3007
      %v3238 = vpop.f32.mrb[0].mxu0
      %v3239 = vadd.f32 0.0, %v3238
      %v3240 = vpop.f32.mrb[0].mxu0
      %v3241 = vpop.f32.mrb[0].mxu0
      %v3242 = vadd.f32 0.0, %v3241
      %v3243 = vpop.f32.mrb[0].mxu0
      %3244 = vmatprep.mubr.bf16.mxu0 %v3154
      %3245 = vmatmul.mubr.bf16.gmra.mrb[0].mxu0 %v3009
      %v3246 = vpop.f32.mrb[0].mxu0
      %v3247 = vadd.f32 0.0, %v3246
      %v3248 = vpop.f32.mrb[0].mxu0
      %v3249 = vpop.f32.mrb[0].mxu0
      %v3250 = vadd.f32 0.0, %v3249
      %v3251 = vpop.f32.mrb[0].mxu0
      %3252 = vdwg.mxu0
      %3269 = vrot.lane.b32.xlu0 %v3191, 16
      %v3270 = vpop.permute.xlu0 %3269
      %3271 = vrot.lane.b32.xlu0 %v3194, 16
      %v3272 = vpop.permute.xlu0 %3271
      %3273 = vrot.lane.b32.xlu0 %v3199, 16
      %v3274 = vpop.permute.xlu0 %3273
      %3275 = vrot.lane.b32.xlu0 %v3202, 16
      %v3276 = vpop.permute.xlu0 %3275
      %3277 = vrot.lane.b32.xlu0 %v3207, 16
      %v3278 = vpop.permute.xlu0 %3277
      %3279 = vrot.lane.b32.xlu0 %v3210, 16
      %v3280 = vpop.permute.xlu0 %3279
      %3281 = vrot.lane.b32.xlu0 %v3215, 16
      %v3282 = vpop.permute.xlu0 %3281
      %3283 = vrot.lane.b32.xlu0 %v3218, 16
      %v3284 = vpop.permute.xlu0 %3283
      %3285 = vrot.lane.b32.xlu0 %v3223, 16
      %v3286 = vpop.permute.xlu0 %3285
      %3287 = vrot.lane.b32.xlu0 %v3226, 16
      %v3288 = vpop.permute.xlu0 %3287
      %3289 = vrot.lane.b32.xlu0 %v3231, 16
      %v3290 = vpop.permute.xlu0 %3289
      %3291 = vrot.lane.b32.xlu0 %v3234, 16
      %v3292 = vpop.permute.xlu0 %3291
      %3293 = vrot.lane.b32.xlu0 %v3239, 16
      %v3294 = vpop.permute.xlu0 %3293
      %3295 = vrot.lane.b32.xlu0 %v3242, 16
      %v3296 = vpop.permute.xlu0 %3295
      %3297 = vrot.lane.b32.xlu0 %v3247, 16
      %v3298 = vpop.permute.xlu0 %3297
      %3299 = vrot.lane.b32.xlu0 %v3250, 16
      %v3300 = vpop.permute.xlu0 %3299
      %vm3317 = vcmask 130048
      %v3318 = vsel %vm3317, %v848, %v3270
      %v3319 = vsel %vm3317, %v849, %v3272
      %v3320 = vsel %vm3317, %v850, %v3274
      %v3321 = vsel %vm3317, %v851, %v3276
      %v3322 = vsel %vm3317, %v852, %v3278
      %v3323 = vsel %vm3317, %v853, %v3280
      %v3324 = vsel %vm3317, %v854, %v3282
      %v3325 = vsel %vm3317, %v855, %v3284
      %v3326 = vsel %vm3317, %v856, %v3286
      %v3327 = vsel %vm3317, %v857, %v3288
      %v3328 = vsel %vm3317, %v858, %v3290
      %v3329 = vsel %vm3317, %v859, %v3292
      %v3330 = vsel %vm3317, %v860, %v3294
      %v3331 = vsel %vm3317, %v861, %v3296
      %v3332 = vsel %vm3317, %v862, %v3298
      %v3333 = vsel %vm3317, %v863, %v3300
      %v3334 = vpack.c.bf16 %v3319, %v3318
      %v3335 = vpack.c.bf16 %v3321, %v3320
      %v3336 = vpack.c.bf16 %v3323, %v3322
      %v3337 = vpack.c.bf16 %v3325, %v3324
      %v3338 = vpack.c.bf16 %v3327, %v3326
      %v3339 = vpack.c.bf16 %v3329, %v3328
      %v3340 = vpack.c.bf16 %v3331, %v3330
      %v3341 = vpack.c.bf16 %v3333, %v3332
      %v3342 = vld [vmem:[%s3] sm:$0xf]
      %v3343 = vld [vmem:[%s3 + $0x4] sm:$0xf]
      %v3344 = vld [vmem:[%s3 + $0x8] sm:$0xf]
      %v3345 = vld [vmem:[%s3 + $0xc] sm:$0xf]
      %v3346 = vld [vmem:[%s3 + $0x10] sm:$0xf]
      %v3347 = vld [vmem:[%s3 + $0x14] sm:$0xf]
      %v3348 = vld [vmem:[%s3 + $0x18] sm:$0xf]
      %v3349 = vld [vmem:[%s3 + $0x1c] sm:$0xf]
      %v3358 = vunpack.c.l.b16 %v3342
      %v3359 = vunpack.c.l.b16 %v3343
      %v3360 = vunpack.c.l.b16 %v3344
      %v3361 = vunpack.c.l.b16 %v3345
      %v3362 = vunpack.c.l.b16 %v3346
      %v3363 = vunpack.c.l.b16 %v3347
      %v3364 = vunpack.c.l.b16 %v3348
      %v3365 = vunpack.c.l.b16 %v3349
      %v3366 = vpack.c.b16 %v3359, %v3358
      %v3367 = vpack.c.b16 %v3361, %v3360
      %v3368 = vpack.c.b16 %v3363, %v3362
      %v3369 = vpack.c.b16 %v3365, %v3364
      %v3375 = vsel %vm726, %v3334, 0
      %v3378 = vsel %vm726, %v3335, 0
      %v3381 = vsel %vm726, %v3336, 0
      %v3384 = vsel %vm726, %v3337, 0
      %v3387 = vsel %vm726, %v3338, 0
      %v3390 = vsel %vm726, %v3339, 0
      %v3393 = vsel %vm726, %v3340, 0
      %v3396 = vsel %vm726, %v3341, 0
      %3398 = vmatprep.subr.bf16.mxu0 0
      %3399 = vmatpush1.bf16.msra.mxu0 %v3366
      %3400 = vmatprep.subr.bf16.mxu0 0
      %3401 = vmatpush1.bf16.msra.mxu0 %v3367
      %3402 = vmatprep.subr.bf16.mxu0 0
      %3403 = vmatpush1.bf16.msra.mxu0 %v3368
      %3404 = vmatprep.subr.bf16.mxu0 0
      %3405 = vmatpush1.bf16.msra.mxu0 %v3369
      %3406 = vmatprep.subr.bf16.mxu0 0
      %3407 = vmatpush1.bf16.msra.mxu0 0
      %3408 = vmatprep.subr.bf16.mxu0 0
      %3409 = vmatpush1.bf16.msra.mxu0 0
      %3410 = vmatprep.subr.bf16.mxu0 0
      %3411 = vmatpush1.bf16.msra.mxu0 0
      %3412 = vmatprep.subr.bf16.mxu0 0
      %3413 = vmatpush1.bf16.msra.mxu0 0
      %3414 = vmatprep.subr.bf16.mxu0 0
      %3415 = vmatpush1.bf16.msra.mxu0 0
      %3416 = vmatprep.subr.bf16.mxu0 0
      %3417 = vmatpush1.bf16.msra.mxu0 0
      %3418 = vmatprep.subr.bf16.mxu0 0
      %3419 = vmatpush1.bf16.msra.mxu0 0
      %3420 = vmatprep.subr.bf16.mxu0 0
      %3421 = vmatpush1.bf16.msra.mxu0 0
      %3422 = vmatprep.subr.bf16.mxu0 0
      %3423 = vmatpush1.bf16.msra.mxu0 0
      %3424 = vmatprep.subr.bf16.mxu0 0
      %3425 = vmatpush1.bf16.msra.mxu0 0
      %3426 = vmatprep.subr.bf16.mxu0 0
      %3427 = vmatpush1.bf16.msra.mxu0 0
      %3428 = vmatprep.subr.bf16.mxu0 0
      %3429 = vmatpush1.bf16.msra.mxu0 0
      %3430 = vmatprep.mubr.bf16.mxu0 0
      %3431 = vmatmul.mubr.bf16.gmra.mrb[0].mxu0 %v3375
      %v3432 = vpop.f32.mrb[0].mxu0
      %v3433 = vadd.f32 0.0, %v3432
      %v3434 = vpop.f32.mrb[0].mxu0
      %v3435 = vpop.f32.mrb[0].mxu0
      %v3436 = vadd.f32 0.0, %v3435
      %v3437 = vpop.f32.mrb[0].mxu0
      %3438 = vmatprep.mubr.bf16.mxu0 0
      %3439 = vmatmul.mubr.bf16.gmra.mrb[0].mxu0 %v3378
      %v3440 = vpop.f32.mrb[0].mxu0
      %v3441 = vadd.f32 0.0, %v3440
      %v3442 = vpop.f32.mrb[0].mxu0
      %v3443 = vpop.f32.mrb[0].mxu0
      %v3444 = vadd.f32 0.0, %v3443
      %v3445 = vpop.f32.mrb[0].mxu0
      %3446 = vmatprep.mubr.bf16.mxu0 0
      %3447 = vmatmul.mubr.bf16.gmra.mrb[0].mxu0 %v3381
      %v3448 = vpop.f32.mrb[0].mxu0
      %v3449 = vadd.f32 0.0, %v3448
      %v3450 = vpop.f32.mrb[0].mxu0
      %v3451 = vpop.f32.mrb[0].mxu0
      %v3452 = vadd.f32 0.0, %v3451
      %v3453 = vpop.f32.mrb[0].mxu0
      %3454 = vmatprep.mubr.bf16.mxu0 0
      %3455 = vmatmul.mubr.bf16.gmra.mrb[0].mxu0 %v3384
      %v3456 = vpop.f32.mrb[0].mxu0
      %v3457 = vadd.f32 0.0, %v3456
      %v3458 = vpop.f32.mrb[0].mxu0
      %v3459 = vpop.f32.mrb[0].mxu0
      %v3460 = vadd.f32 0.0, %v3459
      %v3461 = vpop.f32.mrb[0].mxu0
      %3462 = vmatprep.mubr.bf16.mxu0 0
      %3463 = vmatmul.mubr.bf16.gmra.mrb[0].mxu0 %v3387
      %v3464 = vpop.f32.mrb[0].mxu0
      %v3465 = vadd.f32 0.0, %v3464
      %v3466 = vpop.f32.mrb[0].mxu0
      %v3467 = vpop.f32.mrb[0].mxu0
      %v3468 = vadd.f32 0.0, %v3467
      %v3469 = vpop.f32.mrb[0].mxu0
      %3470 = vmatprep.mubr.bf16.mxu0 0
      %3471 = vmatmul.mubr.bf16.gmra.mrb[0].mxu0 %v3390
      %v3472 = vpop.f32.mrb[0].mxu0
      %v3473 = vadd.f32 0.0, %v3472
      %v3474 = vpop.f32.mrb[0].mxu0
      %v3475 = vpop.f32.mrb[0].mxu0
      %v3476 = vadd.f32 0.0, %v3475
      %v3477 = vpop.f32.mrb[0].mxu0
      %3478 = vmatprep.mubr.bf16.mxu0 0
      %3479 = vmatmul.mubr.bf16.gmra.mrb[0].mxu0 %v3393
      %v3480 = vpop.f32.mrb[0].mxu0
      %v3481 = vadd.f32 0.0, %v3480
      %v3482 = vpop.f32.mrb[0].mxu0
      %v3483 = vpop.f32.mrb[0].mxu0
      %v3484 = vadd.f32 0.0, %v3483
      %v3485 = vpop.f32.mrb[0].mxu0
      %3486 = vmatprep.mubr.bf16.mxu0 0
      %3487 = vmatmul.mubr.bf16.gmra.mrb[0].mxu0 %v3396
      %v3488 = vpop.f32.mrb[0].mxu0
      %v3489 = vadd.f32 0.0, %v3488
      %v3490 = vpop.f32.mrb[0].mxu0
      %v3491 = vpop.f32.mrb[0].mxu0
      %v3492 = vadd.f32 0.0, %v3491
      %v3493 = vpop.f32.mrb[0].mxu0
      %3494 = vdwg.mxu0
      %v3495 = vld [vmem:[%s4] sm:$0xf]
      %v3496 = vld [vmem:[%s4 + $0x4] sm:$0xf]
      %v3497 = vld [vmem:[%s4 + $0x8] sm:$0xf]
      %v3498 = vld [vmem:[%s4 + $0xc] sm:$0xf]
      %v3499 = vld [vmem:[%s4 + $0x10] sm:$0xf]
      %v3500 = vld [vmem:[%s4 + $0x14] sm:$0xf]
      %v3501 = vld [vmem:[%s4 + $0x18] sm:$0xf]
      %v3502 = vld [vmem:[%s4 + $0x1c] sm:$0xf]
      %v3511 = vunpack.c.l.b16 %v3495
      %v3512 = vunpack.c.l.b16 %v3496
      %v3513 = vunpack.c.l.b16 %v3497
      %v3514 = vunpack.c.l.b16 %v3498
      %v3515 = vunpack.c.l.b16 %v3499
      %v3516 = vunpack.c.l.b16 %v3500
      %v3517 = vunpack.c.l.b16 %v3501
      %v3518 = vunpack.c.l.b16 %v3502
      %v3519 = vpack.c.b16 %v3512, %v3511
      %v3520 = vpack.c.b16 %v3514, %v3513
      %v3521 = vpack.c.b16 %v3516, %v3515
      %v3522 = vpack.c.b16 %v3518, %v3517
      %3527 = vmatprep.subr.bf16.mxu0 0
      %3528 = vmatpush1.bf16.msra.mxu0 %v3519
      %3529 = vmatprep.subr.bf16.mxu0 0
      %3530 = vmatpush1.bf16.msra.mxu0 %v3520
      %3531 = vmatprep.subr.bf16.mxu0 0
      %3532 = vmatpush1.bf16.msra.mxu0 %v3521
      %3533 = vmatprep.subr.bf16.mxu0 0
      %3534 = vmatpush1.bf16.msra.mxu0 %v3522
      %3535 = vmatprep.subr.bf16.mxu0 0
      %3536 = vmatpush1.bf16.msra.mxu0 0
      %3537 = vmatprep.subr.bf16.mxu0 0
      %3538 = vmatpush1.bf16.msra.mxu0 0
      %3539 = vmatprep.subr.bf16.mxu0 0
      %3540 = vmatpush1.bf16.msra.mxu0 0
      %3541 = vmatprep.subr.bf16.mxu0 0
      %3542 = vmatpush1.bf16.msra.mxu0 0
      %3543 = vmatprep.subr.bf16.mxu0 0
      %3544 = vmatpush1.bf16.msra.mxu0 0
      %3545 = vmatprep.subr.bf16.mxu0 0
      %3546 = vmatpush1.bf16.msra.mxu0 0
      %3547 = vmatprep.subr.bf16.mxu0 0
      %3548 = vmatpush1.bf16.msra.mxu0 0
      %3549 = vmatprep.subr.bf16.mxu0 0
      %3550 = vmatpush1.bf16.msra.mxu0 0
      %3551 = vmatprep.subr.bf16.mxu0 0
      %3552 = vmatpush1.bf16.msra.mxu0 0
      %3553 = vmatprep.subr.bf16.mxu0 0
      %3554 = vmatpush1.bf16.msra.mxu0 0
      %3555 = vmatprep.subr.bf16.mxu0 0
      %3556 = vmatpush1.bf16.msra.mxu0 0
      %3557 = vmatprep.subr.bf16.mxu0 0
      %3558 = vmatpush1.bf16.msra.mxu0 0
      %3559 = vmatprep.mubr.bf16.mxu0 0
      %3560 = vmatmul.mubr.bf16.gmra.mrb[0].mxu0 %v3375
      %v3561 = vpop.f32.mrb[0].mxu0
      %v3562 = vadd.f32 0.0, %v3561
      %v3563 = vpop.f32.mrb[0].mxu0
      %v3564 = vpop.f32.mrb[0].mxu0
      %v3565 = vadd.f32 0.0, %v3564
      %v3566 = vpop.f32.mrb[0].mxu0
      %3567 = vmatprep.mubr.bf16.mxu0 0
      %3568 = vmatmul.mubr.bf16.gmra.mrb[0].mxu0 %v3378
      %v3569 = vpop.f32.mrb[0].mxu0
      %v3570 = vadd.f32 0.0, %v3569
      %v3571 = vpop.f32.mrb[0].mxu0
      %v3572 = vpop.f32.mrb[0].mxu0
      %v3573 = vadd.f32 0.0, %v3572
      %v3574 = vpop.f32.mrb[0].mxu0
      %3575 = vmatprep.mubr.bf16.mxu0 0
      %3576 = vmatmul.mubr.bf16.gmra.mrb[0].mxu0 %v3381
      %v3577 = vpop.f32.mrb[0].mxu0
      %v3578 = vadd.f32 0.0, %v3577
      %v3579 = vpop.f32.mrb[0].mxu0
      %v3580 = vpop.f32.mrb[0].mxu0
      %v3581 = vadd.f32 0.0, %v3580
      %v3582 = vpop.f32.mrb[0].mxu0
      %3583 = vmatprep.mubr.bf16.mxu0 0
      %3584 = vmatmul.mubr.bf16.gmra.mrb[0].mxu0 %v3384
      %v3585 = vpop.f32.mrb[0].mxu0
      %v3586 = vadd.f32 0.0, %v3585
      %v3587 = vpop.f32.mrb[0].mxu0
      %v3588 = vpop.f32.mrb[0].mxu0
      %v3589 = vadd.f32 0.0, %v3588
      %v3590 = vpop.f32.mrb[0].mxu0
      %3591 = vmatprep.mubr.bf16.mxu0 0
      %3592 = vmatmul.mubr.bf16.gmra.mrb[0].mxu0 %v3387
      %v3593 = vpop.f32.mrb[0].mxu0
      %v3594 = vadd.f32 0.0, %v3593
      %v3595 = vpop.f32.mrb[0].mxu0
      %v3596 = vpop.f32.mrb[0].mxu0
      %v3597 = vadd.f32 0.0, %v3596
      %v3598 = vpop.f32.mrb[0].mxu0
      %3599 = vmatprep.mubr.bf16.mxu0 0
      %3600 = vmatmul.mubr.bf16.gmra.mrb[0].mxu0 %v3390
      %v3601 = vpop.f32.mrb[0].mxu0
      %v3602 = vadd.f32 0.0, %v3601
      %v3603 = vpop.f32.mrb[0].mxu0
      %v3604 = vpop.f32.mrb[0].mxu0
      %v3605 = vadd.f32 0.0, %v3604
      %v3606 = vpop.f32.mrb[0].mxu0
      %3607 = vmatprep.mubr.bf16.mxu0 0
      %3608 = vmatmul.mubr.bf16.gmra.mrb[0].mxu0 %v3393
      %v3609 = vpop.f32.mrb[0].mxu0
      %v3610 = vadd.f32 0.0, %v3609
      %v3611 = vpop.f32.mrb[0].mxu0
      %v3612 = vpop.f32.mrb[0].mxu0
      %v3613 = vadd.f32 0.0, %v3612
      %v3614 = vpop.f32.mrb[0].mxu0
      %3615 = vmatprep.mubr.bf16.mxu0 0
      %3616 = vmatmul.mubr.bf16.gmra.mrb[0].mxu0 %v3396
      %v3617 = vpop.f32.mrb[0].mxu0
      %v3618 = vadd.f32 0.0, %v3617
      %v3619 = vpop.f32.mrb[0].mxu0
      %v3620 = vpop.f32.mrb[0].mxu0
      %v3621 = vadd.f32 0.0, %v3620
      %v3622 = vpop.f32.mrb[0].mxu0
      %3623 = vdwg.mxu0
      %v3624 = vmul.f32 %v3433, %v3562
      %v3625 = vmul.f32 %v3436, %v3565
      %v3626 = vmul.f32 %v3441, %v3570
      %v3627 = vmul.f32 %v3444, %v3573
      %v3628 = vmul.f32 %v3449, %v3578
      %v3629 = vmul.f32 %v3452, %v3581
      %v3630 = vmul.f32 %v3457, %v3586
      %v3631 = vmul.f32 %v3460, %v3589
      %v3632 = vmul.f32 %v3465, %v3594
      %v3633 = vmul.f32 %v3468, %v3597
      %v3634 = vmul.f32 %v3473, %v3602
      %v3635 = vmul.f32 %v3476, %v3605
      %v3636 = vmul.f32 %v3481, %v3610
      %v3637 = vmul.f32 %v3484, %v3613
      %v3638 = vmul.f32 %v3489, %v3618
      %v3639 = vmul.f32 %v3492, %v3621
      %v3640 = vpack.c.bf16 %v3625, %v3624
      %v3641 = vpack.c.bf16 %v3627, %v3626
      %v3642 = vpack.c.bf16 %v3629, %v3628
      %v3643 = vpack.c.bf16 %v3631, %v3630
      %v3644 = vpack.c.bf16 %v3633, %v3632
      %v3645 = vpack.c.bf16 %v3635, %v3634
      %v3646 = vpack.c.bf16 %v3637, %v3636
      %v3647 = vpack.c.bf16 %v3639, %v3638
      %v3648 = vld [vmem:[%s5] sm:$0xf]
      %v3649 = vld [vmem:[%s5 + $0x4] sm:$0xf]
      %v3650 = vld [vmem:[%s5 + $0x8] sm:$0xf]
      %v3651 = vld [vmem:[%s5 + $0xc] sm:$0xf]
      %v3652 = vld [vmem:[%s5 + $0x10] sm:$0xf]
      %v3653 = vld [vmem:[%s5 + $0x14] sm:$0xf]
      %v3654 = vld [vmem:[%s5 + $0x18] sm:$0xf]
      %v3655 = vld [vmem:[%s5 + $0x1c] sm:$0xf]
      %v3656 = vld [vmem:[%s5 + $0x20] sm:$0xf]
      %v3657 = vld [vmem:[%s5 + $0x24] sm:$0xf]
      %v3658 = vld [vmem:[%s5 + $0x28] sm:$0xf]
      %v3659 = vld [vmem:[%s5 + $0x2c] sm:$0xf]
      %v3672 = vunpack.c.l.b16 %v3648
      %v3673 = vunpack.c.l.b16 %v3649
      %v3674 = vunpack.c.l.b16 %v3650
      %v3675 = vunpack.c.l.b16 %v3651
      %v3676 = vunpack.c.l.b16 %v3652
      %v3677 = vunpack.c.l.b16 %v3653
      %v3678 = vunpack.c.l.b16 %v3654
      %v3679 = vunpack.c.l.b16 %v3655
      %v3680 = vunpack.c.l.b16 %v3656
      %v3681 = vunpack.c.l.b16 %v3657
      %v3682 = vunpack.c.l.b16 %v3658
      %v3683 = vunpack.c.l.b16 %v3659
      %v3684 = vpack.c.b16 %v3673, %v3672
      %v3685 = vpack.c.b16 %v3675, %v3674
      %v3686 = vpack.c.b16 %v3677, %v3676
      %v3687 = vpack.c.b16 %v3679, %v3678
      %v3688 = vpack.c.b16 %v3681, %v3680
      %v3689 = vpack.c.b16 %v3683, %v3682
      %vm3696 = vcmask 785408
      %v3698 = vsel %vm3696, %v3640, 0
      %v3701 = vsel %vm3696, %v3641, 0
      %v3704 = vsel %vm3696, %v3642, 0
      %v3707 = vsel %vm3696, %v3643, 0
      %v3710 = vsel %vm3696, %v3644, 0
      %v3713 = vsel %vm3696, %v3645, 0
      %v3716 = vsel %vm3696, %v3646, 0
      %v3719 = vsel %vm3696, %v3647, 0
      %3721 = vmatprep.subr.bf16.mxu0 0
      %3722 = vmatpush1.bf16.msra.mxu0 %v3684
      %3723 = vmatprep.subr.bf16.mxu0 0
      %3724 = vmatpush1.bf16.msra.mxu0 %v3685
      %3725 = vmatprep.subr.bf16.mxu0 0
      %3726 = vmatpush1.bf16.msra.mxu0 %v3686
      %3727 = vmatprep.subr.bf16.mxu0 0
      %3728 = vmatpush1.bf16.msra.mxu0 %v3687
      %3729 = vmatprep.subr.bf16.mxu0 0
      %3730 = vmatpush1.bf16.msra.mxu0 %v3688
      %3731 = vmatprep.subr.bf16.mxu0 0
      %3732 = vmatpush1.bf16.msra.mxu0 %v3689
      %3733 = vmatprep.subr.bf16.mxu0 0
      %3734 = vmatpush1.bf16.msra.mxu0 0
      %3735 = vmatprep.subr.bf16.mxu0 0
      %3736 = vmatpush1.bf16.msra.mxu0 0
      %3737 = vmatprep.subr.bf16.mxu0 0
      %3738 = vmatpush1.bf16.msra.mxu0 0
      %3739 = vmatprep.subr.bf16.mxu0 0
      %3740 = vmatpush1.bf16.msra.mxu0 0
      %3741 = vmatprep.subr.bf16.mxu0 0
      %3742 = vmatpush1.bf16.msra.mxu0 0
      %3743 = vmatprep.subr.bf16.mxu0 0
      %3744 = vmatpush1.bf16.msra.mxu0 0
      %3745 = vmatprep.subr.bf16.mxu0 0
      %3746 = vmatpush1.bf16.msra.mxu0 0
      %3747 = vmatprep.subr.bf16.mxu0 0
      %3748 = vmatpush1.bf16.msra.mxu0 0
      %3749 = vmatprep.subr.bf16.mxu0 0
      %3750 = vmatpush1.bf16.msra.mxu0 0
      %3751 = vmatprep.subr.bf16.mxu0 0
      %3752 = vmatpush1.bf16.msra.mxu0 0
      %3753 = vmatprep.mubr.bf16.mxu0 0
      %3754 = vmatmul.mubr.bf16.gmra.mrb[0].mxu0 %v3698
      %v3755 = vpop.f32.mrb[0].mxu0
      %v3756 = vadd.f32 0.0, %v3755
      %v3757 = vpop.f32.mrb[0].mxu0
      %v3758 = vpop.f32.mrb[0].mxu0
      %v3759 = vadd.f32 0.0, %v3758
      %v3760 = vpop.f32.mrb[0].mxu0
      %3761 = vmatprep.mubr.bf16.mxu0 0
      %3762 = vmatmul.mubr.bf16.gmra.mrb[0].mxu0 %v3701
      %v3763 = vpop.f32.mrb[0].mxu0
      %v3764 = vadd.f32 0.0, %v3763
      %v3765 = vpop.f32.mrb[0].mxu0
      %v3766 = vpop.f32.mrb[0].mxu0
      %v3767 = vadd.f32 0.0, %v3766
      %v3768 = vpop.f32.mrb[0].mxu0
      %3769 = vmatprep.mubr.bf16.mxu0 0
      %3770 = vmatmul.mubr.bf16.gmra.mrb[0].mxu0 %v3704
      %v3771 = vpop.f32.mrb[0].mxu0
      %v3772 = vadd.f32 0.0, %v3771
      %v3773 = vpop.f32.mrb[0].mxu0
      %v3774 = vpop.f32.mrb[0].mxu0
      %v3775 = vadd.f32 0.0, %v3774
      %v3776 = vpop.f32.mrb[0].mxu0
      %3777 = vmatprep.mubr.bf16.mxu0 0
      %3778 = vmatmul.mubr.bf16.gmra.mrb[0].mxu0 %v3707
      %v3779 = vpop.f32.mrb[0].mxu0
      %v3780 = vadd.f32 0.0, %v3779
      %v3781 = vpop.f32.mrb[0].mxu0
      %v3782 = vpop.f32.mrb[0].mxu0
      %v3783 = vadd.f32 0.0, %v3782
      %v3784 = vpop.f32.mrb[0].mxu0
      %3785 = vmatprep.mubr.bf16.mxu0 0
      %3786 = vmatmul.mubr.bf16.gmra.mrb[0].mxu0 %v3710
      %v3787 = vpop.f32.mrb[0].mxu0
      %v3788 = vadd.f32 0.0, %v3787
      %v3789 = vpop.f32.mrb[0].mxu0
      %v3790 = vpop.f32.mrb[0].mxu0
      %v3791 = vadd.f32 0.0, %v3790
      %v3792 = vpop.f32.mrb[0].mxu0
      %3793 = vmatprep.mubr.bf16.mxu0 0
      %3794 = vmatmul.mubr.bf16.gmra.mrb[0].mxu0 %v3713
      %v3795 = vpop.f32.mrb[0].mxu0
      %v3796 = vadd.f32 0.0, %v3795
      %v3797 = vpop.f32.mrb[0].mxu0
      %v3798 = vpop.f32.mrb[0].mxu0
      %v3799 = vadd.f32 0.0, %v3798
      %v3800 = vpop.f32.mrb[0].mxu0
      %3801 = vmatprep.mubr.bf16.mxu0 0
      %3802 = vmatmul.mubr.bf16.gmra.mrb[0].mxu0 %v3716
      %v3803 = vpop.f32.mrb[0].mxu0
      %v3804 = vadd.f32 0.0, %v3803
      %v3805 = vpop.f32.mrb[0].mxu0
      %v3806 = vpop.f32.mrb[0].mxu0
      %v3807 = vadd.f32 0.0, %v3806
      %v3808 = vpop.f32.mrb[0].mxu0
      %3809 = vmatprep.mubr.bf16.mxu0 0
      %3810 = vmatmul.mubr.bf16.gmra.mrb[0].mxu0 %v3719
      %v3811 = vpop.f32.mrb[0].mxu0
      %v3812 = vadd.f32 0.0, %v3811
      %v3813 = vpop.f32.mrb[0].mxu0
      %v3814 = vpop.f32.mrb[0].mxu0
      %v3815 = vadd.f32 0.0, %v3814
      %v3816 = vpop.f32.mrb[0].mxu0
      %3817 = vdwg.mxu0
      %3834 = vrot.lane.b32.xlu0 %v3756, 16
      %v3835 = vpop.permute.xlu0 %3834
      %3836 = vrot.lane.b32.xlu0 %v3759, 16
      %v3837 = vpop.permute.xlu0 %3836
      %3838 = vrot.lane.b32.xlu0 %v3764, 16
      %v3839 = vpop.permute.xlu0 %3838
      %3840 = vrot.lane.b32.xlu0 %v3767, 16
      %v3841 = vpop.permute.xlu0 %3840
      %3842 = vrot.lane.b32.xlu0 %v3772, 16
      %v3843 = vpop.permute.xlu0 %3842
      %3844 = vrot.lane.b32.xlu0 %v3775, 16
      %v3845 = vpop.permute.xlu0 %3844
      %3846 = vrot.lane.b32.xlu0 %v3780, 16
      %v3847 = vpop.permute.xlu0 %3846
      %3848 = vrot.lane.b32.xlu0 %v3783, 16
      %v3849 = vpop.permute.xlu0 %3848
      %3850 = vrot.lane.b32.xlu0 %v3788, 16
      %v3851 = vpop.permute.xlu0 %3850
      %3852 = vrot.lane.b32.xlu0 %v3791, 16
      %v3853 = vpop.permute.xlu0 %3852
      %3854 = vrot.lane.b32.xlu0 %v3796, 16
      %v3855 = vpop.permute.xlu0 %3854
      %3856 = vrot.lane.b32.xlu0 %v3799, 16
      %v3857 = vpop.permute.xlu0 %3856
      %3858 = vrot.lane.b32.xlu0 %v3804, 16
      %v3859 = vpop.permute.xlu0 %3858
      %3860 = vrot.lane.b32.xlu0 %v3807, 16
      %v3861 = vpop.permute.xlu0 %3860
      %3862 = vrot.lane.b32.xlu0 %v3812, 16
      %v3863 = vpop.permute.xlu0 %3862
      %3864 = vrot.lane.b32.xlu0 %v3815, 16
      %v3865 = vpop.permute.xlu0 %3864
      %v3882 = vsel %vm3317, %v848, %v3835
      %v3883 = vsel %vm3317, %v849, %v3837
      %v3884 = vsel %vm3317, %v850, %v3839
      %v3885 = vsel %vm3317, %v851, %v3841
      %v3886 = vsel %vm3317, %v852, %v3843
      %v3887 = vsel %vm3317, %v853, %v3845
      %v3888 = vsel %vm3317, %v854, %v3847
      %v3889 = vsel %vm3317, %v855, %v3849
      %v3890 = vsel %vm3317, %v856, %v3851
      %v3891 = vsel %vm3317, %v857, %v3853
      %v3892 = vsel %vm3317, %v858, %v3855
      %v3893 = vsel %vm3317, %v859, %v3857
      %v3894 = vsel %vm3317, %v860, %v3859
      %v3895 = vsel %vm3317, %v861, %v3861
      %v3896 = vsel %vm3317, %v862, %v3863
      %v3897 = vsel %vm3317, %v863, %v3865
      %v3898 = vld [vmem:[%s10] sm:$0xf]
      %v3899 = vld [vmem:[%s10 + $0x4] sm:$0xf]
      %v3900 = vld [vmem:[%s10 + $0x8] sm:$0x7]
      %v3901 = vld [vmem:[%s11] sm:$0x1]
      %v3902 = vpack.c.bf16 %v3883, %v3882
      %v3903 = vpack.c.bf16 %v3885, %v3884
      %v3904 = vpack.c.bf16 %v3887, %v3886
      %v3905 = vpack.c.bf16 %v3889, %v3888
      %v3906 = vpack.c.bf16 %v3891, %v3890
      %v3907 = vpack.c.bf16 %v3893, %v3892
      %v3908 = vpack.c.bf16 %v3895, %v3894
      %v3909 = vpack.c.bf16 %v3897, %v3896
      %v3911 = vlaneseq
      %v3912 = vshrl.u32 %v3911, 7
      %v3913 = vsub.s32 0, %v3912
      %v3914 = vrot.slane %v3901, %v3913
      %v3919 = vunpack.c.l.b16 %v3898
      %v3920 = vunpack.c.l.b16 %v3899
      %v3921 = vunpack.c.l.b16 %v3900
      %v3922 = vpack.c.b16 %v3920, %v3919
      %v3923 = vpack.c.b16 %v3921, %v3921
      %vm3925 = vcmask 179200
      %v3927 = vsel %vm3925, %v3902, 0
      %v3930 = vsel %vm3925, %v3903, 0
      %v3933 = vsel %vm3925, %v3904, 0
      %v3936 = vsel %vm3925, %v3905, 0
      %v3939 = vsel %vm3925, %v3906, 0
      %v3942 = vsel %vm3925, %v3907, 0
      %v3945 = vsel %vm3925, %v3908, 0
      %v3948 = vsel %vm3925, %v3909, 0
      %vm3950 = vcmask 1042432
      %v3952 = vsel %vm3950, %v3923, 0
      %3954 = vmatprep.subr.bf16.mxu0 0
      %3955 = vmatpush1.bf16.msra.mxu0 %v3922
      %3956 = vmatprep.subr.bf16.mxu0 0
      %3957 = vmatpush1.bf16.msra.mxu0 %v3952
      %3958 = vmatprep.subr.bf16.mxu0 0
      %3959 = vmatpush1.bf16.msra.mxu0 0
      %3960 = vmatprep.subr.bf16.mxu0 0
      %3961 = vmatpush1.bf16.msra.mxu0 0
      %3962 = vmatprep.subr.bf16.mxu0 0
      %3963 = vmatpush1.bf16.msra.mxu0 0
      %3964 = vmatprep.subr.bf16.mxu0 0
      %3965 = vmatpush1.bf16.msra.mxu0 0
      %3966 = vmatprep.subr.bf16.mxu0 0
      %3967 = vmatpush1.bf16.msra.mxu0 0
      %3968 = vmatprep.subr.bf16.mxu0 0
      %3969 = vmatpush1.bf16.msra.mxu0 0
      %3970 = vmatprep.subr.bf16.mxu0 0
      %3971 = vmatpush1.bf16.msra.mxu0 0
      %3972 = vmatprep.subr.bf16.mxu0 0
      %3973 = vmatpush1.bf16.msra.mxu0 0
      %3974 = vmatprep.subr.bf16.mxu0 0
      %3975 = vmatpush1.bf16.msra.mxu0 0
      %3976 = vmatprep.subr.bf16.mxu0 0
      %3977 = vmatpush1.bf16.msra.mxu0 0
      %3978 = vmatprep.subr.bf16.mxu0 0
      %3979 = vmatpush1.bf16.msra.mxu0 0
      %3980 = vmatprep.subr.bf16.mxu0 0
      %3981 = vmatpush1.bf16.msra.mxu0 0
      %3982 = vmatprep.subr.bf16.mxu0 0
      %3983 = vmatpush1.bf16.msra.mxu0 0
      %3984 = vmatprep.subr.bf16.mxu0 0
      %3985 = vmatpush1.bf16.msra.mxu0 0
      %3986 = vmatprep.mubr.bf16.mxu0 0
      %3987 = vmatmul.mubr.bf16.gmra.mrb[0].mxu0 %v3927
      %v3988 = vpop.f32.mrb[0].mxu0
      %v3989 = vadd.f32 %v3914, %v3988
      %v3990 = vpop.f32.mrb[0].mxu0
      %v3991 = vpop.f32.mrb[0].mxu0
      %v3992 = vadd.f32 %v3914, %v3991
      %v3993 = vpop.f32.mrb[0].mxu0
      %3994 = vmatprep.mubr.bf16.mxu0 0
      %3995 = vmatmul.mubr.bf16.gmra.mrb[0].mxu0 %v3930
      %v3996 = vpop.f32.mrb[0].mxu0
      %v3997 = vadd.f32 %v3914, %v3996
      %v3998 = vpop.f32.mrb[0].mxu0
      %v3999 = vpop.f32.mrb[0].mxu0
      %v4000 = vadd.f32 %v3914, %v3999
      %v4001 = vpop.f32.mrb[0].mxu0
      %4002 = vmatprep.mubr.bf16.mxu0 0
      %4003 = vmatmul.mubr.bf16.gmra.mrb[0].mxu0 %v3933
      %v4004 = vpop.f32.mrb[0].mxu0
      %v4005 = vadd.f32 %v3914, %v4004
      %v4006 = vpop.f32.mrb[0].mxu0
      %v4007 = vpop.f32.mrb[0].mxu0
      %v4008 = vadd.f32 %v3914, %v4007
      %v4009 = vpop.f32.mrb[0].mxu0
      %4010 = vmatprep.mubr.bf16.mxu0 0
      %4011 = vmatmul.mubr.bf16.gmra.mrb[0].mxu0 %v3936
      %v4012 = vpop.f32.mrb[0].mxu0
      %v4013 = vadd.f32 %v3914, %v4012
      %v4014 = vpop.f32.mrb[0].mxu0
      %v4015 = vpop.f32.mrb[0].mxu0
      %v4016 = vadd.f32 %v3914, %v4015
      %v4017 = vpop.f32.mrb[0].mxu0
      %4018 = vmatprep.mubr.bf16.mxu0 0
      %4019 = vmatmul.mubr.bf16.gmra.mrb[0].mxu0 %v3939
      %v4020 = vpop.f32.mrb[0].mxu0
      %v4021 = vadd.f32 %v3914, %v4020
      %v4022 = vpop.f32.mrb[0].mxu0
      %v4023 = vpop.f32.mrb[0].mxu0
      %v4024 = vadd.f32 %v3914, %v4023
      %v4025 = vpop.f32.mrb[0].mxu0
      %4026 = vmatprep.mubr.bf16.mxu0 0
      %4027 = vmatmul.mubr.bf16.gmra.mrb[0].mxu0 %v3942
      %v4028 = vpop.f32.mrb[0].mxu0
      %v4029 = vadd.f32 %v3914, %v4028
      %v4030 = vpop.f32.mrb[0].mxu0
      %v4031 = vpop.f32.mrb[0].mxu0
      %v4032 = vadd.f32 %v3914, %v4031
      %v4033 = vpop.f32.mrb[0].mxu0
      %4034 = vmatprep.mubr.bf16.mxu0 0
      %4035 = vmatmul.mubr.bf16.gmra.mrb[0].mxu0 %v3945
      %v4036 = vpop.f32.mrb[0].mxu0
      %v4037 = vadd.f32 %v3914, %v4036
      %v4038 = vpop.f32.mrb[0].mxu0
      %v4039 = vpop.f32.mrb[0].mxu0
      %v4040 = vadd.f32 %v3914, %v4039
      %v4041 = vpop.f32.mrb[0].mxu0
      %4042 = vmatprep.mubr.bf16.mxu0 0
      %4043 = vmatmul.mubr.bf16.gmra.mrb[0].mxu0 %v3948
      %v4044 = vpop.f32.mrb[0].mxu0
      %v4045 = vadd.f32 %v3914, %v4044
      %v4046 = vpop.f32.mrb[0].mxu0
      %v4047 = vpop.f32.mrb[0].mxu0
      %v4048 = vadd.f32 %v3914, %v4047
      %v4049 = vpop.f32.mrb[0].mxu0
      %4050 = vdwg.mxu0
      %v4051 = vmax.f32 %v3989, 0.0
      %v4052 = vmax.f32 %v3992, 0.0
      %v4053 = vmax.f32 %v3997, 0.0
      %v4054 = vmax.f32 %v4000, 0.0
      %v4055 = vmax.f32 %v4005, 0.0
      %v4056 = vmax.f32 %v4008, 0.0
      %v4057 = vmax.f32 %v4013, 0.0
      %v4058 = vmax.f32 %v4016, 0.0
      %v4059 = vmax.f32 %v4021, 0.0
      %v4060 = vmax.f32 %v4024, 0.0
      %v4061 = vmax.f32 %v4029, 0.0
      %v4062 = vmax.f32 %v4032, 0.0
      %v4063 = vmax.f32 %v4037, 0.0
      %v4064 = vmax.f32 %v4040, 0.0
      %v4065 = vmax.f32 %v4045, 0.0
      %v4066 = vmax.f32 %v4048, 0.0
      %v4067 = vld [vmem:[%s12] sm:$0xf]
      %v4068 = vld [vmem:[%s12 + $0x4] sm:$0xf]
      %v4069 = vld [vmem:[%s12 + $0x8] sm:$0xf]
      %v4070 = vld [vmem:[%s12 + $0xc] sm:$0xf]
      %v4071 = vld [vmem:[#allocation2] sm:$0x1]
      %v4072 = vpack.c.bf16 %v4052, %v4051
      %v4073 = vpack.c.bf16 %v4054, %v4053
      %v4074 = vpack.c.bf16 %v4056, %v4055
      %v4075 = vpack.c.bf16 %v4058, %v4057
      %v4076 = vpack.c.bf16 %v4060, %v4059
      %v4077 = vpack.c.bf16 %v4062, %v4061
      %v4078 = vpack.c.bf16 %v4064, %v4063
      %v4079 = vpack.c.bf16 %v4066, %v4065
      %v4081 = vlaneseq
      %v4082 = vshrl.u32 %v4081, 7
      %v4083 = vsub.s32 0, %v4082
      %v4084 = vrot.slane %v4071, %v4083
      %v4090 = vunpack.c.l.b16 %v4067
      %v4091 = vunpack.c.l.b16 %v4068
      %v4092 = vunpack.c.l.b16 %v4069
      %v4093 = vunpack.c.l.b16 %v4070
      %v4094 = vpack.c.b16 %v4091, %v4090
      %v4095 = vpack.c.b16 %v4093, %v4092
      %vm4098 = vcmask 261120
      %v4100 = vsel %vm4098, %v4072, 0
      %v4103 = vsel %vm4098, %v4073, 0
      %v4106 = vsel %vm4098, %v4074, 0
      %v4109 = vsel %vm4098, %v4075, 0
      %v4112 = vsel %vm4098, %v4076, 0
      %v4115 = vsel %vm4098, %v4077, 0
      %v4118 = vsel %vm4098, %v4078, 0
      %v4121 = vsel %vm4098, %v4079, 0
      %4123 = vmatprep.subr.bf16.mxu0 0
      %4124 = vmatpush1.bf16.msra.mxu0 %v4094
      %4125 = vmatprep.subr.bf16.mxu0 0
      %4126 = vmatpush1.bf16.msra.mxu0 %v4095
      %4127 = vmatprep.subr.bf16.mxu0 0
      %4128 = vmatpush1.bf16.msra.mxu0 0
      %4129 = vmatprep.subr.bf16.mxu0 0
      %4130 = vmatpush1.bf16.msra.mxu0 0
      %4131 = vmatprep.subr.bf16.mxu0 0
      %4132 = vmatpush1.bf16.msra.mxu0 0
      %4133 = vmatprep.subr.bf16.mxu0 0
      %4134 = vmatpush1.bf16.msra.mxu0 0
      %4135 = vmatprep.subr.bf16.mxu0 0
      %4136 = vmatpush1.bf16.msra.mxu0 0
      %4137 = vmatprep.subr.bf16.mxu0 0
      %4138 = vmatpush1.bf16.msra.mxu0 0
      %4139 = vmatprep.subr.bf16.mxu0 0
      %4140 = vmatpush1.bf16.msra.mxu0 0
      %4141 = vmatprep.subr.bf16.mxu0 0
      %4142 = vmatpush1.bf16.msra.mxu0 0
      %4143 = vmatprep.subr.bf16.mxu0 0
      %4144 = vmatpush1.bf16.msra.mxu0 0
      %4145 = vmatprep.subr.bf16.mxu0 0
      %4146 = vmatpush1.bf16.msra.mxu0 0
      %4147 = vmatprep.subr.bf16.mxu0 0
      %4148 = vmatpush1.bf16.msra.mxu0 0
      %4149 = vmatprep.subr.bf16.mxu0 0
      %4150 = vmatpush1.bf16.msra.mxu0 0
      %4151 = vmatprep.subr.bf16.mxu0 0
      %4152 = vmatpush1.bf16.msra.mxu0 0
      %4153 = vmatprep.subr.bf16.mxu0 0
      %4154 = vmatpush1.bf16.msra.mxu0 0
      %4155 = vmatprep.mubr.bf16.mxu0 0
      %4156 = vmatmul.mubr.bf16.gmra.mrb[0].mxu0 %v4100
      %v4157 = vpop.f32.mrb[0].mxu0
      %v4158 = vadd.f32 %v4084, %v4157
      %v4159 = vpop.f32.mrb[0].mxu0
      %v4160 = vpop.f32.mrb[0].mxu0
      %v4161 = vadd.f32 %v4084, %v4160
      %v4162 = vpop.f32.mrb[0].mxu0
      %4163 = vmatprep.mubr.bf16.mxu0 0
      %4164 = vmatmul.mubr.bf16.gmra.mrb[0].mxu0 %v4103
      %v4165 = vpop.f32.mrb[0].mxu0
      %v4166 = vadd.f32 %v4084, %v4165
      %v4167 = vpop.f32.mrb[0].mxu0
      %v4168 = vpop.f32.mrb[0].mxu0
      %v4169 = vadd.f32 %v4084, %v4168
      %v4170 = vpop.f32.mrb[0].mxu0
      %4171 = vmatprep.mubr.bf16.mxu0 0
      %4172 = vmatmul.mubr.bf16.gmra.mrb[0].mxu0 %v4106
      %v4173 = vpop.f32.mrb[0].mxu0
      %v4174 = vadd.f32 %v4084, %v4173
      %v4175 = vpop.f32.mrb[0].mxu0
      %v4176 = vpop.f32.mrb[0].mxu0
      %v4177 = vadd.f32 %v4084, %v4176
      %v4178 = vpop.f32.mrb[0].mxu0
      %4179 = vmatprep.mubr.bf16.mxu0 0
      %4180 = vmatmul.mubr.bf16.gmra.mrb[0].mxu0 %v4109
      %v4181 = vpop.f32.mrb[0].mxu0
      %v4182 = vadd.f32 %v4084, %v4181
      %v4183 = vpop.f32.mrb[0].mxu0
      %v4184 = vpop.f32.mrb[0].mxu0
      %v4185 = vadd.f32 %v4084, %v4184
      %v4186 = vpop.f32.mrb[0].mxu0
      %4187 = vmatprep.mubr.bf16.mxu0 0
      %4188 = vmatmul.mubr.bf16.gmra.mrb[0].mxu0 %v4112
      %v4189 = vpop.f32.mrb[0].mxu0
      %v4190 = vadd.f32 %v4084, %v4189
      %v4191 = vpop.f32.mrb[0].mxu0
      %v4192 = vpop.f32.mrb[0].mxu0
      %v4193 = vadd.f32 %v4084, %v4192
      %v4194 = vpop.f32.mrb[0].mxu0
      %4195 = vmatprep.mubr.bf16.mxu0 0
      %4196 = vmatmul.mubr.bf16.gmra.mrb[0].mxu0 %v4115
      %v4197 = vpop.f32.mrb[0].mxu0
      %v4198 = vadd.f32 %v4084, %v4197
      %v4199 = vpop.f32.mrb[0].mxu0
      %v4200 = vpop.f32.mrb[0].mxu0
      %v4201 = vadd.f32 %v4084, %v4200
      %v4202 = vpop.f32.mrb[0].mxu0
      %4203 = vmatprep.mubr.bf16.mxu0 0
      %4204 = vmatmul.mubr.bf16.gmra.mrb[0].mxu0 %v4118
      %v4205 = vpop.f32.mrb[0].mxu0
      %v4206 = vadd.f32 %v4084, %v4205
      %v4207 = vpop.f32.mrb[0].mxu0
      %v4208 = vpop.f32.mrb[0].mxu0
      %v4209 = vadd.f32 %v4084, %v4208
      %v4210 = vpop.f32.mrb[0].mxu0
      %4211 = vmatprep.mubr.bf16.mxu0 0
      %4212 = vmatmul.mubr.bf16.gmra.mrb[0].mxu0 %v4121
      %v4213 = vpop.f32.mrb[0].mxu0
      %v4214 = vadd.f32 %v4084, %v4213
      %v4215 = vpop.f32.mrb[0].mxu0
      %v4216 = vpop.f32.mrb[0].mxu0
      %v4217 = vadd.f32 %v4084, %v4216
      %v4218 = vpop.f32.mrb[0].mxu0
      %4219 = vdwg.mxu0
      %v4220 = vxor.u32 %v4158, 2147483648
      %v4221 = vxor.u32 %v4161, 2147483648
      %v4222 = vxor.u32 %v4166, 2147483648
      %v4223 = vxor.u32 %v4169, 2147483648
      %v4224 = vxor.u32 %v4174, 2147483648
      %v4225 = vxor.u32 %v4177, 2147483648
      %v4226 = vxor.u32 %v4182, 2147483648
      %v4227 = vxor.u32 %v4185, 2147483648
      %v4228 = vxor.u32 %v4190, 2147483648
      %v4229 = vxor.u32 %v4193, 2147483648
      %v4230 = vxor.u32 %v4198, 2147483648
      %v4231 = vxor.u32 %v4201, 2147483648
      %v4232 = vxor.u32 %v4206, 2147483648
      %v4233 = vxor.u32 %v4209, 2147483648
      %v4234 = vxor.u32 %v4214, 2147483648
      %v4235 = vxor.u32 %v4217, 2147483648
      %v4236 = vmul.f32 %v4220, 1.442695
      %v4237 = vpow.pop %v4236
      %v4238 = vmul.f32 %v4221, 1.442695
      %v4239 = vpow.pop %v4238
      %v4240 = vmul.f32 %v4222, 1.442695
      %v4241 = vpow.pop %v4240
      %v4242 = vmul.f32 %v4223, 1.442695
      %v4243 = vpow.pop %v4242
      %v4244 = vmul.f32 %v4224, 1.442695
      %v4245 = vpow.pop %v4244
      %v4246 = vmul.f32 %v4225, 1.442695
      %v4247 = vpow.pop %v4246
      %v4248 = vmul.f32 %v4226, 1.442695
      %v4249 = vpow.pop %v4248
      %v4250 = vmul.f32 %v4227, 1.442695
      %v4251 = vpow.pop %v4250
      %v4252 = vmul.f32 %v4228, 1.442695
      %v4253 = vpow.pop %v4252
      %v4254 = vmul.f32 %v4229, 1.442695
      %v4255 = vpow.pop %v4254
      %v4256 = vmul.f32 %v4230, 1.442695
      %v4257 = vpow.pop %v4256
      %v4258 = vmul.f32 %v4231, 1.442695
      %v4259 = vpow.pop %v4258
      %v4260 = vmul.f32 %v4232, 1.442695
      %v4261 = vpow.pop %v4260
      %v4262 = vmul.f32 %v4233, 1.442695
      %v4263 = vpow.pop %v4262
      %v4264 = vmul.f32 %v4234, 1.442695
      %v4265 = vpow.pop %v4264
      %v4266 = vmul.f32 %v4235, 1.442695
      %v4267 = vpow.pop %v4266
      %v4268 = vadd.f32 %v4237, 1.0
      %v4269 = vadd.f32 %v4239, 1.0
      %v4270 = vadd.f32 %v4241, 1.0
      %v4271 = vadd.f32 %v4243, 1.0
      %v4272 = vadd.f32 %v4245, 1.0
      %v4273 = vadd.f32 %v4247, 1.0
      %v4274 = vadd.f32 %v4249, 1.0
      %v4275 = vadd.f32 %v4251, 1.0
      %v4276 = vadd.f32 %v4253, 1.0
      %v4277 = vadd.f32 %v4255, 1.0
      %v4278 = vadd.f32 %v4257, 1.0
      %v4279 = vadd.f32 %v4259, 1.0
      %v4280 = vadd.f32 %v4261, 1.0
      %v4281 = vadd.f32 %v4263, 1.0
      %v4282 = vadd.f32 %v4265, 1.0
      %v4283 = vadd.f32 %v4267, 1.0
      %v4284 = vrcp.pop %v4268
      %v4285 = vmul.f32 1.0, %v4284
      %v4286 = vrcp.pop %v4269
      %v4287 = vmul.f32 1.0, %v4286
      %v4288 = vrcp.pop %v4270
      %v4289 = vmul.f32 1.0, %v4288
      %v4290 = vrcp.pop %v4271
      %v4291 = vmul.f32 1.0, %v4290
      %v4292 = vrcp.pop %v4272
      %v4293 = vmul.f32 1.0, %v4292
      %v4294 = vrcp.pop %v4273
      %v4295 = vmul.f32 1.0, %v4294
      %v4296 = vrcp.pop %v4274
      %v4297 = vmul.f32 1.0, %v4296
      %v4298 = vrcp.pop %v4275
      %v4299 = vmul.f32 1.0, %v4298
      %v4300 = vrcp.pop %v4276
      %v4301 = vmul.f32 1.0, %v4300
      %v4302 = vrcp.pop %v4277
      %v4303 = vmul.f32 1.0, %v4302
      %v4304 = vrcp.pop %v4278
      %v4305 = vmul.f32 1.0, %v4304
      %v4306 = vrcp.pop %v4279
      %v4307 = vmul.f32 1.0, %v4306
      %v4308 = vrcp.pop %v4280
      %v4309 = vmul.f32 1.0, %v4308
      %v4310 = vrcp.pop %v4281
      %v4311 = vmul.f32 1.0, %v4310
      %v4312 = vrcp.pop %v4282
      %v4313 = vmul.f32 1.0, %v4312
      %v4314 = vrcp.pop %v4283
      %v4315 = vmul.f32 1.0, %v4314
      %vm4316 = vcmask 7168
      %4317 = vst.msk [vmem:[%s493] sm:$0xff] %vm4316, %v4285
      %4318 = vst.msk [vmem:[%s493 + $0x8] sm:$0xff] %vm4316, %v4287
      %4319 = vst.msk [vmem:[%s493 + $0x10] sm:$0xff] %vm4316, %v4289
      %4320 = vst.msk [vmem:[%s493 + $0x18] sm:$0xff] %vm4316, %v4291
      %4321 = vst.msk [vmem:[%s493 + $0x20] sm:$0xff] %vm4316, %v4293
      %4322 = vst.msk [vmem:[%s493 + $0x28] sm:$0xff] %vm4316, %v4295
      %4323 = vst.msk [vmem:[%s493 + $0x30] sm:$0xff] %vm4316, %v4297
      %4324 = vst.msk [vmem:[%s493 + $0x38] sm:$0xff] %vm4316, %v4299
      %4325 = vst.msk [vmem:[%s493 + $0x40] sm:$0xff] %vm4316, %v4301
      %4326 = vst.msk [vmem:[%s493 + $0x48] sm:$0xff] %vm4316, %v4303
      %4327 = vst.msk [vmem:[%s493 + $0x50] sm:$0xff] %vm4316, %v4305
      %4328 = vst.msk [vmem:[%s493 + $0x58] sm:$0xff] %vm4316, %v4307
      %4329 = vst.msk [vmem:[%s493 + $0x60] sm:$0xff] %vm4316, %v4309
      %4330 = vst.msk [vmem:[%s493 + $0x68] sm:$0xff] %vm4316, %v4311
      %4331 = vst.msk [vmem:[%s493 + $0x70] sm:$0xff] %vm4316, %v4313
      %4332 = vst.msk [vmem:[%s493 + $0x78] sm:$0xff] %vm4316, %v4315
      %s4333 = smul.u32 16, %s27
      %p4334 = scmp.lt.s32.totalorder %s4333, 31
      %s4335 = scalar_select %p4334, %s4333, 31
      %s4336 = smul.addr %s4335, 8
      %s4337 = scalar_lea.vmem %s14, %s4336
      // Predicated region
      $region77: #{tpu_custom_call.1} parent=75 // pred_check
        %p4338 = pneg %p349
      $region78: #{tpu_custom_call.1} parent=75 // pred_check_branch
        %4340 = sbr.rel (%p4338) target = $region80
      $region79: #{tpu_custom_call.1} parent=75 // pred_region
        %s4341 = smul.u32 16, %s27
      $region80: #{tpu_custom_call.1} parent=75 // pred_fallthru
        _
    $region76: #{tpu_custom_call.1} parent=5 // pred_fallthru
      _
    %p4342 = scmp.le.s32.totalorder 2, %s22
    // Predicated region
    $region81: #{tpu_custom_call.1} parent=5 // pred_check
      %p4343 = pneg %p4342
    $region82: #{tpu_custom_call.1} parent=5 // pred_check_branch
      %4345 = sbr.rel (%p4343) target = $region84
    $region83: #{tpu_custom_call.1} parent=5 // pred_region
      %s4346 = ssub.s32 %s22, 2
      // Predicated region
      $region85: #{tpu_custom_call.1} parent=83 // pred_check
        %p4347 = pneg %p355
      $region86: #{tpu_custom_call.1} parent=83 // pred_check_branch
        %4349 = sbr.rel (%p4347) target = $region88
      $region87: #{tpu_custom_call.1} parent=83 // pred_region
        %s4350 = smul.u32 16, %s28
        %p4351 = scmp.lt.s32.totalorder %s4350, 31
        %s4352 = scalar_select %p4351, %s4350, 31
        %s4353 = smul.addr %s4352, 8
        %s4354 = scalar_lea.vmem %s14, %s4353
      $region88: #{tpu_custom_call.1} parent=83 // pred_fallthru
        _
    $region84: #{tpu_custom_call.1} parent=5 // pred_fallthru
      _
  $region6: #{tpu_custom_call.1} parent=0 // loop_footer
    %s26 = sadd.s32 1, %s22
  $region7: #{tpu_custom_call.1} parent=0 // loop_footer_branch
    %21 = sbr.rel target = $region3
  $region8: #{tpu_custom_call.1} parent=0 // loop_exit
    _

</llo_original>
